<compile_context>
chip_gen: v7x
topology: tpu7x:2x2x1
jax: 0.10.0
libtpu: 0.0.40
codegen_flags: <defaults>
</compile_context>

<pallas_src>
import functools

import jax
import jax.numpy as jnp
import numpy as np
from jax.experimental import pallas as pl
from jax.experimental.pallas import tpu as pltpu


# ----------------------------------------------------------------------------
# Fused Pallas kernel: conv1+ReLU+pool -> conv2+ReLU+pool -> flatten -> Linear
# ----------------------------------------------------------------------------
def _fused_forward_kernel(x_ref, t1_ref, a1e_ref, a1o_ref, b1_ref, r1e_ref, r1o_ref,
                          t2_ref, a2e_ref, a2o_ref, b2_ref, r2e_ref, r2o_ref,
                          g_ref, s2_ref, bf_ref, o_ref):
    f32 = jnp.float32
    bf16 = jnp.bfloat16

    def conv_relu_wpool(xin, t_ref, ae_ref, ao_ref, b_ref):
        # xin: (rows, lanes_in) bf16, rows = (image, spatial row), lanes = (col, chan)
        m = xin.shape[0]
        n = ae_ref.shape[-1]
        ye = jnp.zeros((m, n), f32)   # even output columns
        yo = jnp.zeros((m, n), f32)   # odd  output columns
        for kh in range(3):           # static unroll over the 3 kernel rows
            # row-shifted (and H-zero-padded) view of the input via a 0/1 shift matrix
            xs = jnp.dot(t_ref[kh], xin, preferred_element_type=f32).astype(bf16)
            ye = ye + jnp.dot(xs, ae_ref[kh], preferred_element_type=f32)
            yo = yo + jnp.dot(xs, ao_ref[kh], preferred_element_type=f32)
        b = b_ref[...]                # (1, n) f32, channel bias tiled over columns
        ye = jnp.maximum(ye + b, 0.0)
        yo = jnp.maximum(yo + b, 0.0)
        # max over the 2-wide W pool window (even vs odd output column)
        return jnp.maximum(ye, yo).astype(bf16)

    def hpool(y, re_ref, ro_ref):
        # max over the 2-tall H pool window via two 0/1 row-selection matmuls
        return jnp.maximum(
            jnp.dot(re_ref[...], y, preferred_element_type=f32),
            jnp.dot(ro_ref[...], y, preferred_element_type=f32)).astype(bf16)

    x = x_ref[...]                                                     # (BT*32, 96)
    h1 = hpool(conv_relu_wpool(x, t1_ref, a1e_ref, a1o_ref, b1_ref),
               r1e_ref, r1o_ref)                                       # (BT*16, 256)
    h2 = hpool(conv_relu_wpool(h1, t2_ref, a2e_ref, a2o_ref, b2_ref),
               r2e_ref, r2o_ref)                                       # (BT*8, 256)

    # FC: out[b, :] = sum_i2 h2[b*8 + i2, :] @ G[i2]   (NCHW flatten folded into G)
    bt = s2_ref.shape[1]
    n_pad = g_ref.shape[-1]
    acc = jnp.zeros((bt, n_pad), f32)
    for i2 in range(g_ref.shape[0]):
        rows = jnp.dot(s2_ref[i2], h2, preferred_element_type=f32).astype(bf16)
        acc = acc + jnp.dot(rows, g_ref[i2], preferred_element_type=f32)
    o_ref[...] = acc + bf_ref[...]


# ----------------------------------------------------------------------------
# One-time parameter preparation (numpy, outside jit)
# ----------------------------------------------------------------------------
def _band_matrices(conv_w, w_in):
    """Conv(3x3, pad 1) as banded weight matrices over a (col, chan)-merged lane dim.

    conv_w: (Cout, Cin, 3, 3).  Returns (A_even, A_odd), each (3, w_in*Cin, (w_in//2)*Cout)
    with A_par[kh][(wi, ci), (j, co)] = conv_w[co, ci, kh, wi - (2j+par) + 1].
    """
    cout, cin, _, _ = conv_w.shape
    w_half = w_in // 2
    A = np.zeros((2, 3, w_in * cin, w_half * cout), np.float32)
    for par in range(2):
        for kh in range(3):
            for j in range(w_half):
                wo = 2 * j + par
                for kw in range(3):
                    wi = wo + kw - 1
                    if 0 <= wi < w_in:
                        A[par, kh, wi * cin:(wi + 1) * cin,
                          j * cout:(j + 1) * cout] = conv_w[:, :, kh, kw].T
    return A[0], A[1]


def _shift_matrices(bt, rows):
    """T[kh][(b, r), (b, r + kh - 1)] = 1 (zero row outside the image): conv row taps."""
    T = np.zeros((3, bt * rows, bt * rows), np.float32)
    for kh in range(3):
        d = kh - 1
        for b in range(bt):
            for r in range(rows):
                rs = r + d
                if 0 <= rs < rows:
                    T[kh, b * rows + r, b * rows + rs] = 1.0
    return T


def _pool_rows(bt, rows_in, parity):
    """R[(b, i), (b, 2i + parity)] = 1 : row selection for the 2-tall max pool."""
    rows_out = rows_in // 2
    R = np.zeros((bt * rows_out, bt * rows_in), np.float32)
    for b in range(bt):
        for i in range(rows_out):
            R[b * rows_out + i, b * rows_in + 2 * i + parity] = 1.0
    return R


def _fc_matrices(fc_w, fc_b, h2, w2, c2, n_pad):
    """Fold torch's NCHW flatten into the FC weight; pad outputs 100 -> n_pad lanes."""
    n = fc_w.shape[0]
    G = np.zeros((h2, w2 * c2, n_pad), np.float32)
    for i in range(h2):
        for j in range(w2):
            for c in range(c2):
                G[i, j * c2 + c, :n] = fc_w[:, c * h2 * w2 + i * w2 + j]
    b = np.zeros((1, n_pad), np.float32)
    b[0, :n] = fc_b
    return G, b


def _fc_row_select(bt, h2):
    """S[i2][b, b*h2 + i2] = 1 : picks spatial row i2 of every image for the FC."""
    S = np.zeros((h2, bt, bt * h2), np.float32)
    for i in range(h2):
        for b in range(bt):
            S[i, b, b * h2 + i] = 1.0
    return S


def prepare_params(params, bt):
    w1 = np.asarray(params["conv1_w"], np.float32)   # (16, 3, 3, 3)
    b1 = np.asarray(params["conv1_b"], np.float32)
    w2 = np.asarray(params["conv2_w"], np.float32)   # (32, 16, 3, 3)
    b2 = np.asarray(params["conv2_b"], np.float32)
    fw = np.asarray(params["fc_w"], np.float32)      # (100, 2048)
    fb = np.asarray(params["fc_b"], np.float32)

    a1e, a1o = _band_matrices(w1, w_in=32)           # (3, 96, 256) each
    a2e, a2o = _band_matrices(w2, w_in=16)           # (3, 256, 256) each
    g, bf_pad = _fc_matrices(fw, fb, h2=8, w2=8, c2=32, n_pad=128)

    as_bf16 = lambda a: jnp.asarray(a, jnp.bfloat16)
    as_f32 = lambda a: jnp.asarray(a, jnp.float32)
    return {
        "t1": as_bf16(_shift_matrices(bt, 32)),
        "a1e": as_bf16(a1e), "a1o": as_bf16(a1o),
        "b1": as_f32(np.tile(b1, 16)[None, :]),
        "r1e": as_bf16(_pool_rows(bt, 32, 0)), "r1o": as_bf16(_pool_rows(bt, 32, 1)),
        "t2": as_bf16(_shift_matrices(bt, 16)),
        "a2e": as_bf16(a2e), "a2o": as_bf16(a2o),
        "b2": as_f32(np.tile(b2, 8)[None, :]),
        "r2e": as_bf16(_pool_rows(bt, 16, 0)), "r2o": as_bf16(_pool_rows(bt, 16, 1)),
        "g": as_bf16(g), "s2": as_bf16(_fc_row_select(bt, 8)),
        "bf": as_f32(bf_pad),
    }


# ----------------------------------------------------------------------------
# Forward wrapper
# ----------------------------------------------------------------------------
def ae_classifier_forward(x_nchw, prep, *, bt):
    B, C, H, W = x_nchw.shape
    assert (C, H, W) == (3, 32, 32), "Linear(2048, 100) forces 3x32x32 inputs"
    assert B % bt == 0
    n_steps = B // bt
    n_pad = prep["g"].shape[-1]

    # NCHW -> rows = (image, row), lanes = (col, chan): one cheap relayout of raw input.
    x2d = jnp.transpose(x_nchw, (0, 2, 3, 1)).reshape(B * H, W * C).astype(jnp.bfloat16)

    def const_spec(arr):
        nd = arr.ndim
        return pl.BlockSpec(arr.shape, lambda i, _nd=nd: (0,) * _nd)

    p = prep
    out = pl.pallas_call(
        _fused_forward_kernel,
        out_shape=jax.ShapeDtypeStruct((n_steps, bt, n_pad), jnp.float32),
        grid=(n_steps,),
        in_specs=[
            pl.BlockSpec((bt * 32, 96), lambda i: (i, 0)),
            const_spec(p["t1"]), const_spec(p["a1e"]), const_spec(p["a1o"]),
            const_spec(p["b1"]), const_spec(p["r1e"]), const_spec(p["r1o"]),
            const_spec(p["t2"]), const_spec(p["a2e"]), const_spec(p["a2o"]),
            const_spec(p["b2"]), const_spec(p["r2e"]), const_spec(p["r2o"]),
            const_spec(p["g"]), const_spec(p["s2"]), const_spec(p["bf"]),
        ],
        out_specs=pl.BlockSpec((None, bt, n_pad), lambda i: (i, 0, 0)),
        compiler_params=pltpu.CompilerParams(
            dimension_semantics=("parallel",),
            vmem_limit_bytes=32 * 1024 * 1024,
        ),
    )(x2d,
      p["t1"], p["a1e"], p["a1o"], p["b1"], p["r1e"], p["r1o"],
      p["t2"], p["a2e"], p["a2o"], p["b2"], p["r2e"], p["r2o"],
      p["g"], p["s2"], p["bf"])

    return out.reshape(B, n_pad)[:, :100]


# ----------------------------------------------------------------------------
# Pure-JAX reference (numerical verification)
# ----------------------------------------------------------------------------
def reference_forward(x_nchw, params):
    def conv(x, w, b):
        y = jax.lax.conv_general_dilated(
            x, w, (1, 1), ((1, 1), (1, 1)),
            dimension_numbers=("NCHW", "OIHW", "NCHW"))
        return y + b[None, :, None, None]

    def pool(x):
        return jax.lax.reduce_window(
            x, -jnp.inf, jax.lax.max, (1, 1, 2, 2), (1, 1, 2, 2), "VALID")

    h = pool(jax.nn.relu(conv(x_nchw, params["conv1_w"], params["conv1_b"])))
    h = pool(jax.nn.relu(conv(h, params["conv2_w"], params["conv2_b"])))
    flat = h.reshape(h.shape[0], -1)
    return flat @ params["fc_w"].T + params["fc_b"]


# ----------------------------------------------------------------------------
if __name__ == "__main__":
    key = jax.random.PRNGKey(0)
    k = jax.random.split(key, 7)
    params = {
        "conv1_w": 0.10 * jax.random.normal(k[0], (16, 3, 3, 3), jnp.float32),
        "conv1_b": 0.10 * jax.random.normal(k[1], (16,), jnp.float32),
        "conv2_w": 0.05 * jax.random.normal(k[2], (32, 16, 3, 3), jnp.float32),
        "conv2_b": 0.05 * jax.random.normal(k[3], (32,), jnp.float32),
        "fc_w":    0.02 * jax.random.normal(k[4], (100, 2048), jnp.float32),
        "fc_b":    0.02 * jax.random.normal(k[5], (100,), jnp.float32),
    }
    BT = 4                                   # images per grid step (2 parallel steps)
    # Linear(2048, 100) after two 2x downsamples of a 32-channel map forces 32x32 input.
    x = jax.random.normal(k[6], (8, 3, 32, 32), jnp.float32)

    prep = prepare_params(params, BT)        # one-time parameter prep, outside jit
    fwd = jax.jit(functools.partial(ae_classifier_forward, bt=BT))
    out = jax.block_until_ready(fwd(x, prep))
    assert out.shape == (8, 100), out.shape

    ref = jax.block_until_ready(reference_forward(x, params))
    max_err = float(jnp.max(jnp.abs(out - ref)))
    assert jnp.allclose(out, ref, rtol=5e-2, atol=5e-2), max_err

    print("KERNEL_OK")
</pallas_src>

<mosaic_0001>
module attributes {stable_mosaic.version = 11 : i64} {
  func.func @_fused_forward_kernel(%arg0: i32, %arg1: memref<128x96xbf16, #tpu.memory_space<vmem>>, %arg2: memref<3x128x128xbf16, #tpu.memory_space<vmem>>, %arg3: memref<3x96x256xbf16, #tpu.memory_space<vmem>>, %arg4: memref<3x96x256xbf16, #tpu.memory_space<vmem>>, %arg5: memref<1x256xf32, #tpu.memory_space<vmem>>, %arg6: memref<64x128xbf16, #tpu.memory_space<vmem>>, %arg7: memref<64x128xbf16, #tpu.memory_space<vmem>>, %arg8: memref<3x64x64xbf16, #tpu.memory_space<vmem>>, %arg9: memref<3x256x256xbf16, #tpu.memory_space<vmem>>, %arg10: memref<3x256x256xbf16, #tpu.memory_space<vmem>>, %arg11: memref<1x256xf32, #tpu.memory_space<vmem>>, %arg12: memref<32x64xbf16, #tpu.memory_space<vmem>>, %arg13: memref<32x64xbf16, #tpu.memory_space<vmem>>, %arg14: memref<8x256x128xbf16, #tpu.memory_space<vmem>>, %arg15: memref<8x4x32xbf16, #tpu.memory_space<vmem>>, %arg16: memref<1x128xf32, #tpu.memory_space<vmem>>, %arg17: memref<1x4x128xf32, #tpu.memory_space<vmem>>) attributes {dimension_semantics = [#tpu.dimension_semantics<parallel>], iteration_bounds = array<i64: 2>, scalar_prefetch = 0 : i64, scratch_operands = 0 : i64, tpu.core_type = #tpu.core_type<tc>, window_params = [{transform_indices = @transform_0, window_bounds = array<i64: 128, 96>}, {pipeline_mode = #tpu.pipeline_mode<synchronous>, transform_indices = @transform_1, window_bounds = array<i64: 3, 128, 128>}, {pipeline_mode = #tpu.pipeline_mode<synchronous>, transform_indices = @transform_2, window_bounds = array<i64: 3, 96, 256>}, {pipeline_mode = #tpu.pipeline_mode<synchronous>, transform_indices = @transform_3, window_bounds = array<i64: 3, 96, 256>}, {pipeline_mode = #tpu.pipeline_mode<synchronous>, transform_indices = @transform_4, window_bounds = array<i64: 1, 256>}, {pipeline_mode = #tpu.pipeline_mode<synchronous>, transform_indices = @transform_5, window_bounds = array<i64: 64, 128>}, {pipeline_mode = #tpu.pipeline_mode<synchronous>, transform_indices = @transform_6, window_bounds = array<i64: 64, 128>}, {pipeline_mode = #tpu.pipeline_mode<synchronous>, transform_indices = @transform_7, window_bounds = array<i64: 3, 64, 64>}, {pipeline_mode = #tpu.pipeline_mode<synchronous>, transform_indices = @transform_8, window_bounds = array<i64: 3, 256, 256>}, {pipeline_mode = #tpu.pipeline_mode<synchronous>, transform_indices = @transform_9, window_bounds = array<i64: 3, 256, 256>}, {pipeline_mode = #tpu.pipeline_mode<synchronous>, transform_indices = @transform_10, window_bounds = array<i64: 1, 256>}, {pipeline_mode = #tpu.pipeline_mode<synchronous>, transform_indices = @transform_11, window_bounds = array<i64: 32, 64>}, {pipeline_mode = #tpu.pipeline_mode<synchronous>, transform_indices = @transform_12, window_bounds = array<i64: 32, 64>}, {pipeline_mode = #tpu.pipeline_mode<synchronous>, transform_indices = @transform_13, window_bounds = array<i64: 8, 256, 128>}, {pipeline_mode = #tpu.pipeline_mode<synchronous>, transform_indices = @transform_14, window_bounds = array<i64: 8, 4, 32>}, {pipeline_mode = #tpu.pipeline_mode<synchronous>, transform_indices = @transform_15, window_bounds = array<i64: 1, 128>}, {transform_indices = @transform_16, window_bounds = array<i64: 1, 4, 128>}]} {
    %c0 = arith.constant 0 : index
    %c0_0 = arith.constant 0 : index
    %0 = vector.load %arg1[%c0, %c0_0] : memref<128x96xbf16, #tpu.memory_space<vmem>>, vector<128x96xbf16>
    %cst = arith.constant 0.000000e+00 : f32
    %1 = vector.broadcast %cst : f32 to vector<128x256xf32>
    %cst_1 = arith.constant 0.000000e+00 : f32
    %2 = vector.broadcast %cst_1 : f32 to vector<128x256xf32>
    %c0_2 = arith.constant 0 : index
    %c0_3 = arith.constant 0 : index
    %c0_4 = arith.constant 0 : index
    %3 = vector.load %arg2[%c0_2, %c0_3, %c0_4] : memref<3x128x128xbf16, #tpu.memory_space<vmem>>, vector<1x128x128xbf16>
    %4 = vector.shape_cast %3 : vector<1x128x128xbf16> to vector<128x128xbf16>
    %cst_5 = arith.constant dense<0.000000e+00> : vector<128x96xf32>
    %5 = tpu.matmul %4, %0, %cst_5 {dimension_numbers = #tpu.dot_dimension_numbers<[1], [0], [0], [1], [0, 0, 1, 1], [], []>} : vector<128x128xbf16>, vector<128x96xbf16>, vector<128x96xf32> -> vector<128x96xf32>
    %6 = arith.truncf %5 : vector<128x96xf32> to vector<128x96xbf16>
    %c0_6 = arith.constant 0 : index
    %c0_7 = arith.constant 0 : index
    %c0_8 = arith.constant 0 : index
    %7 = vector.load %arg3[%c0_6, %c0_7, %c0_8] : memref<3x96x256xbf16, #tpu.memory_space<vmem>>, vector<1x96x256xbf16>
    %8 = vector.shape_cast %7 : vector<1x96x256xbf16> to vector<96x256xbf16>
    %cst_9 = arith.constant dense<0.000000e+00> : vector<128x256xf32>
    %9 = tpu.matmul %6, %8, %cst_9 {dimension_numbers = #tpu.dot_dimension_numbers<[1], [0], [0], [1], [0, 0, 1, 1], [], []>} : vector<128x96xbf16>, vector<96x256xbf16>, vector<128x256xf32> -> vector<128x256xf32>
    %10 = arith.addf %1, %9 : vector<128x256xf32>
    %c0_10 = arith.constant 0 : index
    %c0_11 = arith.constant 0 : index
    %c0_12 = arith.constant 0 : index
    %11 = vector.load %arg4[%c0_10, %c0_11, %c0_12] : memref<3x96x256xbf16, #tpu.memory_space<vmem>>, vector<1x96x256xbf16>
    %12 = vector.shape_cast %11 : vector<1x96x256xbf16> to vector<96x256xbf16>
    %cst_13 = arith.constant dense<0.000000e+00> : vector<128x256xf32>
    %13 = tpu.matmul %6, %12, %cst_13 {dimension_numbers = #tpu.dot_dimension_numbers<[1], [0], [0], [1], [0, 0, 1, 1], [], []>} : vector<128x96xbf16>, vector<96x256xbf16>, vector<128x256xf32> -> vector<128x256xf32>
    %14 = arith.addf %2, %13 : vector<128x256xf32>
    %c1 = arith.constant 1 : index
    %c0_14 = arith.constant 0 : index
    %c0_15 = arith.constant 0 : index
    %15 = vector.load %arg2[%c1, %c0_14, %c0_15] : memref<3x128x128xbf16, #tpu.memory_space<vmem>>, vector<1x128x128xbf16>
    %16 = vector.shape_cast %15 : vector<1x128x128xbf16> to vector<128x128xbf16>
    %cst_16 = arith.constant dense<0.000000e+00> : vector<128x96xf32>
    %17 = tpu.matmul %16, %0, %cst_16 {dimension_numbers = #tpu.dot_dimension_numbers<[1], [0], [0], [1], [0, 0, 1, 1], [], []>} : vector<128x128xbf16>, vector<128x96xbf16>, vector<128x96xf32> -> vector<128x96xf32>
    %18 = arith.truncf %17 : vector<128x96xf32> to vector<128x96xbf16>
    %c1_17 = arith.constant 1 : index
    %c0_18 = arith.constant 0 : index
    %c0_19 = arith.constant 0 : index
    %19 = vector.load %arg3[%c1_17, %c0_18, %c0_19] : memref<3x96x256xbf16, #tpu.memory_space<vmem>>, vector<1x96x256xbf16>
    %20 = vector.shape_cast %19 : vector<1x96x256xbf16> to vector<96x256xbf16>
    %cst_20 = arith.constant dense<0.000000e+00> : vector<128x256xf32>
    %21 = tpu.matmul %18, %20, %cst_20 {dimension_numbers = #tpu.dot_dimension_numbers<[1], [0], [0], [1], [0, 0, 1, 1], [], []>} : vector<128x96xbf16>, vector<96x256xbf16>, vector<128x256xf32> -> vector<128x256xf32>
    %22 = arith.addf %10, %21 : vector<128x256xf32>
    %c1_21 = arith.constant 1 : index
    %c0_22 = arith.constant 0 : index
    %c0_23 = arith.constant 0 : index
    %23 = vector.load %arg4[%c1_21, %c0_22, %c0_23] : memref<3x96x256xbf16, #tpu.memory_space<vmem>>, vector<1x96x256xbf16>
    %24 = vector.shape_cast %23 : vector<1x96x256xbf16> to vector<96x256xbf16>
    %cst_24 = arith.constant dense<0.000000e+00> : vector<128x256xf32>
    %25 = tpu.matmul %18, %24, %cst_24 {dimension_numbers = #tpu.dot_dimension_numbers<[1], [0], [0], [1], [0, 0, 1, 1], [], []>} : vector<128x96xbf16>, vector<96x256xbf16>, vector<128x256xf32> -> vector<128x256xf32>
    %26 = arith.addf %14, %25 : vector<128x256xf32>
    %c2 = arith.constant 2 : index
    %c0_25 = arith.constant 0 : index
    %c0_26 = arith.constant 0 : index
    %27 = vector.load %arg2[%c2, %c0_25, %c0_26] : memref<3x128x128xbf16, #tpu.memory_space<vmem>>, vector<1x128x128xbf16>
    %28 = vector.shape_cast %27 : vector<1x128x128xbf16> to vector<128x128xbf16>
    %cst_27 = arith.constant dense<0.000000e+00> : vector<128x96xf32>
    %29 = tpu.matmul %28, %0, %cst_27 {dimension_numbers = #tpu.dot_dimension_numbers<[1], [0], [0], [1], [0, 0, 1, 1], [], []>} : vector<128x128xbf16>, vector<128x96xbf16>, vector<128x96xf32> -> vector<128x96xf32>
    %30 = arith.truncf %29 : vector<128x96xf32> to vector<128x96xbf16>
    %c2_28 = arith.constant 2 : index
    %c0_29 = arith.constant 0 : index
    %c0_30 = arith.constant 0 : index
    %31 = vector.load %arg3[%c2_28, %c0_29, %c0_30] : memref<3x96x256xbf16, #tpu.memory_space<vmem>>, vector<1x96x256xbf16>
    %32 = vector.shape_cast %31 : vector<1x96x256xbf16> to vector<96x256xbf16>
    %cst_31 = arith.constant dense<0.000000e+00> : vector<128x256xf32>
    %33 = tpu.matmul %30, %32, %cst_31 {dimension_numbers = #tpu.dot_dimension_numbers<[1], [0], [0], [1], [0, 0, 1, 1], [], []>} : vector<128x96xbf16>, vector<96x256xbf16>, vector<128x256xf32> -> vector<128x256xf32>
    %34 = arith.addf %22, %33 : vector<128x256xf32>
    %c2_32 = arith.constant 2 : index
    %c0_33 = arith.constant 0 : index
    %c0_34 = arith.constant 0 : index
    %35 = vector.load %arg4[%c2_32, %c0_33, %c0_34] : memref<3x96x256xbf16, #tpu.memory_space<vmem>>, vector<1x96x256xbf16>
    %36 = vector.shape_cast %35 : vector<1x96x256xbf16> to vector<96x256xbf16>
    %cst_35 = arith.constant dense<0.000000e+00> : vector<128x256xf32>
    %37 = tpu.matmul %30, %36, %cst_35 {dimension_numbers = #tpu.dot_dimension_numbers<[1], [0], [0], [1], [0, 0, 1, 1], [], []>} : vector<128x96xbf16>, vector<96x256xbf16>, vector<128x256xf32> -> vector<128x256xf32>
    %38 = arith.addf %26, %37 : vector<128x256xf32>
    %c0_36 = arith.constant 0 : index
    %c0_37 = arith.constant 0 : index
    %39 = vector.load %arg5[%c0_36, %c0_37] : memref<1x256xf32, #tpu.memory_space<vmem>>, vector<1x256xf32>
    %40 = vector.broadcast %39 : vector<1x256xf32> to vector<128x256xf32>
    %41 = arith.addf %34, %40 : vector<128x256xf32>
    %cst_38 = arith.constant 0.000000e+00 : f32
    %42 = vector.broadcast %cst_38 : f32 to vector<128x256xf32>
    %43 = arith.maximumf %41, %42 : vector<128x256xf32>
    %44 = vector.broadcast %39 : vector<1x256xf32> to vector<128x256xf32>
    %45 = arith.addf %38, %44 : vector<128x256xf32>
    %cst_39 = arith.constant 0.000000e+00 : f32
    %46 = vector.broadcast %cst_39 : f32 to vector<128x256xf32>
    %47 = arith.maximumf %45, %46 : vector<128x256xf32>
    %48 = arith.maximumf %43, %47 : vector<128x256xf32>
    %49 = arith.truncf %48 : vector<128x256xf32> to vector<128x256xbf16>
    %c0_40 = arith.constant 0 : index
    %c0_41 = arith.constant 0 : index
    %50 = vector.load %arg6[%c0_40, %c0_41] : memref<64x128xbf16, #tpu.memory_space<vmem>>, vector<64x128xbf16>
    %cst_42 = arith.constant dense<0.000000e+00> : vector<64x256xf32>
    %51 = tpu.matmul %50, %49, %cst_42 {dimension_numbers = #tpu.dot_dimension_numbers<[1], [0], [0], [1], [0, 0, 1, 1], [], []>} : vector<64x128xbf16>, vector<128x256xbf16>, vector<64x256xf32> -> vector<64x256xf32>
    %c0_43 = arith.constant 0 : index
    %c0_44 = arith.constant 0 : index
    %52 = vector.load %arg7[%c0_43, %c0_44] : memref<64x128xbf16, #tpu.memory_space<vmem>>, vector<64x128xbf16>
    %cst_45 = arith.constant dense<0.000000e+00> : vector<64x256xf32>
    %53 = tpu.matmul %52, %49, %cst_45 {dimension_numbers = #tpu.dot_dimension_numbers<[1], [0], [0], [1], [0, 0, 1, 1], [], []>} : vector<64x128xbf16>, vector<128x256xbf16>, vector<64x256xf32> -> vector<64x256xf32>
    %54 = arith.maximumf %51, %53 : vector<64x256xf32>
    %55 = arith.truncf %54 : vector<64x256xf32> to vector<64x256xbf16>
    %cst_46 = arith.constant 0.000000e+00 : f32
    %56 = vector.broadcast %cst_46 : f32 to vector<64x256xf32>
    %cst_47 = arith.constant 0.000000e+00 : f32
    %57 = vector.broadcast %cst_47 : f32 to vector<64x256xf32>
    %c0_48 = arith.constant 0 : index
    %c0_49 = arith.constant 0 : index
    %c0_50 = arith.constant 0 : index
    %58 = vector.load %arg8[%c0_48, %c0_49, %c0_50] : memref<3x64x64xbf16, #tpu.memory_space<vmem>>, vector<1x64x64xbf16>
    %59 = vector.shape_cast %58 : vector<1x64x64xbf16> to vector<64x64xbf16>
    %cst_51 = arith.constant dense<0.000000e+00> : vector<64x256xf32>
    %60 = tpu.matmul %59, %55, %cst_51 {dimension_numbers = #tpu.dot_dimension_numbers<[1], [0], [0], [1], [0, 0, 1, 1], [], []>} : vector<64x64xbf16>, vector<64x256xbf16>, vector<64x256xf32> -> vector<64x256xf32>
    %61 = arith.truncf %60 : vector<64x256xf32> to vector<64x256xbf16>
    %c0_52 = arith.constant 0 : index
    %c0_53 = arith.constant 0 : index
    %c0_54 = arith.constant 0 : index
    %62 = vector.load %arg9[%c0_52, %c0_53, %c0_54] : memref<3x256x256xbf16, #tpu.memory_space<vmem>>, vector<1x256x256xbf16>
    %63 = vector.shape_cast %62 : vector<1x256x256xbf16> to vector<256x256xbf16>
    %cst_55 = arith.constant dense<0.000000e+00> : vector<64x256xf32>
    %64 = tpu.matmul %61, %63, %cst_55 {dimension_numbers = #tpu.dot_dimension_numbers<[1], [0], [0], [1], [0, 0, 1, 1], [], []>} : vector<64x256xbf16>, vector<256x256xbf16>, vector<64x256xf32> -> vector<64x256xf32>
    %65 = arith.addf %56, %64 : vector<64x256xf32>
    %c0_56 = arith.constant 0 : index
    %c0_57 = arith.constant 0 : index
    %c0_58 = arith.constant 0 : index
    %66 = vector.load %arg10[%c0_56, %c0_57, %c0_58] : memref<3x256x256xbf16, #tpu.memory_space<vmem>>, vector<1x256x256xbf16>
    %67 = vector.shape_cast %66 : vector<1x256x256xbf16> to vector<256x256xbf16>
    %cst_59 = arith.constant dense<0.000000e+00> : vector<64x256xf32>
    %68 = tpu.matmul %61, %67, %cst_59 {dimension_numbers = #tpu.dot_dimension_numbers<[1], [0], [0], [1], [0, 0, 1, 1], [], []>} : vector<64x256xbf16>, vector<256x256xbf16>, vector<64x256xf32> -> vector<64x256xf32>
    %69 = arith.addf %57, %68 : vector<64x256xf32>
    %c1_60 = arith.constant 1 : index
    %c0_61 = arith.constant 0 : index
    %c0_62 = arith.constant 0 : index
    %70 = vector.load %arg8[%c1_60, %c0_61, %c0_62] : memref<3x64x64xbf16, #tpu.memory_space<vmem>>, vector<1x64x64xbf16>
    %71 = vector.shape_cast %70 : vector<1x64x64xbf16> to vector<64x64xbf16>
    %cst_63 = arith.constant dense<0.000000e+00> : vector<64x256xf32>
    %72 = tpu.matmul %71, %55, %cst_63 {dimension_numbers = #tpu.dot_dimension_numbers<[1], [0], [0], [1], [0, 0, 1, 1], [], []>} : vector<64x64xbf16>, vector<64x256xbf16>, vector<64x256xf32> -> vector<64x256xf32>
    %73 = arith.truncf %72 : vector<64x256xf32> to vector<64x256xbf16>
    %c1_64 = arith.constant 1 : index
    %c0_65 = arith.constant 0 : index
    %c0_66 = arith.constant 0 : index
    %74 = vector.load %arg9[%c1_64, %c0_65, %c0_66] : memref<3x256x256xbf16, #tpu.memory_space<vmem>>, vector<1x256x256xbf16>
    %75 = vector.shape_cast %74 : vector<1x256x256xbf16> to vector<256x256xbf16>
    %cst_67 = arith.constant dense<0.000000e+00> : vector<64x256xf32>
    %76 = tpu.matmul %73, %75, %cst_67 {dimension_numbers = #tpu.dot_dimension_numbers<[1], [0], [0], [1], [0, 0, 1, 1], [], []>} : vector<64x256xbf16>, vector<256x256xbf16>, vector<64x256xf32> -> vector<64x256xf32>
    %77 = arith.addf %65, %76 : vector<64x256xf32>
    %c1_68 = arith.constant 1 : index
    %c0_69 = arith.constant 0 : index
    %c0_70 = arith.constant 0 : index
    %78 = vector.load %arg10[%c1_68, %c0_69, %c0_70] : memref<3x256x256xbf16, #tpu.memory_space<vmem>>, vector<1x256x256xbf16>
    %79 = vector.shape_cast %78 : vector<1x256x256xbf16> to vector<256x256xbf16>
    %cst_71 = arith.constant dense<0.000000e+00> : vector<64x256xf32>
    %80 = tpu.matmul %73, %79, %cst_71 {dimension_numbers = #tpu.dot_dimension_numbers<[1], [0], [0], [1], [0, 0, 1, 1], [], []>} : vector<64x256xbf16>, vector<256x256xbf16>, vector<64x256xf32> -> vector<64x256xf32>
    %81 = arith.addf %69, %80 : vector<64x256xf32>
    %c2_72 = arith.constant 2 : index
    %c0_73 = arith.constant 0 : index
    %c0_74 = arith.constant 0 : index
    %82 = vector.load %arg8[%c2_72, %c0_73, %c0_74] : memref<3x64x64xbf16, #tpu.memory_space<vmem>>, vector<1x64x64xbf16>
    %83 = vector.shape_cast %82 : vector<1x64x64xbf16> to vector<64x64xbf16>
    %cst_75 = arith.constant dense<0.000000e+00> : vector<64x256xf32>
    %84 = tpu.matmul %83, %55, %cst_75 {dimension_numbers = #tpu.dot_dimension_numbers<[1], [0], [0], [1], [0, 0, 1, 1], [], []>} : vector<64x64xbf16>, vector<64x256xbf16>, vector<64x256xf32> -> vector<64x256xf32>
    %85 = arith.truncf %84 : vector<64x256xf32> to vector<64x256xbf16>
    %c2_76 = arith.constant 2 : index
    %c0_77 = arith.constant 0 : index
    %c0_78 = arith.constant 0 : index
    %86 = vector.load %arg9[%c2_76, %c0_77, %c0_78] : memref<3x256x256xbf16, #tpu.memory_space<vmem>>, vector<1x256x256xbf16>
    %87 = vector.shape_cast %86 : vector<1x256x256xbf16> to vector<256x256xbf16>
    %cst_79 = arith.constant dense<0.000000e+00> : vector<64x256xf32>
    %88 = tpu.matmul %85, %87, %cst_79 {dimension_numbers = #tpu.dot_dimension_numbers<[1], [0], [0], [1], [0, 0, 1, 1], [], []>} : vector<64x256xbf16>, vector<256x256xbf16>, vector<64x256xf32> -> vector<64x256xf32>
    %89 = arith.addf %77, %88 : vector<64x256xf32>
    %c2_80 = arith.constant 2 : index
    %c0_81 = arith.constant 0 : index
    %c0_82 = arith.constant 0 : index
    %90 = vector.load %arg10[%c2_80, %c0_81, %c0_82] : memref<3x256x256xbf16, #tpu.memory_space<vmem>>, vector<1x256x256xbf16>
    %91 = vector.shape_cast %90 : vector<1x256x256xbf16> to vector<256x256xbf16>
    %cst_83 = arith.constant dense<0.000000e+00> : vector<64x256xf32>
    %92 = tpu.matmul %85, %91, %cst_83 {dimension_numbers = #tpu.dot_dimension_numbers<[1], [0], [0], [1], [0, 0, 1, 1], [], []>} : vector<64x256xbf16>, vector<256x256xbf16>, vector<64x256xf32> -> vector<64x256xf32>
    %93 = arith.addf %81, %92 : vector<64x256xf32>
    %c0_84 = arith.constant 0 : index
    %c0_85 = arith.constant 0 : index
    %94 = vector.load %arg11[%c0_84, %c0_85] : memref<1x256xf32, #tpu.memory_space<vmem>>, vector<1x256xf32>
    %95 = vector.broadcast %94 : vector<1x256xf32> to vector<64x256xf32>
    %96 = arith.addf %89, %95 : vector<64x256xf32>
    %cst_86 = arith.constant 0.000000e+00 : f32
    %97 = vector.broadcast %cst_86 : f32 to vector<64x256xf32>
    %98 = arith.maximumf %96, %97 : vector<64x256xf32>
    %99 = vector.broadcast %94 : vector<1x256xf32> to vector<64x256xf32>
    %100 = arith.addf %93, %99 : vector<64x256xf32>
    %cst_87 = arith.constant 0.000000e+00 : f32
    %101 = vector.broadcast %cst_87 : f32 to vector<64x256xf32>
    %102 = arith.maximumf %100, %101 : vector<64x256xf32>
    %103 = arith.maximumf %98, %102 : vector<64x256xf32>
    %104 = arith.truncf %103 : vector<64x256xf32> to vector<64x256xbf16>
    %c0_88 = arith.constant 0 : index
    %c0_89 = arith.constant 0 : index
    %105 = vector.load %arg12[%c0_88, %c0_89] : memref<32x64xbf16, #tpu.memory_space<vmem>>, vector<32x64xbf16>
    %cst_90 = arith.constant dense<0.000000e+00> : vector<32x256xf32>
    %106 = tpu.matmul %105, %104, %cst_90 {dimension_numbers = #tpu.dot_dimension_numbers<[1], [0], [0], [1], [0, 0, 1, 1], [], []>} : vector<32x64xbf16>, vector<64x256xbf16>, vector<32x256xf32> -> vector<32x256xf32>
    %c0_91 = arith.constant 0 : index
    %c0_92 = arith.constant 0 : index
    %107 = vector.load %arg13[%c0_91, %c0_92] : memref<32x64xbf16, #tpu.memory_space<vmem>>, vector<32x64xbf16>
    %cst_93 = arith.constant dense<0.000000e+00> : vector<32x256xf32>
    %108 = tpu.matmul %107, %104, %cst_93 {dimension_numbers = #tpu.dot_dimension_numbers<[1], [0], [0], [1], [0, 0, 1, 1], [], []>} : vector<32x64xbf16>, vector<64x256xbf16>, vector<32x256xf32> -> vector<32x256xf32>
    %109 = arith.maximumf %106, %108 : vector<32x256xf32>
    %110 = arith.truncf %109 : vector<32x256xf32> to vector<32x256xbf16>
    %cst_94 = arith.constant 0.000000e+00 : f32
    %111 = vector.broadcast %cst_94 : f32 to vector<4x128xf32>
    %c0_95 = arith.constant 0 : index
    %c0_96 = arith.constant 0 : index
    %c0_97 = arith.constant 0 : index
    %112 = vector.load %arg15[%c0_95, %c0_96, %c0_97] : memref<8x4x32xbf16, #tpu.memory_space<vmem>>, vector<1x4x32xbf16>
    %113 = vector.shape_cast %112 : vector<1x4x32xbf16> to vector<4x32xbf16>
    %cst_98 = arith.constant dense<0.000000e+00> : vector<4x256xf32>
    %114 = tpu.matmul %113, %110, %cst_98 {dimension_numbers = #tpu.dot_dimension_numbers<[1], [0], [0], [1], [0, 0, 1, 1], [], []>} : vector<4x32xbf16>, vector<32x256xbf16>, vector<4x256xf32> -> vector<4x256xf32>
    %115 = arith.truncf %114 : vector<4x256xf32> to vector<4x256xbf16>
    %c0_99 = arith.constant 0 : index
    %c0_100 = arith.constant 0 : index
    %c0_101 = arith.constant 0 : index
    %116 = vector.load %arg14[%c0_99, %c0_100, %c0_101] : memref<8x256x128xbf16, #tpu.memory_space<vmem>>, vector<1x256x128xbf16>
    %117 = vector.shape_cast %116 : vector<1x256x128xbf16> to vector<256x128xbf16>
    %cst_102 = arith.constant dense<0.000000e+00> : vector<4x128xf32>
    %118 = tpu.matmul %115, %117, %cst_102 {dimension_numbers = #tpu.dot_dimension_numbers<[1], [0], [0], [1], [0, 0, 1, 1], [], []>} : vector<4x256xbf16>, vector<256x128xbf16>, vector<4x128xf32> -> vector<4x128xf32>
    %119 = arith.addf %111, %118 : vector<4x128xf32>
    %c1_103 = arith.constant 1 : index
    %c0_104 = arith.constant 0 : index
    %c0_105 = arith.constant 0 : index
    %120 = vector.load %arg15[%c1_103, %c0_104, %c0_105] : memref<8x4x32xbf16, #tpu.memory_space<vmem>>, vector<1x4x32xbf16>
    %121 = vector.shape_cast %120 : vector<1x4x32xbf16> to vector<4x32xbf16>
    %cst_106 = arith.constant dense<0.000000e+00> : vector<4x256xf32>
    %122 = tpu.matmul %121, %110, %cst_106 {dimension_numbers = #tpu.dot_dimension_numbers<[1], [0], [0], [1], [0, 0, 1, 1], [], []>} : vector<4x32xbf16>, vector<32x256xbf16>, vector<4x256xf32> -> vector<4x256xf32>
    %123 = arith.truncf %122 : vector<4x256xf32> to vector<4x256xbf16>
    %c1_107 = arith.constant 1 : index
    %c0_108 = arith.constant 0 : index
    %c0_109 = arith.constant 0 : index
    %124 = vector.load %arg14[%c1_107, %c0_108, %c0_109] : memref<8x256x128xbf16, #tpu.memory_space<vmem>>, vector<1x256x128xbf16>
    %125 = vector.shape_cast %124 : vector<1x256x128xbf16> to vector<256x128xbf16>
    %cst_110 = arith.constant dense<0.000000e+00> : vector<4x128xf32>
    %126 = tpu.matmul %123, %125, %cst_110 {dimension_numbers = #tpu.dot_dimension_numbers<[1], [0], [0], [1], [0, 0, 1, 1], [], []>} : vector<4x256xbf16>, vector<256x128xbf16>, vector<4x128xf32> -> vector<4x128xf32>
    %127 = arith.addf %119, %126 : vector<4x128xf32>
    %c2_111 = arith.constant 2 : index
    %c0_112 = arith.constant 0 : index
    %c0_113 = arith.constant 0 : index
    %128 = vector.load %arg15[%c2_111, %c0_112, %c0_113] : memref<8x4x32xbf16, #tpu.memory_space<vmem>>, vector<1x4x32xbf16>
    %129 = vector.shape_cast %128 : vector<1x4x32xbf16> to vector<4x32xbf16>
    %cst_114 = arith.constant dense<0.000000e+00> : vector<4x256xf32>
    %130 = tpu.matmul %129, %110, %cst_114 {dimension_numbers = #tpu.dot_dimension_numbers<[1], [0], [0], [1], [0, 0, 1, 1], [], []>} : vector<4x32xbf16>, vector<32x256xbf16>, vector<4x256xf32> -> vector<4x256xf32>
    %131 = arith.truncf %130 : vector<4x256xf32> to vector<4x256xbf16>
    %c2_115 = arith.constant 2 : index
    %c0_116 = arith.constant 0 : index
    %c0_117 = arith.constant 0 : index
    %132 = vector.load %arg14[%c2_115, %c0_116, %c0_117] : memref<8x256x128xbf16, #tpu.memory_space<vmem>>, vector<1x256x128xbf16>
    %133 = vector.shape_cast %132 : vector<1x256x128xbf16> to vector<256x128xbf16>
    %cst_118 = arith.constant dense<0.000000e+00> : vector<4x128xf32>
    %134 = tpu.matmul %131, %133, %cst_118 {dimension_numbers = #tpu.dot_dimension_numbers<[1], [0], [0], [1], [0, 0, 1, 1], [], []>} : vector<4x256xbf16>, vector<256x128xbf16>, vector<4x128xf32> -> vector<4x128xf32>
    %135 = arith.addf %127, %134 : vector<4x128xf32>
    %c3 = arith.constant 3 : index
    %c0_119 = arith.constant 0 : index
    %c0_120 = arith.constant 0 : index
    %136 = vector.load %arg15[%c3, %c0_119, %c0_120] : memref<8x4x32xbf16, #tpu.memory_space<vmem>>, vector<1x4x32xbf16>
    %137 = vector.shape_cast %136 : vector<1x4x32xbf16> to vector<4x32xbf16>
    %cst_121 = arith.constant dense<0.000000e+00> : vector<4x256xf32>
    %138 = tpu.matmul %137, %110, %cst_121 {dimension_numbers = #tpu.dot_dimension_numbers<[1], [0], [0], [1], [0, 0, 1, 1], [], []>} : vector<4x32xbf16>, vector<32x256xbf16>, vector<4x256xf32> -> vector<4x256xf32>
    %139 = arith.truncf %138 : vector<4x256xf32> to vector<4x256xbf16>
    %c3_122 = arith.constant 3 : index
    %c0_123 = arith.constant 0 : index
    %c0_124 = arith.constant 0 : index
    %140 = vector.load %arg14[%c3_122, %c0_123, %c0_124] : memref<8x256x128xbf16, #tpu.memory_space<vmem>>, vector<1x256x128xbf16>
    %141 = vector.shape_cast %140 : vector<1x256x128xbf16> to vector<256x128xbf16>
    %cst_125 = arith.constant dense<0.000000e+00> : vector<4x128xf32>
    %142 = tpu.matmul %139, %141, %cst_125 {dimension_numbers = #tpu.dot_dimension_numbers<[1], [0], [0], [1], [0, 0, 1, 1], [], []>} : vector<4x256xbf16>, vector<256x128xbf16>, vector<4x128xf32> -> vector<4x128xf32>
    %143 = arith.addf %135, %142 : vector<4x128xf32>
    %c4 = arith.constant 4 : index
    %c0_126 = arith.constant 0 : index
    %c0_127 = arith.constant 0 : index
    %144 = vector.load %arg15[%c4, %c0_126, %c0_127] : memref<8x4x32xbf16, #tpu.memory_space<vmem>>, vector<1x4x32xbf16>
    %145 = vector.shape_cast %144 : vector<1x4x32xbf16> to vector<4x32xbf16>
    %cst_128 = arith.constant dense<0.000000e+00> : vector<4x256xf32>
    %146 = tpu.matmul %145, %110, %cst_128 {dimension_numbers = #tpu.dot_dimension_numbers<[1], [0], [0], [1], [0, 0, 1, 1], [], []>} : vector<4x32xbf16>, vector<32x256xbf16>, vector<4x256xf32> -> vector<4x256xf32>
    %147 = arith.truncf %146 : vector<4x256xf32> to vector<4x256xbf16>
    %c4_129 = arith.constant 4 : index
    %c0_130 = arith.constant 0 : index
    %c0_131 = arith.constant 0 : index
    %148 = vector.load %arg14[%c4_129, %c0_130, %c0_131] : memref<8x256x128xbf16, #tpu.memory_space<vmem>>, vector<1x256x128xbf16>
    %149 = vector.shape_cast %148 : vector<1x256x128xbf16> to vector<256x128xbf16>
    %cst_132 = arith.constant dense<0.000000e+00> : vector<4x128xf32>
    %150 = tpu.matmul %147, %149, %cst_132 {dimension_numbers = #tpu.dot_dimension_numbers<[1], [0], [0], [1], [0, 0, 1, 1], [], []>} : vector<4x256xbf16>, vector<256x128xbf16>, vector<4x128xf32> -> vector<4x128xf32>
    %151 = arith.addf %143, %150 : vector<4x128xf32>
    %c5 = arith.constant 5 : index
    %c0_133 = arith.constant 0 : index
    %c0_134 = arith.constant 0 : index
    %152 = vector.load %arg15[%c5, %c0_133, %c0_134] : memref<8x4x32xbf16, #tpu.memory_space<vmem>>, vector<1x4x32xbf16>
    %153 = vector.shape_cast %152 : vector<1x4x32xbf16> to vector<4x32xbf16>
    %cst_135 = arith.constant dense<0.000000e+00> : vector<4x256xf32>
    %154 = tpu.matmul %153, %110, %cst_135 {dimension_numbers = #tpu.dot_dimension_numbers<[1], [0], [0], [1], [0, 0, 1, 1], [], []>} : vector<4x32xbf16>, vector<32x256xbf16>, vector<4x256xf32> -> vector<4x256xf32>
    %155 = arith.truncf %154 : vector<4x256xf32> to vector<4x256xbf16>
    %c5_136 = arith.constant 5 : index
    %c0_137 = arith.constant 0 : index
    %c0_138 = arith.constant 0 : index
    %156 = vector.load %arg14[%c5_136, %c0_137, %c0_138] : memref<8x256x128xbf16, #tpu.memory_space<vmem>>, vector<1x256x128xbf16>
    %157 = vector.shape_cast %156 : vector<1x256x128xbf16> to vector<256x128xbf16>
    %cst_139 = arith.constant dense<0.000000e+00> : vector<4x128xf32>
    %158 = tpu.matmul %155, %157, %cst_139 {dimension_numbers = #tpu.dot_dimension_numbers<[1], [0], [0], [1], [0, 0, 1, 1], [], []>} : vector<4x256xbf16>, vector<256x128xbf16>, vector<4x128xf32> -> vector<4x128xf32>
    %159 = arith.addf %151, %158 : vector<4x128xf32>
    %c6 = arith.constant 6 : index
    %c0_140 = arith.constant 0 : index
    %c0_141 = arith.constant 0 : index
    %160 = vector.load %arg15[%c6, %c0_140, %c0_141] : memref<8x4x32xbf16, #tpu.memory_space<vmem>>, vector<1x4x32xbf16>
    %161 = vector.shape_cast %160 : vector<1x4x32xbf16> to vector<4x32xbf16>
    %cst_142 = arith.constant dense<0.000000e+00> : vector<4x256xf32>
    %162 = tpu.matmul %161, %110, %cst_142 {dimension_numbers = #tpu.dot_dimension_numbers<[1], [0], [0], [1], [0, 0, 1, 1], [], []>} : vector<4x32xbf16>, vector<32x256xbf16>, vector<4x256xf32> -> vector<4x256xf32>
    %163 = arith.truncf %162 : vector<4x256xf32> to vector<4x256xbf16>
    %c6_143 = arith.constant 6 : index
    %c0_144 = arith.constant 0 : index
    %c0_145 = arith.constant 0 : index
    %164 = vector.load %arg14[%c6_143, %c0_144, %c0_145] : memref<8x256x128xbf16, #tpu.memory_space<vmem>>, vector<1x256x128xbf16>
    %165 = vector.shape_cast %164 : vector<1x256x128xbf16> to vector<256x128xbf16>
    %cst_146 = arith.constant dense<0.000000e+00> : vector<4x128xf32>
    %166 = tpu.matmul %163, %165, %cst_146 {dimension_numbers = #tpu.dot_dimension_numbers<[1], [0], [0], [1], [0, 0, 1, 1], [], []>} : vector<4x256xbf16>, vector<256x128xbf16>, vector<4x128xf32> -> vector<4x128xf32>
    %167 = arith.addf %159, %166 : vector<4x128xf32>
    %c7 = arith.constant 7 : index
    %c0_147 = arith.constant 0 : index
    %c0_148 = arith.constant 0 : index
    %168 = vector.load %arg15[%c7, %c0_147, %c0_148] : memref<8x4x32xbf16, #tpu.memory_space<vmem>>, vector<1x4x32xbf16>
    %169 = vector.shape_cast %168 : vector<1x4x32xbf16> to vector<4x32xbf16>
    %cst_149 = arith.constant dense<0.000000e+00> : vector<4x256xf32>
    %170 = tpu.matmul %169, %110, %cst_149 {dimension_numbers = #tpu.dot_dimension_numbers<[1], [0], [0], [1], [0, 0, 1, 1], [], []>} : vector<4x32xbf16>, vector<32x256xbf16>, vector<4x256xf32> -> vector<4x256xf32>
    %171 = arith.truncf %170 : vector<4x256xf32> to vector<4x256xbf16>
    %c7_150 = arith.constant 7 : index
    %c0_151 = arith.constant 0 : index
    %c0_152 = arith.constant 0 : index
    %172 = vector.load %arg14[%c7_150, %c0_151, %c0_152] : memref<8x256x128xbf16, #tpu.memory_space<vmem>>, vector<1x256x128xbf16>
    %173 = vector.shape_cast %172 : vector<1x256x128xbf16> to vector<256x128xbf16>
    %cst_153 = arith.constant dense<0.000000e+00> : vector<4x128xf32>
    %174 = tpu.matmul %171, %173, %cst_153 {dimension_numbers = #tpu.dot_dimension_numbers<[1], [0], [0], [1], [0, 0, 1, 1], [], []>} : vector<4x256xbf16>, vector<256x128xbf16>, vector<4x128xf32> -> vector<4x128xf32>
    %175 = arith.addf %167, %174 : vector<4x128xf32>
    %c0_154 = arith.constant 0 : index
    %c0_155 = arith.constant 0 : index
    %176 = vector.load %arg16[%c0_154, %c0_155] : memref<1x128xf32, #tpu.memory_space<vmem>>, vector<1x128xf32>
    %177 = vector.broadcast %176 : vector<1x128xf32> to vector<4x128xf32>
    %178 = arith.addf %175, %177 : vector<4x128xf32>
    %c0_156 = arith.constant 0 : index
    %c0_157 = arith.constant 0 : index
    %c0_158 = arith.constant 0 : index
    %179 = vector.load %arg17[%c0_156, %c0_157, %c0_158] : memref<1x4x128xf32, #tpu.memory_space<vmem>>, vector<1x4x128xf32>
    %180 = vector.shape_cast %179 : vector<1x4x128xf32> to vector<4x128xf32>
    %181 = vector.shape_cast %178 : vector<4x128xf32> to vector<1x4x128xf32>
    tpu.vector_store %arg17[%c0_156, %c0_157, %c0_158], %181 {strides = array<i32>} : memref<1x4x128xf32, #tpu.memory_space<vmem>>, vector<1x4x128xf32>,
    return
  }
  func.func @transform_0(%arg0: i32) -> (i32, i32) {
    %c0_i32 = arith.constant 0 : i32
    %c0_i32_0 = arith.constant 0 : i32
    return %arg0, %c0_i32 : i32, i32
  }
  func.func @transform_1(%arg0: i32) -> (i32, i32, i32) {
    %c0_i32 = arith.constant 0 : i32
    %c0_i32_0 = arith.constant 0 : i32
    %c0_i32_1 = arith.constant 0 : i32
    %c0_i32_2 = arith.constant 0 : i32
    return %c0_i32, %c0_i32_0, %c0_i32_1 : i32, i32, i32
  }
  func.func @transform_2(%arg0: i32) -> (i32, i32, i32) {
    %c0_i32 = arith.constant 0 : i32
    %c0_i32_0 = arith.constant 0 : i32
    %c0_i32_1 = arith.constant 0 : i32
    %c0_i32_2 = arith.constant 0 : i32
    return %c0_i32, %c0_i32_0, %c0_i32_1 : i32, i32, i32
  }
  func.func @transform_3(%arg0: i32) -> (i32, i32, i32) {
    %c0_i32 = arith.constant 0 : i32
    %c0_i32_0 = arith.constant 0 : i32
    %c0_i32_1 = arith.constant 0 : i32
    %c0_i32_2 = arith.constant 0 : i32
    return %c0_i32, %c0_i32_0, %c0_i32_1 : i32, i32, i32
  }
  func.func @transform_4(%arg0: i32) -> (i32, i32) {
    %c0_i32 = arith.constant 0 : i32
    %c0_i32_0 = arith.constant 0 : i32
    %c0_i32_1 = arith.constant 0 : i32
    return %c0_i32, %c0_i32_0 : i32, i32
  }
  func.func @transform_5(%arg0: i32) -> (i32, i32) {
    %c0_i32 = arith.constant 0 : i32
    %c0_i32_0 = arith.constant 0 : i32
    %c0_i32_1 = arith.constant 0 : i32
    return %c0_i32, %c0_i32_0 : i32, i32
  }
  func.func @transform_6(%arg0: i32) -> (i32, i32) {
    %c0_i32 = arith.constant 0 : i32
    %c0_i32_0 = arith.constant 0 : i32
    %c0_i32_1 = arith.constant 0 : i32
    return %c0_i32, %c0_i32_0 : i32, i32
  }
  func.func @transform_7(%arg0: i32) -> (i32, i32, i32) {
    %c0_i32 = arith.constant 0 : i32
    %c0_i32_0 = arith.constant 0 : i32
    %c0_i32_1 = arith.constant 0 : i32
    %c0_i32_2 = arith.constant 0 : i32
    return %c0_i32, %c0_i32_0, %c0_i32_1 : i32, i32, i32
  }
  func.func @transform_8(%arg0: i32) -> (i32, i32, i32) {
    %c0_i32 = arith.constant 0 : i32
    %c0_i32_0 = arith.constant 0 : i32
    %c0_i32_1 = arith.constant 0 : i32
    %c0_i32_2 = arith.constant 0 : i32
    return %c0_i32, %c0_i32_0, %c0_i32_1 : i32, i32, i32
  }
  func.func @transform_9(%arg0: i32) -> (i32, i32, i32) {
    %c0_i32 = arith.constant 0 : i32
    %c0_i32_0 = arith.constant 0 : i32
    %c0_i32_1 = arith.constant 0 : i32
    %c0_i32_2 = arith.constant 0 : i32
    return %c0_i32, %c0_i32_0, %c0_i32_1 : i32, i32, i32
  }
  func.func @transform_10(%arg0: i32) -> (i32, i32) {
    %c0_i32 = arith.constant 0 : i32
    %c0_i32_0 = arith.constant 0 : i32
    %c0_i32_1 = arith.constant 0 : i32
    return %c0_i32, %c0_i32_0 : i32, i32
  }
  func.func @transform_11(%arg0: i32) -> (i32, i32) {
    %c0_i32 = arith.constant 0 : i32
    %c0_i32_0 = arith.constant 0 : i32
    %c0_i32_1 = arith.constant 0 : i32
    return %c0_i32, %c0_i32_0 : i32, i32
  }
  func.func @transform_12(%arg0: i32) -> (i32, i32) {
    %c0_i32 = arith.constant 0 : i32
    %c0_i32_0 = arith.constant 0 : i32
    %c0_i32_1 = arith.constant 0 : i32
    return %c0_i32, %c0_i32_0 : i32, i32
  }
  func.func @transform_13(%arg0: i32) -> (i32, i32, i32) {
    %c0_i32 = arith.constant 0 : i32
    %c0_i32_0 = arith.constant 0 : i32
    %c0_i32_1 = arith.constant 0 : i32
    %c0_i32_2 = arith.constant 0 : i32
    return %c0_i32, %c0_i32_0, %c0_i32_1 : i32, i32, i32
  }
  func.func @transform_14(%arg0: i32) -> (i32, i32, i32) {
    %c0_i32 = arith.constant 0 : i32
    %c0_i32_0 = arith.constant 0 : i32
    %c0_i32_1 = arith.constant 0 : i32
    %c0_i32_2 = arith.constant 0 : i32
    return %c0_i32, %c0_i32_0, %c0_i32_1 : i32, i32, i32
  }
  func.func @transform_15(%arg0: i32) -> (i32, i32) {
    %c0_i32 = arith.constant 0 : i32
    %c0_i32_0 = arith.constant 0 : i32
    %c0_i32_1 = arith.constant 0 : i32
    return %c0_i32, %c0_i32_0 : i32, i32
  }
  func.func @transform_16(%arg0: i32) -> (i32, i32, i32) {
    %c0_i32 = arith.constant 0 : i32
    %c0_i32_0 = arith.constant 0 : i32
    %c0_i32_1 = arith.constant 0 : i32
    return %arg0, %c0_i32, %c0_i32_0 : i32, i32, i32
  }
}

</mosaic_0001>

<llo_original>
// kernel: ae_classifier_forward.1
$region0: #{ae_classifier_forward.1}
  #allocation0 [shape = 'u32[]', space=smem, size = 0x4, offset = 0x4, fixed_abs, tag = 'smem constant byte address 0x4 - core index']
  #allocation1 [shape = 'u32[144,128]{1,0:T(1,128)}', space=vmem, size = 0x12000, scoped, tag = 'internal scratch']
  %s0 = inlined_call_operand.vmem [shape: bf16[256,96], index: 0, kind: input, shape index: {}]
  %s1 = inlined_call_operand.hbm [shape: bf16[3,128,128], index: 1, kind: input, shape index: {}]
  %s2 = inlined_call_operand.hbm [shape: bf16[3,96,256], index: 2, kind: input, shape index: {}]
  %s3 = inlined_call_operand.hbm [shape: bf16[3,96,256], index: 3, kind: input, shape index: {}]
  %s4 = inlined_call_operand.hbm [shape: f32[1,256], index: 4, kind: input, shape index: {}]
  %s5 = inlined_call_operand.vmem [shape: bf16[64,128], index: 5, kind: input, shape index: {}]
  %s6 = inlined_call_operand.vmem [shape: bf16[64,128], index: 6, kind: input, shape index: {}]
  %s7 = inlined_call_operand.hbm [shape: bf16[3,64,64], index: 7, kind: input, shape index: {}]
  %s8 = inlined_call_operand.vmem [shape: bf16[3,256,256], index: 8, kind: input, shape index: {}]
  %s9 = inlined_call_operand.vmem [shape: bf16[3,256,256], index: 9, kind: input, shape index: {}]
  %s10 = inlined_call_operand.hbm [shape: f32[1,256], index: 10, kind: input, shape index: {}]
  %s11 = inlined_call_operand.vmem [shape: bf16[32,64], index: 11, kind: input, shape index: {}]
  %s12 = inlined_call_operand.hbm [shape: bf16[32,64], index: 12, kind: input, shape index: {}]
  %s13 = inlined_call_operand.vmem [shape: bf16[8,256,128], index: 13, kind: input, shape index: {}]
  %s14 = inlined_call_operand.hbm [shape: bf16[8,4,32], index: 14, kind: input, shape index: {}]
  %s15 = inlined_call_operand.vmem [shape: f32[1,128], index: 15, kind: input, shape index: {}]
  %s16 = inlined_call_operand.hbm [shape: f32[2,4,128], index: 16, kind: output, shape index: {}]
  %s17 = sld [smem:[#allocation0]]
  $region129: #{ae_classifier_forward.1} parent=0
    _
  %s19 = ssub.s32 1, %s17
  %s20 = scalar_select 0, %s19, %s17
  $region1: #{ae_classifier_forward.1} parent=0
    #allocation2 [shape = 'u8[98304]{0}', space=vmem, size = 0x18000, scoped, tag = 'input window, operand 1, single buffered']
    #allocation3 [shape = 's32[2]{0}', space=sflag, size = 0x8, scoped, tag = 'scoped memory for ae_classifier_forward.1']
    #allocation4 [shape = 's32[2]{0}', space=sflag, size = 0x8, scoped, tag = 'scoped memory for ae_classifier_forward.1']
    #allocation5 [shape = 'u8[147456]{0}', space=vmem, size = 0x24000, scoped, tag = 'input window, operand 2, single buffered']
    #allocation6 [shape = 's32[1]{0}', space=sflag, size = 0x4, scoped, tag = 'scoped memory for ae_classifier_forward.1']
    #allocation7 [shape = 'u8[147456]{0}', space=vmem, size = 0x24000, scoped, tag = 'input window, operand 3, single buffered']
    #allocation8 [shape = 'u8[1024]{0}', space=vmem, size = 0x400, scoped, tag = 'input window, operand 4, single buffered']
    #allocation9 [shape = 's32[1]{0}', space=sflag, size = 0x4, scoped, tag = 'scoped memory for ae_classifier_forward.1']
    #allocation10 [shape = 'u8[49152]{0}', space=vmem, size = 0xc000, scoped, tag = 'input window, operand 7, single buffered']
    #allocation11 [shape = 'u8[1024]{0}', space=vmem, size = 0x400, scoped, tag = 'input window, operand 10, single buffered']
    #allocation12 [shape = 's32[1]{0}', space=sflag, size = 0x4, scoped, tag = 'scoped memory for ae_classifier_forward.1']
    #allocation13 [shape = 'u8[8192]{0}', space=vmem, size = 0x2000, scoped, tag = 'input window, operand 12, single buffered']
    #allocation14 [shape = 'u8[8192]{0}', space=vmem, size = 0x2000, scoped, tag = 'input window, operand 14, single buffered']
    #allocation15 [shape = 's32[1]{0}', space=sflag, size = 0x4, scoped, tag = 'scoped memory for ae_classifier_forward.1']
    #allocation16 [shape = 'u8[4096]{0}', space=vmem, size = 0x1000, scoped, tag = 'output window, operand 0']
    %21 = vsyncpa [#allocation3], 0
    %22 = vsyncpa [#allocation6], 0
    %23 = vsyncpa [#allocation9], 0
    %24 = vsyncpa [#allocation12], 0
    %25 = vsyncpa [#allocation15], 0
    %26 = vsyncpa [#allocation4], 0
    %s27 = scalar_lea.sflag [#allocation4], 1
    %28 = vsyncpa %s27, 0
    loop: start=0, step=1, limit=4
    $region2: #{ae_classifier_forward.1} parent=1 // loop_pre_header
      _
    $region3: #{ae_classifier_forward.1} parent=1 // loop_header
      %s30 = sphi 0, %s34
      %p31 = scmp.ge.s32.totalorder %s30, 4
      %s40 = sphi 0, %s42
      %s43 = sphi 0, %s40
      %s44 = sphi 0, %s43
      %s60 = sphi 0, %s44
      %s64 = sphi 0, %s64
      %s66 = sphi 0, %s64
      %s67 = sphi 0, %s66
      %s81 = sphi 0, %s67
      %s85 = sphi 0, %s85
      %s87 = sphi 0, %s85
      %s88 = sphi 0, %s87
      %s102 = sphi 0, %s88
      %s106 = sphi 0, %s106
      %s108 = sphi 0, %s106
      %s109 = sphi 0, %s108
      %s123 = sphi 0, %s109
      %s127 = sphi 0, %s127
      %s129 = sphi 0, %s127
      %s130 = sphi 0, %s129
      %s144 = sphi 0, %s130
      %s148 = sphi 0, %s148
      %s150 = sphi 0, %s148
      %s151 = sphi 0, %s150
      %s165 = sphi 0, %s151
      %s169 = sphi 0, %s169
      %s171 = sphi 0, %s169
      %s172 = sphi 0, %s171
      %s186 = sphi 0, %s172
      %s190 = sphi 0, %s190
      %s192 = sphi 0, %s190
      %s193 = sphi 0, %s192
      %s207 = sphi 0, %s193
      %s211 = sphi 0, %s211
      %s213 = sphi 0, %s211
      %s214 = sphi 0, %s213
      %s228 = sphi 0, %s214
      %s232 = sphi 0, %s232
      %s234 = sphi 0, %s232
      %s235 = sphi 0, %s234
      %s249 = sphi 0, %s235
      %s253 = sphi 0, %s253
      %s255 = sphi 0, %s253
      %s256 = sphi 0, %s255
      %s270 = sphi 0, %s256
      %s274 = sphi 0, %s274
      %s276 = sphi 0, %s274
      %s277 = sphi 0, %s276
      %s291 = sphi 0, %s277
      %s295 = sphi 0, %s295
      %s297 = sphi 0, %s295
      %s298 = sphi 0, %s297
      %s312 = sphi 0, %s298
      %s316 = sphi 0, %s316
      %s318 = sphi 0, %s316
      %s319 = sphi 0, %s318
      %s333 = sphi 0, %s319
      %s337 = sphi 0, %s337
      %s339 = sphi 0, %s337
      %s340 = sphi 0, %s339
      %s354 = sphi 0, %s340
      %s358 = sphi 0, %s358
      %s360 = sphi 0, %s358
      %s361 = sphi 0, %s360
      %s375 = sphi 0, %s361
      %s381 = sphi 0, %s383
      %s384 = sphi 0, %s381
      %s385 = sphi 0, %s384
      %s401 = sphi 0, %s385
    $region4: #{ae_classifier_forward.1} parent=1 // loop_header_branch
      %33 = sbr.rel (%p31) target = $region8
    $region5: #{ae_classifier_forward.1} parent=1 // loop_body
      %s35 = ssub.s32 %s30, 1
      %s36 = ssub.s32 %s30, 2
      %s37 = sadd.s32 %s30, 1
      %s38 = ssub.s32 %s30, %s37
      %p39 = scmp.eq.s32.totalorder %s38, 0
      %s41 = sadd.s32 %s40, 1
      %s42 = scalar_select %p39, %s40, %s41
      %p45 = pneg %p39
      %p46 = scmp.eq.s32.totalorder %s30, 1
      %p47 = por %p45, %p46
      %p48 = scmp.ne.s32.totalorder %s40, %s43
      %p49 = scmp.eq.s32.totalorder %s30, 0
      %p50 = por %p48, %p49
      %p51 = scmp.ne.s32.totalorder %s40, %s43
      %p52 = scmp.eq.s32.totalorder %s35, 1
      %p53 = por %p51, %p52
      %p54 = scmp.ne.s32.totalorder %s43, %s44
      %p55 = scmp.eq.s32.totalorder %s35, 0
      %p56 = por %p54, %p55
      %p57 = scmp.ne.s32.totalorder %s43, %s44
      %p58 = scmp.eq.s32.totalorder %s36, 1
      %p59 = por %p57, %p58
      %p61 = scmp.ne.s32.totalorder %s44, %s60
      %p62 = scmp.eq.s32.totalorder %s36, 0
      %p63 = por %p61, %p62
      %s65 = sadd.s32 %s64, 1
      %p68 = scmp.eq.s32.totalorder %s30, 1
      %p69 = scmp.ne.s32.totalorder %s64, %s66
      %p70 = scmp.eq.s32.totalorder %s30, 0
      %p71 = por %p69, %p70
      %p72 = scmp.ne.s32.totalorder %s64, %s66
      %p73 = scmp.eq.s32.totalorder %s35, 1
      %p74 = por %p72, %p73
      %p75 = scmp.ne.s32.totalorder %s66, %s67
      %p76 = scmp.eq.s32.totalorder %s35, 0
      %p77 = por %p75, %p76
      %p78 = scmp.ne.s32.totalorder %s66, %s67
      %p79 = scmp.eq.s32.totalorder %s36, 1
      %p80 = por %p78, %p79
      %p82 = scmp.ne.s32.totalorder %s67, %s81
      %p83 = scmp.eq.s32.totalorder %s36, 0
      %p84 = por %p82, %p83
      %s86 = sadd.s32 %s85, 1
      %p89 = scmp.eq.s32.totalorder %s30, 1
      %p90 = scmp.ne.s32.totalorder %s85, %s87
      %p91 = scmp.eq.s32.totalorder %s30, 0
      %p92 = por %p90, %p91
      %p93 = scmp.ne.s32.totalorder %s85, %s87
      %p94 = scmp.eq.s32.totalorder %s35, 1
      %p95 = por %p93, %p94
      %p96 = scmp.ne.s32.totalorder %s87, %s88
      %p97 = scmp.eq.s32.totalorder %s35, 0
      %p98 = por %p96, %p97
      %p99 = scmp.ne.s32.totalorder %s87, %s88
      %p100 = scmp.eq.s32.totalorder %s36, 1
      %p101 = por %p99, %p100
      %p103 = scmp.ne.s32.totalorder %s88, %s102
      %p104 = scmp.eq.s32.totalorder %s36, 0
      %p105 = por %p103, %p104
      %s107 = sadd.s32 %s106, 1
      %p110 = scmp.eq.s32.totalorder %s30, 1
      %p111 = scmp.ne.s32.totalorder %s106, %s108
      %p112 = scmp.eq.s32.totalorder %s30, 0
      %p113 = por %p111, %p112
      %p114 = scmp.ne.s32.totalorder %s106, %s108
      %p115 = scmp.eq.s32.totalorder %s35, 1
      %p116 = por %p114, %p115
      %p117 = scmp.ne.s32.totalorder %s108, %s109
      %p118 = scmp.eq.s32.totalorder %s35, 0
      %p119 = por %p117, %p118
      %p120 = scmp.ne.s32.totalorder %s108, %s109
      %p121 = scmp.eq.s32.totalorder %s36, 1
      %p122 = por %p120, %p121
      %p124 = scmp.ne.s32.totalorder %s109, %s123
      %p125 = scmp.eq.s32.totalorder %s36, 0
      %p126 = por %p124, %p125
      %s128 = sadd.s32 %s127, 1
      %p131 = scmp.eq.s32.totalorder %s30, 1
      %p132 = scmp.ne.s32.totalorder %s127, %s129
      %p133 = scmp.eq.s32.totalorder %s30, 0
      %p134 = por %p132, %p133
      %p135 = scmp.ne.s32.totalorder %s127, %s129
      %p136 = scmp.eq.s32.totalorder %s35, 1
      %p137 = por %p135, %p136
      %p138 = scmp.ne.s32.totalorder %s129, %s130
      %p139 = scmp.eq.s32.totalorder %s35, 0
      %p140 = por %p138, %p139
      %p141 = scmp.ne.s32.totalorder %s129, %s130
      %p142 = scmp.eq.s32.totalorder %s36, 1
      %p143 = por %p141, %p142
      %p145 = scmp.ne.s32.totalorder %s130, %s144
      %p146 = scmp.eq.s32.totalorder %s36, 0
      %p147 = por %p145, %p146
      %s149 = sadd.s32 %s148, 1
      %p152 = scmp.eq.s32.totalorder %s30, 1
      %p153 = scmp.ne.s32.totalorder %s148, %s150
      %p154 = scmp.eq.s32.totalorder %s30, 0
      %p155 = por %p153, %p154
      %p156 = scmp.ne.s32.totalorder %s148, %s150
      %p157 = scmp.eq.s32.totalorder %s35, 1
      %p158 = por %p156, %p157
      %p159 = scmp.ne.s32.totalorder %s150, %s151
      %p160 = scmp.eq.s32.totalorder %s35, 0
      %p161 = por %p159, %p160
      %p162 = scmp.ne.s32.totalorder %s150, %s151
      %p163 = scmp.eq.s32.totalorder %s36, 1
      %p164 = por %p162, %p163
      %p166 = scmp.ne.s32.totalorder %s151, %s165
      %p167 = scmp.eq.s32.totalorder %s36, 0
      %p168 = por %p166, %p167
      %s170 = sadd.s32 %s169, 1
      %p173 = scmp.eq.s32.totalorder %s30, 1
      %p174 = scmp.ne.s32.totalorder %s169, %s171
      %p175 = scmp.eq.s32.totalorder %s30, 0
      %p176 = por %p174, %p175
      %p177 = scmp.ne.s32.totalorder %s169, %s171
      %p178 = scmp.eq.s32.totalorder %s35, 1
      %p179 = por %p177, %p178
      %p180 = scmp.ne.s32.totalorder %s171, %s172
      %p181 = scmp.eq.s32.totalorder %s35, 0
      %p182 = por %p180, %p181
      %p183 = scmp.ne.s32.totalorder %s171, %s172
      %p184 = scmp.eq.s32.totalorder %s36, 1
      %p185 = por %p183, %p184
      %p187 = scmp.ne.s32.totalorder %s172, %s186
      %p188 = scmp.eq.s32.totalorder %s36, 0
      %p189 = por %p187, %p188
      %s191 = sadd.s32 %s190, 1
      %p194 = scmp.eq.s32.totalorder %s30, 1
      %p195 = scmp.ne.s32.totalorder %s190, %s192
      %p196 = scmp.eq.s32.totalorder %s30, 0
      %p197 = por %p195, %p196
      %p198 = scmp.ne.s32.totalorder %s190, %s192
      %p199 = scmp.eq.s32.totalorder %s35, 1
      %p200 = por %p198, %p199
      %p201 = scmp.ne.s32.totalorder %s192, %s193
      %p202 = scmp.eq.s32.totalorder %s35, 0
      %p203 = por %p201, %p202
      %p204 = scmp.ne.s32.totalorder %s192, %s193
      %p205 = scmp.eq.s32.totalorder %s36, 1
      %p206 = por %p204, %p205
      %p208 = scmp.ne.s32.totalorder %s193, %s207
      %p209 = scmp.eq.s32.totalorder %s36, 0
      %p210 = por %p208, %p209
      %s212 = sadd.s32 %s211, 1
      %p215 = scmp.eq.s32.totalorder %s30, 1
      %p216 = scmp.ne.s32.totalorder %s211, %s213
      %p217 = scmp.eq.s32.totalorder %s30, 0
      %p218 = por %p216, %p217
      %p219 = scmp.ne.s32.totalorder %s211, %s213
      %p220 = scmp.eq.s32.totalorder %s35, 1
      %p221 = por %p219, %p220
      %p222 = scmp.ne.s32.totalorder %s213, %s214
      %p223 = scmp.eq.s32.totalorder %s35, 0
      %p224 = por %p222, %p223
      %p225 = scmp.ne.s32.totalorder %s213, %s214
      %p226 = scmp.eq.s32.totalorder %s36, 1
      %p227 = por %p225, %p226
      %p229 = scmp.ne.s32.totalorder %s214, %s228
      %p230 = scmp.eq.s32.totalorder %s36, 0
      %p231 = por %p229, %p230
      %s233 = sadd.s32 %s232, 1
      %p236 = scmp.eq.s32.totalorder %s30, 1
      %p237 = scmp.ne.s32.totalorder %s232, %s234
      %p238 = scmp.eq.s32.totalorder %s30, 0
      %p239 = por %p237, %p238
      %p240 = scmp.ne.s32.totalorder %s232, %s234
      %p241 = scmp.eq.s32.totalorder %s35, 1
      %p242 = por %p240, %p241
      %p243 = scmp.ne.s32.totalorder %s234, %s235
      %p244 = scmp.eq.s32.totalorder %s35, 0
      %p245 = por %p243, %p244
      %p246 = scmp.ne.s32.totalorder %s234, %s235
      %p247 = scmp.eq.s32.totalorder %s36, 1
      %p248 = por %p246, %p247
      %p250 = scmp.ne.s32.totalorder %s235, %s249
      %p251 = scmp.eq.s32.totalorder %s36, 0
      %p252 = por %p250, %p251
      %s254 = sadd.s32 %s253, 1
      %p257 = scmp.eq.s32.totalorder %s30, 1
      %p258 = scmp.ne.s32.totalorder %s253, %s255
      %p259 = scmp.eq.s32.totalorder %s30, 0
      %p260 = por %p258, %p259
      %p261 = scmp.ne.s32.totalorder %s253, %s255
      %p262 = scmp.eq.s32.totalorder %s35, 1
      %p263 = por %p261, %p262
      %p264 = scmp.ne.s32.totalorder %s255, %s256
      %p265 = scmp.eq.s32.totalorder %s35, 0
      %p266 = por %p264, %p265
      %p267 = scmp.ne.s32.totalorder %s255, %s256
      %p268 = scmp.eq.s32.totalorder %s36, 1
      %p269 = por %p267, %p268
      %p271 = scmp.ne.s32.totalorder %s256, %s270
      %p272 = scmp.eq.s32.totalorder %s36, 0
      %p273 = por %p271, %p272
      %s275 = sadd.s32 %s274, 1
      %p278 = scmp.eq.s32.totalorder %s30, 1
      %p279 = scmp.ne.s32.totalorder %s274, %s276
      %p280 = scmp.eq.s32.totalorder %s30, 0
      %p281 = por %p279, %p280
      %p282 = scmp.ne.s32.totalorder %s274, %s276
      %p283 = scmp.eq.s32.totalorder %s35, 1
      %p284 = por %p282, %p283
      %p285 = scmp.ne.s32.totalorder %s276, %s277
      %p286 = scmp.eq.s32.totalorder %s35, 0
      %p287 = por %p285, %p286
      %p288 = scmp.ne.s32.totalorder %s276, %s277
      %p289 = scmp.eq.s32.totalorder %s36, 1
      %p290 = por %p288, %p289
      %p292 = scmp.ne.s32.totalorder %s277, %s291
      %p293 = scmp.eq.s32.totalorder %s36, 0
      %p294 = por %p292, %p293
      %s296 = sadd.s32 %s295, 1
      %p299 = scmp.eq.s32.totalorder %s30, 1
      %p300 = scmp.ne.s32.totalorder %s295, %s297
      %p301 = scmp.eq.s32.totalorder %s30, 0
      %p302 = por %p300, %p301
      %p303 = scmp.ne.s32.totalorder %s295, %s297
      %p304 = scmp.eq.s32.totalorder %s35, 1
      %p305 = por %p303, %p304
      %p306 = scmp.ne.s32.totalorder %s297, %s298
      %p307 = scmp.eq.s32.totalorder %s35, 0
      %p308 = por %p306, %p307
      %p309 = scmp.ne.s32.totalorder %s297, %s298
      %p310 = scmp.eq.s32.totalorder %s36, 1
      %p311 = por %p309, %p310
      %p313 = scmp.ne.s32.totalorder %s298, %s312
      %p314 = scmp.eq.s32.totalorder %s36, 0
      %p315 = por %p313, %p314
      %s317 = sadd.s32 %s316, 1
      %p320 = scmp.eq.s32.totalorder %s30, 1
      %p321 = scmp.ne.s32.totalorder %s316, %s318
      %p322 = scmp.eq.s32.totalorder %s30, 0
      %p323 = por %p321, %p322
      %p324 = scmp.ne.s32.totalorder %s316, %s318
      %p325 = scmp.eq.s32.totalorder %s35, 1
      %p326 = por %p324, %p325
      %p327 = scmp.ne.s32.totalorder %s318, %s319
      %p328 = scmp.eq.s32.totalorder %s35, 0
      %p329 = por %p327, %p328
      %p330 = scmp.ne.s32.totalorder %s318, %s319
      %p331 = scmp.eq.s32.totalorder %s36, 1
      %p332 = por %p330, %p331
      %p334 = scmp.ne.s32.totalorder %s319, %s333
      %p335 = scmp.eq.s32.totalorder %s36, 0
      %p336 = por %p334, %p335
      %s338 = sadd.s32 %s337, 1
      %p341 = scmp.eq.s32.totalorder %s30, 1
      %p342 = scmp.ne.s32.totalorder %s337, %s339
      %p343 = scmp.eq.s32.totalorder %s30, 0
      %p344 = por %p342, %p343
      %p345 = scmp.ne.s32.totalorder %s337, %s339
      %p346 = scmp.eq.s32.totalorder %s35, 1
      %p347 = por %p345, %p346
      %p348 = scmp.ne.s32.totalorder %s339, %s340
      %p349 = scmp.eq.s32.totalorder %s35, 0
      %p350 = por %p348, %p349
      %p351 = scmp.ne.s32.totalorder %s339, %s340
      %p352 = scmp.eq.s32.totalorder %s36, 1
      %p353 = por %p351, %p352
      %p355 = scmp.ne.s32.totalorder %s340, %s354
      %p356 = scmp.eq.s32.totalorder %s36, 0
      %p357 = por %p355, %p356
      %s359 = sadd.s32 %s358, 1
      %p362 = scmp.eq.s32.totalorder %s30, 1
      %p363 = scmp.ne.s32.totalorder %s358, %s360
      %p364 = scmp.eq.s32.totalorder %s30, 0
      %p365 = por %p363, %p364
      %p366 = scmp.ne.s32.totalorder %s358, %s360
      %p367 = scmp.eq.s32.totalorder %s35, 1
      %p368 = por %p366, %p367
      %p369 = scmp.ne.s32.totalorder %s360, %s361
      %p370 = scmp.eq.s32.totalorder %s35, 0
      %p371 = por %p369, %p370
      %p372 = scmp.ne.s32.totalorder %s360, %s361
      %p373 = scmp.eq.s32.totalorder %s36, 1
      %p374 = por %p372, %p373
      %p376 = scmp.ne.s32.totalorder %s361, %s375
      %p377 = scmp.eq.s32.totalorder %s36, 0
      %p378 = por %p376, %p377
      %s379 = ssub.s32 %s30, %s37
      %p380 = scmp.eq.s32.totalorder %s379, 0
      %s382 = sadd.s32 %s381, 1
      %s383 = scalar_select %p380, %s381, %s382
      %p386 = pneg %p380
      %p387 = scmp.eq.s32.totalorder %s30, 1
      %p388 = por %p386, %p387
      %p389 = scmp.ne.s32.totalorder %s381, %s384
      %p390 = scmp.eq.s32.totalorder %s30, 0
      %p391 = por %p389, %p390
      %p392 = scmp.ne.s32.totalorder %s381, %s384
      %p393 = scmp.eq.s32.totalorder %s35, 1
      %p394 = por %p392, %p393
      %p395 = scmp.ne.s32.totalorder %s384, %s385
      %p396 = scmp.eq.s32.totalorder %s35, 0
      %p397 = por %p395, %p396
      %p398 = scmp.ne.s32.totalorder %s384, %s385
      %p399 = scmp.eq.s32.totalorder %s36, 1
      %p400 = por %p398, %p399
      %p402 = scmp.ne.s32.totalorder %s385, %s401
      %p403 = scmp.eq.s32.totalorder %s36, 0
      %p404 = por %p402, %p403
      %p405 = scmp.le.s32.totalorder 1, %s30
      %p406 = scmp.lt.s32.totalorder %s30, 3
      %p407 = pnand %p405, %p406
      %p408 = pneg %p407
      // Predicated region
      $region9: #{ae_classifier_forward.1} parent=5 // pred_check
        _
      $region10: #{ae_classifier_forward.1} parent=5 // pred_check_branch
        %410 = sbr.rel (%p407) target = $region12
      $region11: #{ae_classifier_forward.1} parent=5 // pred_region
        %s411 = ssub.s32 %s30, 1
        // Predicated region
        $region13: #{ae_classifier_forward.1} parent=11 // pred_check
          %p412 = pneg %p77
        $region14: #{ae_classifier_forward.1} parent=11 // pred_check_branch
          %414 = sbr.rel (%p412) target = $region16
        $region15: #{ae_classifier_forward.1} parent=11 // pred_region
          %s416 = ssub.s32 3072, 3072
          %417 = vsyncadd [#allocation3], %s416
          %s418 = sshll.u32 [#allocation2], 4
          %s419 = int_to_ptr.vmem [resolvable:$true] %s418
          %424 = dma.hbm_to_vmem [thread:$0]  %s1, 3072, %s419, [#allocation3], 64, 64, 4
        $region16: #{ae_classifier_forward.1} parent=11 // pred_fallthru
          _
        // Predicated region
        $region17: #{ae_classifier_forward.1} parent=11 // pred_check
          %p425 = pneg %p98
        $region18: #{ae_classifier_forward.1} parent=11 // pred_check_branch
          %427 = sbr.rel (%p425) target = $region20
        $region19: #{ae_classifier_forward.1} parent=11 // pred_region
          %s429 = ssub.s32 4608, 4608
          %430 = vsyncadd [#allocation6], %s429
          %s431 = sshll.u32 [#allocation5], 4
          %s432 = int_to_ptr.vmem [resolvable:$true] %s431
          %437 = dma.hbm_to_vmem [thread:$0]  %s2, 4608, %s432, [#allocation6], 128, 128, 8
        $region20: #{ae_classifier_forward.1} parent=11 // pred_fallthru
          _
        // Predicated region
        $region21: #{ae_classifier_forward.1} parent=11 // pred_check
          %p438 = pneg %p119
        $region22: #{ae_classifier_forward.1} parent=11 // pred_check_branch
          %440 = sbr.rel (%p438) target = $region24
        $region23: #{ae_classifier_forward.1} parent=11 // pred_region
          %s442 = ssub.s32 4608, 4608
          %443 = vsyncadd [#allocation6], %s442
          %s444 = sshll.u32 [#allocation7], 4
          %s445 = int_to_ptr.vmem [resolvable:$true] %s444
          %450 = dma.hbm_to_vmem [thread:$0]  %s3, 4608, %s445, [#allocation6], 128, 128, 8
        $region24: #{ae_classifier_forward.1} parent=11 // pred_fallthru
          _
        // Predicated region
        $region25: #{ae_classifier_forward.1} parent=11 // pred_check
          %p451 = pneg %p140
        $region26: #{ae_classifier_forward.1} parent=11 // pred_check_branch
          %453 = sbr.rel (%p451) target = $region28
        $region27: #{ae_classifier_forward.1} parent=11 // pred_region
          %s455 = ssub.s32 32, 32
          %456 = vsyncadd [#allocation9], %s455
          %s458 = sshll.u32 [#allocation8], 4
          %s459 = int_to_ptr.vmem [resolvable:$true] %s458
          %461 = dma.hbm_to_vmem [thread:$0]  %s4, 32, %s459, [#allocation9]
        $region28: #{ae_classifier_forward.1} parent=11 // pred_fallthru
          _
        // Predicated region
        $region29: #{ae_classifier_forward.1} parent=11 // pred_check
          %p462 = pneg %p161
        $region30: #{ae_classifier_forward.1} parent=11 // pred_check_branch
          %464 = sbr.rel (%p462) target = $region32
        $region31: #{ae_classifier_forward.1} parent=11 // pred_region
          _
        $region32: #{ae_classifier_forward.1} parent=11 // pred_fallthru
          _
        // Predicated region
        $region33: #{ae_classifier_forward.1} parent=11 // pred_check
          %p465 = pneg %p182
        $region34: #{ae_classifier_forward.1} parent=11 // pred_check_branch
          %467 = sbr.rel (%p465) target = $region36
        $region35: #{ae_classifier_forward.1} parent=11 // pred_region
          _
        $region36: #{ae_classifier_forward.1} parent=11 // pred_fallthru
          _
        // Predicated region
        $region37: #{ae_classifier_forward.1} parent=11 // pred_check
          %p468 = pneg %p203
        $region38: #{ae_classifier_forward.1} parent=11 // pred_check_branch
          %470 = sbr.rel (%p468) target = $region40
        $region39: #{ae_classifier_forward.1} parent=11 // pred_region
          %s472 = ssub.s32 1536, 1536
          %473 = vsyncadd [#allocation9], %s472
          %s474 = sshll.u32 [#allocation10], 4
          %s475 = int_to_ptr.vmem [resolvable:$true] %s474
          %480 = dma.hbm_to_vmem [thread:$0]  %s7, 1536, %s475, [#allocation9], 64, 64, 4
        $region40: #{ae_classifier_forward.1} parent=11 // pred_fallthru
          _
        // Predicated region
        $region41: #{ae_classifier_forward.1} parent=11 // pred_check
          %p481 = pneg %p224
        $region42: #{ae_classifier_forward.1} parent=11 // pred_check_branch
          %483 = sbr.rel (%p481) target = $region44
        $region43: #{ae_classifier_forward.1} parent=11 // pred_region
          _
        $region44: #{ae_classifier_forward.1} parent=11 // pred_fallthru
          _
        // Predicated region
        $region45: #{ae_classifier_forward.1} parent=11 // pred_check
          %p484 = pneg %p245
        $region46: #{ae_classifier_forward.1} parent=11 // pred_check_branch
          %486 = sbr.rel (%p484) target = $region48
        $region47: #{ae_classifier_forward.1} parent=11 // pred_region
          _
        $region48: #{ae_classifier_forward.1} parent=11 // pred_fallthru
          _
        // Predicated region
        $region49: #{ae_classifier_forward.1} parent=11 // pred_check
          %p487 = pneg %p266
        $region50: #{ae_classifier_forward.1} parent=11 // pred_check_branch
          %489 = sbr.rel (%p487) target = $region52
        $region51: #{ae_classifier_forward.1} parent=11 // pred_region
          %s491 = ssub.s32 32, 32
          %492 = vsyncadd [#allocation12], %s491
          %s494 = sshll.u32 [#allocation11], 4
          %s495 = int_to_ptr.vmem [resolvable:$true] %s494
          %497 = dma.hbm_to_vmem [thread:$0]  %s10, 32, %s495, [#allocation12]
        $region52: #{ae_classifier_forward.1} parent=11 // pred_fallthru
          _
        // Predicated region
        $region53: #{ae_classifier_forward.1} parent=11 // pred_check
          %p498 = pneg %p287
        $region54: #{ae_classifier_forward.1} parent=11 // pred_check_branch
          %500 = sbr.rel (%p498) target = $region56
        $region55: #{ae_classifier_forward.1} parent=11 // pred_region
          _
        $region56: #{ae_classifier_forward.1} parent=11 // pred_fallthru
          _
        // Predicated region
        $region57: #{ae_classifier_forward.1} parent=11 // pred_check
          %p501 = pneg %p308
        $region58: #{ae_classifier_forward.1} parent=11 // pred_check_branch
          %503 = sbr.rel (%p501) target = $region60
        $region59: #{ae_classifier_forward.1} parent=11 // pred_region
          %s505 = ssub.s32 256, 256
          %506 = vsyncadd [#allocation12], %s505
          %s507 = sshll.u32 [#allocation13], 4
          %s508 = int_to_ptr.vmem [resolvable:$true] %s507
          %513 = dma.hbm_to_vmem [thread:$0]  %s12, 256, %s508, [#allocation12], 64, 64, 4
        $region60: #{ae_classifier_forward.1} parent=11 // pred_fallthru
          _
        // Predicated region
        $region61: #{ae_classifier_forward.1} parent=11 // pred_check
          %p514 = pneg %p329
        $region62: #{ae_classifier_forward.1} parent=11 // pred_check_branch
          %516 = sbr.rel (%p514) target = $region64
        $region63: #{ae_classifier_forward.1} parent=11 // pred_region
          _
        $region64: #{ae_classifier_forward.1} parent=11 // pred_fallthru
          _
        // Predicated region
        $region65: #{ae_classifier_forward.1} parent=11 // pred_check
          %p517 = pneg %p350
        $region66: #{ae_classifier_forward.1} parent=11 // pred_check_branch
          %519 = sbr.rel (%p517) target = $region68
        $region67: #{ae_classifier_forward.1} parent=11 // pred_region
          %s521 = ssub.s32 256, 256
          %522 = vsyncadd [#allocation15], %s521
          %s523 = sshll.u32 [#allocation14], 4
          %s524 = int_to_ptr.vmem [resolvable:$true] %s523
          %529 = dma.hbm_to_vmem [thread:$0]  %s14, 256, %s524, [#allocation15], 32, 32, 2
        $region68: #{ae_classifier_forward.1} parent=11 // pred_fallthru
          _
        // Predicated region
        $region69: #{ae_classifier_forward.1} parent=11 // pred_check
          %p530 = pneg %p371
        $region70: #{ae_classifier_forward.1} parent=11 // pred_check_branch
          %532 = sbr.rel (%p530) target = $region72
        $region71: #{ae_classifier_forward.1} parent=11 // pred_region
          _
        $region72: #{ae_classifier_forward.1} parent=11 // pred_fallthru
          _
      $region12: #{ae_classifier_forward.1} parent=5 // pred_fallthru
        _
      %p533 = scmp.lt.s32.totalorder %s30, 2
      // Predicated region
      $region73: #{ae_classifier_forward.1} parent=5 // pred_check
        %p534 = pneg %p533
      $region74: #{ae_classifier_forward.1} parent=5 // pred_check_branch
        %536 = sbr.rel (%p534) target = $region76
      $region75: #{ae_classifier_forward.1} parent=5 // pred_region
        // Predicated region
        $region77: #{ae_classifier_forward.1} parent=75 // pred_check
          %p537 = pneg %p50
        $region78: #{ae_classifier_forward.1} parent=75 // pred_check_branch
          %539 = sbr.rel (%p537) target = $region80
        $region79: #{ae_classifier_forward.1} parent=75 // pred_region
          %s540 = smul.u32 16, %s30
          %p541 = scmp.lt.s32.totalorder %s540, 31
          %s542 = scalar_select %p541, %s540, 31
          %s543 = smul.addr %s542, 4
          %s544 = scalar_lea.vmem %s0, %s543
          %s545 = smul.u32 16, %s30
        $region80: #{ae_classifier_forward.1} parent=75 // pred_fallthru
          _
      $region76: #{ae_classifier_forward.1} parent=5 // pred_fallthru
        _
      %p546 = scmp.le.s32.totalorder 1, %s30
      %p547 = scmp.lt.s32.totalorder %s30, 3
      %p548 = pnand %p546, %p547
      %p549 = pneg %p548
      // Predicated region
      $region81: #{ae_classifier_forward.1} parent=5 // pred_check
        _
      $region82: #{ae_classifier_forward.1} parent=5 // pred_check_branch
        %551 = sbr.rel (%p548) target = $region84
      $region83: #{ae_classifier_forward.1} parent=5 // pred_region
        %s552 = ssub.s32 %s30, 1
        // Predicated region
        $region85: #{ae_classifier_forward.1} parent=83 // pred_check
          %p553 = pneg %p77
        $region86: #{ae_classifier_forward.1} parent=83 // pred_check_branch
          %555 = sbr.rel (%p553) target = $region88
        $region87: #{ae_classifier_forward.1} parent=83 // pred_region
          %556 = dma.done [#allocation3], 3072
        $region88: #{ae_classifier_forward.1} parent=83 // pred_fallthru
          _
        // Predicated region
        $region89: #{ae_classifier_forward.1} parent=83 // pred_check
          %p557 = pneg %p98
        $region90: #{ae_classifier_forward.1} parent=83 // pred_check_branch
          %559 = sbr.rel (%p557) target = $region92
        $region91: #{ae_classifier_forward.1} parent=83 // pred_region
          %560 = dma.done [#allocation6], 4608
        $region92: #{ae_classifier_forward.1} parent=83 // pred_fallthru
          _
        // Predicated region
        $region93: #{ae_classifier_forward.1} parent=83 // pred_check
          %p561 = pneg %p119
        $region94: #{ae_classifier_forward.1} parent=83 // pred_check_branch
          %563 = sbr.rel (%p561) target = $region96
        $region95: #{ae_classifier_forward.1} parent=83 // pred_region
          %564 = dma.done [#allocation6], 4608
        $region96: #{ae_classifier_forward.1} parent=83 // pred_fallthru
          _
        // Predicated region
        $region97: #{ae_classifier_forward.1} parent=83 // pred_check
          %p565 = pneg %p140
        $region98: #{ae_classifier_forward.1} parent=83 // pred_check_branch
          %567 = sbr.rel (%p565) target = $region100
        $region99: #{ae_classifier_forward.1} parent=83 // pred_region
          %568 = dma.done [#allocation9], 32
        $region100: #{ae_classifier_forward.1} parent=83 // pred_fallthru
          _
        // Predicated region
        $region101: #{ae_classifier_forward.1} parent=83 // pred_check
          %p569 = pneg %p203
        $region102: #{ae_classifier_forward.1} parent=83 // pred_check_branch
          %571 = sbr.rel (%p569) target = $region104
        $region103: #{ae_classifier_forward.1} parent=83 // pred_region
          %572 = dma.done [#allocation9], 1536
        $region104: #{ae_classifier_forward.1} parent=83 // pred_fallthru
          _
        // Predicated region
        $region105: #{ae_classifier_forward.1} parent=83 // pred_check
          %p573 = pneg %p266
        $region106: #{ae_classifier_forward.1} parent=83 // pred_check_branch
          %575 = sbr.rel (%p573) target = $region108
        $region107: #{ae_classifier_forward.1} parent=83 // pred_region
          %576 = dma.done [#allocation12], 32
        $region108: #{ae_classifier_forward.1} parent=83 // pred_fallthru
          _
        // Predicated region
        $region109: #{ae_classifier_forward.1} parent=83 // pred_check
          %p577 = pneg %p308
        $region110: #{ae_classifier_forward.1} parent=83 // pred_check_branch
          %579 = sbr.rel (%p577) target = $region112
        $region111: #{ae_classifier_forward.1} parent=83 // pred_region
          %580 = dma.done [#allocation12], 256
        $region112: #{ae_classifier_forward.1} parent=83 // pred_fallthru
          _
        // Predicated region
        $region113: #{ae_classifier_forward.1} parent=83 // pred_check
          %p581 = pneg %p350
        $region114: #{ae_classifier_forward.1} parent=83 // pred_check_branch
          %583 = sbr.rel (%p581) target = $region116
        $region115: #{ae_classifier_forward.1} parent=83 // pred_region
          %584 = dma.done [#allocation15], 256
        $region116: #{ae_classifier_forward.1} parent=83 // pred_fallthru
          _
        %s585 = smul.u32 16, %s35
        %p586 = scmp.lt.s32.totalorder %s585, 31
        %s587 = scalar_select %p586, %s585, 31
        %s588 = smul.addr %s587, 4
        %s589 = scalar_lea.vmem %s0, %s588
        %p590 = pneg %p56
        %p591 = pneg %p53
        %p592 = pneg %p77
        %p593 = pneg %p74
        %p594 = pneg %p98
        %p595 = pneg %p95
        %p596 = pneg %p119
        %p597 = pneg %p116
        %p598 = pneg %p140
        %p599 = pneg %p137
        %p600 = pneg %p161
        %p601 = pneg %p158
        %p602 = pneg %p182
        %p603 = pneg %p179
        %p604 = pneg %p203
        %p605 = pneg %p200
        %p606 = pneg %p224
        %p607 = pneg %p221
        %p608 = pneg %p245
        %p609 = pneg %p242
        %p610 = pneg %p266
        %p611 = pneg %p263
        %p612 = pneg %p287
        %p613 = pneg %p284
        %p614 = pneg %p308
        %p615 = pneg %p305
        %p616 = pneg %p329
        %p617 = pneg %p326
        %p618 = pneg %p350
        %p619 = pneg %p347
        %p620 = pneg %p371
        %p621 = pneg %p368
        %p622 = pneg %p397
        %p623 = pneg %p394
        %s624 = sand.u32 %s384, 1
        %s625 = scalar_lea.sflag [#allocation4], %s624
        %s626 = sand.u32 %s384, 1
        %s627 = smul.addr %s626, 4
        %s628 = scalar_lea.vmem [#allocation16], %s627
        %s629 = smul.u32 16, %s35
        %p630 = scmp.lt.s32.totalorder %s629, 31
        %s631 = scalar_select %p630, %s629, 31
        %s632 = smul.addr %s631, 4
        %s633 = scalar_lea.vmem %s0, %s632
        %s634 = smul.u32 16, %s35
        %v636 = vld [vmem:[%s633] sm:$0xf]
        %v637 = vld [vmem:[%s633 + $0x4] sm:$0xf]
        %v638 = vld [vmem:[%s633 + $0x8] sm:$0xf]
        %v639 = vld [vmem:[%s633 + $0xc] sm:$0xf]
        %v640 = vld [vmem:[%s633 + $0x10] sm:$0xf]
        %v641 = vld [vmem:[%s633 + $0x14] sm:$0xf]
        %v642 = vld [vmem:[%s633 + $0x18] sm:$0xf]
        %v643 = vld [vmem:[%s633 + $0x1c] sm:$0xf]
        %v644 = vld [vmem:[%s633 + $0x20] sm:$0xf]
        %v645 = vld [vmem:[%s633 + $0x24] sm:$0xf]
        %v646 = vld [vmem:[%s633 + $0x28] sm:$0xf]
        %v647 = vld [vmem:[%s633 + $0x2c] sm:$0xf]
        %v648 = vld [vmem:[%s633 + $0x30] sm:$0xf]
        %v649 = vld [vmem:[%s633 + $0x34] sm:$0xf]
        %v650 = vld [vmem:[%s633 + $0x38] sm:$0xf]
        %v651 = vld [vmem:[%s633 + $0x3c] sm:$0xf]
        %v652 = vld [vmem:[#allocation2] sm:$0xf]
        %v653 = vld [vmem:[#allocation2 + $0x4] sm:$0xf]
        %v654 = vld [vmem:[#allocation2 + $0x8] sm:$0xf]
        %v655 = vld [vmem:[#allocation2 + $0xc] sm:$0xf]
        %v656 = vld [vmem:[#allocation2 + $0x10] sm:$0xf]
        %v657 = vld [vmem:[#allocation2 + $0x14] sm:$0xf]
        %v658 = vld [vmem:[#allocation2 + $0x18] sm:$0xf]
        %v659 = vld [vmem:[#allocation2 + $0x1c] sm:$0xf]
        %v660 = vld [vmem:[#allocation2 + $0x20] sm:$0xf]
        %v661 = vld [vmem:[#allocation2 + $0x24] sm:$0xf]
        %v662 = vld [vmem:[#allocation2 + $0x28] sm:$0xf]
        %v663 = vld [vmem:[#allocation2 + $0x2c] sm:$0xf]
        %v664 = vld [vmem:[#allocation2 + $0x30] sm:$0xf]
        %v665 = vld [vmem:[#allocation2 + $0x34] sm:$0xf]
        %v666 = vld [vmem:[#allocation2 + $0x38] sm:$0xf]
        %v667 = vld [vmem:[#allocation2 + $0x3c] sm:$0xf]
        %v684 = vunpack.c.l.b16 %v652
        %v685 = vunpack.c.l.b16 %v653
        %v686 = vunpack.c.l.b16 %v654
        %v687 = vunpack.c.l.b16 %v655
        %v688 = vunpack.c.l.b16 %v656
        %v689 = vunpack.c.l.b16 %v657
        %v690 = vunpack.c.l.b16 %v658
        %v691 = vunpack.c.l.b16 %v659
        %v692 = vunpack.c.l.b16 %v660
        %v693 = vunpack.c.l.b16 %v661
        %v694 = vunpack.c.l.b16 %v662
        %v695 = vunpack.c.l.b16 %v663
        %v696 = vunpack.c.l.b16 %v664
        %v697 = vunpack.c.l.b16 %v665
        %v698 = vunpack.c.l.b16 %v666
        %v699 = vunpack.c.l.b16 %v667
        %v700 = vpack.c.b16 %v685, %v684
        %v701 = vpack.c.b16 %v687, %v686
        %v702 = vpack.c.b16 %v689, %v688
        %v703 = vpack.c.b16 %v691, %v690
        %v704 = vpack.c.b16 %v693, %v692
        %v705 = vpack.c.b16 %v695, %v694
        %v706 = vpack.c.b16 %v697, %v696
        %v707 = vpack.c.b16 %v699, %v698
        %v732 = vunpack.c.l.b16 %v636
        %v733 = vunpack.c.l.b16 %v637
        %v734 = vunpack.c.l.b16 %v638
        %v735 = vunpack.c.l.b16 %v639
        %v736 = vunpack.c.l.b16 %v640
        %v737 = vunpack.c.l.b16 %v641
        %v738 = vunpack.c.l.b16 %v642
        %v739 = vunpack.c.l.b16 %v643
        %v740 = vunpack.c.l.b16 %v644
        %v741 = vunpack.c.l.b16 %v645
        %v742 = vunpack.c.l.b16 %v646
        %v743 = vunpack.c.l.b16 %v647
        %v744 = vunpack.c.l.b16 %v648
        %v745 = vunpack.c.l.b16 %v649
        %v746 = vunpack.c.l.b16 %v650
        %v747 = vunpack.c.l.b16 %v651
        %v748 = vpack.c.b16 %v733, %v732
        %v749 = vpack.c.b16 %v735, %v734
        %v750 = vpack.c.b16 %v737, %v736
        %v751 = vpack.c.b16 %v739, %v738
        %v752 = vpack.c.b16 %v741, %v740
        %v753 = vpack.c.b16 %v743, %v742
        %v754 = vpack.c.b16 %v745, %v744
        %v755 = vpack.c.b16 %v747, %v746
        %764 = vmatprep.subr.bf16.mxu0 0
        %765 = vmatpush1.bf16.msra.mxu0 %v748
        %766 = vmatprep.subr.bf16.mxu0 0
        %767 = vmatpush1.bf16.msra.mxu0 %v749
        %768 = vmatprep.subr.bf16.mxu0 0
        %769 = vmatpush1.bf16.msra.mxu0 %v750
        %770 = vmatprep.subr.bf16.mxu0 0
        %771 = vmatpush1.bf16.msra.mxu0 %v751
        %772 = vmatprep.subr.bf16.mxu0 0
        %773 = vmatpush1.bf16.msra.mxu0 %v752
        %774 = vmatprep.subr.bf16.mxu0 0
        %775 = vmatpush1.bf16.msra.mxu0 %v753
        %776 = vmatprep.subr.bf16.mxu0 0
        %777 = vmatpush1.bf16.msra.mxu0 %v754
        %778 = vmatprep.subr.bf16.mxu0 0
        %779 = vmatpush1.bf16.msra.mxu0 %v755
        %780 = vmatprep.subr.bf16.mxu0 0
        %781 = vmatpush1.bf16.msra.mxu0 0
        %782 = vmatprep.subr.bf16.mxu0 0
        %783 = vmatpush1.bf16.msra.mxu0 0
        %784 = vmatprep.subr.bf16.mxu0 0
        %785 = vmatpush1.bf16.msra.mxu0 0
        %786 = vmatprep.subr.bf16.mxu0 0
        %787 = vmatpush1.bf16.msra.mxu0 0
        %788 = vmatprep.subr.bf16.mxu0 0
        %789 = vmatpush1.bf16.msra.mxu0 0
        %790 = vmatprep.subr.bf16.mxu0 0
        %791 = vmatpush1.bf16.msra.mxu0 0
        %792 = vmatprep.subr.bf16.mxu0 0
        %793 = vmatpush1.bf16.msra.mxu0 0
        %794 = vmatprep.subr.bf16.mxu0 0
        %795 = vmatpush1.bf16.msra.mxu0 0
        %796 = vmatprep.mubr.bf16.mxu0 0
        %797 = vmatmul.mubr.bf16.gmra.mrb[0].mxu0 %v700
        %v798 = vpop.f32.mrb[0].mxu0
        %v799 = vadd.f32 0.0, %v798
        %v800 = vpop.f32.mrb[0].mxu0
        %v801 = vpop.f32.mrb[0].mxu0
        %v802 = vadd.f32 0.0, %v801
        %v803 = vpop.f32.mrb[0].mxu0
        %804 = vmatprep.mubr.bf16.mxu0 0
        %805 = vmatmul.mubr.bf16.gmra.mrb[0].mxu0 %v701
        %v806 = vpop.f32.mrb[0].mxu0
        %v807 = vadd.f32 0.0, %v806
        %v808 = vpop.f32.mrb[0].mxu0
        %v809 = vpop.f32.mrb[0].mxu0
        %v810 = vadd.f32 0.0, %v809
        %v811 = vpop.f32.mrb[0].mxu0
        %812 = vmatprep.mubr.bf16.mxu0 0
        %813 = vmatmul.mubr.bf16.gmra.mrb[0].mxu0 %v702
        %v814 = vpop.f32.mrb[0].mxu0
        %v815 = vadd.f32 0.0, %v814
        %v816 = vpop.f32.mrb[0].mxu0
        %v817 = vpop.f32.mrb[0].mxu0
        %v818 = vadd.f32 0.0, %v817
        %v819 = vpop.f32.mrb[0].mxu0
        %820 = vmatprep.mubr.bf16.mxu0 0
        %821 = vmatmul.mubr.bf16.gmra.mrb[0].mxu0 %v703
        %v822 = vpop.f32.mrb[0].mxu0
        %v823 = vadd.f32 0.0, %v822
        %v824 = vpop.f32.mrb[0].mxu0
        %v825 = vpop.f32.mrb[0].mxu0
        %v826 = vadd.f32 0.0, %v825
        %v827 = vpop.f32.mrb[0].mxu0
        %828 = vmatprep.mubr.bf16.mxu0 0
        %829 = vmatmul.mubr.bf16.gmra.mrb[0].mxu0 %v704
        %v830 = vpop.f32.mrb[0].mxu0
        %v831 = vadd.f32 0.0, %v830
        %v832 = vpop.f32.mrb[0].mxu0
        %v833 = vpop.f32.mrb[0].mxu0
        %v834 = vadd.f32 0.0, %v833
        %v835 = vpop.f32.mrb[0].mxu0
        %836 = vmatprep.mubr.bf16.mxu0 0
        %837 = vmatmul.mubr.bf16.gmra.mrb[0].mxu0 %v705
        %v838 = vpop.f32.mrb[0].mxu0
        %v839 = vadd.f32 0.0, %v838
        %v840 = vpop.f32.mrb[0].mxu0
        %v841 = vpop.f32.mrb[0].mxu0
        %v842 = vadd.f32 0.0, %v841
        %v843 = vpop.f32.mrb[0].mxu0
        %844 = vmatprep.mubr.bf16.mxu0 0
        %845 = vmatmul.mubr.bf16.gmra.mrb[0].mxu0 %v706
        %v846 = vpop.f32.mrb[0].mxu0
        %v847 = vadd.f32 0.0, %v846
        %v848 = vpop.f32.mrb[0].mxu0
        %v849 = vpop.f32.mrb[0].mxu0
        %v850 = vadd.f32 0.0, %v849
        %v851 = vpop.f32.mrb[0].mxu0
        %852 = vmatprep.mubr.bf16.mxu0 0
        %853 = vmatmul.mubr.bf16.gmra.mrb[0].mxu0 %v707
        %v854 = vpop.f32.mrb[0].mxu0
        %v855 = vadd.f32 0.0, %v854
        %v856 = vpop.f32.mrb[0].mxu0
        %v857 = vpop.f32.mrb[0].mxu0
        %v858 = vadd.f32 0.0, %v857
        %v859 = vpop.f32.mrb[0].mxu0
        %860 = vdwg.mxu0
        %v861 = vpack.c.bf16 %v802, %v799
        %v862 = vpack.c.bf16 %v810, %v807
        %v863 = vpack.c.bf16 %v818, %v815
        %v864 = vpack.c.bf16 %v826, %v823
        %v865 = vpack.c.bf16 %v834, %v831
        %v866 = vpack.c.bf16 %v842, %v839
        %v867 = vpack.c.bf16 %v850, %v847
        %v868 = vpack.c.bf16 %v858, %v855
        %v869 = vld [vmem:[#allocation5] sm:$0xff]
        %v870 = vld [vmem:[#allocation5 + $0x8] sm:$0xff]
        %v871 = vld [vmem:[#allocation5 + $0x10] sm:$0xff]
        %v872 = vld [vmem:[#allocation5 + $0x18] sm:$0xff]
        %v873 = vld [vmem:[#allocation5 + $0x20] sm:$0xff]
        %v874 = vld [vmem:[#allocation5 + $0x28] sm:$0xff]
        %v875 = vld [vmem:[#allocation5 + $0x30] sm:$0xff]
        %v876 = vld [vmem:[#allocation5 + $0x38] sm:$0xff]
        %v877 = vld [vmem:[#allocation5 + $0x40] sm:$0xff]
        %v878 = vld [vmem:[#allocation5 + $0x48] sm:$0xff]
        %v879 = vld [vmem:[#allocation5 + $0x50] sm:$0xff]
        %v880 = vld [vmem:[#allocation5 + $0x58] sm:$0xff]
        %v881 = vld [vmem:[#allocation7] sm:$0xff]
        %v882 = vld [vmem:[#allocation7 + $0x8] sm:$0xff]
        %v883 = vld [vmem:[#allocation7 + $0x10] sm:$0xff]
        %v884 = vld [vmem:[#allocation7 + $0x18] sm:$0xff]
        %v885 = vld [vmem:[#allocation7 + $0x20] sm:$0xff]
        %v886 = vld [vmem:[#allocation7 + $0x28] sm:$0xff]
        %v887 = vld [vmem:[#allocation7 + $0x30] sm:$0xff]
        %v888 = vld [vmem:[#allocation7 + $0x38] sm:$0xff]
        %v889 = vld [vmem:[#allocation7 + $0x40] sm:$0xff]
        %v890 = vld [vmem:[#allocation7 + $0x48] sm:$0xff]
        %v891 = vld [vmem:[#allocation7 + $0x50] sm:$0xff]
        %v892 = vld [vmem:[#allocation7 + $0x58] sm:$0xff]
        %s893 = scalar_lea.vmem [#allocation2], 64
        %v894 = vld [vmem:[%s893] sm:$0xf]
        %v895 = vld [vmem:[%s893 + $0x4] sm:$0xf]
        %v896 = vld [vmem:[%s893 + $0x8] sm:$0xf]
        %v897 = vld [vmem:[%s893 + $0xc] sm:$0xf]
        %v898 = vld [vmem:[%s893 + $0x10] sm:$0xf]
        %v899 = vld [vmem:[%s893 + $0x14] sm:$0xf]
        %v900 = vld [vmem:[%s893 + $0x18] sm:$0xf]
        %v901 = vld [vmem:[%s893 + $0x1c] sm:$0xf]
        %v902 = vld [vmem:[%s893 + $0x20] sm:$0xf]
        %v903 = vld [vmem:[%s893 + $0x24] sm:$0xf]
        %v904 = vld [vmem:[%s893 + $0x28] sm:$0xf]
        %v905 = vld [vmem:[%s893 + $0x2c] sm:$0xf]
        %v906 = vld [vmem:[%s893 + $0x30] sm:$0xf]
        %v907 = vld [vmem:[%s893 + $0x34] sm:$0xf]
        %v908 = vld [vmem:[%s893 + $0x38] sm:$0xf]
        %v909 = vld [vmem:[%s893 + $0x3c] sm:$0xf]
        %v926 = vunpack.c.l.b16 %v894
        %v927 = vunpack.c.l.b16 %v895
        %v928 = vunpack.c.l.b16 %v896
        %v929 = vunpack.c.l.b16 %v897
        %v930 = vunpack.c.l.b16 %v898
        %v931 = vunpack.c.l.b16 %v899
        %v932 = vunpack.c.l.b16 %v900
        %v933 = vunpack.c.l.b16 %v901
        %v934 = vunpack.c.l.b16 %v902
        %v935 = vunpack.c.l.b16 %v903
        %v936 = vunpack.c.l.b16 %v904
        %v937 = vunpack.c.l.b16 %v905
        %v938 = vunpack.c.l.b16 %v906
        %v939 = vunpack.c.l.b16 %v907
        %v940 = vunpack.c.l.b16 %v908
        %v941 = vunpack.c.l.b16 %v909
        %v942 = vpack.c.b16 %v927, %v926
        %v943 = vpack.c.b16 %v929, %v928
        %v944 = vpack.c.b16 %v931, %v930
        %v945 = vpack.c.b16 %v933, %v932
        %v946 = vpack.c.b16 %v935, %v934
        %v947 = vpack.c.b16 %v937, %v936
        %v948 = vpack.c.b16 %v939, %v938
        %v949 = vpack.c.b16 %v941, %v940
        %958 = vmatprep.subr.bf16.mxu0 0
        %959 = vmatpush1.bf16.msra.mxu0 %v748
        %960 = vmatprep.subr.bf16.mxu0 0
        %961 = vmatpush1.bf16.msra.mxu0 %v749
        %962 = vmatprep.subr.bf16.mxu0 0
        %963 = vmatpush1.bf16.msra.mxu0 %v750
        %964 = vmatprep.subr.bf16.mxu0 0
        %965 = vmatpush1.bf16.msra.mxu0 %v751
        %966 = vmatprep.subr.bf16.mxu0 0
        %967 = vmatpush1.bf16.msra.mxu0 %v752
        %968 = vmatprep.subr.bf16.mxu0 0
        %969 = vmatpush1.bf16.msra.mxu0 %v753
        %970 = vmatprep.subr.bf16.mxu0 0
        %971 = vmatpush1.bf16.msra.mxu0 %v754
        %972 = vmatprep.subr.bf16.mxu0 0
        %973 = vmatpush1.bf16.msra.mxu0 %v755
        %974 = vmatprep.subr.bf16.mxu0 0
        %975 = vmatpush1.bf16.msra.mxu0 0
        %976 = vmatprep.subr.bf16.mxu0 0
        %977 = vmatpush1.bf16.msra.mxu0 0
        %978 = vmatprep.subr.bf16.mxu0 0
        %979 = vmatpush1.bf16.msra.mxu0 0
        %980 = vmatprep.subr.bf16.mxu0 0
        %981 = vmatpush1.bf16.msra.mxu0 0
        %982 = vmatprep.subr.bf16.mxu0 0
        %983 = vmatpush1.bf16.msra.mxu0 0
        %984 = vmatprep.subr.bf16.mxu0 0
        %985 = vmatpush1.bf16.msra.mxu0 0
        %986 = vmatprep.subr.bf16.mxu0 0
        %987 = vmatpush1.bf16.msra.mxu0 0
        %988 = vmatprep.subr.bf16.mxu0 0
        %989 = vmatpush1.bf16.msra.mxu0 0
        %990 = vmatprep.mubr.bf16.mxu0 0
        %991 = vmatmul.mubr.bf16.gmra.mrb[0].mxu0 %v942
        %v992 = vpop.f32.mrb[0].mxu0
        %v993 = vadd.f32 0.0, %v992
        %v994 = vpop.f32.mrb[0].mxu0
        %v995 = vpop.f32.mrb[0].mxu0
        %v996 = vadd.f32 0.0, %v995
        %v997 = vpop.f32.mrb[0].mxu0
        %998 = vmatprep.mubr.bf16.mxu0 0
        %999 = vmatmul.mubr.bf16.gmra.mrb[0].mxu0 %v943
        %v1000 = vpop.f32.mrb[0].mxu0
        %v1001 = vadd.f32 0.0, %v1000
        %v1002 = vpop.f32.mrb[0].mxu0
        %v1003 = vpop.f32.mrb[0].mxu0
        %v1004 = vadd.f32 0.0, %v1003
        %v1005 = vpop.f32.mrb[0].mxu0
        %1006 = vmatprep.mubr.bf16.mxu0 0
        %1007 = vmatmul.mubr.bf16.gmra.mrb[0].mxu0 %v944
        %v1008 = vpop.f32.mrb[0].mxu0
        %v1009 = vadd.f32 0.0, %v1008
        %v1010 = vpop.f32.mrb[0].mxu0
        %v1011 = vpop.f32.mrb[0].mxu0
        %v1012 = vadd.f32 0.0, %v1011
        %v1013 = vpop.f32.mrb[0].mxu0
        %1014 = vmatprep.mubr.bf16.mxu0 0
        %1015 = vmatmul.mubr.bf16.gmra.mrb[0].mxu0 %v945
        %v1016 = vpop.f32.mrb[0].mxu0
        %v1017 = vadd.f32 0.0, %v1016
        %v1018 = vpop.f32.mrb[0].mxu0
        %v1019 = vpop.f32.mrb[0].mxu0
        %v1020 = vadd.f32 0.0, %v1019
        %v1021 = vpop.f32.mrb[0].mxu0
        %1022 = vmatprep.mubr.bf16.mxu0 0
        %1023 = vmatmul.mubr.bf16.gmra.mrb[0].mxu0 %v946
        %v1024 = vpop.f32.mrb[0].mxu0
        %v1025 = vadd.f32 0.0, %v1024
        %v1026 = vpop.f32.mrb[0].mxu0
        %v1027 = vpop.f32.mrb[0].mxu0
        %v1028 = vadd.f32 0.0, %v1027
        %v1029 = vpop.f32.mrb[0].mxu0
        %1030 = vmatprep.mubr.bf16.mxu0 0
        %1031 = vmatmul.mubr.bf16.gmra.mrb[0].mxu0 %v947
        %v1032 = vpop.f32.mrb[0].mxu0
        %v1033 = vadd.f32 0.0, %v1032
        %v1034 = vpop.f32.mrb[0].mxu0
        %v1035 = vpop.f32.mrb[0].mxu0
        %v1036 = vadd.f32 0.0, %v1035
        %v1037 = vpop.f32.mrb[0].mxu0
        %1038 = vmatprep.mubr.bf16.mxu0 0
        %1039 = vmatmul.mubr.bf16.gmra.mrb[0].mxu0 %v948
        %v1040 = vpop.f32.mrb[0].mxu0
        %v1041 = vadd.f32 0.0, %v1040
        %v1042 = vpop.f32.mrb[0].mxu0
        %v1043 = vpop.f32.mrb[0].mxu0
        %v1044 = vadd.f32 0.0, %v1043
        %v1045 = vpop.f32.mrb[0].mxu0
        %1046 = vmatprep.mubr.bf16.mxu0 0
        %1047 = vmatmul.mubr.bf16.gmra.mrb[0].mxu0 %v949
        %v1048 = vpop.f32.mrb[0].mxu0
        %v1049 = vadd.f32 0.0, %v1048
        %v1050 = vpop.f32.mrb[0].mxu0
        %v1051 = vpop.f32.mrb[0].mxu0
        %v1052 = vadd.f32 0.0, %v1051
        %v1053 = vpop.f32.mrb[0].mxu0
        %1054 = vdwg.mxu0
        %v1055 = vpack.c.bf16 %v996, %v993
        %v1056 = vpack.c.bf16 %v1004, %v1001
        %v1057 = vpack.c.bf16 %v1012, %v1009
        %v1058 = vpack.c.bf16 %v1020, %v1017
        %v1059 = vpack.c.bf16 %v1028, %v1025
        %v1060 = vpack.c.bf16 %v1036, %v1033
        %v1061 = vpack.c.bf16 %v1044, %v1041
        %v1062 = vpack.c.bf16 %v1052, %v1049
        %s1063 = scalar_lea.vmem [#allocation5], 96
        %v1064 = vld [vmem:[%s1063] sm:$0xff]
        %v1065 = vld [vmem:[%s1063 + $0x8] sm:$0xff]
        %v1066 = vld [vmem:[%s1063 + $0x10] sm:$0xff]
        %v1067 = vld [vmem:[%s1063 + $0x18] sm:$0xff]
        %v1068 = vld [vmem:[%s1063 + $0x20] sm:$0xff]
        %v1069 = vld [vmem:[%s1063 + $0x28] sm:$0xff]
        %v1070 = vld [vmem:[%s1063 + $0x30] sm:$0xff]
        %v1071 = vld [vmem:[%s1063 + $0x38] sm:$0xff]
        %v1072 = vld [vmem:[%s1063 + $0x40] sm:$0xff]
        %v1073 = vld [vmem:[%s1063 + $0x48] sm:$0xff]
        %v1074 = vld [vmem:[%s1063 + $0x50] sm:$0xff]
        %v1075 = vld [vmem:[%s1063 + $0x58] sm:$0xff]
        %v1088 = vunpack.c.l.b16 %v1064
        %v1089 = vunpack.c.h.b16 %v1064
        %v1090 = vunpack.c.l.b16 %v1065
        %v1091 = vunpack.c.h.b16 %v1065
        %v1092 = vunpack.c.l.b16 %v1066
        %v1093 = vunpack.c.h.b16 %v1066
        %v1094 = vunpack.c.l.b16 %v1067
        %v1095 = vunpack.c.h.b16 %v1067
        %v1096 = vunpack.c.l.b16 %v1068
        %v1097 = vunpack.c.h.b16 %v1068
        %v1098 = vunpack.c.l.b16 %v1069
        %v1099 = vunpack.c.h.b16 %v1069
        %v1100 = vunpack.c.l.b16 %v1070
        %v1101 = vunpack.c.h.b16 %v1070
        %v1102 = vunpack.c.l.b16 %v1071
        %v1103 = vunpack.c.h.b16 %v1071
        %v1104 = vunpack.c.l.b16 %v1072
        %v1105 = vunpack.c.h.b16 %v1072
        %v1106 = vunpack.c.l.b16 %v1073
        %v1107 = vunpack.c.h.b16 %v1073
        %v1108 = vunpack.c.l.b16 %v1074
        %v1109 = vunpack.c.h.b16 %v1074
        %v1110 = vunpack.c.l.b16 %v1075
        %v1111 = vunpack.c.h.b16 %v1075
        %v1112 = vpack.c.b16 %v1090, %v1088
        %v1113 = vpack.c.b16 %v1091, %v1089
        %v1114 = vpack.c.b16 %v1094, %v1092
        %v1115 = vpack.c.b16 %v1095, %v1093
        %v1116 = vpack.c.b16 %v1098, %v1096
        %v1117 = vpack.c.b16 %v1099, %v1097
        %v1118 = vpack.c.b16 %v1102, %v1100
        %v1119 = vpack.c.b16 %v1103, %v1101
        %v1120 = vpack.c.b16 %v1106, %v1104
        %v1121 = vpack.c.b16 %v1107, %v1105
        %v1122 = vpack.c.b16 %v1110, %v1108
        %v1123 = vpack.c.b16 %v1111, %v1109
        %vm1136 = vcmask 785408
        %v1138 = vsel %vm1136, %v1055, 0
        %v1141 = vsel %vm1136, %v1056, 0
        %v1144 = vsel %vm1136, %v1057, 0
        %v1147 = vsel %vm1136, %v1058, 0
        %v1150 = vsel %vm1136, %v1059, 0
        %v1153 = vsel %vm1136, %v1060, 0
        %v1156 = vsel %vm1136, %v1061, 0
        %v1159 = vsel %vm1136, %v1062, 0
        %1161 = vmatprep.subr.bf16.mxu0 %v1113
        %1162 = vmatpush1.bf16.msra.mxu0 %v1112
        %1163 = vmatprep.subr.bf16.mxu0 %v1115
        %1164 = vmatpush1.bf16.msra.mxu0 %v1114
        %1165 = vmatprep.subr.bf16.mxu0 %v1117
        %1166 = vmatpush1.bf16.msra.mxu0 %v1116
        %1167 = vmatprep.subr.bf16.mxu0 %v1119
        %1168 = vmatpush1.bf16.msra.mxu0 %v1118
        %1169 = vmatprep.subr.bf16.mxu0 %v1121
        %1170 = vmatpush1.bf16.msra.mxu0 %v1120
        %1171 = vmatprep.subr.bf16.mxu0 %v1123
        %1172 = vmatpush1.bf16.msra.mxu0 %v1122
        %1173 = vmatprep.subr.bf16.mxu0 0
        %1174 = vmatpush1.bf16.msra.mxu0 0
        %1175 = vmatprep.subr.bf16.mxu0 0
        %1176 = vmatpush1.bf16.msra.mxu0 0
        %1177 = vmatprep.subr.bf16.mxu0 0
        %1178 = vmatpush1.bf16.msra.mxu0 0
        %1179 = vmatprep.subr.bf16.mxu0 0
        %1180 = vmatpush1.bf16.msra.mxu0 0
        %1181 = vmatprep.subr.bf16.mxu0 0
        %1182 = vmatpush1.bf16.msra.mxu0 0
        %1183 = vmatprep.subr.bf16.mxu0 0
        %1184 = vmatpush1.bf16.msra.mxu0 0
        %1185 = vmatprep.subr.bf16.mxu0 0
        %1186 = vmatpush1.bf16.msra.mxu0 0
        %1187 = vmatprep.subr.bf16.mxu0 0
        %1188 = vmatpush1.bf16.msra.mxu0 0
        %1189 = vmatprep.subr.bf16.mxu0 0
        %1190 = vmatpush1.bf16.msra.mxu0 0
        %1191 = vmatprep.subr.bf16.mxu0 0
        %1192 = vmatpush1.bf16.msra.mxu0 0
        %1193 = vmatprep.mubr.bf16.mxu0 0
        %1194 = vmatmul.mubr.bf16.gmra.mrb[0].mxu0 %v1138
        %v1195 = vpop.f32.mrb[0].mxu0
        %v1196 = vadd.f32 0.0, %v1195
        %v1197 = vpop.f32.mrb[0].mxu0
        %v1198 = vadd.f32 0.0, %v1197
        %v1199 = vpop.f32.mrb[0].mxu0
        %v1200 = vadd.f32 0.0, %v1199
        %v1201 = vpop.f32.mrb[0].mxu0
        %v1202 = vadd.f32 0.0, %v1201
        %1203 = vmatprep.mubr.bf16.mxu0 0
        %1204 = vmatmul.mubr.bf16.gmra.mrb[0].mxu0 %v1141
        %v1205 = vpop.f32.mrb[0].mxu0
        %v1206 = vadd.f32 0.0, %v1205
        %v1207 = vpop.f32.mrb[0].mxu0
        %v1208 = vadd.f32 0.0, %v1207
        %v1209 = vpop.f32.mrb[0].mxu0
        %v1210 = vadd.f32 0.0, %v1209
        %v1211 = vpop.f32.mrb[0].mxu0
        %v1212 = vadd.f32 0.0, %v1211
        %1213 = vmatprep.mubr.bf16.mxu0 0
        %1214 = vmatmul.mubr.bf16.gmra.mrb[0].mxu0 %v1144
        %v1215 = vpop.f32.mrb[0].mxu0
        %v1216 = vadd.f32 0.0, %v1215
        %v1217 = vpop.f32.mrb[0].mxu0
        %v1218 = vadd.f32 0.0, %v1217
        %v1219 = vpop.f32.mrb[0].mxu0
        %v1220 = vadd.f32 0.0, %v1219
        %v1221 = vpop.f32.mrb[0].mxu0
        %v1222 = vadd.f32 0.0, %v1221
        %1223 = vmatprep.mubr.bf16.mxu0 0
        %1224 = vmatmul.mubr.bf16.gmra.mrb[0].mxu0 %v1147
        %v1225 = vpop.f32.mrb[0].mxu0
        %v1226 = vadd.f32 0.0, %v1225
        %v1227 = vpop.f32.mrb[0].mxu0
        %v1228 = vadd.f32 0.0, %v1227
        %v1229 = vpop.f32.mrb[0].mxu0
        %v1230 = vadd.f32 0.0, %v1229
        %v1231 = vpop.f32.mrb[0].mxu0
        %v1232 = vadd.f32 0.0, %v1231
        %1233 = vmatprep.mubr.bf16.mxu0 0
        %1234 = vmatmul.mubr.bf16.gmra.mrb[0].mxu0 %v1150
        %v1235 = vpop.f32.mrb[0].mxu0
        %v1236 = vadd.f32 0.0, %v1235
        %v1237 = vpop.f32.mrb[0].mxu0
        %v1238 = vadd.f32 0.0, %v1237
        %v1239 = vpop.f32.mrb[0].mxu0
        %v1240 = vadd.f32 0.0, %v1239
        %v1241 = vpop.f32.mrb[0].mxu0
        %v1242 = vadd.f32 0.0, %v1241
        %1243 = vmatprep.mubr.bf16.mxu0 0
        %1244 = vmatmul.mubr.bf16.gmra.mrb[0].mxu0 %v1153
        %v1245 = vpop.f32.mrb[0].mxu0
        %v1246 = vadd.f32 0.0, %v1245
        %v1247 = vpop.f32.mrb[0].mxu0
        %v1248 = vadd.f32 0.0, %v1247
        %v1249 = vpop.f32.mrb[0].mxu0
        %v1250 = vadd.f32 0.0, %v1249
        %v1251 = vpop.f32.mrb[0].mxu0
        %v1252 = vadd.f32 0.0, %v1251
        %1253 = vmatprep.mubr.bf16.mxu0 0
        %1254 = vmatmul.mubr.bf16.gmra.mrb[0].mxu0 %v1156
        %v1255 = vpop.f32.mrb[0].mxu0
        %v1256 = vadd.f32 0.0, %v1255
        %v1257 = vpop.f32.mrb[0].mxu0
        %v1258 = vadd.f32 0.0, %v1257
        %v1259 = vpop.f32.mrb[0].mxu0
        %v1260 = vadd.f32 0.0, %v1259
        %v1261 = vpop.f32.mrb[0].mxu0
        %v1262 = vadd.f32 0.0, %v1261
        %1263 = vmatprep.mubr.bf16.mxu0 0
        %1264 = vmatmul.mubr.bf16.gmra.mrb[0].mxu0 %v1159
        %v1265 = vpop.f32.mrb[0].mxu0
        %v1266 = vadd.f32 0.0, %v1265
        %v1267 = vpop.f32.mrb[0].mxu0
        %v1268 = vadd.f32 0.0, %v1267
        %v1269 = vpop.f32.mrb[0].mxu0
        %v1270 = vadd.f32 0.0, %v1269
        %v1271 = vpop.f32.mrb[0].mxu0
        %v1272 = vadd.f32 0.0, %v1271
        %1273 = vdwg.mxu0
        %v1286 = vunpack.c.l.b16 %v869
        %v1287 = vunpack.c.h.b16 %v869
        %v1288 = vunpack.c.l.b16 %v870
        %v1289 = vunpack.c.h.b16 %v870
        %v1290 = vunpack.c.l.b16 %v871
        %v1291 = vunpack.c.h.b16 %v871
        %v1292 = vunpack.c.l.b16 %v872
        %v1293 = vunpack.c.h.b16 %v872
        %v1294 = vunpack.c.l.b16 %v873
        %v1295 = vunpack.c.h.b16 %v873
        %v1296 = vunpack.c.l.b16 %v874
        %v1297 = vunpack.c.h.b16 %v874
        %v1298 = vunpack.c.l.b16 %v875
        %v1299 = vunpack.c.h.b16 %v875
        %v1300 = vunpack.c.l.b16 %v876
        %v1301 = vunpack.c.h.b16 %v876
        %v1302 = vunpack.c.l.b16 %v877
        %v1303 = vunpack.c.h.b16 %v877
        %v1304 = vunpack.c.l.b16 %v878
        %v1305 = vunpack.c.h.b16 %v878
        %v1306 = vunpack.c.l.b16 %v879
        %v1307 = vunpack.c.h.b16 %v879
        %v1308 = vunpack.c.l.b16 %v880
        %v1309 = vunpack.c.h.b16 %v880
        %v1310 = vpack.c.b16 %v1288, %v1286
        %v1311 = vpack.c.b16 %v1289, %v1287
        %v1312 = vpack.c.b16 %v1292, %v1290
        %v1313 = vpack.c.b16 %v1293, %v1291
        %v1314 = vpack.c.b16 %v1296, %v1294
        %v1315 = vpack.c.b16 %v1297, %v1295
        %v1316 = vpack.c.b16 %v1300, %v1298
        %v1317 = vpack.c.b16 %v1301, %v1299
        %v1318 = vpack.c.b16 %v1304, %v1302
        %v1319 = vpack.c.b16 %v1305, %v1303
        %v1320 = vpack.c.b16 %v1308, %v1306
        %v1321 = vpack.c.b16 %v1309, %v1307
        %v1335 = vsel %vm1136, %v861, 0
        %v1338 = vsel %vm1136, %v862, 0
        %v1341 = vsel %vm1136, %v863, 0
        %v1344 = vsel %vm1136, %v864, 0
        %v1347 = vsel %vm1136, %v865, 0
        %v1350 = vsel %vm1136, %v866, 0
        %v1353 = vsel %vm1136, %v867, 0
        %v1356 = vsel %vm1136, %v868, 0
        %1358 = vmatprep.subr.bf16.mxu0 %v1311
        %1359 = vmatpush1.bf16.msra.mxu0 %v1310
        %1360 = vmatprep.subr.bf16.mxu0 %v1313
        %1361 = vmatpush1.bf16.msra.mxu0 %v1312
        %1362 = vmatprep.subr.bf16.mxu0 %v1315
        %1363 = vmatpush1.bf16.msra.mxu0 %v1314
        %1364 = vmatprep.subr.bf16.mxu0 %v1317
        %1365 = vmatpush1.bf16.msra.mxu0 %v1316
        %1366 = vmatprep.subr.bf16.mxu0 %v1319
        %1367 = vmatpush1.bf16.msra.mxu0 %v1318
        %1368 = vmatprep.subr.bf16.mxu0 %v1321
        %1369 = vmatpush1.bf16.msra.mxu0 %v1320
        %1370 = vmatprep.subr.bf16.mxu0 0
        %1371 = vmatpush1.bf16.msra.mxu0 0
        %1372 = vmatprep.subr.bf16.mxu0 0
        %1373 = vmatpush1.bf16.msra.mxu0 0
        %1374 = vmatprep.subr.bf16.mxu0 0
        %1375 = vmatpush1.bf16.msra.mxu0 0
        %1376 = vmatprep.subr.bf16.mxu0 0
        %1377 = vmatpush1.bf16.msra.mxu0 0
        %1378 = vmatprep.subr.bf16.mxu0 0
        %1379 = vmatpush1.bf16.msra.mxu0 0
        %1380 = vmatprep.subr.bf16.mxu0 0
        %1381 = vmatpush1.bf16.msra.mxu0 0
        %1382 = vmatprep.subr.bf16.mxu0 0
        %1383 = vmatpush1.bf16.msra.mxu0 0
        %1384 = vmatprep.subr.bf16.mxu0 0
        %1385 = vmatpush1.bf16.msra.mxu0 0
        %1386 = vmatprep.subr.bf16.mxu0 0
        %1387 = vmatpush1.bf16.msra.mxu0 0
        %1388 = vmatprep.subr.bf16.mxu0 0
        %1389 = vmatpush1.bf16.msra.mxu0 0
        %1390 = vmatprep.mubr.bf16.mxu0 0
        %1391 = vmatmul.mubr.bf16.gmra.mrb[0].mxu0 %v1335
        %v1392 = vpop.f32.mrb[0].mxu0
        %v1393 = vadd.f32 %v1196, %v1392
        %v1394 = vpop.f32.mrb[0].mxu0
        %v1395 = vadd.f32 %v1198, %v1394
        %v1396 = vpop.f32.mrb[0].mxu0
        %v1397 = vadd.f32 %v1200, %v1396
        %v1398 = vpop.f32.mrb[0].mxu0
        %v1399 = vadd.f32 %v1202, %v1398
        %1400 = vmatprep.mubr.bf16.mxu0 0
        %1401 = vmatmul.mubr.bf16.gmra.mrb[0].mxu0 %v1338
        %v1402 = vpop.f32.mrb[0].mxu0
        %v1403 = vadd.f32 %v1206, %v1402
        %v1404 = vpop.f32.mrb[0].mxu0
        %v1405 = vadd.f32 %v1208, %v1404
        %v1406 = vpop.f32.mrb[0].mxu0
        %v1407 = vadd.f32 %v1210, %v1406
        %v1408 = vpop.f32.mrb[0].mxu0
        %v1409 = vadd.f32 %v1212, %v1408
        %1410 = vmatprep.mubr.bf16.mxu0 0
        %1411 = vmatmul.mubr.bf16.gmra.mrb[0].mxu0 %v1341
        %v1412 = vpop.f32.mrb[0].mxu0
        %v1413 = vadd.f32 %v1216, %v1412
        %v1414 = vpop.f32.mrb[0].mxu0
        %v1415 = vadd.f32 %v1218, %v1414
        %v1416 = vpop.f32.mrb[0].mxu0
        %v1417 = vadd.f32 %v1220, %v1416
        %v1418 = vpop.f32.mrb[0].mxu0
        %v1419 = vadd.f32 %v1222, %v1418
        %1420 = vmatprep.mubr.bf16.mxu0 0
        %1421 = vmatmul.mubr.bf16.gmra.mrb[0].mxu0 %v1344
        %v1422 = vpop.f32.mrb[0].mxu0
        %v1423 = vadd.f32 %v1226, %v1422
        %v1424 = vpop.f32.mrb[0].mxu0
        %v1425 = vadd.f32 %v1228, %v1424
        %v1426 = vpop.f32.mrb[0].mxu0
        %v1427 = vadd.f32 %v1230, %v1426
        %v1428 = vpop.f32.mrb[0].mxu0
        %v1429 = vadd.f32 %v1232, %v1428
        %1430 = vmatprep.mubr.bf16.mxu0 0
        %1431 = vmatmul.mubr.bf16.gmra.mrb[0].mxu0 %v1347
        %v1432 = vpop.f32.mrb[0].mxu0
        %v1433 = vadd.f32 %v1236, %v1432
        %v1434 = vpop.f32.mrb[0].mxu0
        %v1435 = vadd.f32 %v1238, %v1434
        %v1436 = vpop.f32.mrb[0].mxu0
        %v1437 = vadd.f32 %v1240, %v1436
        %v1438 = vpop.f32.mrb[0].mxu0
        %v1439 = vadd.f32 %v1242, %v1438
        %1440 = vmatprep.mubr.bf16.mxu0 0
        %1441 = vmatmul.mubr.bf16.gmra.mrb[0].mxu0 %v1350
        %v1442 = vpop.f32.mrb[0].mxu0
        %v1443 = vadd.f32 %v1246, %v1442
        %v1444 = vpop.f32.mrb[0].mxu0
        %v1445 = vadd.f32 %v1248, %v1444
        %v1446 = vpop.f32.mrb[0].mxu0
        %v1447 = vadd.f32 %v1250, %v1446
        %v1448 = vpop.f32.mrb[0].mxu0
        %v1449 = vadd.f32 %v1252, %v1448
        %1450 = vmatprep.mubr.bf16.mxu0 0
        %1451 = vmatmul.mubr.bf16.gmra.mrb[0].mxu0 %v1353
        %v1452 = vpop.f32.mrb[0].mxu0
        %v1453 = vadd.f32 %v1256, %v1452
        %v1454 = vpop.f32.mrb[0].mxu0
        %v1455 = vadd.f32 %v1258, %v1454
        %v1456 = vpop.f32.mrb[0].mxu0
        %v1457 = vadd.f32 %v1260, %v1456
        %v1458 = vpop.f32.mrb[0].mxu0
        %v1459 = vadd.f32 %v1262, %v1458
        %1460 = vmatprep.mubr.bf16.mxu0 0
        %1461 = vmatmul.mubr.bf16.gmra.mrb[0].mxu0 %v1356
        %v1462 = vpop.f32.mrb[0].mxu0
        %v1463 = vadd.f32 %v1266, %v1462
        %v1464 = vpop.f32.mrb[0].mxu0
        %v1465 = vadd.f32 %v1268, %v1464
        %v1466 = vpop.f32.mrb[0].mxu0
        %v1467 = vadd.f32 %v1270, %v1466
        %v1468 = vpop.f32.mrb[0].mxu0
        %v1469 = vadd.f32 %v1272, %v1468
        %1470 = vdwg.mxu0
        %s1471 = scalar_lea.vmem [#allocation7], 96
        %v1472 = vld [vmem:[%s1471] sm:$0xff]
        %v1473 = vld [vmem:[%s1471 + $0x8] sm:$0xff]
        %v1474 = vld [vmem:[%s1471 + $0x10] sm:$0xff]
        %v1475 = vld [vmem:[%s1471 + $0x18] sm:$0xff]
        %v1476 = vld [vmem:[%s1471 + $0x20] sm:$0xff]
        %v1477 = vld [vmem:[%s1471 + $0x28] sm:$0xff]
        %v1478 = vld [vmem:[%s1471 + $0x30] sm:$0xff]
        %v1479 = vld [vmem:[%s1471 + $0x38] sm:$0xff]
        %v1480 = vld [vmem:[%s1471 + $0x40] sm:$0xff]
        %v1481 = vld [vmem:[%s1471 + $0x48] sm:$0xff]
        %v1482 = vld [vmem:[%s1471 + $0x50] sm:$0xff]
        %v1483 = vld [vmem:[%s1471 + $0x58] sm:$0xff]
        %v1496 = vunpack.c.l.b16 %v1472
        %v1497 = vunpack.c.h.b16 %v1472
        %v1498 = vunpack.c.l.b16 %v1473
        %v1499 = vunpack.c.h.b16 %v1473
        %v1500 = vunpack.c.l.b16 %v1474
        %v1501 = vunpack.c.h.b16 %v1474
        %v1502 = vunpack.c.l.b16 %v1475
        %v1503 = vunpack.c.h.b16 %v1475
        %v1504 = vunpack.c.l.b16 %v1476
        %v1505 = vunpack.c.h.b16 %v1476
        %v1506 = vunpack.c.l.b16 %v1477
        %v1507 = vunpack.c.h.b16 %v1477
        %v1508 = vunpack.c.l.b16 %v1478
        %v1509 = vunpack.c.h.b16 %v1478
        %v1510 = vunpack.c.l.b16 %v1479
        %v1511 = vunpack.c.h.b16 %v1479
        %v1512 = vunpack.c.l.b16 %v1480
        %v1513 = vunpack.c.h.b16 %v1480
        %v1514 = vunpack.c.l.b16 %v1481
        %v1515 = vunpack.c.h.b16 %v1481
        %v1516 = vunpack.c.l.b16 %v1482
        %v1517 = vunpack.c.h.b16 %v1482
        %v1518 = vunpack.c.l.b16 %v1483
        %v1519 = vunpack.c.h.b16 %v1483
        %v1520 = vpack.c.b16 %v1498, %v1496
        %v1521 = vpack.c.b16 %v1499, %v1497
        %v1522 = vpack.c.b16 %v1502, %v1500
        %v1523 = vpack.c.b16 %v1503, %v1501
        %v1524 = vpack.c.b16 %v1506, %v1504
        %v1525 = vpack.c.b16 %v1507, %v1505
        %v1526 = vpack.c.b16 %v1510, %v1508
        %v1527 = vpack.c.b16 %v1511, %v1509
        %v1528 = vpack.c.b16 %v1514, %v1512
        %v1529 = vpack.c.b16 %v1515, %v1513
        %v1530 = vpack.c.b16 %v1518, %v1516
        %v1531 = vpack.c.b16 %v1519, %v1517
        %1544 = vmatprep.subr.bf16.mxu0 %v1521
        %1545 = vmatpush1.bf16.msra.mxu0 %v1520
        %1546 = vmatprep.subr.bf16.mxu0 %v1523
        %1547 = vmatpush1.bf16.msra.mxu0 %v1522
        %1548 = vmatprep.subr.bf16.mxu0 %v1525
        %1549 = vmatpush1.bf16.msra.mxu0 %v1524
        %1550 = vmatprep.subr.bf16.mxu0 %v1527
        %1551 = vmatpush1.bf16.msra.mxu0 %v1526
        %1552 = vmatprep.subr.bf16.mxu0 %v1529
        %1553 = vmatpush1.bf16.msra.mxu0 %v1528
        %1554 = vmatprep.subr.bf16.mxu0 %v1531
        %1555 = vmatpush1.bf16.msra.mxu0 %v1530
        %1556 = vmatprep.subr.bf16.mxu0 0
        %1557 = vmatpush1.bf16.msra.mxu0 0
        %1558 = vmatprep.subr.bf16.mxu0 0
        %1559 = vmatpush1.bf16.msra.mxu0 0
        %1560 = vmatprep.subr.bf16.mxu0 0
        %1561 = vmatpush1.bf16.msra.mxu0 0
        %1562 = vmatprep.subr.bf16.mxu0 0
        %1563 = vmatpush1.bf16.msra.mxu0 0
        %1564 = vmatprep.subr.bf16.mxu0 0
        %1565 = vmatpush1.bf16.msra.mxu0 0
        %1566 = vmatprep.subr.bf16.mxu0 0
        %1567 = vmatpush1.bf16.msra.mxu0 0
        %1568 = vmatprep.subr.bf16.mxu0 0
        %1569 = vmatpush1.bf16.msra.mxu0 0
        %1570 = vmatprep.subr.bf16.mxu0 0
        %1571 = vmatpush1.bf16.msra.mxu0 0
        %1572 = vmatprep.subr.bf16.mxu0 0
        %1573 = vmatpush1.bf16.msra.mxu0 0
        %1574 = vmatprep.subr.bf16.mxu0 0
        %1575 = vmatpush1.bf16.msra.mxu0 0
        %1576 = vmatprep.mubr.bf16.mxu0 0
        %1577 = vmatmul.mubr.bf16.gmra.mrb[0].mxu0 %v1138
        %v1578 = vpop.f32.mrb[0].mxu0
        %v1579 = vadd.f32 0.0, %v1578
        %v1580 = vpop.f32.mrb[0].mxu0
        %v1581 = vadd.f32 0.0, %v1580
        %v1582 = vpop.f32.mrb[0].mxu0
        %v1583 = vadd.f32 0.0, %v1582
        %v1584 = vpop.f32.mrb[0].mxu0
        %v1585 = vadd.f32 0.0, %v1584
        %1586 = vmatprep.mubr.bf16.mxu0 0
        %1587 = vmatmul.mubr.bf16.gmra.mrb[0].mxu0 %v1141
        %v1588 = vpop.f32.mrb[0].mxu0
        %v1589 = vadd.f32 0.0, %v1588
        %v1590 = vpop.f32.mrb[0].mxu0
        %v1591 = vadd.f32 0.0, %v1590
        %v1592 = vpop.f32.mrb[0].mxu0
        %v1593 = vadd.f32 0.0, %v1592
        %v1594 = vpop.f32.mrb[0].mxu0
        %v1595 = vadd.f32 0.0, %v1594
        %1596 = vmatprep.mubr.bf16.mxu0 0
        %1597 = vmatmul.mubr.bf16.gmra.mrb[0].mxu0 %v1144
        %v1598 = vpop.f32.mrb[0].mxu0
        %v1599 = vadd.f32 0.0, %v1598
        %v1600 = vpop.f32.mrb[0].mxu0
        %v1601 = vadd.f32 0.0, %v1600
        %v1602 = vpop.f32.mrb[0].mxu0
        %v1603 = vadd.f32 0.0, %v1602
        %v1604 = vpop.f32.mrb[0].mxu0
        %v1605 = vadd.f32 0.0, %v1604
        %1606 = vmatprep.mubr.bf16.mxu0 0
        %1607 = vmatmul.mubr.bf16.gmra.mrb[0].mxu0 %v1147
        %v1608 = vpop.f32.mrb[0].mxu0
        %v1609 = vadd.f32 0.0, %v1608
        %v1610 = vpop.f32.mrb[0].mxu0
        %v1611 = vadd.f32 0.0, %v1610
        %v1612 = vpop.f32.mrb[0].mxu0
        %v1613 = vadd.f32 0.0, %v1612
        %v1614 = vpop.f32.mrb[0].mxu0
        %v1615 = vadd.f32 0.0, %v1614
        %1616 = vmatprep.mubr.bf16.mxu0 0
        %1617 = vmatmul.mubr.bf16.gmra.mrb[0].mxu0 %v1150
        %v1618 = vpop.f32.mrb[0].mxu0
        %v1619 = vadd.f32 0.0, %v1618
        %v1620 = vpop.f32.mrb[0].mxu0
        %v1621 = vadd.f32 0.0, %v1620
        %v1622 = vpop.f32.mrb[0].mxu0
        %v1623 = vadd.f32 0.0, %v1622
        %v1624 = vpop.f32.mrb[0].mxu0
        %v1625 = vadd.f32 0.0, %v1624
        %1626 = vmatprep.mubr.bf16.mxu0 0
        %1627 = vmatmul.mubr.bf16.gmra.mrb[0].mxu0 %v1153
        %v1628 = vpop.f32.mrb[0].mxu0
        %v1629 = vadd.f32 0.0, %v1628
        %v1630 = vpop.f32.mrb[0].mxu0
        %v1631 = vadd.f32 0.0, %v1630
        %v1632 = vpop.f32.mrb[0].mxu0
        %v1633 = vadd.f32 0.0, %v1632
        %v1634 = vpop.f32.mrb[0].mxu0
        %v1635 = vadd.f32 0.0, %v1634
        %1636 = vmatprep.mubr.bf16.mxu0 0
        %1637 = vmatmul.mubr.bf16.gmra.mrb[0].mxu0 %v1156
        %v1638 = vpop.f32.mrb[0].mxu0
        %v1639 = vadd.f32 0.0, %v1638
        %v1640 = vpop.f32.mrb[0].mxu0
        %v1641 = vadd.f32 0.0, %v1640
        %v1642 = vpop.f32.mrb[0].mxu0
        %v1643 = vadd.f32 0.0, %v1642
        %v1644 = vpop.f32.mrb[0].mxu0
        %v1645 = vadd.f32 0.0, %v1644
        %1646 = vmatprep.mubr.bf16.mxu0 0
        %1647 = vmatmul.mubr.bf16.gmra.mrb[0].mxu0 %v1159
        %v1648 = vpop.f32.mrb[0].mxu0
        %v1649 = vadd.f32 0.0, %v1648
        %v1650 = vpop.f32.mrb[0].mxu0
        %v1651 = vadd.f32 0.0, %v1650
        %v1652 = vpop.f32.mrb[0].mxu0
        %v1653 = vadd.f32 0.0, %v1652
        %v1654 = vpop.f32.mrb[0].mxu0
        %v1655 = vadd.f32 0.0, %v1654
        %1656 = vdwg.mxu0
        %v1669 = vunpack.c.l.b16 %v881
        %v1670 = vunpack.c.h.b16 %v881
        %v1671 = vunpack.c.l.b16 %v882
        %v1672 = vunpack.c.h.b16 %v882
        %v1673 = vunpack.c.l.b16 %v883
        %v1674 = vunpack.c.h.b16 %v883
        %v1675 = vunpack.c.l.b16 %v884
        %v1676 = vunpack.c.h.b16 %v884
        %v1677 = vunpack.c.l.b16 %v885
        %v1678 = vunpack.c.h.b16 %v885
        %v1679 = vunpack.c.l.b16 %v886
        %v1680 = vunpack.c.h.b16 %v886
        %v1681 = vunpack.c.l.b16 %v887
        %v1682 = vunpack.c.h.b16 %v887
        %v1683 = vunpack.c.l.b16 %v888
        %v1684 = vunpack.c.h.b16 %v888
        %v1685 = vunpack.c.l.b16 %v889
        %v1686 = vunpack.c.h.b16 %v889
        %v1687 = vunpack.c.l.b16 %v890
        %v1688 = vunpack.c.h.b16 %v890
        %v1689 = vunpack.c.l.b16 %v891
        %v1690 = vunpack.c.h.b16 %v891
        %v1691 = vunpack.c.l.b16 %v892
        %v1692 = vunpack.c.h.b16 %v892
        %v1693 = vpack.c.b16 %v1671, %v1669
        %v1694 = vpack.c.b16 %v1672, %v1670
        %v1695 = vpack.c.b16 %v1675, %v1673
        %v1696 = vpack.c.b16 %v1676, %v1674
        %v1697 = vpack.c.b16 %v1679, %v1677
        %v1698 = vpack.c.b16 %v1680, %v1678
        %v1699 = vpack.c.b16 %v1683, %v1681
        %v1700 = vpack.c.b16 %v1684, %v1682
        %v1701 = vpack.c.b16 %v1687, %v1685
        %v1702 = vpack.c.b16 %v1688, %v1686
        %v1703 = vpack.c.b16 %v1691, %v1689
        %v1704 = vpack.c.b16 %v1692, %v1690
        %1717 = vmatprep.subr.bf16.mxu0 %v1694
        %1718 = vmatpush1.bf16.msra.mxu0 %v1693
        %1719 = vmatprep.subr.bf16.mxu0 %v1696
        %1720 = vmatpush1.bf16.msra.mxu0 %v1695
        %1721 = vmatprep.subr.bf16.mxu0 %v1698
        %1722 = vmatpush1.bf16.msra.mxu0 %v1697
        %1723 = vmatprep.subr.bf16.mxu0 %v1700
        %1724 = vmatpush1.bf16.msra.mxu0 %v1699
        %1725 = vmatprep.subr.bf16.mxu0 %v1702
        %1726 = vmatpush1.bf16.msra.mxu0 %v1701
        %1727 = vmatprep.subr.bf16.mxu0 %v1704
        %1728 = vmatpush1.bf16.msra.mxu0 %v1703
        %1729 = vmatprep.subr.bf16.mxu0 0
        %1730 = vmatpush1.bf16.msra.mxu0 0
        %1731 = vmatprep.subr.bf16.mxu0 0
        %1732 = vmatpush1.bf16.msra.mxu0 0
        %1733 = vmatprep.subr.bf16.mxu0 0
        %1734 = vmatpush1.bf16.msra.mxu0 0
        %1735 = vmatprep.subr.bf16.mxu0 0
        %1736 = vmatpush1.bf16.msra.mxu0 0
        %1737 = vmatprep.subr.bf16.mxu0 0
        %1738 = vmatpush1.bf16.msra.mxu0 0
        %1739 = vmatprep.subr.bf16.mxu0 0
        %1740 = vmatpush1.bf16.msra.mxu0 0
        %1741 = vmatprep.subr.bf16.mxu0 0
        %1742 = vmatpush1.bf16.msra.mxu0 0
        %1743 = vmatprep.subr.bf16.mxu0 0
        %1744 = vmatpush1.bf16.msra.mxu0 0
        %1745 = vmatprep.subr.bf16.mxu0 0
        %1746 = vmatpush1.bf16.msra.mxu0 0
        %1747 = vmatprep.subr.bf16.mxu0 0
        %1748 = vmatpush1.bf16.msra.mxu0 0
        %1749 = vmatprep.mubr.bf16.mxu0 0
        %1750 = vmatmul.mubr.bf16.gmra.mrb[0].mxu0 %v1335
        %v1751 = vpop.f32.mrb[0].mxu0
        %v1752 = vadd.f32 %v1579, %v1751
        %v1753 = vpop.f32.mrb[0].mxu0
        %v1754 = vadd.f32 %v1581, %v1753
        %v1755 = vpop.f32.mrb[0].mxu0
        %v1756 = vadd.f32 %v1583, %v1755
        %v1757 = vpop.f32.mrb[0].mxu0
        %v1758 = vadd.f32 %v1585, %v1757
        %1759 = vmatprep.mubr.bf16.mxu0 0
        %1760 = vmatmul.mubr.bf16.gmra.mrb[0].mxu0 %v1338
        %v1761 = vpop.f32.mrb[0].mxu0
        %v1762 = vadd.f32 %v1589, %v1761
        %v1763 = vpop.f32.mrb[0].mxu0
        %v1764 = vadd.f32 %v1591, %v1763
        %v1765 = vpop.f32.mrb[0].mxu0
        %v1766 = vadd.f32 %v1593, %v1765
        %v1767 = vpop.f32.mrb[0].mxu0
        %v1768 = vadd.f32 %v1595, %v1767
        %1769 = vmatprep.mubr.bf16.mxu0 0
        %1770 = vmatmul.mubr.bf16.gmra.mrb[0].mxu0 %v1341
        %v1771 = vpop.f32.mrb[0].mxu0
        %v1772 = vadd.f32 %v1599, %v1771
        %v1773 = vpop.f32.mrb[0].mxu0
        %v1774 = vadd.f32 %v1601, %v1773
        %v1775 = vpop.f32.mrb[0].mxu0
        %v1776 = vadd.f32 %v1603, %v1775
        %v1777 = vpop.f32.mrb[0].mxu0
        %v1778 = vadd.f32 %v1605, %v1777
        %1779 = vmatprep.mubr.bf16.mxu0 0
        %1780 = vmatmul.mubr.bf16.gmra.mrb[0].mxu0 %v1344
        %v1781 = vpop.f32.mrb[0].mxu0
        %v1782 = vadd.f32 %v1609, %v1781
        %v1783 = vpop.f32.mrb[0].mxu0
        %v1784 = vadd.f32 %v1611, %v1783
        %v1785 = vpop.f32.mrb[0].mxu0
        %v1786 = vadd.f32 %v1613, %v1785
        %v1787 = vpop.f32.mrb[0].mxu0
        %v1788 = vadd.f32 %v1615, %v1787
        %1789 = vmatprep.mubr.bf16.mxu0 0
        %1790 = vmatmul.mubr.bf16.gmra.mrb[0].mxu0 %v1347
        %v1791 = vpop.f32.mrb[0].mxu0
        %v1792 = vadd.f32 %v1619, %v1791
        %v1793 = vpop.f32.mrb[0].mxu0
        %v1794 = vadd.f32 %v1621, %v1793
        %v1795 = vpop.f32.mrb[0].mxu0
        %v1796 = vadd.f32 %v1623, %v1795
        %v1797 = vpop.f32.mrb[0].mxu0
        %v1798 = vadd.f32 %v1625, %v1797
        %1799 = vmatprep.mubr.bf16.mxu0 0
        %1800 = vmatmul.mubr.bf16.gmra.mrb[0].mxu0 %v1350
        %v1801 = vpop.f32.mrb[0].mxu0
        %v1802 = vadd.f32 %v1629, %v1801
        %v1803 = vpop.f32.mrb[0].mxu0
        %v1804 = vadd.f32 %v1631, %v1803
        %v1805 = vpop.f32.mrb[0].mxu0
        %v1806 = vadd.f32 %v1633, %v1805
        %v1807 = vpop.f32.mrb[0].mxu0
        %v1808 = vadd.f32 %v1635, %v1807
        %1809 = vmatprep.mubr.bf16.mxu0 0
        %1810 = vmatmul.mubr.bf16.gmra.mrb[0].mxu0 %v1353
        %v1811 = vpop.f32.mrb[0].mxu0
        %v1812 = vadd.f32 %v1639, %v1811
        %v1813 = vpop.f32.mrb[0].mxu0
        %v1814 = vadd.f32 %v1641, %v1813
        %v1815 = vpop.f32.mrb[0].mxu0
        %v1816 = vadd.f32 %v1643, %v1815
        %v1817 = vpop.f32.mrb[0].mxu0
        %v1818 = vadd.f32 %v1645, %v1817
        %1819 = vmatprep.mubr.bf16.mxu0 0
        %1820 = vmatmul.mubr.bf16.gmra.mrb[0].mxu0 %v1356
        %v1821 = vpop.f32.mrb[0].mxu0
        %v1822 = vadd.f32 %v1649, %v1821
        %v1823 = vpop.f32.mrb[0].mxu0
        %v1824 = vadd.f32 %v1651, %v1823
        %v1825 = vpop.f32.mrb[0].mxu0
        %v1826 = vadd.f32 %v1653, %v1825
        %v1827 = vpop.f32.mrb[0].mxu0
        %v1828 = vadd.f32 %v1655, %v1827
        %1829 = vdwg.mxu0
        %s1830 = scalar_lea.vmem [#allocation2], 128
        %v1831 = vld [vmem:[%s1830] sm:$0xf]
        %v1832 = vld [vmem:[%s1830 + $0x4] sm:$0xf]
        %v1833 = vld [vmem:[%s1830 + $0x8] sm:$0xf]
        %v1834 = vld [vmem:[%s1830 + $0xc] sm:$0xf]
        %v1835 = vld [vmem:[%s1830 + $0x10] sm:$0xf]
        %v1836 = vld [vmem:[%s1830 + $0x14] sm:$0xf]
        %v1837 = vld [vmem:[%s1830 + $0x18] sm:$0xf]
        %v1838 = vld [vmem:[%s1830 + $0x1c] sm:$0xf]
        %v1839 = vld [vmem:[%s1830 + $0x20] sm:$0xf]
        %v1840 = vld [vmem:[%s1830 + $0x24] sm:$0xf]
        %v1841 = vld [vmem:[%s1830 + $0x28] sm:$0xf]
        %v1842 = vld [vmem:[%s1830 + $0x2c] sm:$0xf]
        %v1843 = vld [vmem:[%s1830 + $0x30] sm:$0xf]
        %v1844 = vld [vmem:[%s1830 + $0x34] sm:$0xf]
        %v1845 = vld [vmem:[%s1830 + $0x38] sm:$0xf]
        %v1846 = vld [vmem:[%s1830 + $0x3c] sm:$0xf]
        %v1863 = vunpack.c.l.b16 %v1831
        %v1864 = vunpack.c.l.b16 %v1832
        %v1865 = vunpack.c.l.b16 %v1833
        %v1866 = vunpack.c.l.b16 %v1834
        %v1867 = vunpack.c.l.b16 %v1835
        %v1868 = vunpack.c.l.b16 %v1836
        %v1869 = vunpack.c.l.b16 %v1837
        %v1870 = vunpack.c.l.b16 %v1838
        %v1871 = vunpack.c.l.b16 %v1839
        %v1872 = vunpack.c.l.b16 %v1840
        %v1873 = vunpack.c.l.b16 %v1841
        %v1874 = vunpack.c.l.b16 %v1842
        %v1875 = vunpack.c.l.b16 %v1843
        %v1876 = vunpack.c.l.b16 %v1844
        %v1877 = vunpack.c.l.b16 %v1845
        %v1878 = vunpack.c.l.b16 %v1846
        %v1879 = vpack.c.b16 %v1864, %v1863
        %v1880 = vpack.c.b16 %v1866, %v1865
        %v1881 = vpack.c.b16 %v1868, %v1867
        %v1882 = vpack.c.b16 %v1870, %v1869
        %v1883 = vpack.c.b16 %v1872, %v1871
        %v1884 = vpack.c.b16 %v1874, %v1873
        %v1885 = vpack.c.b16 %v1876, %v1875
        %v1886 = vpack.c.b16 %v1878, %v1877
        %1895 = vmatprep.subr.bf16.mxu0 0
        %1896 = vmatpush1.bf16.msra.mxu0 %v748
        %1897 = vmatprep.subr.bf16.mxu0 0
        %1898 = vmatpush1.bf16.msra.mxu0 %v749
        %1899 = vmatprep.subr.bf16.mxu0 0
        %1900 = vmatpush1.bf16.msra.mxu0 %v750
        %1901 = vmatprep.subr.bf16.mxu0 0
        %1902 = vmatpush1.bf16.msra.mxu0 %v751
        %1903 = vmatprep.subr.bf16.mxu0 0
        %1904 = vmatpush1.bf16.msra.mxu0 %v752
        %1905 = vmatprep.subr.bf16.mxu0 0
        %1906 = vmatpush1.bf16.msra.mxu0 %v753
        %1907 = vmatprep.subr.bf16.mxu0 0
        %1908 = vmatpush1.bf16.msra.mxu0 %v754
        %1909 = vmatprep.subr.bf16.mxu0 0
        %1910 = vmatpush1.bf16.msra.mxu0 %v755
        %1911 = vmatprep.subr.bf16.mxu0 0
        %1912 = vmatpush1.bf16.msra.mxu0 0
        %1913 = vmatprep.subr.bf16.mxu0 0
        %1914 = vmatpush1.bf16.msra.mxu0 0
        %1915 = vmatprep.subr.bf16.mxu0 0
        %1916 = vmatpush1.bf16.msra.mxu0 0
        %1917 = vmatprep.subr.bf16.mxu0 0
        %1918 = vmatpush1.bf16.msra.mxu0 0
        %1919 = vmatprep.subr.bf16.mxu0 0
        %1920 = vmatpush1.bf16.msra.mxu0 0
        %1921 = vmatprep.subr.bf16.mxu0 0
        %1922 = vmatpush1.bf16.msra.mxu0 0
        %1923 = vmatprep.subr.bf16.mxu0 0
        %1924 = vmatpush1.bf16.msra.mxu0 0
        %1925 = vmatprep.subr.bf16.mxu0 0
        %1926 = vmatpush1.bf16.msra.mxu0 0
        %1927 = vmatprep.mubr.bf16.mxu0 0
        %1928 = vmatmul.mubr.bf16.gmra.mrb[0].mxu0 %v1879
        %v1929 = vpop.f32.mrb[0].mxu0
        %v1930 = vadd.f32 0.0, %v1929
        %v1931 = vpop.f32.mrb[0].mxu0
        %v1932 = vpop.f32.mrb[0].mxu0
        %v1933 = vadd.f32 0.0, %v1932
        %v1934 = vpop.f32.mrb[0].mxu0
        %1935 = vmatprep.mubr.bf16.mxu0 0
        %1936 = vmatmul.mubr.bf16.gmra.mrb[0].mxu0 %v1880
        %v1937 = vpop.f32.mrb[0].mxu0
        %v1938 = vadd.f32 0.0, %v1937
        %v1939 = vpop.f32.mrb[0].mxu0
        %v1940 = vpop.f32.mrb[0].mxu0
        %v1941 = vadd.f32 0.0, %v1940
        %v1942 = vpop.f32.mrb[0].mxu0
        %1943 = vmatprep.mubr.bf16.mxu0 0
        %1944 = vmatmul.mubr.bf16.gmra.mrb[0].mxu0 %v1881
        %v1945 = vpop.f32.mrb[0].mxu0
        %v1946 = vadd.f32 0.0, %v1945
        %v1947 = vpop.f32.mrb[0].mxu0
        %v1948 = vpop.f32.mrb[0].mxu0
        %v1949 = vadd.f32 0.0, %v1948
        %v1950 = vpop.f32.mrb[0].mxu0
        %1951 = vmatprep.mubr.bf16.mxu0 0
        %1952 = vmatmul.mubr.bf16.gmra.mrb[0].mxu0 %v1882
        %v1953 = vpop.f32.mrb[0].mxu0
        %v1954 = vadd.f32 0.0, %v1953
        %v1955 = vpop.f32.mrb[0].mxu0
        %v1956 = vpop.f32.mrb[0].mxu0
        %v1957 = vadd.f32 0.0, %v1956
        %v1958 = vpop.f32.mrb[0].mxu0
        %1959 = vmatprep.mubr.bf16.mxu0 0
        %1960 = vmatmul.mubr.bf16.gmra.mrb[0].mxu0 %v1883
        %v1961 = vpop.f32.mrb[0].mxu0
        %v1962 = vadd.f32 0.0, %v1961
        %v1963 = vpop.f32.mrb[0].mxu0
        %v1964 = vpop.f32.mrb[0].mxu0
        %v1965 = vadd.f32 0.0, %v1964
        %v1966 = vpop.f32.mrb[0].mxu0
        %1967 = vmatprep.mubr.bf16.mxu0 0
        %1968 = vmatmul.mubr.bf16.gmra.mrb[0].mxu0 %v1884
        %v1969 = vpop.f32.mrb[0].mxu0
        %v1970 = vadd.f32 0.0, %v1969
        %v1971 = vpop.f32.mrb[0].mxu0
        %v1972 = vpop.f32.mrb[0].mxu0
        %v1973 = vadd.f32 0.0, %v1972
        %v1974 = vpop.f32.mrb[0].mxu0
        %1975 = vmatprep.mubr.bf16.mxu0 0
        %1976 = vmatmul.mubr.bf16.gmra.mrb[0].mxu0 %v1885
        %v1977 = vpop.f32.mrb[0].mxu0
        %v1978 = vadd.f32 0.0, %v1977
        %v1979 = vpop.f32.mrb[0].mxu0
        %v1980 = vpop.f32.mrb[0].mxu0
        %v1981 = vadd.f32 0.0, %v1980
        %v1982 = vpop.f32.mrb[0].mxu0
        %1983 = vmatprep.mubr.bf16.mxu0 0
        %1984 = vmatmul.mubr.bf16.gmra.mrb[0].mxu0 %v1886
        %v1985 = vpop.f32.mrb[0].mxu0
        %v1986 = vadd.f32 0.0, %v1985
        %v1987 = vpop.f32.mrb[0].mxu0
        %v1988 = vpop.f32.mrb[0].mxu0
        %v1989 = vadd.f32 0.0, %v1988
        %v1990 = vpop.f32.mrb[0].mxu0
        %1991 = vdwg.mxu0
        %v1992 = vpack.c.bf16 %v1933, %v1930
        %v1993 = vpack.c.bf16 %v1941, %v1938
        %v1994 = vpack.c.bf16 %v1949, %v1946
        %v1995 = vpack.c.bf16 %v1957, %v1954
        %v1996 = vpack.c.bf16 %v1965, %v1962
        %v1997 = vpack.c.bf16 %v1973, %v1970
        %v1998 = vpack.c.bf16 %v1981, %v1978
        %v1999 = vpack.c.bf16 %v1989, %v1986
        %s2000 = scalar_lea.vmem [#allocation5], 192
        %v2001 = vld [vmem:[%s2000] sm:$0xff]
        %v2002 = vld [vmem:[%s2000 + $0x8] sm:$0xff]
        %v2003 = vld [vmem:[%s2000 + $0x10] sm:$0xff]
        %v2004 = vld [vmem:[%s2000 + $0x18] sm:$0xff]
        %v2005 = vld [vmem:[%s2000 + $0x20] sm:$0xff]
        %v2006 = vld [vmem:[%s2000 + $0x28] sm:$0xff]
        %v2007 = vld [vmem:[%s2000 + $0x30] sm:$0xff]
        %v2008 = vld [vmem:[%s2000 + $0x38] sm:$0xff]
        %v2009 = vld [vmem:[%s2000 + $0x40] sm:$0xff]
        %v2010 = vld [vmem:[%s2000 + $0x48] sm:$0xff]
        %v2011 = vld [vmem:[%s2000 + $0x50] sm:$0xff]
        %v2012 = vld [vmem:[%s2000 + $0x58] sm:$0xff]
        %v2025 = vunpack.c.l.b16 %v2001
        %v2026 = vunpack.c.h.b16 %v2001
        %v2027 = vunpack.c.l.b16 %v2002
        %v2028 = vunpack.c.h.b16 %v2002
        %v2029 = vunpack.c.l.b16 %v2003
        %v2030 = vunpack.c.h.b16 %v2003
        %v2031 = vunpack.c.l.b16 %v2004
        %v2032 = vunpack.c.h.b16 %v2004
        %v2033 = vunpack.c.l.b16 %v2005
        %v2034 = vunpack.c.h.b16 %v2005
        %v2035 = vunpack.c.l.b16 %v2006
        %v2036 = vunpack.c.h.b16 %v2006
        %v2037 = vunpack.c.l.b16 %v2007
        %v2038 = vunpack.c.h.b16 %v2007
        %v2039 = vunpack.c.l.b16 %v2008
        %v2040 = vunpack.c.h.b16 %v2008
        %v2041 = vunpack.c.l.b16 %v2009
        %v2042 = vunpack.c.h.b16 %v2009
        %v2043 = vunpack.c.l.b16 %v2010
        %v2044 = vunpack.c.h.b16 %v2010
        %v2045 = vunpack.c.l.b16 %v2011
        %v2046 = vunpack.c.h.b16 %v2011
        %v2047 = vunpack.c.l.b16 %v2012
        %v2048 = vunpack.c.h.b16 %v2012
        %v2049 = vpack.c.b16 %v2027, %v2025
        %v2050 = vpack.c.b16 %v2028, %v2026
        %v2051 = vpack.c.b16 %v2031, %v2029
        %v2052 = vpack.c.b16 %v2032, %v2030
        %v2053 = vpack.c.b16 %v2035, %v2033
        %v2054 = vpack.c.b16 %v2036, %v2034
        %v2055 = vpack.c.b16 %v2039, %v2037
        %v2056 = vpack.c.b16 %v2040, %v2038
        %v2057 = vpack.c.b16 %v2043, %v2041
        %v2058 = vpack.c.b16 %v2044, %v2042
        %v2059 = vpack.c.b16 %v2047, %v2045
        %v2060 = vpack.c.b16 %v2048, %v2046
        %v2074 = vsel %vm1136, %v1992, 0
        %v2077 = vsel %vm1136, %v1993, 0
        %v2080 = vsel %vm1136, %v1994, 0
        %v2083 = vsel %vm1136, %v1995, 0
        %v2086 = vsel %vm1136, %v1996, 0
        %v2089 = vsel %vm1136, %v1997, 0
        %v2092 = vsel %vm1136, %v1998, 0
        %v2095 = vsel %vm1136, %v1999, 0
        %2097 = vmatprep.subr.bf16.mxu0 %v2050
        %2098 = vmatpush1.bf16.msra.mxu0 %v2049
        %2099 = vmatprep.subr.bf16.mxu0 %v2052
        %2100 = vmatpush1.bf16.msra.mxu0 %v2051
        %2101 = vmatprep.subr.bf16.mxu0 %v2054
        %2102 = vmatpush1.bf16.msra.mxu0 %v2053
        %2103 = vmatprep.subr.bf16.mxu0 %v2056
        %2104 = vmatpush1.bf16.msra.mxu0 %v2055
        %2105 = vmatprep.subr.bf16.mxu0 %v2058
        %2106 = vmatpush1.bf16.msra.mxu0 %v2057
        %2107 = vmatprep.subr.bf16.mxu0 %v2060
        %2108 = vmatpush1.bf16.msra.mxu0 %v2059
        %2109 = vmatprep.subr.bf16.mxu0 0
        %2110 = vmatpush1.bf16.msra.mxu0 0
        %2111 = vmatprep.subr.bf16.mxu0 0
        %2112 = vmatpush1.bf16.msra.mxu0 0
        %2113 = vmatprep.subr.bf16.mxu0 0
        %2114 = vmatpush1.bf16.msra.mxu0 0
        %2115 = vmatprep.subr.bf16.mxu0 0
        %2116 = vmatpush1.bf16.msra.mxu0 0
        %2117 = vmatprep.subr.bf16.mxu0 0
        %2118 = vmatpush1.bf16.msra.mxu0 0
        %2119 = vmatprep.subr.bf16.mxu0 0
        %2120 = vmatpush1.bf16.msra.mxu0 0
        %2121 = vmatprep.subr.bf16.mxu0 0
        %2122 = vmatpush1.bf16.msra.mxu0 0
        %2123 = vmatprep.subr.bf16.mxu0 0
        %2124 = vmatpush1.bf16.msra.mxu0 0
        %2125 = vmatprep.subr.bf16.mxu0 0
        %2126 = vmatpush1.bf16.msra.mxu0 0
        %2127 = vmatprep.subr.bf16.mxu0 0
        %2128 = vmatpush1.bf16.msra.mxu0 0
        %2129 = vmatprep.mubr.bf16.mxu0 0
        %2130 = vmatmul.mubr.bf16.gmra.mrb[0].mxu0 %v2074
        %v2131 = vpop.f32.mrb[0].mxu0
        %v2132 = vadd.f32 0.0, %v2131
        %v2133 = vpop.f32.mrb[0].mxu0
        %v2134 = vadd.f32 0.0, %v2133
        %v2135 = vpop.f32.mrb[0].mxu0
        %v2136 = vadd.f32 0.0, %v2135
        %v2137 = vpop.f32.mrb[0].mxu0
        %v2138 = vadd.f32 0.0, %v2137
        %2139 = vmatprep.mubr.bf16.mxu0 0
        %2140 = vmatmul.mubr.bf16.gmra.mrb[0].mxu0 %v2077
        %v2141 = vpop.f32.mrb[0].mxu0
        %v2142 = vadd.f32 0.0, %v2141
        %v2143 = vpop.f32.mrb[0].mxu0
        %v2144 = vadd.f32 0.0, %v2143
        %v2145 = vpop.f32.mrb[0].mxu0
        %v2146 = vadd.f32 0.0, %v2145
        %v2147 = vpop.f32.mrb[0].mxu0
        %v2148 = vadd.f32 0.0, %v2147
        %2149 = vmatprep.mubr.bf16.mxu0 0
        %2150 = vmatmul.mubr.bf16.gmra.mrb[0].mxu0 %v2080
        %v2151 = vpop.f32.mrb[0].mxu0
        %v2152 = vadd.f32 0.0, %v2151
        %v2153 = vpop.f32.mrb[0].mxu0
        %v2154 = vadd.f32 0.0, %v2153
        %v2155 = vpop.f32.mrb[0].mxu0
        %v2156 = vadd.f32 0.0, %v2155
        %v2157 = vpop.f32.mrb[0].mxu0
        %v2158 = vadd.f32 0.0, %v2157
        %2159 = vmatprep.mubr.bf16.mxu0 0
        %2160 = vmatmul.mubr.bf16.gmra.mrb[0].mxu0 %v2083
        %v2161 = vpop.f32.mrb[0].mxu0
        %v2162 = vadd.f32 0.0, %v2161
        %v2163 = vpop.f32.mrb[0].mxu0
        %v2164 = vadd.f32 0.0, %v2163
        %v2165 = vpop.f32.mrb[0].mxu0
        %v2166 = vadd.f32 0.0, %v2165
        %v2167 = vpop.f32.mrb[0].mxu0
        %v2168 = vadd.f32 0.0, %v2167
        %2169 = vmatprep.mubr.bf16.mxu0 0
        %2170 = vmatmul.mubr.bf16.gmra.mrb[0].mxu0 %v2086
        %v2171 = vpop.f32.mrb[0].mxu0
        %v2172 = vadd.f32 0.0, %v2171
        %v2173 = vpop.f32.mrb[0].mxu0
        %v2174 = vadd.f32 0.0, %v2173
        %v2175 = vpop.f32.mrb[0].mxu0
        %v2176 = vadd.f32 0.0, %v2175
        %v2177 = vpop.f32.mrb[0].mxu0
        %v2178 = vadd.f32 0.0, %v2177
        %2179 = vmatprep.mubr.bf16.mxu0 0
        %2180 = vmatmul.mubr.bf16.gmra.mrb[0].mxu0 %v2089
        %v2181 = vpop.f32.mrb[0].mxu0
        %v2182 = vadd.f32 0.0, %v2181
        %v2183 = vpop.f32.mrb[0].mxu0
        %v2184 = vadd.f32 0.0, %v2183
        %v2185 = vpop.f32.mrb[0].mxu0
        %v2186 = vadd.f32 0.0, %v2185
        %v2187 = vpop.f32.mrb[0].mxu0
        %v2188 = vadd.f32 0.0, %v2187
        %2189 = vmatprep.mubr.bf16.mxu0 0
        %2190 = vmatmul.mubr.bf16.gmra.mrb[0].mxu0 %v2092
        %v2191 = vpop.f32.mrb[0].mxu0
        %v2192 = vadd.f32 0.0, %v2191
        %v2193 = vpop.f32.mrb[0].mxu0
        %v2194 = vadd.f32 0.0, %v2193
        %v2195 = vpop.f32.mrb[0].mxu0
        %v2196 = vadd.f32 0.0, %v2195
        %v2197 = vpop.f32.mrb[0].mxu0
        %v2198 = vadd.f32 0.0, %v2197
        %2199 = vmatprep.mubr.bf16.mxu0 0
        %2200 = vmatmul.mubr.bf16.gmra.mrb[0].mxu0 %v2095
        %v2201 = vpop.f32.mrb[0].mxu0
        %v2202 = vadd.f32 0.0, %v2201
        %v2203 = vpop.f32.mrb[0].mxu0
        %v2204 = vadd.f32 0.0, %v2203
        %v2205 = vpop.f32.mrb[0].mxu0
        %v2206 = vadd.f32 0.0, %v2205
        %v2207 = vpop.f32.mrb[0].mxu0
        %v2208 = vadd.f32 0.0, %v2207
        %2209 = vdwg.mxu0
        %v2210 = vadd.f32 %v1393, %v2132
        %v2211 = vadd.f32 %v1395, %v2134
        %v2212 = vadd.f32 %v1397, %v2136
        %v2213 = vadd.f32 %v1399, %v2138
        %v2214 = vadd.f32 %v1403, %v2142
        %v2215 = vadd.f32 %v1405, %v2144
        %v2216 = vadd.f32 %v1407, %v2146
        %v2217 = vadd.f32 %v1409, %v2148
        %v2218 = vadd.f32 %v1413, %v2152
        %v2219 = vadd.f32 %v1415, %v2154
        %v2220 = vadd.f32 %v1417, %v2156
        %v2221 = vadd.f32 %v1419, %v2158
        %v2222 = vadd.f32 %v1423, %v2162
        %v2223 = vadd.f32 %v1425, %v2164
        %v2224 = vadd.f32 %v1427, %v2166
        %v2225 = vadd.f32 %v1429, %v2168
        %v2226 = vadd.f32 %v1433, %v2172
        %v2227 = vadd.f32 %v1435, %v2174
        %v2228 = vadd.f32 %v1437, %v2176
        %v2229 = vadd.f32 %v1439, %v2178
        %v2230 = vadd.f32 %v1443, %v2182
        %v2231 = vadd.f32 %v1445, %v2184
        %v2232 = vadd.f32 %v1447, %v2186
        %v2233 = vadd.f32 %v1449, %v2188
        %v2234 = vadd.f32 %v1453, %v2192
        %v2235 = vadd.f32 %v1455, %v2194
        %v2236 = vadd.f32 %v1457, %v2196
        %v2237 = vadd.f32 %v1459, %v2198
        %v2238 = vadd.f32 %v1463, %v2202
        %v2239 = vadd.f32 %v1465, %v2204
        %v2240 = vadd.f32 %v1467, %v2206
        %v2241 = vadd.f32 %v1469, %v2208
        %s2242 = scalar_lea.vmem [#allocation7], 192
        %v2243 = vld [vmem:[%s2242] sm:$0xff]
        %v2244 = vld [vmem:[%s2242 + $0x8] sm:$0xff]
        %v2245 = vld [vmem:[%s2242 + $0x10] sm:$0xff]
        %v2246 = vld [vmem:[%s2242 + $0x18] sm:$0xff]
        %v2247 = vld [vmem:[%s2242 + $0x20] sm:$0xff]
        %v2248 = vld [vmem:[%s2242 + $0x28] sm:$0xff]
        %v2249 = vld [vmem:[%s2242 + $0x30] sm:$0xff]
        %v2250 = vld [vmem:[%s2242 + $0x38] sm:$0xff]
        %v2251 = vld [vmem:[%s2242 + $0x40] sm:$0xff]
        %v2252 = vld [vmem:[%s2242 + $0x48] sm:$0xff]
        %v2253 = vld [vmem:[%s2242 + $0x50] sm:$0xff]
        %v2254 = vld [vmem:[%s2242 + $0x58] sm:$0xff]
        %v2267 = vunpack.c.l.b16 %v2243
        %v2268 = vunpack.c.h.b16 %v2243
        %v2269 = vunpack.c.l.b16 %v2244
        %v2270 = vunpack.c.h.b16 %v2244
        %v2271 = vunpack.c.l.b16 %v2245
        %v2272 = vunpack.c.h.b16 %v2245
        %v2273 = vunpack.c.l.b16 %v2246
        %v2274 = vunpack.c.h.b16 %v2246
        %v2275 = vunpack.c.l.b16 %v2247
        %v2276 = vunpack.c.h.b16 %v2247
        %v2277 = vunpack.c.l.b16 %v2248
        %v2278 = vunpack.c.h.b16 %v2248
        %v2279 = vunpack.c.l.b16 %v2249
        %v2280 = vunpack.c.h.b16 %v2249
        %v2281 = vunpack.c.l.b16 %v2250
        %v2282 = vunpack.c.h.b16 %v2250
        %v2283 = vunpack.c.l.b16 %v2251
        %v2284 = vunpack.c.h.b16 %v2251
        %v2285 = vunpack.c.l.b16 %v2252
        %v2286 = vunpack.c.h.b16 %v2252
        %v2287 = vunpack.c.l.b16 %v2253
        %v2288 = vunpack.c.h.b16 %v2253
        %v2289 = vunpack.c.l.b16 %v2254
        %v2290 = vunpack.c.h.b16 %v2254
        %v2291 = vpack.c.b16 %v2269, %v2267
        %v2292 = vpack.c.b16 %v2270, %v2268
        %v2293 = vpack.c.b16 %v2273, %v2271
        %v2294 = vpack.c.b16 %v2274, %v2272
        %v2295 = vpack.c.b16 %v2277, %v2275
        %v2296 = vpack.c.b16 %v2278, %v2276
        %v2297 = vpack.c.b16 %v2281, %v2279
        %v2298 = vpack.c.b16 %v2282, %v2280
        %v2299 = vpack.c.b16 %v2285, %v2283
        %v2300 = vpack.c.b16 %v2286, %v2284
        %v2301 = vpack.c.b16 %v2289, %v2287
        %v2302 = vpack.c.b16 %v2290, %v2288
        %2315 = vmatprep.subr.bf16.mxu0 %v2292
        %2316 = vmatpush1.bf16.msra.mxu0 %v2291
        %2317 = vmatprep.subr.bf16.mxu0 %v2294
        %2318 = vmatpush1.bf16.msra.mxu0 %v2293
        %2319 = vmatprep.subr.bf16.mxu0 %v2296
        %2320 = vmatpush1.bf16.msra.mxu0 %v2295
        %2321 = vmatprep.subr.bf16.mxu0 %v2298
        %2322 = vmatpush1.bf16.msra.mxu0 %v2297
        %2323 = vmatprep.subr.bf16.mxu0 %v2300
        %2324 = vmatpush1.bf16.msra.mxu0 %v2299
        %2325 = vmatprep.subr.bf16.mxu0 %v2302
        %2326 = vmatpush1.bf16.msra.mxu0 %v2301
        %2327 = vmatprep.subr.bf16.mxu0 0
        %2328 = vmatpush1.bf16.msra.mxu0 0
        %2329 = vmatprep.subr.bf16.mxu0 0
        %2330 = vmatpush1.bf16.msra.mxu0 0
        %2331 = vmatprep.subr.bf16.mxu0 0
        %2332 = vmatpush1.bf16.msra.mxu0 0
        %2333 = vmatprep.subr.bf16.mxu0 0
        %2334 = vmatpush1.bf16.msra.mxu0 0
        %2335 = vmatprep.subr.bf16.mxu0 0
        %2336 = vmatpush1.bf16.msra.mxu0 0
        %2337 = vmatprep.subr.bf16.mxu0 0
        %2338 = vmatpush1.bf16.msra.mxu0 0
        %2339 = vmatprep.subr.bf16.mxu0 0
        %2340 = vmatpush1.bf16.msra.mxu0 0
        %2341 = vmatprep.subr.bf16.mxu0 0
        %2342 = vmatpush1.bf16.msra.mxu0 0
        %2343 = vmatprep.subr.bf16.mxu0 0
        %2344 = vmatpush1.bf16.msra.mxu0 0
        %2345 = vmatprep.subr.bf16.mxu0 0
        %2346 = vmatpush1.bf16.msra.mxu0 0
        %2347 = vmatprep.mubr.bf16.mxu0 0
        %2348 = vmatmul.mubr.bf16.gmra.mrb[0].mxu0 %v2074
        %v2349 = vpop.f32.mrb[0].mxu0
        %v2350 = vadd.f32 0.0, %v2349
        %v2351 = vpop.f32.mrb[0].mxu0
        %v2352 = vadd.f32 0.0, %v2351
        %v2353 = vpop.f32.mrb[0].mxu0
        %v2354 = vadd.f32 0.0, %v2353
        %v2355 = vpop.f32.mrb[0].mxu0
        %v2356 = vadd.f32 0.0, %v2355
        %2357 = vmatprep.mubr.bf16.mxu0 0
        %2358 = vmatmul.mubr.bf16.gmra.mrb[0].mxu0 %v2077
        %v2359 = vpop.f32.mrb[0].mxu0
        %v2360 = vadd.f32 0.0, %v2359
        %v2361 = vpop.f32.mrb[0].mxu0
        %v2362 = vadd.f32 0.0, %v2361
        %v2363 = vpop.f32.mrb[0].mxu0
        %v2364 = vadd.f32 0.0, %v2363
        %v2365 = vpop.f32.mrb[0].mxu0
        %v2366 = vadd.f32 0.0, %v2365
        %2367 = vmatprep.mubr.bf16.mxu0 0
        %2368 = vmatmul.mubr.bf16.gmra.mrb[0].mxu0 %v2080
        %v2369 = vpop.f32.mrb[0].mxu0
        %v2370 = vadd.f32 0.0, %v2369
        %v2371 = vpop.f32.mrb[0].mxu0
        %v2372 = vadd.f32 0.0, %v2371
        %v2373 = vpop.f32.mrb[0].mxu0
        %v2374 = vadd.f32 0.0, %v2373
        %v2375 = vpop.f32.mrb[0].mxu0
        %v2376 = vadd.f32 0.0, %v2375
        %2377 = vmatprep.mubr.bf16.mxu0 0
        %2378 = vmatmul.mubr.bf16.gmra.mrb[0].mxu0 %v2083
        %v2379 = vpop.f32.mrb[0].mxu0
        %v2380 = vadd.f32 0.0, %v2379
        %v2381 = vpop.f32.mrb[0].mxu0
        %v2382 = vadd.f32 0.0, %v2381
        %v2383 = vpop.f32.mrb[0].mxu0
        %v2384 = vadd.f32 0.0, %v2383
        %v2385 = vpop.f32.mrb[0].mxu0
        %v2386 = vadd.f32 0.0, %v2385
        %2387 = vmatprep.mubr.bf16.mxu0 0
        %2388 = vmatmul.mubr.bf16.gmra.mrb[0].mxu0 %v2086
        %v2389 = vpop.f32.mrb[0].mxu0
        %v2390 = vadd.f32 0.0, %v2389
        %v2391 = vpop.f32.mrb[0].mxu0
        %v2392 = vadd.f32 0.0, %v2391
        %v2393 = vpop.f32.mrb[0].mxu0
        %v2394 = vadd.f32 0.0, %v2393
        %v2395 = vpop.f32.mrb[0].mxu0
        %v2396 = vadd.f32 0.0, %v2395
        %2397 = vmatprep.mubr.bf16.mxu0 0
        %2398 = vmatmul.mubr.bf16.gmra.mrb[0].mxu0 %v2089
        %v2399 = vpop.f32.mrb[0].mxu0
        %v2400 = vadd.f32 0.0, %v2399
        %v2401 = vpop.f32.mrb[0].mxu0
        %v2402 = vadd.f32 0.0, %v2401
        %v2403 = vpop.f32.mrb[0].mxu0
        %v2404 = vadd.f32 0.0, %v2403
        %v2405 = vpop.f32.mrb[0].mxu0
        %v2406 = vadd.f32 0.0, %v2405
        %2407 = vmatprep.mubr.bf16.mxu0 0
        %2408 = vmatmul.mubr.bf16.gmra.mrb[0].mxu0 %v2092
        %v2409 = vpop.f32.mrb[0].mxu0
        %v2410 = vadd.f32 0.0, %v2409
        %v2411 = vpop.f32.mrb[0].mxu0
        %v2412 = vadd.f32 0.0, %v2411
        %v2413 = vpop.f32.mrb[0].mxu0
        %v2414 = vadd.f32 0.0, %v2413
        %v2415 = vpop.f32.mrb[0].mxu0
        %v2416 = vadd.f32 0.0, %v2415
        %2417 = vmatprep.mubr.bf16.mxu0 0
        %2418 = vmatmul.mubr.bf16.gmra.mrb[0].mxu0 %v2095
        %v2419 = vpop.f32.mrb[0].mxu0
        %v2420 = vadd.f32 0.0, %v2419
        %v2421 = vpop.f32.mrb[0].mxu0
        %v2422 = vadd.f32 0.0, %v2421
        %v2423 = vpop.f32.mrb[0].mxu0
        %v2424 = vadd.f32 0.0, %v2423
        %v2425 = vpop.f32.mrb[0].mxu0
        %v2426 = vadd.f32 0.0, %v2425
        %2427 = vdwg.mxu0
        %v2428 = vadd.f32 %v1752, %v2350
        %v2429 = vadd.f32 %v1754, %v2352
        %v2430 = vadd.f32 %v1756, %v2354
        %v2431 = vadd.f32 %v1758, %v2356
        %v2432 = vadd.f32 %v1762, %v2360
        %v2433 = vadd.f32 %v1764, %v2362
        %v2434 = vadd.f32 %v1766, %v2364
        %v2435 = vadd.f32 %v1768, %v2366
        %v2436 = vadd.f32 %v1772, %v2370
        %v2437 = vadd.f32 %v1774, %v2372
        %v2438 = vadd.f32 %v1776, %v2374
        %v2439 = vadd.f32 %v1778, %v2376
        %v2440 = vadd.f32 %v1782, %v2380
        %v2441 = vadd.f32 %v1784, %v2382
        %v2442 = vadd.f32 %v1786, %v2384
        %v2443 = vadd.f32 %v1788, %v2386
        %v2444 = vadd.f32 %v1792, %v2390
        %v2445 = vadd.f32 %v1794, %v2392
        %v2446 = vadd.f32 %v1796, %v2394
        %v2447 = vadd.f32 %v1798, %v2396
        %v2448 = vadd.f32 %v1802, %v2400
        %v2449 = vadd.f32 %v1804, %v2402
        %v2450 = vadd.f32 %v1806, %v2404
        %v2451 = vadd.f32 %v1808, %v2406
        %v2452 = vadd.f32 %v1812, %v2410
        %v2453 = vadd.f32 %v1814, %v2412
        %v2454 = vadd.f32 %v1816, %v2414
        %v2455 = vadd.f32 %v1818, %v2416
        %v2456 = vadd.f32 %v1822, %v2420
        %v2457 = vadd.f32 %v1824, %v2422
        %v2458 = vadd.f32 %v1826, %v2424
        %v2459 = vadd.f32 %v1828, %v2426
        %v2460 = vld [vmem:[#allocation8] sm:$0x3]
        %v2462 = vlaneseq
        %v2463 = vshrl.u32 %v2462, 7
        %v2464 = vsub.s32 0, %v2463
        %v2465 = vrot.slane %v2460, %v2464
        %v2466 = vlaneseq
        %v2467 = vshrl.u32 %v2466, 7
        %v2468 = vsub.s32 1, %v2467
        %v2469 = vrot.slane %v2460, %v2468
        %v2472 = vadd.f32 %v2210, %v2465
        %v2473 = vadd.f32 %v2211, %v2469
        %v2474 = vadd.f32 %v2212, %v2465
        %v2475 = vadd.f32 %v2213, %v2469
        %v2476 = vadd.f32 %v2214, %v2465
        %v2477 = vadd.f32 %v2215, %v2469
        %v2478 = vadd.f32 %v2216, %v2465
        %v2479 = vadd.f32 %v2217, %v2469
        %v2480 = vadd.f32 %v2218, %v2465
        %v2481 = vadd.f32 %v2219, %v2469
        %v2482 = vadd.f32 %v2220, %v2465
        %v2483 = vadd.f32 %v2221, %v2469
        %v2484 = vadd.f32 %v2222, %v2465
        %v2485 = vadd.f32 %v2223, %v2469
        %v2486 = vadd.f32 %v2224, %v2465
        %v2487 = vadd.f32 %v2225, %v2469
        %v2488 = vadd.f32 %v2226, %v2465
        %v2489 = vadd.f32 %v2227, %v2469
        %v2490 = vadd.f32 %v2228, %v2465
        %v2491 = vadd.f32 %v2229, %v2469
        %v2492 = vadd.f32 %v2230, %v2465
        %v2493 = vadd.f32 %v2231, %v2469
        %v2494 = vadd.f32 %v2232, %v2465
        %v2495 = vadd.f32 %v2233, %v2469
        %v2496 = vadd.f32 %v2234, %v2465
        %v2497 = vadd.f32 %v2235, %v2469
        %v2498 = vadd.f32 %v2236, %v2465
        %v2499 = vadd.f32 %v2237, %v2469
        %v2500 = vadd.f32 %v2238, %v2465
        %v2501 = vadd.f32 %v2239, %v2469
        %v2502 = vadd.f32 %v2240, %v2465
        %v2503 = vadd.f32 %v2241, %v2469
        %v2504 = vmax.f32 %v2472, 0.0
        %v2505 = vmax.f32 %v2473, 0.0
        %v2506 = vmax.f32 %v2474, 0.0
        %v2507 = vmax.f32 %v2475, 0.0
        %v2508 = vmax.f32 %v2476, 0.0
        %v2509 = vmax.f32 %v2477, 0.0
        %v2510 = vmax.f32 %v2478, 0.0
        %v2511 = vmax.f32 %v2479, 0.0
        %v2512 = vmax.f32 %v2480, 0.0
        %v2513 = vmax.f32 %v2481, 0.0
        %v2514 = vmax.f32 %v2482, 0.0
        %v2515 = vmax.f32 %v2483, 0.0
        %v2516 = vmax.f32 %v2484, 0.0
        %v2517 = vmax.f32 %v2485, 0.0
        %v2518 = vmax.f32 %v2486, 0.0
        %v2519 = vmax.f32 %v2487, 0.0
        %v2520 = vmax.f32 %v2488, 0.0
        %v2521 = vmax.f32 %v2489, 0.0
        %v2522 = vmax.f32 %v2490, 0.0
        %v2523 = vmax.f32 %v2491, 0.0
        %v2524 = vmax.f32 %v2492, 0.0
        %v2525 = vmax.f32 %v2493, 0.0
        %v2526 = vmax.f32 %v2494, 0.0
        %v2527 = vmax.f32 %v2495, 0.0
        %v2528 = vmax.f32 %v2496, 0.0
        %v2529 = vmax.f32 %v2497, 0.0
        %v2530 = vmax.f32 %v2498, 0.0
        %v2531 = vmax.f32 %v2499, 0.0
        %v2532 = vmax.f32 %v2500, 0.0
        %v2533 = vmax.f32 %v2501, 0.0
        %v2534 = vmax.f32 %v2502, 0.0
        %v2535 = vmax.f32 %v2503, 0.0
        %v2536 = vadd.f32 %v2428, %v2465
        %v2537 = vadd.f32 %v2429, %v2469
        %v2538 = vadd.f32 %v2430, %v2465
        %v2539 = vadd.f32 %v2431, %v2469
        %v2540 = vadd.f32 %v2432, %v2465
        %v2541 = vadd.f32 %v2433, %v2469
        %v2542 = vadd.f32 %v2434, %v2465
        %v2543 = vadd.f32 %v2435, %v2469
        %v2544 = vadd.f32 %v2436, %v2465
        %v2545 = vadd.f32 %v2437, %v2469
        %v2546 = vadd.f32 %v2438, %v2465
        %v2547 = vadd.f32 %v2439, %v2469
        %v2548 = vadd.f32 %v2440, %v2465
        %v2549 = vadd.f32 %v2441, %v2469
        %v2550 = vadd.f32 %v2442, %v2465
        %v2551 = vadd.f32 %v2443, %v2469
        %v2552 = vadd.f32 %v2444, %v2465
        %v2553 = vadd.f32 %v2445, %v2469
        %v2554 = vadd.f32 %v2446, %v2465
        %v2555 = vadd.f32 %v2447, %v2469
        %v2556 = vadd.f32 %v2448, %v2465
        %v2557 = vadd.f32 %v2449, %v2469
        %v2558 = vadd.f32 %v2450, %v2465
        %v2559 = vadd.f32 %v2451, %v2469
        %v2560 = vadd.f32 %v2452, %v2465
        %v2561 = vadd.f32 %v2453, %v2469
        %v2562 = vadd.f32 %v2454, %v2465
        %v2563 = vadd.f32 %v2455, %v2469
        %v2564 = vadd.f32 %v2456, %v2465
        %v2565 = vadd.f32 %v2457, %v2469
        %v2566 = vadd.f32 %v2458, %v2465
        %v2567 = vadd.f32 %v2459, %v2469
        %v2568 = vmax.f32 %v2536, 0.0
        %v2569 = vmax.f32 %v2537, 0.0
        %v2570 = vmax.f32 %v2538, 0.0
        %v2571 = vmax.f32 %v2539, 0.0
        %v2572 = vmax.f32 %v2540, 0.0
        %v2573 = vmax.f32 %v2541, 0.0
        %v2574 = vmax.f32 %v2542, 0.0
        %v2575 = vmax.f32 %v2543, 0.0
        %v2576 = vmax.f32 %v2544, 0.0
        %v2577 = vmax.f32 %v2545, 0.0
        %v2578 = vmax.f32 %v2546, 0.0
        %v2579 = vmax.f32 %v2547, 0.0
        %v2580 = vmax.f32 %v2548, 0.0
        %v2581 = vmax.f32 %v2549, 0.0
        %v2582 = vmax.f32 %v2550, 0.0
        %v2583 = vmax.f32 %v2551, 0.0
        %v2584 = vmax.f32 %v2552, 0.0
        %v2585 = vmax.f32 %v2553, 0.0
        %v2586 = vmax.f32 %v2554, 0.0
        %v2587 = vmax.f32 %v2555, 0.0
        %v2588 = vmax.f32 %v2556, 0.0
        %v2589 = vmax.f32 %v2557, 0.0
        %v2590 = vmax.f32 %v2558, 0.0
        %v2591 = vmax.f32 %v2559, 0.0
        %v2592 = vmax.f32 %v2560, 0.0
        %v2593 = vmax.f32 %v2561, 0.0
        %v2594 = vmax.f32 %v2562, 0.0
        %v2595 = vmax.f32 %v2563, 0.0
        %v2596 = vmax.f32 %v2564, 0.0
        %v2597 = vmax.f32 %v2565, 0.0
        %v2598 = vmax.f32 %v2566, 0.0
        %v2599 = vmax.f32 %v2567, 0.0
        %v2600 = vmax.f32 %v2504, %v2568
        %v2601 = vmax.f32 %v2505, %v2569
        %v2602 = vmax.f32 %v2506, %v2570
        %v2603 = vmax.f32 %v2507, %v2571
        %v2604 = vmax.f32 %v2508, %v2572
        %v2605 = vmax.f32 %v2509, %v2573
        %v2606 = vmax.f32 %v2510, %v2574
        %v2607 = vmax.f32 %v2511, %v2575
        %v2608 = vmax.f32 %v2512, %v2576
        %v2609 = vmax.f32 %v2513, %v2577
        %v2610 = vmax.f32 %v2514, %v2578
        %v2611 = vmax.f32 %v2515, %v2579
        %v2612 = vmax.f32 %v2516, %v2580
        %v2613 = vmax.f32 %v2517, %v2581
        %v2614 = vmax.f32 %v2518, %v2582
        %v2615 = vmax.f32 %v2519, %v2583
        %v2616 = vmax.f32 %v2520, %v2584
        %v2617 = vmax.f32 %v2521, %v2585
        %v2618 = vmax.f32 %v2522, %v2586
        %v2619 = vmax.f32 %v2523, %v2587
        %v2620 = vmax.f32 %v2524, %v2588
        %v2621 = vmax.f32 %v2525, %v2589
        %v2622 = vmax.f32 %v2526, %v2590
        %v2623 = vmax.f32 %v2527, %v2591
        %v2624 = vmax.f32 %v2528, %v2592
        %v2625 = vmax.f32 %v2529, %v2593
        %v2626 = vmax.f32 %v2530, %v2594
        %v2627 = vmax.f32 %v2531, %v2595
        %v2628 = vmax.f32 %v2532, %v2596
        %v2629 = vmax.f32 %v2533, %v2597
        %v2630 = vmax.f32 %v2534, %v2598
        %v2631 = vmax.f32 %v2535, %v2599
        %v2632 = vpack.c.bf16 %v2602, %v2600
        %v2633 = vpack.c.bf16 %v2603, %v2601
        %v2634 = vpack.c.bf16 %v2606, %v2604
        %v2635 = vpack.c.bf16 %v2607, %v2605
        %v2636 = vpack.c.bf16 %v2610, %v2608
        %v2637 = vpack.c.bf16 %v2611, %v2609
        %v2638 = vpack.c.bf16 %v2614, %v2612
        %v2639 = vpack.c.bf16 %v2615, %v2613
        %v2640 = vpack.c.bf16 %v2618, %v2616
        %v2641 = vpack.c.bf16 %v2619, %v2617
        %v2642 = vpack.c.bf16 %v2622, %v2620
        %v2643 = vpack.c.bf16 %v2623, %v2621
        %v2644 = vpack.c.bf16 %v2626, %v2624
        %v2645 = vpack.c.bf16 %v2627, %v2625
        %v2646 = vpack.c.bf16 %v2630, %v2628
        %v2647 = vpack.c.bf16 %v2631, %v2629
        %v2648 = vld [vmem:[%s5] sm:$0xf]
        %v2649 = vld [vmem:[%s5 + $0x4] sm:$0xf]
        %v2650 = vld [vmem:[%s5 + $0x8] sm:$0xf]
        %v2651 = vld [vmem:[%s5 + $0xc] sm:$0xf]
        %v2652 = vld [vmem:[%s5 + $0x10] sm:$0xf]
        %v2653 = vld [vmem:[%s5 + $0x14] sm:$0xf]
        %v2654 = vld [vmem:[%s5 + $0x18] sm:$0xf]
        %v2655 = vld [vmem:[%s5 + $0x1c] sm:$0xf]
        %v2664 = vunpack.c.l.b16 %v2648
        %v2665 = vunpack.c.l.b16 %v2649
        %v2666 = vunpack.c.l.b16 %v2650
        %v2667 = vunpack.c.l.b16 %v2651
        %v2668 = vunpack.c.l.b16 %v2652
        %v2669 = vunpack.c.l.b16 %v2653
        %v2670 = vunpack.c.l.b16 %v2654
        %v2671 = vunpack.c.l.b16 %v2655
        %v2672 = vpack.c.b16 %v2665, %v2664
        %v2673 = vpack.c.b16 %v2667, %v2666
        %v2674 = vpack.c.b16 %v2669, %v2668
        %v2675 = vpack.c.b16 %v2671, %v2670
        %2680 = vmatprep.subr.bf16.mxu0 %v2633
        %2681 = vmatpush1.bf16.msra.mxu0 %v2632
        %2682 = vmatprep.subr.bf16.mxu0 %v2635
        %2683 = vmatpush1.bf16.msra.mxu0 %v2634
        %2684 = vmatprep.subr.bf16.mxu0 %v2637
        %2685 = vmatpush1.bf16.msra.mxu0 %v2636
        %2686 = vmatprep.subr.bf16.mxu0 %v2639
        %2687 = vmatpush1.bf16.msra.mxu0 %v2638
        %2688 = vmatprep.subr.bf16.mxu0 %v2641
        %2689 = vmatpush1.bf16.msra.mxu0 %v2640
        %2690 = vmatprep.subr.bf16.mxu0 %v2643
        %2691 = vmatpush1.bf16.msra.mxu0 %v2642
        %2692 = vmatprep.subr.bf16.mxu0 %v2645
        %2693 = vmatpush1.bf16.msra.mxu0 %v2644
        %2694 = vmatprep.subr.bf16.mxu0 %v2647
        %2695 = vmatpush1.bf16.msra.mxu0 %v2646
        %2696 = vmatprep.subr.bf16.mxu0 0
        %2697 = vmatpush1.bf16.msra.mxu0 0
        %2698 = vmatprep.subr.bf16.mxu0 0
        %2699 = vmatpush1.bf16.msra.mxu0 0
        %2700 = vmatprep.subr.bf16.mxu0 0
        %2701 = vmatpush1.bf16.msra.mxu0 0
        %2702 = vmatprep.subr.bf16.mxu0 0
        %2703 = vmatpush1.bf16.msra.mxu0 0
        %2704 = vmatprep.subr.bf16.mxu0 0
        %2705 = vmatpush1.bf16.msra.mxu0 0
        %2706 = vmatprep.subr.bf16.mxu0 0
        %2707 = vmatpush1.bf16.msra.mxu0 0
        %2708 = vmatprep.subr.bf16.mxu0 0
        %2709 = vmatpush1.bf16.msra.mxu0 0
        %2710 = vmatprep.subr.bf16.mxu0 0
        %2711 = vmatpush1.bf16.msra.mxu0 0
        %2712 = vmatprep.mubr.bf16.mxu0 0
        %2713 = vmatmul.mubr.bf16.gmra.mrb[0].mxu0 %v2672
        %v2714 = vpop.f32.mrb[0].mxu0
        %v2715 = vadd.f32 0.0, %v2714
        %v2716 = vpop.f32.mrb[0].mxu0
        %v2717 = vadd.f32 0.0, %v2716
        %v2718 = vpop.f32.mrb[0].mxu0
        %v2719 = vadd.f32 0.0, %v2718
        %v2720 = vpop.f32.mrb[0].mxu0
        %v2721 = vadd.f32 0.0, %v2720
        %2722 = vmatprep.mubr.bf16.mxu0 0
        %2723 = vmatmul.mubr.bf16.gmra.mrb[0].mxu0 %v2673
        %v2724 = vpop.f32.mrb[0].mxu0
        %v2725 = vadd.f32 0.0, %v2724
        %v2726 = vpop.f32.mrb[0].mxu0
        %v2727 = vadd.f32 0.0, %v2726
        %v2728 = vpop.f32.mrb[0].mxu0
        %v2729 = vadd.f32 0.0, %v2728
        %v2730 = vpop.f32.mrb[0].mxu0
        %v2731 = vadd.f32 0.0, %v2730
        %2732 = vmatprep.mubr.bf16.mxu0 0
        %2733 = vmatmul.mubr.bf16.gmra.mrb[0].mxu0 %v2674
        %v2734 = vpop.f32.mrb[0].mxu0
        %v2735 = vadd.f32 0.0, %v2734
        %v2736 = vpop.f32.mrb[0].mxu0
        %v2737 = vadd.f32 0.0, %v2736
        %v2738 = vpop.f32.mrb[0].mxu0
        %v2739 = vadd.f32 0.0, %v2738
        %v2740 = vpop.f32.mrb[0].mxu0
        %v2741 = vadd.f32 0.0, %v2740
        %2742 = vmatprep.mubr.bf16.mxu0 0
        %2743 = vmatmul.mubr.bf16.gmra.mrb[0].mxu0 %v2675
        %v2744 = vpop.f32.mrb[0].mxu0
        %v2745 = vadd.f32 0.0, %v2744
        %v2746 = vpop.f32.mrb[0].mxu0
        %v2747 = vadd.f32 0.0, %v2746
        %v2748 = vpop.f32.mrb[0].mxu0
        %v2749 = vadd.f32 0.0, %v2748
        %v2750 = vpop.f32.mrb[0].mxu0
        %v2751 = vadd.f32 0.0, %v2750
        %2752 = vdwg.mxu0
        %v2753 = vld [vmem:[%s6] sm:$0xf]
        %v2754 = vld [vmem:[%s6 + $0x4] sm:$0xf]
        %v2755 = vld [vmem:[%s6 + $0x8] sm:$0xf]
        %v2756 = vld [vmem:[%s6 + $0xc] sm:$0xf]
        %v2757 = vld [vmem:[%s6 + $0x10] sm:$0xf]
        %v2758 = vld [vmem:[%s6 + $0x14] sm:$0xf]
        %v2759 = vld [vmem:[%s6 + $0x18] sm:$0xf]
        %v2760 = vld [vmem:[%s6 + $0x1c] sm:$0xf]
        %v2769 = vunpack.c.l.b16 %v2753
        %v2770 = vunpack.c.l.b16 %v2754
        %v2771 = vunpack.c.l.b16 %v2755
        %v2772 = vunpack.c.l.b16 %v2756
        %v2773 = vunpack.c.l.b16 %v2757
        %v2774 = vunpack.c.l.b16 %v2758
        %v2775 = vunpack.c.l.b16 %v2759
        %v2776 = vunpack.c.l.b16 %v2760
        %v2777 = vpack.c.b16 %v2770, %v2769
        %v2778 = vpack.c.b16 %v2772, %v2771
        %v2779 = vpack.c.b16 %v2774, %v2773
        %v2780 = vpack.c.b16 %v2776, %v2775
        %2785 = vmatprep.subr.bf16.mxu0 %v2633
        %2786 = vmatpush1.bf16.msra.mxu0 %v2632
        %2787 = vmatprep.subr.bf16.mxu0 %v2635
        %2788 = vmatpush1.bf16.msra.mxu0 %v2634
        %2789 = vmatprep.subr.bf16.mxu0 %v2637
        %2790 = vmatpush1.bf16.msra.mxu0 %v2636
        %2791 = vmatprep.subr.bf16.mxu0 %v2639
        %2792 = vmatpush1.bf16.msra.mxu0 %v2638
        %2793 = vmatprep.subr.bf16.mxu0 %v2641
        %2794 = vmatpush1.bf16.msra.mxu0 %v2640
        %2795 = vmatprep.subr.bf16.mxu0 %v2643
        %2796 = vmatpush1.bf16.msra.mxu0 %v2642
        %2797 = vmatprep.subr.bf16.mxu0 %v2645
        %2798 = vmatpush1.bf16.msra.mxu0 %v2644
        %2799 = vmatprep.subr.bf16.mxu0 %v2647
        %2800 = vmatpush1.bf16.msra.mxu0 %v2646
        %2801 = vmatprep.subr.bf16.mxu0 0
        %2802 = vmatpush1.bf16.msra.mxu0 0
        %2803 = vmatprep.subr.bf16.mxu0 0
        %2804 = vmatpush1.bf16.msra.mxu0 0
        %2805 = vmatprep.subr.bf16.mxu0 0
        %2806 = vmatpush1.bf16.msra.mxu0 0
        %2807 = vmatprep.subr.bf16.mxu0 0
        %2808 = vmatpush1.bf16.msra.mxu0 0
        %2809 = vmatprep.subr.bf16.mxu0 0
        %2810 = vmatpush1.bf16.msra.mxu0 0
        %2811 = vmatprep.subr.bf16.mxu0 0
        %2812 = vmatpush1.bf16.msra.mxu0 0
        %2813 = vmatprep.subr.bf16.mxu0 0
        %2814 = vmatpush1.bf16.msra.mxu0 0
        %2815 = vmatprep.subr.bf16.mxu0 0
        %2816 = vmatpush1.bf16.msra.mxu0 0
        %2817 = vmatprep.mubr.bf16.mxu0 0
        %2818 = vmatmul.mubr.bf16.gmra.mrb[0].mxu0 %v2777
        %v2819 = vpop.f32.mrb[0].mxu0
        %v2820 = vadd.f32 0.0, %v2819
        %v2821 = vpop.f32.mrb[0].mxu0
        %v2822 = vadd.f32 0.0, %v2821
        %v2823 = vpop.f32.mrb[0].mxu0
        %v2824 = vadd.f32 0.0, %v2823
        %v2825 = vpop.f32.mrb[0].mxu0
        %v2826 = vadd.f32 0.0, %v2825
        %2827 = vmatprep.mubr.bf16.mxu0 0
        %2828 = vmatmul.mubr.bf16.gmra.mrb[0].mxu0 %v2778
        %v2829 = vpop.f32.mrb[0].mxu0
        %v2830 = vadd.f32 0.0, %v2829
        %v2831 = vpop.f32.mrb[0].mxu0
        %v2832 = vadd.f32 0.0, %v2831
        %v2833 = vpop.f32.mrb[0].mxu0
        %v2834 = vadd.f32 0.0, %v2833
        %v2835 = vpop.f32.mrb[0].mxu0
        %v2836 = vadd.f32 0.0, %v2835
        %2837 = vmatprep.mubr.bf16.mxu0 0
        %2838 = vmatmul.mubr.bf16.gmra.mrb[0].mxu0 %v2779
        %v2839 = vpop.f32.mrb[0].mxu0
        %v2840 = vadd.f32 0.0, %v2839
        %v2841 = vpop.f32.mrb[0].mxu0
        %v2842 = vadd.f32 0.0, %v2841
        %v2843 = vpop.f32.mrb[0].mxu0
        %v2844 = vadd.f32 0.0, %v2843
        %v2845 = vpop.f32.mrb[0].mxu0
        %v2846 = vadd.f32 0.0, %v2845
        %2847 = vmatprep.mubr.bf16.mxu0 0
        %2848 = vmatmul.mubr.bf16.gmra.mrb[0].mxu0 %v2780
        %v2849 = vpop.f32.mrb[0].mxu0
        %v2850 = vadd.f32 0.0, %v2849
        %v2851 = vpop.f32.mrb[0].mxu0
        %v2852 = vadd.f32 0.0, %v2851
        %v2853 = vpop.f32.mrb[0].mxu0
        %v2854 = vadd.f32 0.0, %v2853
        %v2855 = vpop.f32.mrb[0].mxu0
        %v2856 = vadd.f32 0.0, %v2855
        %2857 = vdwg.mxu0
        %v2858 = vmax.f32 %v2715, %v2820
        %v2859 = vmax.f32 %v2717, %v2822
        %v2860 = vmax.f32 %v2719, %v2824
        %v2861 = vmax.f32 %v2721, %v2826
        %v2862 = vmax.f32 %v2725, %v2830
        %v2863 = vmax.f32 %v2727, %v2832
        %v2864 = vmax.f32 %v2729, %v2834
        %v2865 = vmax.f32 %v2731, %v2836
        %v2866 = vmax.f32 %v2735, %v2840
        %v2867 = vmax.f32 %v2737, %v2842
        %v2868 = vmax.f32 %v2739, %v2844
        %v2869 = vmax.f32 %v2741, %v2846
        %v2870 = vmax.f32 %v2745, %v2850
        %v2871 = vmax.f32 %v2747, %v2852
        %v2872 = vmax.f32 %v2749, %v2854
        %v2873 = vmax.f32 %v2751, %v2856
        %v2874 = vpack.c.bf16 %v2860, %v2858
        %v2875 = vpack.c.bf16 %v2861, %v2859
        %v2876 = vpack.c.bf16 %v2864, %v2862
        %v2877 = vpack.c.bf16 %v2865, %v2863
        %v2878 = vpack.c.bf16 %v2868, %v2866
        %v2879 = vpack.c.bf16 %v2869, %v2867
        %v2880 = vpack.c.bf16 %v2872, %v2870
        %v2881 = vpack.c.bf16 %v2873, %v2871
        %v2882 = vld [vmem:[#allocation10] sm:$0xf]
        %v2883 = vld [vmem:[#allocation10 + $0x4] sm:$0xf]
        %v2884 = vld [vmem:[#allocation10 + $0x8] sm:$0xf]
        %v2885 = vld [vmem:[#allocation10 + $0xc] sm:$0xf]
        %v2886 = vld [vmem:[#allocation10 + $0x10] sm:$0xf]
        %v2887 = vld [vmem:[#allocation10 + $0x14] sm:$0xf]
        %v2888 = vld [vmem:[#allocation10 + $0x18] sm:$0xf]
        %v2889 = vld [vmem:[#allocation10 + $0x1c] sm:$0xf]
        %v2898 = vunpack.c.l.b16 %v2882
        %v2899 = vunpack.c.l.b16 %v2883
        %v2900 = vunpack.c.l.b16 %v2884
        %v2901 = vunpack.c.l.b16 %v2885
        %v2902 = vunpack.c.l.b16 %v2886
        %v2903 = vunpack.c.l.b16 %v2887
        %v2904 = vunpack.c.l.b16 %v2888
        %v2905 = vunpack.c.l.b16 %v2889
        %v2906 = vpack.c.b16 %v2899, %v2898
        %v2907 = vpack.c.b16 %v2901, %v2900
        %v2908 = vpack.c.b16 %v2903, %v2902
        %v2909 = vpack.c.b16 %v2905, %v2904
        %vm2910 = vcmask 523264
        %v2912 = vsel %vm2910, %v2906, 0
        %v2915 = vsel %vm2910, %v2907, 0
        %v2918 = vsel %vm2910, %v2908, 0
        %v2921 = vsel %vm2910, %v2909, 0
        %2923 = vmatprep.subr.bf16.mxu0 %v2875
        %2924 = vmatpush1.bf16.msra.mxu0 %v2874
        %2925 = vmatprep.subr.bf16.mxu0 %v2877
        %2926 = vmatpush1.bf16.msra.mxu0 %v2876
        %2927 = vmatprep.subr.bf16.mxu0 %v2879
        %2928 = vmatpush1.bf16.msra.mxu0 %v2878
        %2929 = vmatprep.subr.bf16.mxu0 %v2881
        %2930 = vmatpush1.bf16.msra.mxu0 %v2880
        %2931 = vmatprep.subr.bf16.mxu0 0
        %2932 = vmatpush1.bf16.msra.mxu0 0
        %2933 = vmatprep.subr.bf16.mxu0 0
        %2934 = vmatpush1.bf16.msra.mxu0 0
        %2935 = vmatprep.subr.bf16.mxu0 0
        %2936 = vmatpush1.bf16.msra.mxu0 0
        %2937 = vmatprep.subr.bf16.mxu0 0
        %2938 = vmatpush1.bf16.msra.mxu0 0
        %2939 = vmatprep.subr.bf16.mxu0 0
        %2940 = vmatpush1.bf16.msra.mxu0 0
        %2941 = vmatprep.subr.bf16.mxu0 0
        %2942 = vmatpush1.bf16.msra.mxu0 0
        %2943 = vmatprep.subr.bf16.mxu0 0
        %2944 = vmatpush1.bf16.msra.mxu0 0
        %2945 = vmatprep.subr.bf16.mxu0 0
        %2946 = vmatpush1.bf16.msra.mxu0 0
        %2947 = vmatprep.subr.bf16.mxu0 0
        %2948 = vmatpush1.bf16.msra.mxu0 0
        %2949 = vmatprep.subr.bf16.mxu0 0
        %2950 = vmatpush1.bf16.msra.mxu0 0
        %2951 = vmatprep.subr.bf16.mxu0 0
        %2952 = vmatpush1.bf16.msra.mxu0 0
        %2953 = vmatprep.subr.bf16.mxu0 0
        %2954 = vmatpush1.bf16.msra.mxu0 0
        %2955 = vmatprep.mubr.bf16.mxu0 0
        %2956 = vmatmul.mubr.bf16.gmra.mrb[0].mxu0 %v2912
        %v2957 = vpop.f32.mrb[0].mxu0
        %v2958 = vadd.f32 0.0, %v2957
        %v2959 = vpop.f32.mrb[0].mxu0
        %v2960 = vadd.f32 0.0, %v2959
        %v2961 = vpop.f32.mrb[0].mxu0
        %v2962 = vadd.f32 0.0, %v2961
        %v2963 = vpop.f32.mrb[0].mxu0
        %v2964 = vadd.f32 0.0, %v2963
        %2965 = vmatprep.mubr.bf16.mxu0 0
        %2966 = vmatmul.mubr.bf16.gmra.mrb[0].mxu0 %v2915
        %v2967 = vpop.f32.mrb[0].mxu0
        %v2968 = vadd.f32 0.0, %v2967
        %v2969 = vpop.f32.mrb[0].mxu0
        %v2970 = vadd.f32 0.0, %v2969
        %v2971 = vpop.f32.mrb[0].mxu0
        %v2972 = vadd.f32 0.0, %v2971
        %v2973 = vpop.f32.mrb[0].mxu0
        %v2974 = vadd.f32 0.0, %v2973
        %2975 = vmatprep.mubr.bf16.mxu0 0
        %2976 = vmatmul.mubr.bf16.gmra.mrb[0].mxu0 %v2918
        %v2977 = vpop.f32.mrb[0].mxu0
        %v2978 = vadd.f32 0.0, %v2977
        %v2979 = vpop.f32.mrb[0].mxu0
        %v2980 = vadd.f32 0.0, %v2979
        %v2981 = vpop.f32.mrb[0].mxu0
        %v2982 = vadd.f32 0.0, %v2981
        %v2983 = vpop.f32.mrb[0].mxu0
        %v2984 = vadd.f32 0.0, %v2983
        %2985 = vmatprep.mubr.bf16.mxu0 0
        %2986 = vmatmul.mubr.bf16.gmra.mrb[0].mxu0 %v2921
        %v2987 = vpop.f32.mrb[0].mxu0
        %v2988 = vadd.f32 0.0, %v2987
        %v2989 = vpop.f32.mrb[0].mxu0
        %v2990 = vadd.f32 0.0, %v2989
        %v2991 = vpop.f32.mrb[0].mxu0
        %v2992 = vadd.f32 0.0, %v2991
        %v2993 = vpop.f32.mrb[0].mxu0
        %v2994 = vadd.f32 0.0, %v2993
        %2995 = vdwg.mxu0
        %v2996 = vpack.c.bf16 %v2962, %v2958
        %v2997 = vpack.c.bf16 %v2964, %v2960
        %v2998 = vpack.c.bf16 %v2972, %v2968
        %v2999 = vpack.c.bf16 %v2974, %v2970
        %v3000 = vpack.c.bf16 %v2982, %v2978
        %v3001 = vpack.c.bf16 %v2984, %v2980
        %v3002 = vpack.c.bf16 %v2992, %v2988
        %v3003 = vpack.c.bf16 %v2994, %v2990
        %v3004 = vld [vmem:[%s8] sm:$0xff]
        %v3005 = vld [vmem:[%s8 + $0x8] sm:$0xff]
        %v3006 = vld [vmem:[%s8 + $0x10] sm:$0xff]
        %v3007 = vld [vmem:[%s8 + $0x18] sm:$0xff]
        %v3008 = vld [vmem:[%s8 + $0x20] sm:$0xff]
        %v3009 = vld [vmem:[%s8 + $0x28] sm:$0xff]
        %v3010 = vld [vmem:[%s8 + $0x30] sm:$0xff]
        %v3011 = vld [vmem:[%s8 + $0x38] sm:$0xff]
        %v3012 = vld [vmem:[%s8 + $0x40] sm:$0xff]
        %v3013 = vld [vmem:[%s8 + $0x48] sm:$0xff]
        %v3014 = vld [vmem:[%s8 + $0x50] sm:$0xff]
        %v3015 = vld [vmem:[%s8 + $0x58] sm:$0xff]
        %v3016 = vld [vmem:[%s8 + $0x60] sm:$0xff]
        %v3017 = vld [vmem:[%s8 + $0x68] sm:$0xff]
        %v3018 = vld [vmem:[%s8 + $0x70] sm:$0xff]
        %v3019 = vld [vmem:[%s8 + $0x78] sm:$0xff]
        %v3020 = vld [vmem:[%s8 + $0x80] sm:$0xff]
        %v3021 = vld [vmem:[%s8 + $0x88] sm:$0xff]
        %v3022 = vld [vmem:[%s8 + $0x90] sm:$0xff]
        %v3023 = vld [vmem:[%s8 + $0x98] sm:$0xff]
        %v3024 = vld [vmem:[%s8 + $0xa0] sm:$0xff]
        %v3025 = vld [vmem:[%s8 + $0xa8] sm:$0xff]
        %v3026 = vld [vmem:[%s8 + $0xb0] sm:$0xff]
        %v3027 = vld [vmem:[%s8 + $0xb8] sm:$0xff]
        %v3028 = vld [vmem:[%s8 + $0xc0] sm:$0xff]
        %v3029 = vld [vmem:[%s8 + $0xc8] sm:$0xff]
        %v3030 = vld [vmem:[%s8 + $0xd0] sm:$0xff]
        %v3031 = vld [vmem:[%s8 + $0xd8] sm:$0xff]
        %v3032 = vld [vmem:[%s8 + $0xe0] sm:$0xff]
        %v3033 = vld [vmem:[%s8 + $0xe8] sm:$0xff]
        %v3034 = vld [vmem:[%s8 + $0xf0] sm:$0xff]
        %v3035 = vld [vmem:[%s8 + $0xf8] sm:$0xff]
        %v3036 = vld [vmem:[%s9] sm:$0xff]
        %v3037 = vld [vmem:[%s9 + $0x8] sm:$0xff]
        %v3038 = vld [vmem:[%s9 + $0x10] sm:$0xff]
        %v3039 = vld [vmem:[%s9 + $0x18] sm:$0xff]
        %v3040 = vld [vmem:[%s9 + $0x20] sm:$0xff]
        %v3041 = vld [vmem:[%s9 + $0x28] sm:$0xff]
        %v3042 = vld [vmem:[%s9 + $0x30] sm:$0xff]
        %v3043 = vld [vmem:[%s9 + $0x38] sm:$0xff]
        %v3044 = vld [vmem:[%s9 + $0x40] sm:$0xff]
        %v3045 = vld [vmem:[%s9 + $0x48] sm:$0xff]
        %v3046 = vld [vmem:[%s9 + $0x50] sm:$0xff]
        %v3047 = vld [vmem:[%s9 + $0x58] sm:$0xff]
        %v3048 = vld [vmem:[%s9 + $0x60] sm:$0xff]
        %v3049 = vld [vmem:[%s9 + $0x68] sm:$0xff]
        %v3050 = vld [vmem:[%s9 + $0x70] sm:$0xff]
        %v3051 = vld [vmem:[%s9 + $0x78] sm:$0xff]
        %v3052 = vld [vmem:[%s9 + $0x80] sm:$0xff]
        %v3053 = vld [vmem:[%s9 + $0x88] sm:$0xff]
        %v3054 = vld [vmem:[%s9 + $0x90] sm:$0xff]
        %v3055 = vld [vmem:[%s9 + $0x98] sm:$0xff]
        %v3056 = vld [vmem:[%s9 + $0xa0] sm:$0xff]
        %v3057 = vld [vmem:[%s9 + $0xa8] sm:$0xff]
        %v3058 = vld [vmem:[%s9 + $0xb0] sm:$0xff]
        %v3059 = vld [vmem:[%s9 + $0xb8] sm:$0xff]
        %v3060 = vld [vmem:[%s9 + $0xc0] sm:$0xff]
        %v3061 = vld [vmem:[%s9 + $0xc8] sm:$0xff]
        %v3062 = vld [vmem:[%s9 + $0xd0] sm:$0xff]
        %v3063 = vld [vmem:[%s9 + $0xd8] sm:$0xff]
        %v3064 = vld [vmem:[%s9 + $0xe0] sm:$0xff]
        %v3065 = vld [vmem:[%s9 + $0xe8] sm:$0xff]
        %v3066 = vld [vmem:[%s9 + $0xf0] sm:$0xff]
        %v3067 = vld [vmem:[%s9 + $0xf8] sm:$0xff]
        %s3068 = scalar_lea.vmem [#allocation10], 32
        %v3069 = vld [vmem:[%s3068] sm:$0xf]
        %v3070 = vld [vmem:[%s3068 + $0x4] sm:$0xf]
        %v3071 = vld [vmem:[%s3068 + $0x8] sm:$0xf]
        %v3072 = vld [vmem:[%s3068 + $0xc] sm:$0xf]
        %v3073 = vld [vmem:[%s3068 + $0x10] sm:$0xf]
        %v3074 = vld [vmem:[%s3068 + $0x14] sm:$0xf]
        %v3075 = vld [vmem:[%s3068 + $0x18] sm:$0xf]
        %v3076 = vld [vmem:[%s3068 + $0x1c] sm:$0xf]
        %v3085 = vunpack.c.l.b16 %v3069
        %v3086 = vunpack.c.l.b16 %v3070
        %v3087 = vunpack.c.l.b16 %v3071
        %v3088 = vunpack.c.l.b16 %v3072
        %v3089 = vunpack.c.l.b16 %v3073
        %v3090 = vunpack.c.l.b16 %v3074
        %v3091 = vunpack.c.l.b16 %v3075
        %v3092 = vunpack.c.l.b16 %v3076
        %v3093 = vpack.c.b16 %v3086, %v3085
        %v3094 = vpack.c.b16 %v3088, %v3087
        %v3095 = vpack.c.b16 %v3090, %v3089
        %v3096 = vpack.c.b16 %v3092, %v3091
        %v3098 = vsel %vm2910, %v3093, 0
        %v3101 = vsel %vm2910, %v3094, 0
        %v3104 = vsel %vm2910, %v3095, 0
        %v3107 = vsel %vm2910, %v3096, 0
        %3109 = vmatprep.subr.bf16.mxu0 %v2875
        %3110 = vmatpush1.bf16.msra.mxu0 %v2874
        %3111 = vmatprep.subr.bf16.mxu0 %v2877
        %3112 = vmatpush1.bf16.msra.mxu0 %v2876
        %3113 = vmatprep.subr.bf16.mxu0 %v2879
        %3114 = vmatpush1.bf16.msra.mxu0 %v2878
        %3115 = vmatprep.subr.bf16.mxu0 %v2881
        %3116 = vmatpush1.bf16.msra.mxu0 %v2880
        %3117 = vmatprep.subr.bf16.mxu0 0
        %3118 = vmatpush1.bf16.msra.mxu0 0
        %3119 = vmatprep.subr.bf16.mxu0 0
        %3120 = vmatpush1.bf16.msra.mxu0 0
        %3121 = vmatprep.subr.bf16.mxu0 0
        %3122 = vmatpush1.bf16.msra.mxu0 0
        %3123 = vmatprep.subr.bf16.mxu0 0
        %3124 = vmatpush1.bf16.msra.mxu0 0
        %3125 = vmatprep.subr.bf16.mxu0 0
        %3126 = vmatpush1.bf16.msra.mxu0 0
        %3127 = vmatprep.subr.bf16.mxu0 0
        %3128 = vmatpush1.bf16.msra.mxu0 0
        %3129 = vmatprep.subr.bf16.mxu0 0
        %3130 = vmatpush1.bf16.msra.mxu0 0
        %3131 = vmatprep.subr.bf16.mxu0 0
        %3132 = vmatpush1.bf16.msra.mxu0 0
        %3133 = vmatprep.subr.bf16.mxu0 0
        %3134 = vmatpush1.bf16.msra.mxu0 0
        %3135 = vmatprep.subr.bf16.mxu0 0
        %3136 = vmatpush1.bf16.msra.mxu0 0
        %3137 = vmatprep.subr.bf16.mxu0 0
        %3138 = vmatpush1.bf16.msra.mxu0 0
        %3139 = vmatprep.subr.bf16.mxu0 0
        %3140 = vmatpush1.bf16.msra.mxu0 0
        %3141 = vmatprep.mubr.bf16.mxu0 0
        %3142 = vmatmul.mubr.bf16.gmra.mrb[0].mxu0 %v3098
        %v3143 = vpop.f32.mrb[0].mxu0
        %v3144 = vadd.f32 0.0, %v3143
        %v3145 = vpop.f32.mrb[0].mxu0
        %v3146 = vadd.f32 0.0, %v3145
        %v3147 = vpop.f32.mrb[0].mxu0
        %v3148 = vadd.f32 0.0, %v3147
        %v3149 = vpop.f32.mrb[0].mxu0
        %v3150 = vadd.f32 0.0, %v3149
        %3151 = vmatprep.mubr.bf16.mxu0 0
        %3152 = vmatmul.mubr.bf16.gmra.mrb[0].mxu0 %v3101
        %v3153 = vpop.f32.mrb[0].mxu0
        %v3154 = vadd.f32 0.0, %v3153
        %v3155 = vpop.f32.mrb[0].mxu0
        %v3156 = vadd.f32 0.0, %v3155
        %v3157 = vpop.f32.mrb[0].mxu0
        %v3158 = vadd.f32 0.0, %v3157
        %v3159 = vpop.f32.mrb[0].mxu0
        %v3160 = vadd.f32 0.0, %v3159
        %3161 = vmatprep.mubr.bf16.mxu0 0
        %3162 = vmatmul.mubr.bf16.gmra.mrb[0].mxu0 %v3104
        %v3163 = vpop.f32.mrb[0].mxu0
        %v3164 = vadd.f32 0.0, %v3163
        %v3165 = vpop.f32.mrb[0].mxu0
        %v3166 = vadd.f32 0.0, %v3165
        %v3167 = vpop.f32.mrb[0].mxu0
        %v3168 = vadd.f32 0.0, %v3167
        %v3169 = vpop.f32.mrb[0].mxu0
        %v3170 = vadd.f32 0.0, %v3169
        %3171 = vmatprep.mubr.bf16.mxu0 0
        %3172 = vmatmul.mubr.bf16.gmra.mrb[0].mxu0 %v3107
        %v3173 = vpop.f32.mrb[0].mxu0
        %v3174 = vadd.f32 0.0, %v3173
        %v3175 = vpop.f32.mrb[0].mxu0
        %v3176 = vadd.f32 0.0, %v3175
        %v3177 = vpop.f32.mrb[0].mxu0
        %v3178 = vadd.f32 0.0, %v3177
        %v3179 = vpop.f32.mrb[0].mxu0
        %v3180 = vadd.f32 0.0, %v3179
        %3181 = vdwg.mxu0
        %v3182 = vpack.c.bf16 %v3148, %v3144
        %v3183 = vpack.c.bf16 %v3150, %v3146
        %v3184 = vpack.c.bf16 %v3158, %v3154
        %v3185 = vpack.c.bf16 %v3160, %v3156
        %v3186 = vpack.c.bf16 %v3168, %v3164
        %v3187 = vpack.c.bf16 %v3170, %v3166
        %v3188 = vpack.c.bf16 %v3178, %v3174
        %v3189 = vpack.c.bf16 %v3180, %v3176
        %s3190 = scalar_lea.vmem %s8, 256
        %v3191 = vld [vmem:[%s3190] sm:$0xff]
        %v3192 = vld [vmem:[%s3190 + $0x8] sm:$0xff]
        %v3193 = vld [vmem:[%s3190 + $0x10] sm:$0xff]
        %v3194 = vld [vmem:[%s3190 + $0x18] sm:$0xff]
        %v3195 = vld [vmem:[%s3190 + $0x20] sm:$0xff]
        %v3196 = vld [vmem:[%s3190 + $0x28] sm:$0xff]
        %v3197 = vld [vmem:[%s3190 + $0x30] sm:$0xff]
        %v3198 = vld [vmem:[%s3190 + $0x38] sm:$0xff]
        %v3199 = vld [vmem:[%s3190 + $0x40] sm:$0xff]
        %v3200 = vld [vmem:[%s3190 + $0x48] sm:$0xff]
        %v3201 = vld [vmem:[%s3190 + $0x50] sm:$0xff]
        %v3202 = vld [vmem:[%s3190 + $0x58] sm:$0xff]
        %v3203 = vld [vmem:[%s3190 + $0x60] sm:$0xff]
        %v3204 = vld [vmem:[%s3190 + $0x68] sm:$0xff]
        %v3205 = vld [vmem:[%s3190 + $0x70] sm:$0xff]
        %v3206 = vld [vmem:[%s3190 + $0x78] sm:$0xff]
        %v3207 = vld [vmem:[%s3190 + $0x80] sm:$0xff]
        %v3208 = vld [vmem:[%s3190 + $0x88] sm:$0xff]
        %v3209 = vld [vmem:[%s3190 + $0x90] sm:$0xff]
        %v3210 = vld [vmem:[%s3190 + $0x98] sm:$0xff]
        %v3211 = vld [vmem:[%s3190 + $0xa0] sm:$0xff]
        %v3212 = vld [vmem:[%s3190 + $0xa8] sm:$0xff]
        %v3213 = vld [vmem:[%s3190 + $0xb0] sm:$0xff]
        %v3214 = vld [vmem:[%s3190 + $0xb8] sm:$0xff]
        %v3215 = vld [vmem:[%s3190 + $0xc0] sm:$0xff]
        %v3216 = vld [vmem:[%s3190 + $0xc8] sm:$0xff]
        %v3217 = vld [vmem:[%s3190 + $0xd0] sm:$0xff]
        %v3218 = vld [vmem:[%s3190 + $0xd8] sm:$0xff]
        %v3219 = vld [vmem:[%s3190 + $0xe0] sm:$0xff]
        %v3220 = vld [vmem:[%s3190 + $0xe8] sm:$0xff]
        %v3221 = vld [vmem:[%s3190 + $0xf0] sm:$0xff]
        %v3222 = vld [vmem:[%s3190 + $0xf8] sm:$0xff]
        %v3255 = vunpack.c.l.b16 %v3191
        %v3256 = vunpack.c.h.b16 %v3191
        %v3257 = vunpack.c.l.b16 %v3192
        %v3258 = vunpack.c.h.b16 %v3192
        %v3259 = vunpack.c.l.b16 %v3193
        %v3260 = vunpack.c.h.b16 %v3193
        %v3261 = vunpack.c.l.b16 %v3194
        %v3262 = vunpack.c.h.b16 %v3194
        %v3263 = vunpack.c.l.b16 %v3195
        %v3264 = vunpack.c.h.b16 %v3195
        %v3265 = vunpack.c.l.b16 %v3196
        %v3266 = vunpack.c.h.b16 %v3196
        %v3267 = vunpack.c.l.b16 %v3197
        %v3268 = vunpack.c.h.b16 %v3197
        %v3269 = vunpack.c.l.b16 %v3198
        %v3270 = vunpack.c.h.b16 %v3198
        %v3271 = vunpack.c.l.b16 %v3199
        %v3272 = vunpack.c.h.b16 %v3199
        %v3273 = vunpack.c.l.b16 %v3200
        %v3274 = vunpack.c.h.b16 %v3200
        %v3275 = vunpack.c.l.b16 %v3201
        %v3276 = vunpack.c.h.b16 %v3201
        %v3277 = vunpack.c.l.b16 %v3202
        %v3278 = vunpack.c.h.b16 %v3202
        %v3279 = vunpack.c.l.b16 %v3203
        %v3280 = vunpack.c.h.b16 %v3203
        %v3281 = vunpack.c.l.b16 %v3204
        %v3282 = vunpack.c.h.b16 %v3204
        %v3283 = vunpack.c.l.b16 %v3205
        %v3284 = vunpack.c.h.b16 %v3205
        %v3285 = vunpack.c.l.b16 %v3206
        %v3286 = vunpack.c.h.b16 %v3206
        %v3287 = vunpack.c.l.b16 %v3207
        %v3288 = vunpack.c.h.b16 %v3207
        %v3289 = vunpack.c.l.b16 %v3208
        %v3290 = vunpack.c.h.b16 %v3208
        %v3291 = vunpack.c.l.b16 %v3209
        %v3292 = vunpack.c.h.b16 %v3209
        %v3293 = vunpack.c.l.b16 %v3210
        %v3294 = vunpack.c.h.b16 %v3210
        %v3295 = vunpack.c.l.b16 %v3211
        %v3296 = vunpack.c.h.b16 %v3211
        %v3297 = vunpack.c.l.b16 %v3212
        %v3298 = vunpack.c.h.b16 %v3212
        %v3299 = vunpack.c.l.b16 %v3213
        %v3300 = vunpack.c.h.b16 %v3213
        %v3301 = vunpack.c.l.b16 %v3214
        %v3302 = vunpack.c.h.b16 %v3214
        %v3303 = vunpack.c.l.b16 %v3215
        %v3304 = vunpack.c.h.b16 %v3215
        %v3305 = vunpack.c.l.b16 %v3216
        %v3306 = vunpack.c.h.b16 %v3216
        %v3307 = vunpack.c.l.b16 %v3217
        %v3308 = vunpack.c.h.b16 %v3217
        %v3309 = vunpack.c.l.b16 %v3218
        %v3310 = vunpack.c.h.b16 %v3218
        %v3311 = vunpack.c.l.b16 %v3219
        %v3312 = vunpack.c.h.b16 %v3219
        %v3313 = vunpack.c.l.b16 %v3220
        %v3314 = vunpack.c.h.b16 %v3220
        %v3315 = vunpack.c.l.b16 %v3221
        %v3316 = vunpack.c.h.b16 %v3221
        %v3317 = vunpack.c.l.b16 %v3222
        %v3318 = vunpack.c.h.b16 %v3222
        %v3319 = vpack.c.b16 %v3257, %v3255
        %v3320 = vpack.c.b16 %v3258, %v3256
        %v3321 = vpack.c.b16 %v3261, %v3259
        %v3322 = vpack.c.b16 %v3262, %v3260
        %v3323 = vpack.c.b16 %v3265, %v3263
        %v3324 = vpack.c.b16 %v3266, %v3264
        %v3325 = vpack.c.b16 %v3269, %v3267
        %v3326 = vpack.c.b16 %v3270, %v3268
        %v3327 = vpack.c.b16 %v3273, %v3271
        %v3328 = vpack.c.b16 %v3274, %v3272
        %v3329 = vpack.c.b16 %v3277, %v3275
        %v3330 = vpack.c.b16 %v3278, %v3276
        %v3331 = vpack.c.b16 %v3281, %v3279
        %v3332 = vpack.c.b16 %v3282, %v3280
        %v3333 = vpack.c.b16 %v3285, %v3283
        %v3334 = vpack.c.b16 %v3286, %v3284
        %v3335 = vpack.c.b16 %v3289, %v3287
        %v3336 = vpack.c.b16 %v3290, %v3288
        %v3337 = vpack.c.b16 %v3293, %v3291
        %v3338 = vpack.c.b16 %v3294, %v3292
        %v3339 = vpack.c.b16 %v3297, %v3295
        %v3340 = vpack.c.b16 %v3298, %v3296
        %v3341 = vpack.c.b16 %v3301, %v3299
        %v3342 = vpack.c.b16 %v3302, %v3300
        %v3343 = vpack.c.b16 %v3305, %v3303
        %v3344 = vpack.c.b16 %v3306, %v3304
        %v3345 = vpack.c.b16 %v3309, %v3307
        %v3346 = vpack.c.b16 %v3310, %v3308
        %v3347 = vpack.c.b16 %v3313, %v3311
        %v3348 = vpack.c.b16 %v3314, %v3312
        %v3349 = vpack.c.b16 %v3317, %v3315
        %v3350 = vpack.c.b16 %v3318, %v3316
        %3383 = vmatprep.subr.bf16.mxu0 %v3320
        %3384 = vmatpush1.bf16.msra.mxu0 %v3319
        %3385 = vmatprep.subr.bf16.mxu0 %v3322
        %3386 = vmatpush1.bf16.msra.mxu0 %v3321
        %3387 = vmatprep.subr.bf16.mxu0 %v3324
        %3388 = vmatpush1.bf16.msra.mxu0 %v3323
        %3389 = vmatprep.subr.bf16.mxu0 %v3326
        %3390 = vmatpush1.bf16.msra.mxu0 %v3325
        %3391 = vmatprep.subr.bf16.mxu0 %v3328
        %3392 = vmatpush1.bf16.msra.mxu0 %v3327
        %3393 = vmatprep.subr.bf16.mxu0 %v3330
        %3394 = vmatpush1.bf16.msra.mxu0 %v3329
        %3395 = vmatprep.subr.bf16.mxu0 %v3332
        %3396 = vmatpush1.bf16.msra.mxu0 %v3331
        %3397 = vmatprep.subr.bf16.mxu0 %v3334
        %3398 = vmatpush1.bf16.msra.mxu0 %v3333
        %3399 = vmatprep.subr.bf16.mxu0 %v3336
        %3400 = vmatpush1.bf16.msra.mxu0 %v3335
        %3401 = vmatprep.subr.bf16.mxu0 %v3338
        %3402 = vmatpush1.bf16.msra.mxu0 %v3337
        %3403 = vmatprep.subr.bf16.mxu0 %v3340
        %3404 = vmatpush1.bf16.msra.mxu0 %v3339
        %3405 = vmatprep.subr.bf16.mxu0 %v3342
        %3406 = vmatpush1.bf16.msra.mxu0 %v3341
        %3407 = vmatprep.subr.bf16.mxu0 %v3344
        %3408 = vmatpush1.bf16.msra.mxu0 %v3343
        %3409 = vmatprep.subr.bf16.mxu0 %v3346
        %3410 = vmatpush1.bf16.msra.mxu0 %v3345
        %3411 = vmatprep.subr.bf16.mxu0 %v3348
        %3412 = vmatpush1.bf16.msra.mxu0 %v3347
        %3413 = vmatprep.subr.bf16.mxu0 %v3350
        %3414 = vmatpush1.bf16.msra.mxu0 %v3349
        %3415 = vmatprep.mubr.bf16.mxu0 %v3183
        %3416 = vmatmul.mubr.bf16.gmra.mrb[0].mxu0 %v3182
        %v3417 = vpop.f32.mrb[0].mxu0
        %v3418 = vadd.f32 0.0, %v3417
        %v3419 = vpop.f32.mrb[0].mxu0
        %v3420 = vadd.f32 0.0, %v3419
        %v3421 = vpop.f32.mrb[0].mxu0
        %v3422 = vadd.f32 0.0, %v3421
        %v3423 = vpop.f32.mrb[0].mxu0
        %v3424 = vadd.f32 0.0, %v3423
        %3425 = vmatprep.mubr.bf16.mxu0 %v3185
        %3426 = vmatmul.mubr.bf16.gmra.mrb[0].mxu0 %v3184
        %v3427 = vpop.f32.mrb[0].mxu0
        %v3428 = vadd.f32 0.0, %v3427
        %v3429 = vpop.f32.mrb[0].mxu0
        %v3430 = vadd.f32 0.0, %v3429
        %v3431 = vpop.f32.mrb[0].mxu0
        %v3432 = vadd.f32 0.0, %v3431
        %v3433 = vpop.f32.mrb[0].mxu0
        %v3434 = vadd.f32 0.0, %v3433
        %3435 = vmatprep.mubr.bf16.mxu0 %v3187
        %3436 = vmatmul.mubr.bf16.gmra.mrb[0].mxu0 %v3186
        %v3437 = vpop.f32.mrb[0].mxu0
        %v3438 = vadd.f32 0.0, %v3437
        %v3439 = vpop.f32.mrb[0].mxu0
        %v3440 = vadd.f32 0.0, %v3439
        %v3441 = vpop.f32.mrb[0].mxu0
        %v3442 = vadd.f32 0.0, %v3441
        %v3443 = vpop.f32.mrb[0].mxu0
        %v3444 = vadd.f32 0.0, %v3443
        %3445 = vmatprep.mubr.bf16.mxu0 %v3189
        %3446 = vmatmul.mubr.bf16.gmra.mrb[0].mxu0 %v3188
        %v3447 = vpop.f32.mrb[0].mxu0
        %v3448 = vadd.f32 0.0, %v3447
        %v3449 = vpop.f32.mrb[0].mxu0
        %v3450 = vadd.f32 0.0, %v3449
        %v3451 = vpop.f32.mrb[0].mxu0
        %v3452 = vadd.f32 0.0, %v3451
        %v3453 = vpop.f32.mrb[0].mxu0
        %v3454 = vadd.f32 0.0, %v3453
        %3455 = vdwg.mxu0
        %v3488 = vunpack.c.l.b16 %v3004
        %v3489 = vunpack.c.h.b16 %v3004
        %v3490 = vunpack.c.l.b16 %v3005
        %v3491 = vunpack.c.h.b16 %v3005
        %v3492 = vunpack.c.l.b16 %v3006
        %v3493 = vunpack.c.h.b16 %v3006
        %v3494 = vunpack.c.l.b16 %v3007
        %v3495 = vunpack.c.h.b16 %v3007
        %v3496 = vunpack.c.l.b16 %v3008
        %v3497 = vunpack.c.h.b16 %v3008
        %v3498 = vunpack.c.l.b16 %v3009
        %v3499 = vunpack.c.h.b16 %v3009
        %v3500 = vunpack.c.l.b16 %v3010
        %v3501 = vunpack.c.h.b16 %v3010
        %v3502 = vunpack.c.l.b16 %v3011
        %v3503 = vunpack.c.h.b16 %v3011
        %v3504 = vunpack.c.l.b16 %v3012
        %v3505 = vunpack.c.h.b16 %v3012
        %v3506 = vunpack.c.l.b16 %v3013
        %v3507 = vunpack.c.h.b16 %v3013
        %v3508 = vunpack.c.l.b16 %v3014
        %v3509 = vunpack.c.h.b16 %v3014
        %v3510 = vunpack.c.l.b16 %v3015
        %v3511 = vunpack.c.h.b16 %v3015
        %v3512 = vunpack.c.l.b16 %v3016
        %v3513 = vunpack.c.h.b16 %v3016
        %v3514 = vunpack.c.l.b16 %v3017
        %v3515 = vunpack.c.h.b16 %v3017
        %v3516 = vunpack.c.l.b16 %v3018
        %v3517 = vunpack.c.h.b16 %v3018
        %v3518 = vunpack.c.l.b16 %v3019
        %v3519 = vunpack.c.h.b16 %v3019
        %v3520 = vunpack.c.l.b16 %v3020
        %v3521 = vunpack.c.h.b16 %v3020
        %v3522 = vunpack.c.l.b16 %v3021
        %v3523 = vunpack.c.h.b16 %v3021
        %v3524 = vunpack.c.l.b16 %v3022
        %v3525 = vunpack.c.h.b16 %v3022
        %v3526 = vunpack.c.l.b16 %v3023
        %v3527 = vunpack.c.h.b16 %v3023
        %v3528 = vunpack.c.l.b16 %v3024
        %v3529 = vunpack.c.h.b16 %v3024
        %v3530 = vunpack.c.l.b16 %v3025
        %v3531 = vunpack.c.h.b16 %v3025
        %v3532 = vunpack.c.l.b16 %v3026
        %v3533 = vunpack.c.h.b16 %v3026
        %v3534 = vunpack.c.l.b16 %v3027
        %v3535 = vunpack.c.h.b16 %v3027
        %v3536 = vunpack.c.l.b16 %v3028
        %v3537 = vunpack.c.h.b16 %v3028
        %v3538 = vunpack.c.l.b16 %v3029
        %v3539 = vunpack.c.h.b16 %v3029
        %v3540 = vunpack.c.l.b16 %v3030
        %v3541 = vunpack.c.h.b16 %v3030
        %v3542 = vunpack.c.l.b16 %v3031
        %v3543 = vunpack.c.h.b16 %v3031
        %v3544 = vunpack.c.l.b16 %v3032
        %v3545 = vunpack.c.h.b16 %v3032
        %v3546 = vunpack.c.l.b16 %v3033
        %v3547 = vunpack.c.h.b16 %v3033
        %v3548 = vunpack.c.l.b16 %v3034
        %v3549 = vunpack.c.h.b16 %v3034
        %v3550 = vunpack.c.l.b16 %v3035
        %v3551 = vunpack.c.h.b16 %v3035
        %v3552 = vpack.c.b16 %v3490, %v3488
        %v3553 = vpack.c.b16 %v3491, %v3489
        %v3554 = vpack.c.b16 %v3494, %v3492
        %v3555 = vpack.c.b16 %v3495, %v3493
        %v3556 = vpack.c.b16 %v3498, %v3496
        %v3557 = vpack.c.b16 %v3499, %v3497
        %v3558 = vpack.c.b16 %v3502, %v3500
        %v3559 = vpack.c.b16 %v3503, %v3501
        %v3560 = vpack.c.b16 %v3506, %v3504
        %v3561 = vpack.c.b16 %v3507, %v3505
        %v3562 = vpack.c.b16 %v3510, %v3508
        %v3563 = vpack.c.b16 %v3511, %v3509
        %v3564 = vpack.c.b16 %v3514, %v3512
        %v3565 = vpack.c.b16 %v3515, %v3513
        %v3566 = vpack.c.b16 %v3518, %v3516
        %v3567 = vpack.c.b16 %v3519, %v3517
        %v3568 = vpack.c.b16 %v3522, %v3520
        %v3569 = vpack.c.b16 %v3523, %v3521
        %v3570 = vpack.c.b16 %v3526, %v3524
        %v3571 = vpack.c.b16 %v3527, %v3525
        %v3572 = vpack.c.b16 %v3530, %v3528
        %v3573 = vpack.c.b16 %v3531, %v3529
        %v3574 = vpack.c.b16 %v3534, %v3532
        %v3575 = vpack.c.b16 %v3535, %v3533
        %v3576 = vpack.c.b16 %v3538, %v3536
        %v3577 = vpack.c.b16 %v3539, %v3537
        %v3578 = vpack.c.b16 %v3542, %v3540
        %v3579 = vpack.c.b16 %v3543, %v3541
        %v3580 = vpack.c.b16 %v3546, %v3544
        %v3581 = vpack.c.b16 %v3547, %v3545
        %v3582 = vpack.c.b16 %v3550, %v3548
        %v3583 = vpack.c.b16 %v3551, %v3549
        %3616 = vmatprep.subr.bf16.mxu0 %v3553
        %3617 = vmatpush1.bf16.msra.mxu0 %v3552
        %3618 = vmatprep.subr.bf16.mxu0 %v3555
        %3619 = vmatpush1.bf16.msra.mxu0 %v3554
        %3620 = vmatprep.subr.bf16.mxu0 %v3557
        %3621 = vmatpush1.bf16.msra.mxu0 %v3556
        %3622 = vmatprep.subr.bf16.mxu0 %v3559
        %3623 = vmatpush1.bf16.msra.mxu0 %v3558
        %3624 = vmatprep.subr.bf16.mxu0 %v3561
        %3625 = vmatpush1.bf16.msra.mxu0 %v3560
        %3626 = vmatprep.subr.bf16.mxu0 %v3563
        %3627 = vmatpush1.bf16.msra.mxu0 %v3562
        %3628 = vmatprep.subr.bf16.mxu0 %v3565
        %3629 = vmatpush1.bf16.msra.mxu0 %v3564
        %3630 = vmatprep.subr.bf16.mxu0 %v3567
        %3631 = vmatpush1.bf16.msra.mxu0 %v3566
        %3632 = vmatprep.subr.bf16.mxu0 %v3569
        %3633 = vmatpush1.bf16.msra.mxu0 %v3568
        %3634 = vmatprep.subr.bf16.mxu0 %v3571
        %3635 = vmatpush1.bf16.msra.mxu0 %v3570
        %3636 = vmatprep.subr.bf16.mxu0 %v3573
        %3637 = vmatpush1.bf16.msra.mxu0 %v3572
        %3638 = vmatprep.subr.bf16.mxu0 %v3575
        %3639 = vmatpush1.bf16.msra.mxu0 %v3574
        %3640 = vmatprep.subr.bf16.mxu0 %v3577
        %3641 = vmatpush1.bf16.msra.mxu0 %v3576
        %3642 = vmatprep.subr.bf16.mxu0 %v3579
        %3643 = vmatpush1.bf16.msra.mxu0 %v3578
        %3644 = vmatprep.subr.bf16.mxu0 %v3581
        %3645 = vmatpush1.bf16.msra.mxu0 %v3580
        %3646 = vmatprep.subr.bf16.mxu0 %v3583
        %3647 = vmatpush1.bf16.msra.mxu0 %v3582
        %3648 = vmatprep.mubr.bf16.mxu0 %v2997
        %3649 = vmatmul.mubr.bf16.gmra.mrb[0].mxu0 %v2996
        %v3650 = vpop.f32.mrb[0].mxu0
        %v3651 = vadd.f32 %v3418, %v3650
        %v3652 = vpop.f32.mrb[0].mxu0
        %v3653 = vadd.f32 %v3420, %v3652
        %v3654 = vpop.f32.mrb[0].mxu0
        %v3655 = vadd.f32 %v3422, %v3654
        %v3656 = vpop.f32.mrb[0].mxu0
        %v3657 = vadd.f32 %v3424, %v3656
        %3658 = vmatprep.mubr.bf16.mxu0 %v2999
        %3659 = vmatmul.mubr.bf16.gmra.mrb[0].mxu0 %v2998
        %v3660 = vpop.f32.mrb[0].mxu0
        %v3661 = vadd.f32 %v3428, %v3660
        %v3662 = vpop.f32.mrb[0].mxu0
        %v3663 = vadd.f32 %v3430, %v3662
        %v3664 = vpop.f32.mrb[0].mxu0
        %v3665 = vadd.f32 %v3432, %v3664
        %v3666 = vpop.f32.mrb[0].mxu0
        %v3667 = vadd.f32 %v3434, %v3666
        %3668 = vmatprep.mubr.bf16.mxu0 %v3001
        %3669 = vmatmul.mubr.bf16.gmra.mrb[0].mxu0 %v3000
        %v3670 = vpop.f32.mrb[0].mxu0
        %v3671 = vadd.f32 %v3438, %v3670
        %v3672 = vpop.f32.mrb[0].mxu0
        %v3673 = vadd.f32 %v3440, %v3672
        %v3674 = vpop.f32.mrb[0].mxu0
        %v3675 = vadd.f32 %v3442, %v3674
        %v3676 = vpop.f32.mrb[0].mxu0
        %v3677 = vadd.f32 %v3444, %v3676
        %3678 = vmatprep.mubr.bf16.mxu0 %v3003
        %3679 = vmatmul.mubr.bf16.gmra.mrb[0].mxu0 %v3002
        %v3680 = vpop.f32.mrb[0].mxu0
        %v3681 = vadd.f32 %v3448, %v3680
        %v3682 = vpop.f32.mrb[0].mxu0
        %v3683 = vadd.f32 %v3450, %v3682
        %v3684 = vpop.f32.mrb[0].mxu0
        %v3685 = vadd.f32 %v3452, %v3684
        %v3686 = vpop.f32.mrb[0].mxu0
        %v3687 = vadd.f32 %v3454, %v3686
        %3688 = vdwg.mxu0
        %s3689 = scalar_lea.vmem %s9, 256
        %v3690 = vld [vmem:[%s3689] sm:$0xff]
        %v3691 = vld [vmem:[%s3689 + $0x8] sm:$0xff]
        %v3692 = vld [vmem:[%s3689 + $0x10] sm:$0xff]
        %v3693 = vld [vmem:[%s3689 + $0x18] sm:$0xff]
        %v3694 = vld [vmem:[%s3689 + $0x20] sm:$0xff]
        %v3695 = vld [vmem:[%s3689 + $0x28] sm:$0xff]
        %v3696 = vld [vmem:[%s3689 + $0x30] sm:$0xff]
        %v3697 = vld [vmem:[%s3689 + $0x38] sm:$0xff]
        %v3698 = vld [vmem:[%s3689 + $0x40] sm:$0xff]
        %v3699 = vld [vmem:[%s3689 + $0x48] sm:$0xff]
        %v3700 = vld [vmem:[%s3689 + $0x50] sm:$0xff]
        %v3701 = vld [vmem:[%s3689 + $0x58] sm:$0xff]
        %v3702 = vld [vmem:[%s3689 + $0x60] sm:$0xff]
        %v3703 = vld [vmem:[%s3689 + $0x68] sm:$0xff]
        %v3704 = vld [vmem:[%s3689 + $0x70] sm:$0xff]
        %v3705 = vld [vmem:[%s3689 + $0x78] sm:$0xff]
        %v3706 = vld [vmem:[%s3689 + $0x80] sm:$0xff]
        %v3707 = vld [vmem:[%s3689 + $0x88] sm:$0xff]
        %v3708 = vld [vmem:[%s3689 + $0x90] sm:$0xff]
        %v3709 = vld [vmem:[%s3689 + $0x98] sm:$0xff]
        %v3710 = vld [vmem:[%s3689 + $0xa0] sm:$0xff]
        %v3711 = vld [vmem:[%s3689 + $0xa8] sm:$0xff]
        %v3712 = vld [vmem:[%s3689 + $0xb0] sm:$0xff]
        %v3713 = vld [vmem:[%s3689 + $0xb8] sm:$0xff]
        %v3714 = vld [vmem:[%s3689 + $0xc0] sm:$0xff]
        %v3715 = vld [vmem:[%s3689 + $0xc8] sm:$0xff]
        %v3716 = vld [vmem:[%s3689 + $0xd0] sm:$0xff]
        %v3717 = vld [vmem:[%s3689 + $0xd8] sm:$0xff]
        %v3718 = vld [vmem:[%s3689 + $0xe0] sm:$0xff]
        %v3719 = vld [vmem:[%s3689 + $0xe8] sm:$0xff]
        %v3720 = vld [vmem:[%s3689 + $0xf0] sm:$0xff]
        %v3721 = vld [vmem:[%s3689 + $0xf8] sm:$0xff]
        %v3754 = vunpack.c.l.b16 %v3690
        %v3755 = vunpack.c.h.b16 %v3690
        %v3756 = vunpack.c.l.b16 %v3691
        %v3757 = vunpack.c.h.b16 %v3691
        %v3758 = vunpack.c.l.b16 %v3692
        %v3759 = vunpack.c.h.b16 %v3692
        %v3760 = vunpack.c.l.b16 %v3693
        %v3761 = vunpack.c.h.b16 %v3693
        %v3762 = vunpack.c.l.b16 %v3694
        %v3763 = vunpack.c.h.b16 %v3694
        %v3764 = vunpack.c.l.b16 %v3695
        %v3765 = vunpack.c.h.b16 %v3695
        %v3766 = vunpack.c.l.b16 %v3696
        %v3767 = vunpack.c.h.b16 %v3696
        %v3768 = vunpack.c.l.b16 %v3697
        %v3769 = vunpack.c.h.b16 %v3697
        %v3770 = vunpack.c.l.b16 %v3698
        %v3771 = vunpack.c.h.b16 %v3698
        %v3772 = vunpack.c.l.b16 %v3699
        %v3773 = vunpack.c.h.b16 %v3699
        %v3774 = vunpack.c.l.b16 %v3700
        %v3775 = vunpack.c.h.b16 %v3700
        %v3776 = vunpack.c.l.b16 %v3701
        %v3777 = vunpack.c.h.b16 %v3701
        %v3778 = vunpack.c.l.b16 %v3702
        %v3779 = vunpack.c.h.b16 %v3702
        %v3780 = vunpack.c.l.b16 %v3703
        %v3781 = vunpack.c.h.b16 %v3703
        %v3782 = vunpack.c.l.b16 %v3704
        %v3783 = vunpack.c.h.b16 %v3704
        %v3784 = vunpack.c.l.b16 %v3705
        %v3785 = vunpack.c.h.b16 %v3705
        %v3786 = vunpack.c.l.b16 %v3706
        %v3787 = vunpack.c.h.b16 %v3706
        %v3788 = vunpack.c.l.b16 %v3707
        %v3789 = vunpack.c.h.b16 %v3707
        %v3790 = vunpack.c.l.b16 %v3708
        %v3791 = vunpack.c.h.b16 %v3708
        %v3792 = vunpack.c.l.b16 %v3709
        %v3793 = vunpack.c.h.b16 %v3709
        %v3794 = vunpack.c.l.b16 %v3710
        %v3795 = vunpack.c.h.b16 %v3710
        %v3796 = vunpack.c.l.b16 %v3711
        %v3797 = vunpack.c.h.b16 %v3711
        %v3798 = vunpack.c.l.b16 %v3712
        %v3799 = vunpack.c.h.b16 %v3712
        %v3800 = vunpack.c.l.b16 %v3713
        %v3801 = vunpack.c.h.b16 %v3713
        %v3802 = vunpack.c.l.b16 %v3714
        %v3803 = vunpack.c.h.b16 %v3714
        %v3804 = vunpack.c.l.b16 %v3715
        %v3805 = vunpack.c.h.b16 %v3715
        %v3806 = vunpack.c.l.b16 %v3716
        %v3807 = vunpack.c.h.b16 %v3716
        %v3808 = vunpack.c.l.b16 %v3717
        %v3809 = vunpack.c.h.b16 %v3717
        %v3810 = vunpack.c.l.b16 %v3718
        %v3811 = vunpack.c.h.b16 %v3718
        %v3812 = vunpack.c.l.b16 %v3719
        %v3813 = vunpack.c.h.b16 %v3719
        %v3814 = vunpack.c.l.b16 %v3720
        %v3815 = vunpack.c.h.b16 %v3720
        %v3816 = vunpack.c.l.b16 %v3721
        %v3817 = vunpack.c.h.b16 %v3721
        %v3818 = vpack.c.b16 %v3756, %v3754
        %v3819 = vpack.c.b16 %v3757, %v3755
        %v3820 = vpack.c.b16 %v3760, %v3758
        %v3821 = vpack.c.b16 %v3761, %v3759
        %v3822 = vpack.c.b16 %v3764, %v3762
        %v3823 = vpack.c.b16 %v3765, %v3763
        %v3824 = vpack.c.b16 %v3768, %v3766
        %v3825 = vpack.c.b16 %v3769, %v3767
        %v3826 = vpack.c.b16 %v3772, %v3770
        %v3827 = vpack.c.b16 %v3773, %v3771
        %v3828 = vpack.c.b16 %v3776, %v3774
        %v3829 = vpack.c.b16 %v3777, %v3775
        %v3830 = vpack.c.b16 %v3780, %v3778
        %v3831 = vpack.c.b16 %v3781, %v3779
        %v3832 = vpack.c.b16 %v3784, %v3782
        %v3833 = vpack.c.b16 %v3785, %v3783
        %v3834 = vpack.c.b16 %v3788, %v3786
        %v3835 = vpack.c.b16 %v3789, %v3787
        %v3836 = vpack.c.b16 %v3792, %v3790
        %v3837 = vpack.c.b16 %v3793, %v3791
        %v3838 = vpack.c.b16 %v3796, %v3794
        %v3839 = vpack.c.b16 %v3797, %v3795
        %v3840 = vpack.c.b16 %v3800, %v3798
        %v3841 = vpack.c.b16 %v3801, %v3799
        %v3842 = vpack.c.b16 %v3804, %v3802
        %v3843 = vpack.c.b16 %v3805, %v3803
        %v3844 = vpack.c.b16 %v3808, %v3806
        %v3845 = vpack.c.b16 %v3809, %v3807
        %v3846 = vpack.c.b16 %v3812, %v3810
        %v3847 = vpack.c.b16 %v3813, %v3811
        %v3848 = vpack.c.b16 %v3816, %v3814
        %v3849 = vpack.c.b16 %v3817, %v3815
        %3882 = vmatprep.subr.bf16.mxu0 %v3819
        %3883 = vmatpush1.bf16.msra.mxu0 %v3818
        %3884 = vmatprep.subr.bf16.mxu0 %v3821
        %3885 = vmatpush1.bf16.msra.mxu0 %v3820
        %3886 = vmatprep.subr.bf16.mxu0 %v3823
        %3887 = vmatpush1.bf16.msra.mxu0 %v3822
        %3888 = vmatprep.subr.bf16.mxu0 %v3825
        %3889 = vmatpush1.bf16.msra.mxu0 %v3824
        %3890 = vmatprep.subr.bf16.mxu0 %v3827
        %3891 = vmatpush1.bf16.msra.mxu0 %v3826
        %3892 = vmatprep.subr.bf16.mxu0 %v3829
        %3893 = vmatpush1.bf16.msra.mxu0 %v3828
        %3894 = vmatprep.subr.bf16.mxu0 %v3831
        %3895 = vmatpush1.bf16.msra.mxu0 %v3830
        %3896 = vmatprep.subr.bf16.mxu0 %v3833
        %3897 = vmatpush1.bf16.msra.mxu0 %v3832
        %3898 = vmatprep.subr.bf16.mxu0 %v3835
        %3899 = vmatpush1.bf16.msra.mxu0 %v3834
        %3900 = vmatprep.subr.bf16.mxu0 %v3837
        %3901 = vmatpush1.bf16.msra.mxu0 %v3836
        %3902 = vmatprep.subr.bf16.mxu0 %v3839
        %3903 = vmatpush1.bf16.msra.mxu0 %v3838
        %3904 = vmatprep.subr.bf16.mxu0 %v3841
        %3905 = vmatpush1.bf16.msra.mxu0 %v3840
        %3906 = vmatprep.subr.bf16.mxu0 %v3843
        %3907 = vmatpush1.bf16.msra.mxu0 %v3842
        %3908 = vmatprep.subr.bf16.mxu0 %v3845
        %3909 = vmatpush1.bf16.msra.mxu0 %v3844
        %3910 = vmatprep.subr.bf16.mxu0 %v3847
        %3911 = vmatpush1.bf16.msra.mxu0 %v3846
        %3912 = vmatprep.subr.bf16.mxu0 %v3849
        %3913 = vmatpush1.bf16.msra.mxu0 %v3848
        %3914 = vmatprep.mubr.bf16.mxu0 %v3183
        %3915 = vmatmul.mubr.bf16.gmra.mrb[0].mxu0 %v3182
        %v3916 = vpop.f32.mrb[0].mxu0
        %v3917 = vadd.f32 0.0, %v3916
        %v3918 = vpop.f32.mrb[0].mxu0
        %v3919 = vadd.f32 0.0, %v3918
        %v3920 = vpop.f32.mrb[0].mxu0
        %v3921 = vadd.f32 0.0, %v3920
        %v3922 = vpop.f32.mrb[0].mxu0
        %v3923 = vadd.f32 0.0, %v3922
        %3924 = vmatprep.mubr.bf16.mxu0 %v3185
        %3925 = vmatmul.mubr.bf16.gmra.mrb[0].mxu0 %v3184
        %v3926 = vpop.f32.mrb[0].mxu0
        %v3927 = vadd.f32 0.0, %v3926
        %v3928 = vpop.f32.mrb[0].mxu0
        %v3929 = vadd.f32 0.0, %v3928
        %v3930 = vpop.f32.mrb[0].mxu0
        %v3931 = vadd.f32 0.0, %v3930
        %v3932 = vpop.f32.mrb[0].mxu0
        %v3933 = vadd.f32 0.0, %v3932
        %3934 = vmatprep.mubr.bf16.mxu0 %v3187
        %3935 = vmatmul.mubr.bf16.gmra.mrb[0].mxu0 %v3186
        %v3936 = vpop.f32.mrb[0].mxu0
        %v3937 = vadd.f32 0.0, %v3936
        %v3938 = vpop.f32.mrb[0].mxu0
        %v3939 = vadd.f32 0.0, %v3938
        %v3940 = vpop.f32.mrb[0].mxu0
        %v3941 = vadd.f32 0.0, %v3940
        %v3942 = vpop.f32.mrb[0].mxu0
        %v3943 = vadd.f32 0.0, %v3942
        %3944 = vmatprep.mubr.bf16.mxu0 %v3189
        %3945 = vmatmul.mubr.bf16.gmra.mrb[0].mxu0 %v3188
        %v3946 = vpop.f32.mrb[0].mxu0
        %v3947 = vadd.f32 0.0, %v3946
        %v3948 = vpop.f32.mrb[0].mxu0
        %v3949 = vadd.f32 0.0, %v3948
        %v3950 = vpop.f32.mrb[0].mxu0
        %v3951 = vadd.f32 0.0, %v3950
        %v3952 = vpop.f32.mrb[0].mxu0
        %v3953 = vadd.f32 0.0, %v3952
        %3954 = vdwg.mxu0
        %v3987 = vunpack.c.l.b16 %v3036
        %v3988 = vunpack.c.h.b16 %v3036
        %v3989 = vunpack.c.l.b16 %v3037
        %v3990 = vunpack.c.h.b16 %v3037
        %v3991 = vunpack.c.l.b16 %v3038
        %v3992 = vunpack.c.h.b16 %v3038
        %v3993 = vunpack.c.l.b16 %v3039
        %v3994 = vunpack.c.h.b16 %v3039
        %v3995 = vunpack.c.l.b16 %v3040
        %v3996 = vunpack.c.h.b16 %v3040
        %v3997 = vunpack.c.l.b16 %v3041
        %v3998 = vunpack.c.h.b16 %v3041
        %v3999 = vunpack.c.l.b16 %v3042
        %v4000 = vunpack.c.h.b16 %v3042
        %v4001 = vunpack.c.l.b16 %v3043
        %v4002 = vunpack.c.h.b16 %v3043
        %v4003 = vunpack.c.l.b16 %v3044
        %v4004 = vunpack.c.h.b16 %v3044
        %v4005 = vunpack.c.l.b16 %v3045
        %v4006 = vunpack.c.h.b16 %v3045
        %v4007 = vunpack.c.l.b16 %v3046
        %v4008 = vunpack.c.h.b16 %v3046
        %v4009 = vunpack.c.l.b16 %v3047
        %v4010 = vunpack.c.h.b16 %v3047
        %v4011 = vunpack.c.l.b16 %v3048
        %v4012 = vunpack.c.h.b16 %v3048
        %v4013 = vunpack.c.l.b16 %v3049
        %v4014 = vunpack.c.h.b16 %v3049
        %v4015 = vunpack.c.l.b16 %v3050
        %v4016 = vunpack.c.h.b16 %v3050
        %v4017 = vunpack.c.l.b16 %v3051
        %v4018 = vunpack.c.h.b16 %v3051
        %v4019 = vunpack.c.l.b16 %v3052
        %v4020 = vunpack.c.h.b16 %v3052
        %v4021 = vunpack.c.l.b16 %v3053
        %v4022 = vunpack.c.h.b16 %v3053
        %v4023 = vunpack.c.l.b16 %v3054
        %v4024 = vunpack.c.h.b16 %v3054
        %v4025 = vunpack.c.l.b16 %v3055
        %v4026 = vunpack.c.h.b16 %v3055
        %v4027 = vunpack.c.l.b16 %v3056
        %v4028 = vunpack.c.h.b16 %v3056
        %v4029 = vunpack.c.l.b16 %v3057
        %v4030 = vunpack.c.h.b16 %v3057
        %v4031 = vunpack.c.l.b16 %v3058
        %v4032 = vunpack.c.h.b16 %v3058
        %v4033 = vunpack.c.l.b16 %v3059
        %v4034 = vunpack.c.h.b16 %v3059
        %v4035 = vunpack.c.l.b16 %v3060
        %v4036 = vunpack.c.h.b16 %v3060
        %v4037 = vunpack.c.l.b16 %v3061
        %v4038 = vunpack.c.h.b16 %v3061
        %v4039 = vunpack.c.l.b16 %v3062
        %v4040 = vunpack.c.h.b16 %v3062
        %v4041 = vunpack.c.l.b16 %v3063
        %v4042 = vunpack.c.h.b16 %v3063
        %v4043 = vunpack.c.l.b16 %v3064
        %v4044 = vunpack.c.h.b16 %v3064
        %v4045 = vunpack.c.l.b16 %v3065
        %v4046 = vunpack.c.h.b16 %v3065
        %v4047 = vunpack.c.l.b16 %v3066
        %v4048 = vunpack.c.h.b16 %v3066
        %v4049 = vunpack.c.l.b16 %v3067
        %v4050 = vunpack.c.h.b16 %v3067
        %v4051 = vpack.c.b16 %v3989, %v3987
        %v4052 = vpack.c.b16 %v3990, %v3988
        %v4053 = vpack.c.b16 %v3993, %v3991
        %v4054 = vpack.c.b16 %v3994, %v3992
        %v4055 = vpack.c.b16 %v3997, %v3995
        %v4056 = vpack.c.b16 %v3998, %v3996
        %v4057 = vpack.c.b16 %v4001, %v3999
        %v4058 = vpack.c.b16 %v4002, %v4000
        %v4059 = vpack.c.b16 %v4005, %v4003
        %v4060 = vpack.c.b16 %v4006, %v4004
        %v4061 = vpack.c.b16 %v4009, %v4007
        %v4062 = vpack.c.b16 %v4010, %v4008
        %v4063 = vpack.c.b16 %v4013, %v4011
        %v4064 = vpack.c.b16 %v4014, %v4012
        %v4065 = vpack.c.b16 %v4017, %v4015
        %v4066 = vpack.c.b16 %v4018, %v4016
        %v4067 = vpack.c.b16 %v4021, %v4019
        %v4068 = vpack.c.b16 %v4022, %v4020
        %v4069 = vpack.c.b16 %v4025, %v4023
        %v4070 = vpack.c.b16 %v4026, %v4024
        %v4071 = vpack.c.b16 %v4029, %v4027
        %v4072 = vpack.c.b16 %v4030, %v4028
        %v4073 = vpack.c.b16 %v4033, %v4031
        %v4074 = vpack.c.b16 %v4034, %v4032
        %v4075 = vpack.c.b16 %v4037, %v4035
        %v4076 = vpack.c.b16 %v4038, %v4036
        %v4077 = vpack.c.b16 %v4041, %v4039
        %v4078 = vpack.c.b16 %v4042, %v4040
        %v4079 = vpack.c.b16 %v4045, %v4043
        %v4080 = vpack.c.b16 %v4046, %v4044
        %v4081 = vpack.c.b16 %v4049, %v4047
        %v4082 = vpack.c.b16 %v4050, %v4048
        %4115 = vmatprep.subr.bf16.mxu0 %v4052
        %4116 = vmatpush1.bf16.msra.mxu0 %v4051
        %4117 = vmatprep.subr.bf16.mxu0 %v4054
        %4118 = vmatpush1.bf16.msra.mxu0 %v4053
        %4119 = vmatprep.subr.bf16.mxu0 %v4056
        %4120 = vmatpush1.bf16.msra.mxu0 %v4055
        %4121 = vmatprep.subr.bf16.mxu0 %v4058
        %4122 = vmatpush1.bf16.msra.mxu0 %v4057
        %4123 = vmatprep.subr.bf16.mxu0 %v4060
        %4124 = vmatpush1.bf16.msra.mxu0 %v4059
        %4125 = vmatprep.subr.bf16.mxu0 %v4062
        %4126 = vmatpush1.bf16.msra.mxu0 %v4061
        %4127 = vmatprep.subr.bf16.mxu0 %v4064
        %4128 = vmatpush1.bf16.msra.mxu0 %v4063
        %4129 = vmatprep.subr.bf16.mxu0 %v4066
        %4130 = vmatpush1.bf16.msra.mxu0 %v4065
        %4131 = vmatprep.subr.bf16.mxu0 %v4068
        %4132 = vmatpush1.bf16.msra.mxu0 %v4067
        %4133 = vmatprep.subr.bf16.mxu0 %v4070
        %4134 = vmatpush1.bf16.msra.mxu0 %v4069
        %4135 = vmatprep.subr.bf16.mxu0 %v4072
        %4136 = vmatpush1.bf16.msra.mxu0 %v4071
        %4137 = vmatprep.subr.bf16.mxu0 %v4074
        %4138 = vmatpush1.bf16.msra.mxu0 %v4073
        %4139 = vmatprep.subr.bf16.mxu0 %v4076
        %4140 = vmatpush1.bf16.msra.mxu0 %v4075
        %4141 = vmatprep.subr.bf16.mxu0 %v4078
        %4142 = vmatpush1.bf16.msra.mxu0 %v4077
        %4143 = vmatprep.subr.bf16.mxu0 %v4080
        %4144 = vmatpush1.bf16.msra.mxu0 %v4079
        %4145 = vmatprep.subr.bf16.mxu0 %v4082
        %4146 = vmatpush1.bf16.msra.mxu0 %v4081
        %4147 = vmatprep.mubr.bf16.mxu0 %v2997
        %4148 = vmatmul.mubr.bf16.gmra.mrb[0].mxu0 %v2996
        %v4149 = vpop.f32.mrb[0].mxu0
        %v4150 = vadd.f32 %v3917, %v4149
        %v4151 = vpop.f32.mrb[0].mxu0
        %v4152 = vadd.f32 %v3919, %v4151
        %v4153 = vpop.f32.mrb[0].mxu0
        %v4154 = vadd.f32 %v3921, %v4153
        %v4155 = vpop.f32.mrb[0].mxu0
        %v4156 = vadd.f32 %v3923, %v4155
        %4157 = vmatprep.mubr.bf16.mxu0 %v2999
        %4158 = vmatmul.mubr.bf16.gmra.mrb[0].mxu0 %v2998
        %v4159 = vpop.f32.mrb[0].mxu0
        %v4160 = vadd.f32 %v3927, %v4159
        %v4161 = vpop.f32.mrb[0].mxu0
        %v4162 = vadd.f32 %v3929, %v4161
        %v4163 = vpop.f32.mrb[0].mxu0
        %v4164 = vadd.f32 %v3931, %v4163
        %v4165 = vpop.f32.mrb[0].mxu0
        %v4166 = vadd.f32 %v3933, %v4165
        %4167 = vmatprep.mubr.bf16.mxu0 %v3001
        %4168 = vmatmul.mubr.bf16.gmra.mrb[0].mxu0 %v3000
        %v4169 = vpop.f32.mrb[0].mxu0
        %v4170 = vadd.f32 %v3937, %v4169
        %v4171 = vpop.f32.mrb[0].mxu0
        %v4172 = vadd.f32 %v3939, %v4171
        %v4173 = vpop.f32.mrb[0].mxu0
        %v4174 = vadd.f32 %v3941, %v4173
        %v4175 = vpop.f32.mrb[0].mxu0
        %v4176 = vadd.f32 %v3943, %v4175
        %4177 = vmatprep.mubr.bf16.mxu0 %v3003
        %4178 = vmatmul.mubr.bf16.gmra.mrb[0].mxu0 %v3002
        %v4179 = vpop.f32.mrb[0].mxu0
        %v4180 = vadd.f32 %v3947, %v4179
        %v4181 = vpop.f32.mrb[0].mxu0
        %v4182 = vadd.f32 %v3949, %v4181
        %v4183 = vpop.f32.mrb[0].mxu0
        %v4184 = vadd.f32 %v3951, %v4183
        %v4185 = vpop.f32.mrb[0].mxu0
        %v4186 = vadd.f32 %v3953, %v4185
        %4187 = vdwg.mxu0
        %s4188 = scalar_lea.vmem [#allocation10], 64
        %v4189 = vld [vmem:[%s4188] sm:$0xf]
        %v4190 = vld [vmem:[%s4188 + $0x4] sm:$0xf]
        %v4191 = vld [vmem:[%s4188 + $0x8] sm:$0xf]
        %v4192 = vld [vmem:[%s4188 + $0xc] sm:$0xf]
        %v4193 = vld [vmem:[%s4188 + $0x10] sm:$0xf]
        %v4194 = vld [vmem:[%s4188 + $0x14] sm:$0xf]
        %v4195 = vld [vmem:[%s4188 + $0x18] sm:$0xf]
        %v4196 = vld [vmem:[%s4188 + $0x1c] sm:$0xf]
        %v4205 = vunpack.c.l.b16 %v4189
        %v4206 = vunpack.c.l.b16 %v4190
        %v4207 = vunpack.c.l.b16 %v4191
        %v4208 = vunpack.c.l.b16 %v4192
        %v4209 = vunpack.c.l.b16 %v4193
        %v4210 = vunpack.c.l.b16 %v4194
        %v4211 = vunpack.c.l.b16 %v4195
        %v4212 = vunpack.c.l.b16 %v4196
        %v4213 = vpack.c.b16 %v4206, %v4205
        %v4214 = vpack.c.b16 %v4208, %v4207
        %v4215 = vpack.c.b16 %v4210, %v4209
        %v4216 = vpack.c.b16 %v4212, %v4211
        %v4218 = vsel %vm2910, %v4213, 0
        %v4221 = vsel %vm2910, %v4214, 0
        %v4224 = vsel %vm2910, %v4215, 0
        %v4227 = vsel %vm2910, %v4216, 0
        %4229 = vmatprep.subr.bf16.mxu0 %v2875
        %4230 = vmatpush1.bf16.msra.mxu0 %v2874
        %4231 = vmatprep.subr.bf16.mxu0 %v2877
        %4232 = vmatpush1.bf16.msra.mxu0 %v2876
        %4233 = vmatprep.subr.bf16.mxu0 %v2879
        %4234 = vmatpush1.bf16.msra.mxu0 %v2878
        %4235 = vmatprep.subr.bf16.mxu0 %v2881
        %4236 = vmatpush1.bf16.msra.mxu0 %v2880
        %4237 = vmatprep.subr.bf16.mxu0 0
        %4238 = vmatpush1.bf16.msra.mxu0 0
        %4239 = vmatprep.subr.bf16.mxu0 0
        %4240 = vmatpush1.bf16.msra.mxu0 0
        %4241 = vmatprep.subr.bf16.mxu0 0
        %4242 = vmatpush1.bf16.msra.mxu0 0
        %4243 = vmatprep.subr.bf16.mxu0 0
        %4244 = vmatpush1.bf16.msra.mxu0 0
        %4245 = vmatprep.subr.bf16.mxu0 0
        %4246 = vmatpush1.bf16.msra.mxu0 0
        %4247 = vmatprep.subr.bf16.mxu0 0
        %4248 = vmatpush1.bf16.msra.mxu0 0
        %4249 = vmatprep.subr.bf16.mxu0 0
        %4250 = vmatpush1.bf16.msra.mxu0 0
        %4251 = vmatprep.subr.bf16.mxu0 0
        %4252 = vmatpush1.bf16.msra.mxu0 0
        %4253 = vmatprep.subr.bf16.mxu0 0
        %4254 = vmatpush1.bf16.msra.mxu0 0
        %4255 = vmatprep.subr.bf16.mxu0 0
        %4256 = vmatpush1.bf16.msra.mxu0 0
        %4257 = vmatprep.subr.bf16.mxu0 0
        %4258 = vmatpush1.bf16.msra.mxu0 0
        %4259 = vmatprep.subr.bf16.mxu0 0
        %4260 = vmatpush1.bf16.msra.mxu0 0
        %4261 = vmatprep.mubr.bf16.mxu0 0
        %4262 = vmatmul.mubr.bf16.gmra.mrb[0].mxu0 %v4218
        %v4263 = vpop.f32.mrb[0].mxu0
        %v4264 = vadd.f32 0.0, %v4263
        %v4265 = vpop.f32.mrb[0].mxu0
        %v4266 = vadd.f32 0.0, %v4265
        %v4267 = vpop.f32.mrb[0].mxu0
        %v4268 = vadd.f32 0.0, %v4267
        %v4269 = vpop.f32.mrb[0].mxu0
        %v4270 = vadd.f32 0.0, %v4269
        %4271 = vmatprep.mubr.bf16.mxu0 0
        %4272 = vmatmul.mubr.bf16.gmra.mrb[0].mxu0 %v4221
        %v4273 = vpop.f32.mrb[0].mxu0
        %v4274 = vadd.f32 0.0, %v4273
        %v4275 = vpop.f32.mrb[0].mxu0
        %v4276 = vadd.f32 0.0, %v4275
        %v4277 = vpop.f32.mrb[0].mxu0
        %v4278 = vadd.f32 0.0, %v4277
        %v4279 = vpop.f32.mrb[0].mxu0
        %v4280 = vadd.f32 0.0, %v4279
        %4281 = vmatprep.mubr.bf16.mxu0 0
        %4282 = vmatmul.mubr.bf16.gmra.mrb[0].mxu0 %v4224
        %v4283 = vpop.f32.mrb[0].mxu0
        %v4284 = vadd.f32 0.0, %v4283
        %v4285 = vpop.f32.mrb[0].mxu0
        %v4286 = vadd.f32 0.0, %v4285
        %v4287 = vpop.f32.mrb[0].mxu0
        %v4288 = vadd.f32 0.0, %v4287
        %v4289 = vpop.f32.mrb[0].mxu0
        %v4290 = vadd.f32 0.0, %v4289
        %4291 = vmatprep.mubr.bf16.mxu0 0
        %4292 = vmatmul.mubr.bf16.gmra.mrb[0].mxu0 %v4227
        %v4293 = vpop.f32.mrb[0].mxu0
        %v4294 = vadd.f32 0.0, %v4293
        %v4295 = vpop.f32.mrb[0].mxu0
        %v4296 = vadd.f32 0.0, %v4295
        %v4297 = vpop.f32.mrb[0].mxu0
        %v4298 = vadd.f32 0.0, %v4297
        %v4299 = vpop.f32.mrb[0].mxu0
        %v4300 = vadd.f32 0.0, %v4299
        %4301 = vdwg.mxu0
        %v4302 = vpack.c.bf16 %v4268, %v4264
        %v4303 = vpack.c.bf16 %v4270, %v4266
        %v4304 = vpack.c.bf16 %v4278, %v4274
        %v4305 = vpack.c.bf16 %v4280, %v4276
        %v4306 = vpack.c.bf16 %v4288, %v4284
        %v4307 = vpack.c.bf16 %v4290, %v4286
        %v4308 = vpack.c.bf16 %v4298, %v4294
        %v4309 = vpack.c.bf16 %v4300, %v4296
        %s4310 = scalar_lea.vmem %s8, 512
        %v4311 = vld [vmem:[%s4310] sm:$0xff]
        %v4312 = vld [vmem:[%s4310 + $0x8] sm:$0xff]
        %v4313 = vld [vmem:[%s4310 + $0x10] sm:$0xff]
        %v4314 = vld [vmem:[%s4310 + $0x18] sm:$0xff]
        %v4315 = vld [vmem:[%s4310 + $0x20] sm:$0xff]
        %v4316 = vld [vmem:[%s4310 + $0x28] sm:$0xff]
        %v4317 = vld [vmem:[%s4310 + $0x30] sm:$0xff]
        %v4318 = vld [vmem:[%s4310 + $0x38] sm:$0xff]
        %v4319 = vld [vmem:[%s4310 + $0x40] sm:$0xff]
        %v4320 = vld [vmem:[%s4310 + $0x48] sm:$0xff]
        %v4321 = vld [vmem:[%s4310 + $0x50] sm:$0xff]
        %v4322 = vld [vmem:[%s4310 + $0x58] sm:$0xff]
        %v4323 = vld [vmem:[%s4310 + $0x60] sm:$0xff]
        %v4324 = vld [vmem:[%s4310 + $0x68] sm:$0xff]
        %v4325 = vld [vmem:[%s4310 + $0x70] sm:$0xff]
        %v4326 = vld [vmem:[%s4310 + $0x78] sm:$0xff]
        %v4327 = vld [vmem:[%s4310 + $0x80] sm:$0xff]
        %v4328 = vld [vmem:[%s4310 + $0x88] sm:$0xff]
        %v4329 = vld [vmem:[%s4310 + $0x90] sm:$0xff]
        %v4330 = vld [vmem:[%s4310 + $0x98] sm:$0xff]
        %v4331 = vld [vmem:[%s4310 + $0xa0] sm:$0xff]
        %v4332 = vld [vmem:[%s4310 + $0xa8] sm:$0xff]
        %v4333 = vld [vmem:[%s4310 + $0xb0] sm:$0xff]
        %v4334 = vld [vmem:[%s4310 + $0xb8] sm:$0xff]
        %v4335 = vld [vmem:[%s4310 + $0xc0] sm:$0xff]
        %v4336 = vld [vmem:[%s4310 + $0xc8] sm:$0xff]
        %v4337 = vld [vmem:[%s4310 + $0xd0] sm:$0xff]
        %v4338 = vld [vmem:[%s4310 + $0xd8] sm:$0xff]
        %v4339 = vld [vmem:[%s4310 + $0xe0] sm:$0xff]
        %v4340 = vld [vmem:[%s4310 + $0xe8] sm:$0xff]
        %v4341 = vld [vmem:[%s4310 + $0xf0] sm:$0xff]
        %v4342 = vld [vmem:[%s4310 + $0xf8] sm:$0xff]
        %v4375 = vunpack.c.l.b16 %v4311
        %v4376 = vunpack.c.h.b16 %v4311
        %v4377 = vunpack.c.l.b16 %v4312
        %v4378 = vunpack.c.h.b16 %v4312
        %v4379 = vunpack.c.l.b16 %v4313
        %v4380 = vunpack.c.h.b16 %v4313
        %v4381 = vunpack.c.l.b16 %v4314
        %v4382 = vunpack.c.h.b16 %v4314
        %v4383 = vunpack.c.l.b16 %v4315
        %v4384 = vunpack.c.h.b16 %v4315
        %v4385 = vunpack.c.l.b16 %v4316
        %v4386 = vunpack.c.h.b16 %v4316
        %v4387 = vunpack.c.l.b16 %v4317
        %v4388 = vunpack.c.h.b16 %v4317
        %v4389 = vunpack.c.l.b16 %v4318
        %v4390 = vunpack.c.h.b16 %v4318
        %v4391 = vunpack.c.l.b16 %v4319
        %v4392 = vunpack.c.h.b16 %v4319
        %v4393 = vunpack.c.l.b16 %v4320
        %v4394 = vunpack.c.h.b16 %v4320
        %v4395 = vunpack.c.l.b16 %v4321
        %v4396 = vunpack.c.h.b16 %v4321
        %v4397 = vunpack.c.l.b16 %v4322
        %v4398 = vunpack.c.h.b16 %v4322
        %v4399 = vunpack.c.l.b16 %v4323
        %v4400 = vunpack.c.h.b16 %v4323
        %v4401 = vunpack.c.l.b16 %v4324
        %v4402 = vunpack.c.h.b16 %v4324
        %v4403 = vunpack.c.l.b16 %v4325
        %v4404 = vunpack.c.h.b16 %v4325
        %v4405 = vunpack.c.l.b16 %v4326
        %v4406 = vunpack.c.h.b16 %v4326
        %v4407 = vunpack.c.l.b16 %v4327
        %v4408 = vunpack.c.h.b16 %v4327
        %v4409 = vunpack.c.l.b16 %v4328
        %v4410 = vunpack.c.h.b16 %v4328
        %v4411 = vunpack.c.l.b16 %v4329
        %v4412 = vunpack.c.h.b16 %v4329
        %v4413 = vunpack.c.l.b16 %v4330
        %v4414 = vunpack.c.h.b16 %v4330
        %v4415 = vunpack.c.l.b16 %v4331
        %v4416 = vunpack.c.h.b16 %v4331
        %v4417 = vunpack.c.l.b16 %v4332
        %v4418 = vunpack.c.h.b16 %v4332
        %v4419 = vunpack.c.l.b16 %v4333
        %v4420 = vunpack.c.h.b16 %v4333
        %v4421 = vunpack.c.l.b16 %v4334
        %v4422 = vunpack.c.h.b16 %v4334
        %v4423 = vunpack.c.l.b16 %v4335
        %v4424 = vunpack.c.h.b16 %v4335
        %v4425 = vunpack.c.l.b16 %v4336
        %v4426 = vunpack.c.h.b16 %v4336
        %v4427 = vunpack.c.l.b16 %v4337
        %v4428 = vunpack.c.h.b16 %v4337
        %v4429 = vunpack.c.l.b16 %v4338
        %v4430 = vunpack.c.h.b16 %v4338
        %v4431 = vunpack.c.l.b16 %v4339
        %v4432 = vunpack.c.h.b16 %v4339
        %v4433 = vunpack.c.l.b16 %v4340
        %v4434 = vunpack.c.h.b16 %v4340
        %v4435 = vunpack.c.l.b16 %v4341
        %v4436 = vunpack.c.h.b16 %v4341
        %v4437 = vunpack.c.l.b16 %v4342
        %v4438 = vunpack.c.h.b16 %v4342
        %v4439 = vpack.c.b16 %v4377, %v4375
        %v4440 = vpack.c.b16 %v4378, %v4376
        %v4441 = vpack.c.b16 %v4381, %v4379
        %v4442 = vpack.c.b16 %v4382, %v4380
        %v4443 = vpack.c.b16 %v4385, %v4383
        %v4444 = vpack.c.b16 %v4386, %v4384
        %v4445 = vpack.c.b16 %v4389, %v4387
        %v4446 = vpack.c.b16 %v4390, %v4388
        %v4447 = vpack.c.b16 %v4393, %v4391
        %v4448 = vpack.c.b16 %v4394, %v4392
        %v4449 = vpack.c.b16 %v4397, %v4395
        %v4450 = vpack.c.b16 %v4398, %v4396
        %v4451 = vpack.c.b16 %v4401, %v4399
        %v4452 = vpack.c.b16 %v4402, %v4400
        %v4453 = vpack.c.b16 %v4405, %v4403
        %v4454 = vpack.c.b16 %v4406, %v4404
        %v4455 = vpack.c.b16 %v4409, %v4407
        %v4456 = vpack.c.b16 %v4410, %v4408
        %v4457 = vpack.c.b16 %v4413, %v4411
        %v4458 = vpack.c.b16 %v4414, %v4412
        %v4459 = vpack.c.b16 %v4417, %v4415
        %v4460 = vpack.c.b16 %v4418, %v4416
        %v4461 = vpack.c.b16 %v4421, %v4419
        %v4462 = vpack.c.b16 %v4422, %v4420
        %v4463 = vpack.c.b16 %v4425, %v4423
        %v4464 = vpack.c.b16 %v4426, %v4424
        %v4465 = vpack.c.b16 %v4429, %v4427
        %v4466 = vpack.c.b16 %v4430, %v4428
        %v4467 = vpack.c.b16 %v4433, %v4431
        %v4468 = vpack.c.b16 %v4434, %v4432
        %v4469 = vpack.c.b16 %v4437, %v4435
        %v4470 = vpack.c.b16 %v4438, %v4436
        %4503 = vmatprep.subr.bf16.mxu0 %v4440
        %4504 = vmatpush1.bf16.msra.mxu0 %v4439
        %4505 = vmatprep.subr.bf16.mxu0 %v4442
        %4506 = vmatpush1.bf16.msra.mxu0 %v4441
        %4507 = vmatprep.subr.bf16.mxu0 %v4444
        %4508 = vmatpush1.bf16.msra.mxu0 %v4443
        %4509 = vmatprep.subr.bf16.mxu0 %v4446
        %4510 = vmatpush1.bf16.msra.mxu0 %v4445
        %4511 = vmatprep.subr.bf16.mxu0 %v4448
        %4512 = vmatpush1.bf16.msra.mxu0 %v4447
        %4513 = vmatprep.subr.bf16.mxu0 %v4450
        %4514 = vmatpush1.bf16.msra.mxu0 %v4449
        %4515 = vmatprep.subr.bf16.mxu0 %v4452
        %4516 = vmatpush1.bf16.msra.mxu0 %v4451
        %4517 = vmatprep.subr.bf16.mxu0 %v4454
        %4518 = vmatpush1.bf16.msra.mxu0 %v4453
        %4519 = vmatprep.subr.bf16.mxu0 %v4456
        %4520 = vmatpush1.bf16.msra.mxu0 %v4455
        %4521 = vmatprep.subr.bf16.mxu0 %v4458
        %4522 = vmatpush1.bf16.msra.mxu0 %v4457
        %4523 = vmatprep.subr.bf16.mxu0 %v4460
        %4524 = vmatpush1.bf16.msra.mxu0 %v4459
        %4525 = vmatprep.subr.bf16.mxu0 %v4462
        %4526 = vmatpush1.bf16.msra.mxu0 %v4461
        %4527 = vmatprep.subr.bf16.mxu0 %v4464
        %4528 = vmatpush1.bf16.msra.mxu0 %v4463
        %4529 = vmatprep.subr.bf16.mxu0 %v4466
        %4530 = vmatpush1.bf16.msra.mxu0 %v4465
        %4531 = vmatprep.subr.bf16.mxu0 %v4468
        %4532 = vmatpush1.bf16.msra.mxu0 %v4467
        %4533 = vmatprep.subr.bf16.mxu0 %v4470
        %4534 = vmatpush1.bf16.msra.mxu0 %v4469
        %4535 = vmatprep.mubr.bf16.mxu0 %v4303
        %4536 = vmatmul.mubr.bf16.gmra.mrb[0].mxu0 %v4302
        %v4537 = vpop.f32.mrb[0].mxu0
        %v4538 = vadd.f32 0.0, %v4537
        %v4539 = vpop.f32.mrb[0].mxu0
        %v4540 = vadd.f32 0.0, %v4539
        %v4541 = vpop.f32.mrb[0].mxu0
        %v4542 = vadd.f32 0.0, %v4541
        %v4543 = vpop.f32.mrb[0].mxu0
        %v4544 = vadd.f32 0.0, %v4543
        %4545 = vmatprep.mubr.bf16.mxu0 %v4305
        %4546 = vmatmul.mubr.bf16.gmra.mrb[0].mxu0 %v4304
        %v4547 = vpop.f32.mrb[0].mxu0
        %v4548 = vadd.f32 0.0, %v4547
        %v4549 = vpop.f32.mrb[0].mxu0
        %v4550 = vadd.f32 0.0, %v4549
        %v4551 = vpop.f32.mrb[0].mxu0
        %v4552 = vadd.f32 0.0, %v4551
        %v4553 = vpop.f32.mrb[0].mxu0
        %v4554 = vadd.f32 0.0, %v4553
        %4555 = vmatprep.mubr.bf16.mxu0 %v4307
        %4556 = vmatmul.mubr.bf16.gmra.mrb[0].mxu0 %v4306
        %v4557 = vpop.f32.mrb[0].mxu0
        %v4558 = vadd.f32 0.0, %v4557
        %v4559 = vpop.f32.mrb[0].mxu0
        %v4560 = vadd.f32 0.0, %v4559
        %v4561 = vpop.f32.mrb[0].mxu0
        %v4562 = vadd.f32 0.0, %v4561
        %v4563 = vpop.f32.mrb[0].mxu0
        %v4564 = vadd.f32 0.0, %v4563
        %4565 = vmatprep.mubr.bf16.mxu0 %v4309
        %4566 = vmatmul.mubr.bf16.gmra.mrb[0].mxu0 %v4308
        %v4567 = vpop.f32.mrb[0].mxu0
        %v4568 = vadd.f32 0.0, %v4567
        %v4569 = vpop.f32.mrb[0].mxu0
        %v4570 = vadd.f32 0.0, %v4569
        %v4571 = vpop.f32.mrb[0].mxu0
        %v4572 = vadd.f32 0.0, %v4571
        %v4573 = vpop.f32.mrb[0].mxu0
        %v4574 = vadd.f32 0.0, %v4573
        %4575 = vdwg.mxu0
        %v4576 = vadd.f32 %v3651, %v4538
        %v4577 = vadd.f32 %v3653, %v4540
        %v4578 = vadd.f32 %v3655, %v4542
        %v4579 = vadd.f32 %v3657, %v4544
        %v4580 = vadd.f32 %v3661, %v4548
        %v4581 = vadd.f32 %v3663, %v4550
        %v4582 = vadd.f32 %v3665, %v4552
        %v4583 = vadd.f32 %v3667, %v4554
        %v4584 = vadd.f32 %v3671, %v4558
        %v4585 = vadd.f32 %v3673, %v4560
        %v4586 = vadd.f32 %v3675, %v4562
        %v4587 = vadd.f32 %v3677, %v4564
        %v4588 = vadd.f32 %v3681, %v4568
        %v4589 = vadd.f32 %v3683, %v4570
        %v4590 = vadd.f32 %v3685, %v4572
        %v4591 = vadd.f32 %v3687, %v4574
        %s4592 = scalar_lea.vmem %s9, 512
        %v4593 = vld [vmem:[%s4592] sm:$0xff]
        %v4594 = vld [vmem:[%s4592 + $0x8] sm:$0xff]
        %v4595 = vld [vmem:[%s4592 + $0x10] sm:$0xff]
        %v4596 = vld [vmem:[%s4592 + $0x18] sm:$0xff]
        %v4597 = vld [vmem:[%s4592 + $0x20] sm:$0xff]
        %v4598 = vld [vmem:[%s4592 + $0x28] sm:$0xff]
        %v4599 = vld [vmem:[%s4592 + $0x30] sm:$0xff]
        %v4600 = vld [vmem:[%s4592 + $0x38] sm:$0xff]
        %v4601 = vld [vmem:[%s4592 + $0x40] sm:$0xff]
        %v4602 = vld [vmem:[%s4592 + $0x48] sm:$0xff]
        %v4603 = vld [vmem:[%s4592 + $0x50] sm:$0xff]
        %v4604 = vld [vmem:[%s4592 + $0x58] sm:$0xff]
        %v4605 = vld [vmem:[%s4592 + $0x60] sm:$0xff]
        %v4606 = vld [vmem:[%s4592 + $0x68] sm:$0xff]
        %v4607 = vld [vmem:[%s4592 + $0x70] sm:$0xff]
        %v4608 = vld [vmem:[%s4592 + $0x78] sm:$0xff]
        %v4609 = vld [vmem:[%s4592 + $0x80] sm:$0xff]
        %v4610 = vld [vmem:[%s4592 + $0x88] sm:$0xff]
        %v4611 = vld [vmem:[%s4592 + $0x90] sm:$0xff]
        %v4612 = vld [vmem:[%s4592 + $0x98] sm:$0xff]
        %v4613 = vld [vmem:[%s4592 + $0xa0] sm:$0xff]
        %v4614 = vld [vmem:[%s4592 + $0xa8] sm:$0xff]
        %v4615 = vld [vmem:[%s4592 + $0xb0] sm:$0xff]
        %v4616 = vld [vmem:[%s4592 + $0xb8] sm:$0xff]
        %v4617 = vld [vmem:[%s4592 + $0xc0] sm:$0xff]
        %v4618 = vld [vmem:[%s4592 + $0xc8] sm:$0xff]
        %v4619 = vld [vmem:[%s4592 + $0xd0] sm:$0xff]
        %v4620 = vld [vmem:[%s4592 + $0xd8] sm:$0xff]
        %v4621 = vld [vmem:[%s4592 + $0xe0] sm:$0xff]
        %v4622 = vld [vmem:[%s4592 + $0xe8] sm:$0xff]
        %v4623 = vld [vmem:[%s4592 + $0xf0] sm:$0xff]
        %v4624 = vld [vmem:[%s4592 + $0xf8] sm:$0xff]
        %v4657 = vunpack.c.l.b16 %v4593
        %v4658 = vunpack.c.h.b16 %v4593
        %v4659 = vunpack.c.l.b16 %v4594
        %v4660 = vunpack.c.h.b16 %v4594
        %v4661 = vunpack.c.l.b16 %v4595
        %v4662 = vunpack.c.h.b16 %v4595
        %v4663 = vunpack.c.l.b16 %v4596
        %v4664 = vunpack.c.h.b16 %v4596
        %v4665 = vunpack.c.l.b16 %v4597
        %v4666 = vunpack.c.h.b16 %v4597
        %v4667 = vunpack.c.l.b16 %v4598
        %v4668 = vunpack.c.h.b16 %v4598
        %v4669 = vunpack.c.l.b16 %v4599
        %v4670 = vunpack.c.h.b16 %v4599
        %v4671 = vunpack.c.l.b16 %v4600
        %v4672 = vunpack.c.h.b16 %v4600
        %v4673 = vunpack.c.l.b16 %v4601
        %v4674 = vunpack.c.h.b16 %v4601
        %v4675 = vunpack.c.l.b16 %v4602
        %v4676 = vunpack.c.h.b16 %v4602
        %v4677 = vunpack.c.l.b16 %v4603
        %v4678 = vunpack.c.h.b16 %v4603
        %v4679 = vunpack.c.l.b16 %v4604
        %v4680 = vunpack.c.h.b16 %v4604
        %v4681 = vunpack.c.l.b16 %v4605
        %v4682 = vunpack.c.h.b16 %v4605
        %v4683 = vunpack.c.l.b16 %v4606
        %v4684 = vunpack.c.h.b16 %v4606
        %v4685 = vunpack.c.l.b16 %v4607
        %v4686 = vunpack.c.h.b16 %v4607
        %v4687 = vunpack.c.l.b16 %v4608
        %v4688 = vunpack.c.h.b16 %v4608
        %v4689 = vunpack.c.l.b16 %v4609
        %v4690 = vunpack.c.h.b16 %v4609
        %v4691 = vunpack.c.l.b16 %v4610
        %v4692 = vunpack.c.h.b16 %v4610
        %v4693 = vunpack.c.l.b16 %v4611
        %v4694 = vunpack.c.h.b16 %v4611
        %v4695 = vunpack.c.l.b16 %v4612
        %v4696 = vunpack.c.h.b16 %v4612
        %v4697 = vunpack.c.l.b16 %v4613
        %v4698 = vunpack.c.h.b16 %v4613
        %v4699 = vunpack.c.l.b16 %v4614
        %v4700 = vunpack.c.h.b16 %v4614
        %v4701 = vunpack.c.l.b16 %v4615
        %v4702 = vunpack.c.h.b16 %v4615
        %v4703 = vunpack.c.l.b16 %v4616
        %v4704 = vunpack.c.h.b16 %v4616
        %v4705 = vunpack.c.l.b16 %v4617
        %v4706 = vunpack.c.h.b16 %v4617
        %v4707 = vunpack.c.l.b16 %v4618
        %v4708 = vunpack.c.h.b16 %v4618
        %v4709 = vunpack.c.l.b16 %v4619
        %v4710 = vunpack.c.h.b16 %v4619
        %v4711 = vunpack.c.l.b16 %v4620
        %v4712 = vunpack.c.h.b16 %v4620
        %v4713 = vunpack.c.l.b16 %v4621
        %v4714 = vunpack.c.h.b16 %v4621
        %v4715 = vunpack.c.l.b16 %v4622
        %v4716 = vunpack.c.h.b16 %v4622
        %v4717 = vunpack.c.l.b16 %v4623
        %v4718 = vunpack.c.h.b16 %v4623
        %v4719 = vunpack.c.l.b16 %v4624
        %v4720 = vunpack.c.h.b16 %v4624
        %v4721 = vpack.c.b16 %v4659, %v4657
        %v4722 = vpack.c.b16 %v4660, %v4658
        %v4723 = vpack.c.b16 %v4663, %v4661
        %v4724 = vpack.c.b16 %v4664, %v4662
        %v4725 = vpack.c.b16 %v4667, %v4665
        %v4726 = vpack.c.b16 %v4668, %v4666
        %v4727 = vpack.c.b16 %v4671, %v4669
        %v4728 = vpack.c.b16 %v4672, %v4670
        %v4729 = vpack.c.b16 %v4675, %v4673
        %v4730 = vpack.c.b16 %v4676, %v4674
        %v4731 = vpack.c.b16 %v4679, %v4677
        %v4732 = vpack.c.b16 %v4680, %v4678
        %v4733 = vpack.c.b16 %v4683, %v4681
        %v4734 = vpack.c.b16 %v4684, %v4682
        %v4735 = vpack.c.b16 %v4687, %v4685
        %v4736 = vpack.c.b16 %v4688, %v4686
        %v4737 = vpack.c.b16 %v4691, %v4689
        %v4738 = vpack.c.b16 %v4692, %v4690
        %v4739 = vpack.c.b16 %v4695, %v4693
        %v4740 = vpack.c.b16 %v4696, %v4694
        %v4741 = vpack.c.b16 %v4699, %v4697
        %v4742 = vpack.c.b16 %v4700, %v4698
        %v4743 = vpack.c.b16 %v4703, %v4701
        %v4744 = vpack.c.b16 %v4704, %v4702
        %v4745 = vpack.c.b16 %v4707, %v4705
        %v4746 = vpack.c.b16 %v4708, %v4706
        %v4747 = vpack.c.b16 %v4711, %v4709
        %v4748 = vpack.c.b16 %v4712, %v4710
        %v4749 = vpack.c.b16 %v4715, %v4713
        %v4750 = vpack.c.b16 %v4716, %v4714
        %v4751 = vpack.c.b16 %v4719, %v4717
        %v4752 = vpack.c.b16 %v4720, %v4718
        %4785 = vmatprep.subr.bf16.mxu0 %v4722
        %4786 = vmatpush1.bf16.msra.mxu0 %v4721
        %4787 = vmatprep.subr.bf16.mxu0 %v4724
        %4788 = vmatpush1.bf16.msra.mxu0 %v4723
        %4789 = vmatprep.subr.bf16.mxu0 %v4726
        %4790 = vmatpush1.bf16.msra.mxu0 %v4725
        %4791 = vmatprep.subr.bf16.mxu0 %v4728
        %4792 = vmatpush1.bf16.msra.mxu0 %v4727
        %4793 = vmatprep.subr.bf16.mxu0 %v4730
        %4794 = vmatpush1.bf16.msra.mxu0 %v4729
        %4795 = vmatprep.subr.bf16.mxu0 %v4732
        %4796 = vmatpush1.bf16.msra.mxu0 %v4731
        %4797 = vmatprep.subr.bf16.mxu0 %v4734
        %4798 = vmatpush1.bf16.msra.mxu0 %v4733
        %4799 = vmatprep.subr.bf16.mxu0 %v4736
        %4800 = vmatpush1.bf16.msra.mxu0 %v4735
        %4801 = vmatprep.subr.bf16.mxu0 %v4738
        %4802 = vmatpush1.bf16.msra.mxu0 %v4737
        %4803 = vmatprep.subr.bf16.mxu0 %v4740
        %4804 = vmatpush1.bf16.msra.mxu0 %v4739
        %4805 = vmatprep.subr.bf16.mxu0 %v4742
        %4806 = vmatpush1.bf16.msra.mxu0 %v4741
        %4807 = vmatprep.subr.bf16.mxu0 %v4744
        %4808 = vmatpush1.bf16.msra.mxu0 %v4743
        %4809 = vmatprep.subr.bf16.mxu0 %v4746
        %4810 = vmatpush1.bf16.msra.mxu0 %v4745
        %4811 = vmatprep.subr.bf16.mxu0 %v4748
        %4812 = vmatpush1.bf16.msra.mxu0 %v4747
        %4813 = vmatprep.subr.bf16.mxu0 %v4750
        %4814 = vmatpush1.bf16.msra.mxu0 %v4749
        %4815 = vmatprep.subr.bf16.mxu0 %v4752
        %4816 = vmatpush1.bf16.msra.mxu0 %v4751
        %4817 = vmatprep.mubr.bf16.mxu0 %v4303
        %4818 = vmatmul.mubr.bf16.gmra.mrb[0].mxu0 %v4302
        %v4819 = vpop.f32.mrb[0].mxu0
        %v4820 = vadd.f32 0.0, %v4819
        %v4821 = vpop.f32.mrb[0].mxu0
        %v4822 = vadd.f32 0.0, %v4821
        %v4823 = vpop.f32.mrb[0].mxu0
        %v4824 = vadd.f32 0.0, %v4823
        %v4825 = vpop.f32.mrb[0].mxu0
        %v4826 = vadd.f32 0.0, %v4825
        %4827 = vmatprep.mubr.bf16.mxu0 %v4305
        %4828 = vmatmul.mubr.bf16.gmra.mrb[0].mxu0 %v4304
        %v4829 = vpop.f32.mrb[0].mxu0
        %v4830 = vadd.f32 0.0, %v4829
        %v4831 = vpop.f32.mrb[0].mxu0
        %v4832 = vadd.f32 0.0, %v4831
        %v4833 = vpop.f32.mrb[0].mxu0
        %v4834 = vadd.f32 0.0, %v4833
        %v4835 = vpop.f32.mrb[0].mxu0
        %v4836 = vadd.f32 0.0, %v4835
        %4837 = vmatprep.mubr.bf16.mxu0 %v4307
        %4838 = vmatmul.mubr.bf16.gmra.mrb[0].mxu0 %v4306
        %v4839 = vpop.f32.mrb[0].mxu0
        %v4840 = vadd.f32 0.0, %v4839
        %v4841 = vpop.f32.mrb[0].mxu0
        %v4842 = vadd.f32 0.0, %v4841
        %v4843 = vpop.f32.mrb[0].mxu0
        %v4844 = vadd.f32 0.0, %v4843
        %v4845 = vpop.f32.mrb[0].mxu0
        %v4846 = vadd.f32 0.0, %v4845
        %4847 = vmatprep.mubr.bf16.mxu0 %v4309
        %4848 = vmatmul.mubr.bf16.gmra.mrb[0].mxu0 %v4308
        %v4849 = vpop.f32.mrb[0].mxu0
        %v4850 = vadd.f32 0.0, %v4849
        %v4851 = vpop.f32.mrb[0].mxu0
        %v4852 = vadd.f32 0.0, %v4851
        %v4853 = vpop.f32.mrb[0].mxu0
        %v4854 = vadd.f32 0.0, %v4853
        %v4855 = vpop.f32.mrb[0].mxu0
        %v4856 = vadd.f32 0.0, %v4855
        %4857 = vdwg.mxu0
        %v4858 = vadd.f32 %v4150, %v4820
        %v4859 = vadd.f32 %v4152, %v4822
        %v4860 = vadd.f32 %v4154, %v4824
        %v4861 = vadd.f32 %v4156, %v4826
        %v4862 = vadd.f32 %v4160, %v4830
        %v4863 = vadd.f32 %v4162, %v4832
        %v4864 = vadd.f32 %v4164, %v4834
        %v4865 = vadd.f32 %v4166, %v4836
        %v4866 = vadd.f32 %v4170, %v4840
        %v4867 = vadd.f32 %v4172, %v4842
        %v4868 = vadd.f32 %v4174, %v4844
        %v4869 = vadd.f32 %v4176, %v4846
        %v4870 = vadd.f32 %v4180, %v4850
        %v4871 = vadd.f32 %v4182, %v4852
        %v4872 = vadd.f32 %v4184, %v4854
        %v4873 = vadd.f32 %v4186, %v4856
        %v4874 = vld [vmem:[#allocation11] sm:$0x3]
        %v4876 = vlaneseq
        %v4877 = vshrl.u32 %v4876, 7
        %v4878 = vsub.s32 0, %v4877
        %v4879 = vrot.slane %v4874, %v4878
        %v4880 = vlaneseq
        %v4881 = vshrl.u32 %v4880, 7
        %v4882 = vsub.s32 1, %v4881
        %v4883 = vrot.slane %v4874, %v4882
        %v4886 = vadd.f32 %v4576, %v4879
        %v4887 = vadd.f32 %v4577, %v4883
        %v4888 = vadd.f32 %v4578, %v4879
        %v4889 = vadd.f32 %v4579, %v4883
        %v4890 = vadd.f32 %v4580, %v4879
        %v4891 = vadd.f32 %v4581, %v4883
        %v4892 = vadd.f32 %v4582, %v4879
        %v4893 = vadd.f32 %v4583, %v4883
        %v4894 = vadd.f32 %v4584, %v4879
        %v4895 = vadd.f32 %v4585, %v4883
        %v4896 = vadd.f32 %v4586, %v4879
        %v4897 = vadd.f32 %v4587, %v4883
        %v4898 = vadd.f32 %v4588, %v4879
        %v4899 = vadd.f32 %v4589, %v4883
        %v4900 = vadd.f32 %v4590, %v4879
        %v4901 = vadd.f32 %v4591, %v4883
        %v4902 = vmax.f32 %v4886, 0.0
        %v4903 = vmax.f32 %v4887, 0.0
        %v4904 = vmax.f32 %v4888, 0.0
        %v4905 = vmax.f32 %v4889, 0.0
        %v4906 = vmax.f32 %v4890, 0.0
        %v4907 = vmax.f32 %v4891, 0.0
        %v4908 = vmax.f32 %v4892, 0.0
        %v4909 = vmax.f32 %v4893, 0.0
        %v4910 = vmax.f32 %v4894, 0.0
        %v4911 = vmax.f32 %v4895, 0.0
        %v4912 = vmax.f32 %v4896, 0.0
        %v4913 = vmax.f32 %v4897, 0.0
        %v4914 = vmax.f32 %v4898, 0.0
        %v4915 = vmax.f32 %v4899, 0.0
        %v4916 = vmax.f32 %v4900, 0.0
        %v4917 = vmax.f32 %v4901, 0.0
        %v4918 = vadd.f32 %v4858, %v4879
        %v4919 = vadd.f32 %v4859, %v4883
        %v4920 = vadd.f32 %v4860, %v4879
        %v4921 = vadd.f32 %v4861, %v4883
        %v4922 = vadd.f32 %v4862, %v4879
        %v4923 = vadd.f32 %v4863, %v4883
        %v4924 = vadd.f32 %v4864, %v4879
        %v4925 = vadd.f32 %v4865, %v4883
        %v4926 = vadd.f32 %v4866, %v4879
        %v4927 = vadd.f32 %v4867, %v4883
        %v4928 = vadd.f32 %v4868, %v4879
        %v4929 = vadd.f32 %v4869, %v4883
        %v4930 = vadd.f32 %v4870, %v4879
        %v4931 = vadd.f32 %v4871, %v4883
        %v4932 = vadd.f32 %v4872, %v4879
        %v4933 = vadd.f32 %v4873, %v4883
        %v4934 = vmax.f32 %v4918, 0.0
        %v4935 = vmax.f32 %v4919, 0.0
        %v4936 = vmax.f32 %v4920, 0.0
        %v4937 = vmax.f32 %v4921, 0.0
        %v4938 = vmax.f32 %v4922, 0.0
        %v4939 = vmax.f32 %v4923, 0.0
        %v4940 = vmax.f32 %v4924, 0.0
        %v4941 = vmax.f32 %v4925, 0.0
        %v4942 = vmax.f32 %v4926, 0.0
        %v4943 = vmax.f32 %v4927, 0.0
        %v4944 = vmax.f32 %v4928, 0.0
        %v4945 = vmax.f32 %v4929, 0.0
        %v4946 = vmax.f32 %v4930, 0.0
        %v4947 = vmax.f32 %v4931, 0.0
        %v4948 = vmax.f32 %v4932, 0.0
        %v4949 = vmax.f32 %v4933, 0.0
        %v4950 = vmax.f32 %v4902, %v4934
        %v4951 = vmax.f32 %v4903, %v4935
        %v4952 = vmax.f32 %v4904, %v4936
        %v4953 = vmax.f32 %v4905, %v4937
        %v4954 = vmax.f32 %v4906, %v4938
        %v4955 = vmax.f32 %v4907, %v4939
        %v4956 = vmax.f32 %v4908, %v4940
        %v4957 = vmax.f32 %v4909, %v4941
        %v4958 = vmax.f32 %v4910, %v4942
        %v4959 = vmax.f32 %v4911, %v4943
        %v4960 = vmax.f32 %v4912, %v4944
        %v4961 = vmax.f32 %v4913, %v4945
        %v4962 = vmax.f32 %v4914, %v4946
        %v4963 = vmax.f32 %v4915, %v4947
        %v4964 = vmax.f32 %v4916, %v4948
        %v4965 = vmax.f32 %v4917, %v4949
        %v4966 = vpack.c.bf16 %v4952, %v4950
        %v4967 = vpack.c.bf16 %v4953, %v4951
        %v4968 = vpack.c.bf16 %v4956, %v4954
        %v4969 = vpack.c.bf16 %v4957, %v4955
        %v4970 = vpack.c.bf16 %v4960, %v4958
        %v4971 = vpack.c.bf16 %v4961, %v4959
        %v4972 = vpack.c.bf16 %v4964, %v4962
        %v4973 = vpack.c.bf16 %v4965, %v4963
        %v4974 = vld [vmem:[%s11] sm:$0xf]
        %v4975 = vld [vmem:[%s11 + $0x4] sm:$0xf]
        %v4976 = vld [vmem:[%s11 + $0x8] sm:$0xf]
        %v4977 = vld [vmem:[%s11 + $0xc] sm:$0xf]
        %v4982 = vunpack.c.l.b16 %v4974
        %v4983 = vunpack.c.l.b16 %v4975
        %v4984 = vunpack.c.l.b16 %v4976
        %v4985 = vunpack.c.l.b16 %v4977
        %v4986 = vpack.c.b16 %v4983, %v4982
        %v4987 = vpack.c.b16 %v4985, %v4984
        %v4989 = vsel %vm2910, %v4986, 0
        %v4992 = vsel %vm2910, %v4987, 0
        %4994 = vmatprep.subr.bf16.mxu0 %v4967
        %4995 = vmatpush1.bf16.msra.mxu0 %v4966
        %4996 = vmatprep.subr.bf16.mxu0 %v4969
        %4997 = vmatpush1.bf16.msra.mxu0 %v4968
        %4998 = vmatprep.subr.bf16.mxu0 %v4971
        %4999 = vmatpush1.bf16.msra.mxu0 %v4970
        %5000 = vmatprep.subr.bf16.mxu0 %v4973
        %5001 = vmatpush1.bf16.msra.mxu0 %v4972
        %5002 = vmatprep.subr.bf16.mxu0 0
        %5003 = vmatpush1.bf16.msra.mxu0 0
        %5004 = vmatprep.subr.bf16.mxu0 0
        %5005 = vmatpush1.bf16.msra.mxu0 0
        %5006 = vmatprep.subr.bf16.mxu0 0
        %5007 = vmatpush1.bf16.msra.mxu0 0
        %5008 = vmatprep.subr.bf16.mxu0 0
        %5009 = vmatpush1.bf16.msra.mxu0 0
        %5010 = vmatprep.subr.bf16.mxu0 0
        %5011 = vmatpush1.bf16.msra.mxu0 0
        %5012 = vmatprep.subr.bf16.mxu0 0
        %5013 = vmatpush1.bf16.msra.mxu0 0
        %5014 = vmatprep.subr.bf16.mxu0 0
        %5015 = vmatpush1.bf16.msra.mxu0 0
        %5016 = vmatprep.subr.bf16.mxu0 0
        %5017 = vmatpush1.bf16.msra.mxu0 0
        %5018 = vmatprep.subr.bf16.mxu0 0
        %5019 = vmatpush1.bf16.msra.mxu0 0
        %5020 = vmatprep.subr.bf16.mxu0 0
        %5021 = vmatpush1.bf16.msra.mxu0 0
        %5022 = vmatprep.subr.bf16.mxu0 0
        %5023 = vmatpush1.bf16.msra.mxu0 0
        %5024 = vmatprep.subr.bf16.mxu0 0
        %5025 = vmatpush1.bf16.msra.mxu0 0
        %5026 = vmatprep.mubr.bf16.mxu0 0
        %5027 = vmatmul.mubr.bf16.gmra.mrb[0].mxu0 %v4989
        %v5028 = vpop.f32.mrb[0].mxu0
        %v5029 = vadd.f32 0.0, %v5028
        %v5030 = vpop.f32.mrb[0].mxu0
        %v5031 = vadd.f32 0.0, %v5030
        %v5032 = vpop.f32.mrb[0].mxu0
        %v5033 = vadd.f32 0.0, %v5032
        %v5034 = vpop.f32.mrb[0].mxu0
        %v5035 = vadd.f32 0.0, %v5034
        %5036 = vmatprep.mubr.bf16.mxu0 0
        %5037 = vmatmul.mubr.bf16.gmra.mrb[0].mxu0 %v4992
        %v5038 = vpop.f32.mrb[0].mxu0
        %v5039 = vadd.f32 0.0, %v5038
        %v5040 = vpop.f32.mrb[0].mxu0
        %v5041 = vadd.f32 0.0, %v5040
        %v5042 = vpop.f32.mrb[0].mxu0
        %v5043 = vadd.f32 0.0, %v5042
        %v5044 = vpop.f32.mrb[0].mxu0
        %v5045 = vadd.f32 0.0, %v5044
        %5046 = vdwg.mxu0
        %v5047 = vld [vmem:[#allocation13] sm:$0xf]
        %v5048 = vld [vmem:[#allocation13 + $0x4] sm:$0xf]
        %v5049 = vld [vmem:[#allocation13 + $0x8] sm:$0xf]
        %v5050 = vld [vmem:[#allocation13 + $0xc] sm:$0xf]
        %v5055 = vunpack.c.l.b16 %v5047
        %v5056 = vunpack.c.l.b16 %v5048
        %v5057 = vunpack.c.l.b16 %v5049
        %v5058 = vunpack.c.l.b16 %v5050
        %v5059 = vpack.c.b16 %v5056, %v5055
        %v5060 = vpack.c.b16 %v5058, %v5057
        %v5062 = vsel %vm2910, %v5059, 0
        %v5065 = vsel %vm2910, %v5060, 0
        %5067 = vmatprep.subr.bf16.mxu0 %v4967
        %5068 = vmatpush1.bf16.msra.mxu0 %v4966
        %5069 = vmatprep.subr.bf16.mxu0 %v4969
        %5070 = vmatpush1.bf16.msra.mxu0 %v4968
        %5071 = vmatprep.subr.bf16.mxu0 %v4971
        %5072 = vmatpush1.bf16.msra.mxu0 %v4970
        %5073 = vmatprep.subr.bf16.mxu0 %v4973
        %5074 = vmatpush1.bf16.msra.mxu0 %v4972
        %5075 = vmatprep.subr.bf16.mxu0 0
        %5076 = vmatpush1.bf16.msra.mxu0 0
        %5077 = vmatprep.subr.bf16.mxu0 0
        %5078 = vmatpush1.bf16.msra.mxu0 0
        %5079 = vmatprep.subr.bf16.mxu0 0
        %5080 = vmatpush1.bf16.msra.mxu0 0
        %5081 = vmatprep.subr.bf16.mxu0 0
        %5082 = vmatpush1.bf16.msra.mxu0 0
        %5083 = vmatprep.subr.bf16.mxu0 0
        %5084 = vmatpush1.bf16.msra.mxu0 0
        %5085 = vmatprep.subr.bf16.mxu0 0
        %5086 = vmatpush1.bf16.msra.mxu0 0
        %5087 = vmatprep.subr.bf16.mxu0 0
        %5088 = vmatpush1.bf16.msra.mxu0 0
        %5089 = vmatprep.subr.bf16.mxu0 0
        %5090 = vmatpush1.bf16.msra.mxu0 0
        %5091 = vmatprep.subr.bf16.mxu0 0
        %5092 = vmatpush1.bf16.msra.mxu0 0
        %5093 = vmatprep.subr.bf16.mxu0 0
        %5094 = vmatpush1.bf16.msra.mxu0 0
        %5095 = vmatprep.subr.bf16.mxu0 0
        %5096 = vmatpush1.bf16.msra.mxu0 0
        %5097 = vmatprep.subr.bf16.mxu0 0
        %5098 = vmatpush1.bf16.msra.mxu0 0
        %5099 = vmatprep.mubr.bf16.mxu0 0
        %5100 = vmatmul.mubr.bf16.gmra.mrb[0].mxu0 %v5062
        %v5101 = vpop.f32.mrb[0].mxu0
        %v5102 = vadd.f32 0.0, %v5101
        %v5103 = vpop.f32.mrb[0].mxu0
        %v5104 = vadd.f32 0.0, %v5103
        %v5105 = vpop.f32.mrb[0].mxu0
        %v5106 = vadd.f32 0.0, %v5105
        %v5107 = vpop.f32.mrb[0].mxu0
        %v5108 = vadd.f32 0.0, %v5107
        %5109 = vmatprep.mubr.bf16.mxu0 0
        %5110 = vmatmul.mubr.bf16.gmra.mrb[0].mxu0 %v5065
        %v5111 = vpop.f32.mrb[0].mxu0
        %v5112 = vadd.f32 0.0, %v5111
        %v5113 = vpop.f32.mrb[0].mxu0
        %v5114 = vadd.f32 0.0, %v5113
        %v5115 = vpop.f32.mrb[0].mxu0
        %v5116 = vadd.f32 0.0, %v5115
        %v5117 = vpop.f32.mrb[0].mxu0
        %v5118 = vadd.f32 0.0, %v5117
        %5119 = vdwg.mxu0
        %v5120 = vmax.f32 %v5029, %v5102
        %v5121 = vmax.f32 %v5031, %v5104
        %v5122 = vmax.f32 %v5033, %v5106
        %v5123 = vmax.f32 %v5035, %v5108
        %v5124 = vmax.f32 %v5039, %v5112
        %v5125 = vmax.f32 %v5041, %v5114
        %v5126 = vmax.f32 %v5043, %v5116
        %v5127 = vmax.f32 %v5045, %v5118
        %v5128 = vpack.c.bf16 %v5122, %v5120
        %v5129 = vpack.c.bf16 %v5123, %v5121
        %v5130 = vpack.c.bf16 %v5126, %v5124
        %v5131 = vpack.c.bf16 %v5127, %v5125
        %v5132 = vld [vmem:[#allocation14] sm:$0x3]
        %vm5133 = vcmask 261120
        %v5135 = vsel %vm5133, %v5132, 0
        %5137 = vmatprep.subr.bf16.mxu0 %v5129
        %5138 = vmatpush1.bf16.msra.mxu0 %v5128
        %5139 = vmatprep.subr.bf16.mxu0 %v5131
        %5140 = vmatpush1.bf16.msra.mxu0 %v5130
        %5141 = vmatprep.subr.bf16.mxu0 0
        %5142 = vmatpush1.bf16.msra.mxu0 0
        %5143 = vmatprep.subr.bf16.mxu0 0
        %5144 = vmatpush1.bf16.msra.mxu0 0
        %5145 = vmatprep.subr.bf16.mxu0 0
        %5146 = vmatpush1.bf16.msra.mxu0 0
        %5147 = vmatprep.subr.bf16.mxu0 0
        %5148 = vmatpush1.bf16.msra.mxu0 0
        %5149 = vmatprep.subr.bf16.mxu0 0
        %5150 = vmatpush1.bf16.msra.mxu0 0
        %5151 = vmatprep.subr.bf16.mxu0 0
        %5152 = vmatpush1.bf16.msra.mxu0 0
        %5153 = vmatprep.subr.bf16.mxu0 0
        %5154 = vmatpush1.bf16.msra.mxu0 0
        %5155 = vmatprep.subr.bf16.mxu0 0
        %5156 = vmatpush1.bf16.msra.mxu0 0
        %5157 = vmatprep.subr.bf16.mxu0 0
        %5158 = vmatpush1.bf16.msra.mxu0 0
        %5159 = vmatprep.subr.bf16.mxu0 0
        %5160 = vmatpush1.bf16.msra.mxu0 0
        %5161 = vmatprep.subr.bf16.mxu0 0
        %5162 = vmatpush1.bf16.msra.mxu0 0
        %5163 = vmatprep.subr.bf16.mxu0 0
        %5164 = vmatpush1.bf16.msra.mxu0 0
        %5165 = vmatprep.subr.bf16.mxu0 0
        %5166 = vmatpush1.bf16.msra.mxu0 0
        %5167 = vmatprep.subr.bf16.mxu0 0
        %5168 = vmatpush1.bf16.msra.mxu0 0
        %5169 = vmatprep.mubr.bf16.mxu0 0
        %5170 = vmatmul.mubr.bf16.gmra.mrb[0].mxu0 %v5135
        %v5171 = vpop.f32.mrb[0].mxu0
        %v5172 = vadd.f32 0.0, %v5171
        %v5173 = vpop.f32.mrb[0].mxu0
        %v5174 = vadd.f32 0.0, %v5173
        %v5175 = vpop.f32.mrb[0].mxu0
        %v5176 = vpop.f32.mrb[0].mxu0
        %5177 = vdwg.mxu0
        %v5178 = vpack.c.bf16 %v5172, %v5172
        %v5179 = vpack.c.bf16 %v5174, %v5174
        %v5180 = vld [vmem:[%s13] sm:$0xf]
        %v5181 = vld [vmem:[%s13 + $0x4] sm:$0xf]
        %v5182 = vld [vmem:[%s13 + $0x8] sm:$0xf]
        %v5183 = vld [vmem:[%s13 + $0xc] sm:$0xf]
        %v5184 = vld [vmem:[%s13 + $0x10] sm:$0xf]
        %v5185 = vld [vmem:[%s13 + $0x14] sm:$0xf]
        %v5186 = vld [vmem:[%s13 + $0x18] sm:$0xf]
        %v5187 = vld [vmem:[%s13 + $0x1c] sm:$0xf]
        %v5188 = vld [vmem:[%s13 + $0x20] sm:$0xf]
        %v5189 = vld [vmem:[%s13 + $0x24] sm:$0xf]
        %v5190 = vld [vmem:[%s13 + $0x28] sm:$0xf]
        %v5191 = vld [vmem:[%s13 + $0x2c] sm:$0xf]
        %v5192 = vld [vmem:[%s13 + $0x30] sm:$0xf]
        %v5193 = vld [vmem:[%s13 + $0x34] sm:$0xf]
        %v5194 = vld [vmem:[%s13 + $0x38] sm:$0xf]
        %v5195 = vld [vmem:[%s13 + $0x3c] sm:$0xf]
        %v5196 = vld [vmem:[%s13 + $0x40] sm:$0xf]
        %v5197 = vld [vmem:[%s13 + $0x44] sm:$0xf]
        %v5198 = vld [vmem:[%s13 + $0x48] sm:$0xf]
        %v5199 = vld [vmem:[%s13 + $0x4c] sm:$0xf]
        %v5200 = vld [vmem:[%s13 + $0x50] sm:$0xf]
        %v5201 = vld [vmem:[%s13 + $0x54] sm:$0xf]
        %v5202 = vld [vmem:[%s13 + $0x58] sm:$0xf]
        %v5203 = vld [vmem:[%s13 + $0x5c] sm:$0xf]
        %v5204 = vld [vmem:[%s13 + $0x60] sm:$0xf]
        %v5205 = vld [vmem:[%s13 + $0x64] sm:$0xf]
        %v5206 = vld [vmem:[%s13 + $0x68] sm:$0xf]
        %v5207 = vld [vmem:[%s13 + $0x6c] sm:$0xf]
        %v5208 = vld [vmem:[%s13 + $0x70] sm:$0xf]
        %v5209 = vld [vmem:[%s13 + $0x74] sm:$0xf]
        %v5210 = vld [vmem:[%s13 + $0x78] sm:$0xf]
        %v5211 = vld [vmem:[%s13 + $0x7c] sm:$0xf]
        %s5212 = scalar_lea.vmem [#allocation14], 2
        %v5213 = vld [vmem:[%s5212] sm:$0x3]
        %v5215 = vsel %vm5133, %v5213, 0
        %5217 = vmatprep.subr.bf16.mxu0 %v5129
        %5218 = vmatpush1.bf16.msra.mxu0 %v5128
        %5219 = vmatprep.subr.bf16.mxu0 %v5131
        %5220 = vmatpush1.bf16.msra.mxu0 %v5130
        %5221 = vmatprep.subr.bf16.mxu0 0
        %5222 = vmatpush1.bf16.msra.mxu0 0
        %5223 = vmatprep.subr.bf16.mxu0 0
        %5224 = vmatpush1.bf16.msra.mxu0 0
        %5225 = vmatprep.subr.bf16.mxu0 0
        %5226 = vmatpush1.bf16.msra.mxu0 0
        %5227 = vmatprep.subr.bf16.mxu0 0
        %5228 = vmatpush1.bf16.msra.mxu0 0
        %5229 = vmatprep.subr.bf16.mxu0 0
        %5230 = vmatpush1.bf16.msra.mxu0 0
        %5231 = vmatprep.subr.bf16.mxu0 0
        %5232 = vmatpush1.bf16.msra.mxu0 0
        %5233 = vmatprep.subr.bf16.mxu0 0
        %5234 = vmatpush1.bf16.msra.mxu0 0
        %5235 = vmatprep.subr.bf16.mxu0 0
        %5236 = vmatpush1.bf16.msra.mxu0 0
        %5237 = vmatprep.subr.bf16.mxu0 0
        %5238 = vmatpush1.bf16.msra.mxu0 0
        %5239 = vmatprep.subr.bf16.mxu0 0
        %5240 = vmatpush1.bf16.msra.mxu0 0
        %5241 = vmatprep.subr.bf16.mxu0 0
        %5242 = vmatpush1.bf16.msra.mxu0 0
        %5243 = vmatprep.subr.bf16.mxu0 0
        %5244 = vmatpush1.bf16.msra.mxu0 0
        %5245 = vmatprep.subr.bf16.mxu0 0
        %5246 = vmatpush1.bf16.msra.mxu0 0
        %5247 = vmatprep.subr.bf16.mxu0 0
        %5248 = vmatpush1.bf16.msra.mxu0 0
        %5249 = vmatprep.mubr.bf16.mxu0 0
        %5250 = vmatmul.mubr.bf16.gmra.mrb[0].mxu0 %v5215
        %v5251 = vpop.f32.mrb[0].mxu0
        %v5252 = vadd.f32 0.0, %v5251
        %v5253 = vpop.f32.mrb[0].mxu0
        %v5254 = vadd.f32 0.0, %v5253
        %v5255 = vpop.f32.mrb[0].mxu0
        %v5256 = vpop.f32.mrb[0].mxu0
        %5257 = vdwg.mxu0
        %v5258 = vpack.c.bf16 %v5252, %v5252
        %v5259 = vpack.c.bf16 %v5254, %v5254
        %s5260 = scalar_lea.vmem %s13, 128
        %v5261 = vld [vmem:[%s5260] sm:$0xf]
        %v5262 = vld [vmem:[%s5260 + $0x4] sm:$0xf]
        %v5263 = vld [vmem:[%s5260 + $0x8] sm:$0xf]
        %v5264 = vld [vmem:[%s5260 + $0xc] sm:$0xf]
        %v5265 = vld [vmem:[%s5260 + $0x10] sm:$0xf]
        %v5266 = vld [vmem:[%s5260 + $0x14] sm:$0xf]
        %v5267 = vld [vmem:[%s5260 + $0x18] sm:$0xf]
        %v5268 = vld [vmem:[%s5260 + $0x1c] sm:$0xf]
        %v5269 = vld [vmem:[%s5260 + $0x20] sm:$0xf]
        %v5270 = vld [vmem:[%s5260 + $0x24] sm:$0xf]
        %v5271 = vld [vmem:[%s5260 + $0x28] sm:$0xf]
        %v5272 = vld [vmem:[%s5260 + $0x2c] sm:$0xf]
        %v5273 = vld [vmem:[%s5260 + $0x30] sm:$0xf]
        %v5274 = vld [vmem:[%s5260 + $0x34] sm:$0xf]
        %v5275 = vld [vmem:[%s5260 + $0x38] sm:$0xf]
        %v5276 = vld [vmem:[%s5260 + $0x3c] sm:$0xf]
        %v5277 = vld [vmem:[%s5260 + $0x40] sm:$0xf]
        %v5278 = vld [vmem:[%s5260 + $0x44] sm:$0xf]
        %v5279 = vld [vmem:[%s5260 + $0x48] sm:$0xf]
        %v5280 = vld [vmem:[%s5260 + $0x4c] sm:$0xf]
        %v5281 = vld [vmem:[%s5260 + $0x50] sm:$0xf]
        %v5282 = vld [vmem:[%s5260 + $0x54] sm:$0xf]
        %v5283 = vld [vmem:[%s5260 + $0x58] sm:$0xf]
        %v5284 = vld [vmem:[%s5260 + $0x5c] sm:$0xf]
        %v5285 = vld [vmem:[%s5260 + $0x60] sm:$0xf]
        %v5286 = vld [vmem:[%s5260 + $0x64] sm:$0xf]
        %v5287 = vld [vmem:[%s5260 + $0x68] sm:$0xf]
        %v5288 = vld [vmem:[%s5260 + $0x6c] sm:$0xf]
        %v5289 = vld [vmem:[%s5260 + $0x70] sm:$0xf]
        %v5290 = vld [vmem:[%s5260 + $0x74] sm:$0xf]
        %v5291 = vld [vmem:[%s5260 + $0x78] sm:$0xf]
        %v5292 = vld [vmem:[%s5260 + $0x7c] sm:$0xf]
        %v5325 = vunpack.c.l.b16 %v5261
        %v5326 = vunpack.c.l.b16 %v5262
        %v5327 = vunpack.c.l.b16 %v5263
        %v5328 = vunpack.c.l.b16 %v5264
        %v5329 = vunpack.c.l.b16 %v5265
        %v5330 = vunpack.c.l.b16 %v5266
        %v5331 = vunpack.c.l.b16 %v5267
        %v5332 = vunpack.c.l.b16 %v5268
        %v5333 = vunpack.c.l.b16 %v5269
        %v5334 = vunpack.c.l.b16 %v5270
        %v5335 = vunpack.c.l.b16 %v5271
        %v5336 = vunpack.c.l.b16 %v5272
        %v5337 = vunpack.c.l.b16 %v5273
        %v5338 = vunpack.c.l.b16 %v5274
        %v5339 = vunpack.c.l.b16 %v5275
        %v5340 = vunpack.c.l.b16 %v5276
        %v5341 = vunpack.c.l.b16 %v5277
        %v5342 = vunpack.c.l.b16 %v5278
        %v5343 = vunpack.c.l.b16 %v5279
        %v5344 = vunpack.c.l.b16 %v5280
        %v5345 = vunpack.c.l.b16 %v5281
        %v5346 = vunpack.c.l.b16 %v5282
        %v5347 = vunpack.c.l.b16 %v5283
        %v5348 = vunpack.c.l.b16 %v5284
        %v5349 = vunpack.c.l.b16 %v5285
        %v5350 = vunpack.c.l.b16 %v5286
        %v5351 = vunpack.c.l.b16 %v5287
        %v5352 = vunpack.c.l.b16 %v5288
        %v5353 = vunpack.c.l.b16 %v5289
        %v5354 = vunpack.c.l.b16 %v5290
        %v5355 = vunpack.c.l.b16 %v5291
        %v5356 = vunpack.c.l.b16 %v5292
        %v5357 = vpack.c.b16 %v5326, %v5325
        %v5358 = vpack.c.b16 %v5328, %v5327
        %v5359 = vpack.c.b16 %v5330, %v5329
        %v5360 = vpack.c.b16 %v5332, %v5331
        %v5361 = vpack.c.b16 %v5334, %v5333
        %v5362 = vpack.c.b16 %v5336, %v5335
        %v5363 = vpack.c.b16 %v5338, %v5337
        %v5364 = vpack.c.b16 %v5340, %v5339
        %v5365 = vpack.c.b16 %v5342, %v5341
        %v5366 = vpack.c.b16 %v5344, %v5343
        %v5367 = vpack.c.b16 %v5346, %v5345
        %v5368 = vpack.c.b16 %v5348, %v5347
        %v5369 = vpack.c.b16 %v5350, %v5349
        %v5370 = vpack.c.b16 %v5352, %v5351
        %v5371 = vpack.c.b16 %v5354, %v5353
        %v5372 = vpack.c.b16 %v5356, %v5355
        %5389 = vmatprep.subr.bf16.mxu0 0
        %5390 = vmatpush1.bf16.msra.mxu0 %v5357
        %5391 = vmatprep.subr.bf16.mxu0 0
        %5392 = vmatpush1.bf16.msra.mxu0 %v5358
        %5393 = vmatprep.subr.bf16.mxu0 0
        %5394 = vmatpush1.bf16.msra.mxu0 %v5359
        %5395 = vmatprep.subr.bf16.mxu0 0
        %5396 = vmatpush1.bf16.msra.mxu0 %v5360
        %5397 = vmatprep.subr.bf16.mxu0 0
        %5398 = vmatpush1.bf16.msra.mxu0 %v5361
        %5399 = vmatprep.subr.bf16.mxu0 0
        %5400 = vmatpush1.bf16.msra.mxu0 %v5362
        %5401 = vmatprep.subr.bf16.mxu0 0
        %5402 = vmatpush1.bf16.msra.mxu0 %v5363
        %5403 = vmatprep.subr.bf16.mxu0 0
        %5404 = vmatpush1.bf16.msra.mxu0 %v5364
        %5405 = vmatprep.subr.bf16.mxu0 0
        %5406 = vmatpush1.bf16.msra.mxu0 %v5365
        %5407 = vmatprep.subr.bf16.mxu0 0
        %5408 = vmatpush1.bf16.msra.mxu0 %v5366
        %5409 = vmatprep.subr.bf16.mxu0 0
        %5410 = vmatpush1.bf16.msra.mxu0 %v5367
        %5411 = vmatprep.subr.bf16.mxu0 0
        %5412 = vmatpush1.bf16.msra.mxu0 %v5368
        %5413 = vmatprep.subr.bf16.mxu0 0
        %5414 = vmatpush1.bf16.msra.mxu0 %v5369
        %5415 = vmatprep.subr.bf16.mxu0 0
        %5416 = vmatpush1.bf16.msra.mxu0 %v5370
        %5417 = vmatprep.subr.bf16.mxu0 0
        %5418 = vmatpush1.bf16.msra.mxu0 %v5371
        %5419 = vmatprep.subr.bf16.mxu0 0
        %5420 = vmatpush1.bf16.msra.mxu0 %v5372
        %5421 = vmatprep.mubr.bf16.mxu0 %v5259
        %5422 = vmatmul.mubr.bf16.gmra.mrb[0].mxu0 %v5258
        %v5423 = vpop.f32.mrb[0].mxu0
        %v5424 = vadd.f32 0.0, %v5423
        %v5425 = vpop.f32.mrb[0].mxu0
        %v5426 = vpop.f32.mrb[0].mxu0
        %v5427 = vpop.f32.mrb[0].mxu0
        %5428 = vdwg.mxu0
        %v5461 = vunpack.c.l.b16 %v5180
        %v5462 = vunpack.c.l.b16 %v5181
        %v5463 = vunpack.c.l.b16 %v5182
        %v5464 = vunpack.c.l.b16 %v5183
        %v5465 = vunpack.c.l.b16 %v5184
        %v5466 = vunpack.c.l.b16 %v5185
        %v5467 = vunpack.c.l.b16 %v5186
        %v5468 = vunpack.c.l.b16 %v5187
        %v5469 = vunpack.c.l.b16 %v5188
        %v5470 = vunpack.c.l.b16 %v5189
        %v5471 = vunpack.c.l.b16 %v5190
        %v5472 = vunpack.c.l.b16 %v5191
        %v5473 = vunpack.c.l.b16 %v5192
        %v5474 = vunpack.c.l.b16 %v5193
        %v5475 = vunpack.c.l.b16 %v5194
        %v5476 = vunpack.c.l.b16 %v5195
        %v5477 = vunpack.c.l.b16 %v5196
        %v5478 = vunpack.c.l.b16 %v5197
        %v5479 = vunpack.c.l.b16 %v5198
        %v5480 = vunpack.c.l.b16 %v5199
        %v5481 = vunpack.c.l.b16 %v5200
        %v5482 = vunpack.c.l.b16 %v5201
        %v5483 = vunpack.c.l.b16 %v5202
        %v5484 = vunpack.c.l.b16 %v5203
        %v5485 = vunpack.c.l.b16 %v5204
        %v5486 = vunpack.c.l.b16 %v5205
        %v5487 = vunpack.c.l.b16 %v5206
        %v5488 = vunpack.c.l.b16 %v5207
        %v5489 = vunpack.c.l.b16 %v5208
        %v5490 = vunpack.c.l.b16 %v5209
        %v5491 = vunpack.c.l.b16 %v5210
        %v5492 = vunpack.c.l.b16 %v5211
        %v5493 = vpack.c.b16 %v5462, %v5461
        %v5494 = vpack.c.b16 %v5464, %v5463
        %v5495 = vpack.c.b16 %v5466, %v5465
        %v5496 = vpack.c.b16 %v5468, %v5467
        %v5497 = vpack.c.b16 %v5470, %v5469
        %v5498 = vpack.c.b16 %v5472, %v5471
        %v5499 = vpack.c.b16 %v5474, %v5473
        %v5500 = vpack.c.b16 %v5476, %v5475
        %v5501 = vpack.c.b16 %v5478, %v5477
        %v5502 = vpack.c.b16 %v5480, %v5479
        %v5503 = vpack.c.b16 %v5482, %v5481
        %v5504 = vpack.c.b16 %v5484, %v5483
        %v5505 = vpack.c.b16 %v5486, %v5485
        %v5506 = vpack.c.b16 %v5488, %v5487
        %v5507 = vpack.c.b16 %v5490, %v5489
        %v5508 = vpack.c.b16 %v5492, %v5491
        %5525 = vmatprep.subr.bf16.mxu0 0
        %5526 = vmatpush1.bf16.msra.mxu0 %v5493
        %5527 = vmatprep.subr.bf16.mxu0 0
        %5528 = vmatpush1.bf16.msra.mxu0 %v5494
        %5529 = vmatprep.subr.bf16.mxu0 0
        %5530 = vmatpush1.bf16.msra.mxu0 %v5495
        %5531 = vmatprep.subr.bf16.mxu0 0
        %5532 = vmatpush1.bf16.msra.mxu0 %v5496
        %5533 = vmatprep.subr.bf16.mxu0 0
        %5534 = vmatpush1.bf16.msra.mxu0 %v5497
        %5535 = vmatprep.subr.bf16.mxu0 0
        %5536 = vmatpush1.bf16.msra.mxu0 %v5498
        %5537 = vmatprep.subr.bf16.mxu0 0
        %5538 = vmatpush1.bf16.msra.mxu0 %v5499
        %5539 = vmatprep.subr.bf16.mxu0 0
        %5540 = vmatpush1.bf16.msra.mxu0 %v5500
        %5541 = vmatprep.subr.bf16.mxu0 0
        %5542 = vmatpush1.bf16.msra.mxu0 %v5501
        %5543 = vmatprep.subr.bf16.mxu0 0
        %5544 = vmatpush1.bf16.msra.mxu0 %v5502
        %5545 = vmatprep.subr.bf16.mxu0 0
        %5546 = vmatpush1.bf16.msra.mxu0 %v5503
        %5547 = vmatprep.subr.bf16.mxu0 0
        %5548 = vmatpush1.bf16.msra.mxu0 %v5504
        %5549 = vmatprep.subr.bf16.mxu0 0
        %5550 = vmatpush1.bf16.msra.mxu0 %v5505
        %5551 = vmatprep.subr.bf16.mxu0 0
        %5552 = vmatpush1.bf16.msra.mxu0 %v5506
        %5553 = vmatprep.subr.bf16.mxu0 0
        %5554 = vmatpush1.bf16.msra.mxu0 %v5507
        %5555 = vmatprep.subr.bf16.mxu0 0
        %5556 = vmatpush1.bf16.msra.mxu0 %v5508
        %5557 = vmatprep.mubr.bf16.mxu0 %v5179
        %5558 = vmatmul.mubr.bf16.gmra.mrb[0].mxu0 %v5178
        %v5559 = vpop.f32.mrb[0].mxu0
        %v5560 = vadd.f32 %v5424, %v5559
        %v5561 = vpop.f32.mrb[0].mxu0
        %v5562 = vpop.f32.mrb[0].mxu0
        %v5563 = vpop.f32.mrb[0].mxu0
        %5564 = vdwg.mxu0
        %s5565 = scalar_lea.vmem [#allocation14], 4
        %v5566 = vld [vmem:[%s5565] sm:$0x3]
        %v5568 = vsel %vm5133, %v5566, 0
        %5570 = vmatprep.subr.bf16.mxu0 %v5129
        %5571 = vmatpush1.bf16.msra.mxu0 %v5128
        %5572 = vmatprep.subr.bf16.mxu0 %v5131
        %5573 = vmatpush1.bf16.msra.mxu0 %v5130
        %5574 = vmatprep.subr.bf16.mxu0 0
        %5575 = vmatpush1.bf16.msra.mxu0 0
        %5576 = vmatprep.subr.bf16.mxu0 0
        %5577 = vmatpush1.bf16.msra.mxu0 0
        %5578 = vmatprep.subr.bf16.mxu0 0
        %5579 = vmatpush1.bf16.msra.mxu0 0
        %5580 = vmatprep.subr.bf16.mxu0 0
        %5581 = vmatpush1.bf16.msra.mxu0 0
        %5582 = vmatprep.subr.bf16.mxu0 0
        %5583 = vmatpush1.bf16.msra.mxu0 0
        %5584 = vmatprep.subr.bf16.mxu0 0
        %5585 = vmatpush1.bf16.msra.mxu0 0
        %5586 = vmatprep.subr.bf16.mxu0 0
        %5587 = vmatpush1.bf16.msra.mxu0 0
        %5588 = vmatprep.subr.bf16.mxu0 0
        %5589 = vmatpush1.bf16.msra.mxu0 0
        %5590 = vmatprep.subr.bf16.mxu0 0
        %5591 = vmatpush1.bf16.msra.mxu0 0
        %5592 = vmatprep.subr.bf16.mxu0 0
        %5593 = vmatpush1.bf16.msra.mxu0 0
        %5594 = vmatprep.subr.bf16.mxu0 0
        %5595 = vmatpush1.bf16.msra.mxu0 0
        %5596 = vmatprep.subr.bf16.mxu0 0
        %5597 = vmatpush1.bf16.msra.mxu0 0
        %5598 = vmatprep.subr.bf16.mxu0 0
        %5599 = vmatpush1.bf16.msra.mxu0 0
        %5600 = vmatprep.subr.bf16.mxu0 0
        %5601 = vmatpush1.bf16.msra.mxu0 0
        %5602 = vmatprep.mubr.bf16.mxu0 0
        %5603 = vmatmul.mubr.bf16.gmra.mrb[0].mxu0 %v5568
        %v5604 = vpop.f32.mrb[0].mxu0
        %v5605 = vadd.f32 0.0, %v5604
        %v5606 = vpop.f32.mrb[0].mxu0
        %v5607 = vadd.f32 0.0, %v5606
        %v5608 = vpop.f32.mrb[0].mxu0
        %v5609 = vpop.f32.mrb[0].mxu0
        %5610 = vdwg.mxu0
        %v5611 = vpack.c.bf16 %v5605, %v5605
        %v5612 = vpack.c.bf16 %v5607, %v5607
        %s5613 = scalar_lea.vmem %s13, 256
        %v5614 = vld [vmem:[%s5613] sm:$0xf]
        %v5615 = vld [vmem:[%s5613 + $0x4] sm:$0xf]
        %v5616 = vld [vmem:[%s5613 + $0x8] sm:$0xf]
        %v5617 = vld [vmem:[%s5613 + $0xc] sm:$0xf]
        %v5618 = vld [vmem:[%s5613 + $0x10] sm:$0xf]
        %v5619 = vld [vmem:[%s5613 + $0x14] sm:$0xf]
        %v5620 = vld [vmem:[%s5613 + $0x18] sm:$0xf]
        %v5621 = vld [vmem:[%s5613 + $0x1c] sm:$0xf]
        %v5622 = vld [vmem:[%s5613 + $0x20] sm:$0xf]
        %v5623 = vld [vmem:[%s5613 + $0x24] sm:$0xf]
        %v5624 = vld [vmem:[%s5613 + $0x28] sm:$0xf]
        %v5625 = vld [vmem:[%s5613 + $0x2c] sm:$0xf]
        %v5626 = vld [vmem:[%s5613 + $0x30] sm:$0xf]
        %v5627 = vld [vmem:[%s5613 + $0x34] sm:$0xf]
        %v5628 = vld [vmem:[%s5613 + $0x38] sm:$0xf]
        %v5629 = vld [vmem:[%s5613 + $0x3c] sm:$0xf]
        %v5630 = vld [vmem:[%s5613 + $0x40] sm:$0xf]
        %v5631 = vld [vmem:[%s5613 + $0x44] sm:$0xf]
        %v5632 = vld [vmem:[%s5613 + $0x48] sm:$0xf]
        %v5633 = vld [vmem:[%s5613 + $0x4c] sm:$0xf]
        %v5634 = vld [vmem:[%s5613 + $0x50] sm:$0xf]
        %v5635 = vld [vmem:[%s5613 + $0x54] sm:$0xf]
        %v5636 = vld [vmem:[%s5613 + $0x58] sm:$0xf]
        %v5637 = vld [vmem:[%s5613 + $0x5c] sm:$0xf]
        %v5638 = vld [vmem:[%s5613 + $0x60] sm:$0xf]
        %v5639 = vld [vmem:[%s5613 + $0x64] sm:$0xf]
        %v5640 = vld [vmem:[%s5613 + $0x68] sm:$0xf]
        %v5641 = vld [vmem:[%s5613 + $0x6c] sm:$0xf]
        %v5642 = vld [vmem:[%s5613 + $0x70] sm:$0xf]
        %v5643 = vld [vmem:[%s5613 + $0x74] sm:$0xf]
        %v5644 = vld [vmem:[%s5613 + $0x78] sm:$0xf]
        %v5645 = vld [vmem:[%s5613 + $0x7c] sm:$0xf]
        %v5678 = vunpack.c.l.b16 %v5614
        %v5679 = vunpack.c.l.b16 %v5615
        %v5680 = vunpack.c.l.b16 %v5616
        %v5681 = vunpack.c.l.b16 %v5617
        %v5682 = vunpack.c.l.b16 %v5618
        %v5683 = vunpack.c.l.b16 %v5619
        %v5684 = vunpack.c.l.b16 %v5620
        %v5685 = vunpack.c.l.b16 %v5621
        %v5686 = vunpack.c.l.b16 %v5622
        %v5687 = vunpack.c.l.b16 %v5623
        %v5688 = vunpack.c.l.b16 %v5624
        %v5689 = vunpack.c.l.b16 %v5625
        %v5690 = vunpack.c.l.b16 %v5626
        %v5691 = vunpack.c.l.b16 %v5627
        %v5692 = vunpack.c.l.b16 %v5628
        %v5693 = vunpack.c.l.b16 %v5629
        %v5694 = vunpack.c.l.b16 %v5630
        %v5695 = vunpack.c.l.b16 %v5631
        %v5696 = vunpack.c.l.b16 %v5632
        %v5697 = vunpack.c.l.b16 %v5633
        %v5698 = vunpack.c.l.b16 %v5634
        %v5699 = vunpack.c.l.b16 %v5635
        %v5700 = vunpack.c.l.b16 %v5636
        %v5701 = vunpack.c.l.b16 %v5637
        %v5702 = vunpack.c.l.b16 %v5638
        %v5703 = vunpack.c.l.b16 %v5639
        %v5704 = vunpack.c.l.b16 %v5640
        %v5705 = vunpack.c.l.b16 %v5641
        %v5706 = vunpack.c.l.b16 %v5642
        %v5707 = vunpack.c.l.b16 %v5643
        %v5708 = vunpack.c.l.b16 %v5644
        %v5709 = vunpack.c.l.b16 %v5645
        %v5710 = vpack.c.b16 %v5679, %v5678
        %v5711 = vpack.c.b16 %v5681, %v5680
        %v5712 = vpack.c.b16 %v5683, %v5682
        %v5713 = vpack.c.b16 %v5685, %v5684
        %v5714 = vpack.c.b16 %v5687, %v5686
        %v5715 = vpack.c.b16 %v5689, %v5688
        %v5716 = vpack.c.b16 %v5691, %v5690
        %v5717 = vpack.c.b16 %v5693, %v5692
        %v5718 = vpack.c.b16 %v5695, %v5694
        %v5719 = vpack.c.b16 %v5697, %v5696
        %v5720 = vpack.c.b16 %v5699, %v5698
        %v5721 = vpack.c.b16 %v5701, %v5700
        %v5722 = vpack.c.b16 %v5703, %v5702
        %v5723 = vpack.c.b16 %v5705, %v5704
        %v5724 = vpack.c.b16 %v5707, %v5706
        %v5725 = vpack.c.b16 %v5709, %v5708
        %5742 = vmatprep.subr.bf16.mxu0 0
        %5743 = vmatpush1.bf16.msra.mxu0 %v5710
        %5744 = vmatprep.subr.bf16.mxu0 0
        %5745 = vmatpush1.bf16.msra.mxu0 %v5711
        %5746 = vmatprep.subr.bf16.mxu0 0
        %5747 = vmatpush1.bf16.msra.mxu0 %v5712
        %5748 = vmatprep.subr.bf16.mxu0 0
        %5749 = vmatpush1.bf16.msra.mxu0 %v5713
        %5750 = vmatprep.subr.bf16.mxu0 0
        %5751 = vmatpush1.bf16.msra.mxu0 %v5714
        %5752 = vmatprep.subr.bf16.mxu0 0
        %5753 = vmatpush1.bf16.msra.mxu0 %v5715
        %5754 = vmatprep.subr.bf16.mxu0 0
        %5755 = vmatpush1.bf16.msra.mxu0 %v5716
        %5756 = vmatprep.subr.bf16.mxu0 0
        %5757 = vmatpush1.bf16.msra.mxu0 %v5717
        %5758 = vmatprep.subr.bf16.mxu0 0
        %5759 = vmatpush1.bf16.msra.mxu0 %v5718
        %5760 = vmatprep.subr.bf16.mxu0 0
        %5761 = vmatpush1.bf16.msra.mxu0 %v5719
        %5762 = vmatprep.subr.bf16.mxu0 0
        %5763 = vmatpush1.bf16.msra.mxu0 %v5720
        %5764 = vmatprep.subr.bf16.mxu0 0
        %5765 = vmatpush1.bf16.msra.mxu0 %v5721
        %5766 = vmatprep.subr.bf16.mxu0 0
        %5767 = vmatpush1.bf16.msra.mxu0 %v5722
        %5768 = vmatprep.subr.bf16.mxu0 0
        %5769 = vmatpush1.bf16.msra.mxu0 %v5723
        %5770 = vmatprep.subr.bf16.mxu0 0
        %5771 = vmatpush1.bf16.msra.mxu0 %v5724
        %5772 = vmatprep.subr.bf16.mxu0 0
        %5773 = vmatpush1.bf16.msra.mxu0 %v5725
        %5774 = vmatprep.mubr.bf16.mxu0 %v5612
        %5775 = vmatmul.mubr.bf16.gmra.mrb[0].mxu0 %v5611
        %v5776 = vpop.f32.mrb[0].mxu0
        %v5777 = vadd.f32 0.0, %v5776
        %v5778 = vpop.f32.mrb[0].mxu0
        %v5779 = vpop.f32.mrb[0].mxu0
        %v5780 = vpop.f32.mrb[0].mxu0
        %5781 = vdwg.mxu0
        %v5782 = vadd.f32 %v5560, %v5777
        %s5783 = scalar_lea.vmem [#allocation14], 6
        %v5784 = vld [vmem:[%s5783] sm:$0x3]
        %v5786 = vsel %vm5133, %v5784, 0
        %5788 = vmatprep.subr.bf16.mxu0 %v5129
        %5789 = vmatpush1.bf16.msra.mxu0 %v5128
        %5790 = vmatprep.subr.bf16.mxu0 %v5131
        %5791 = vmatpush1.bf16.msra.mxu0 %v5130
        %5792 = vmatprep.subr.bf16.mxu0 0
        %5793 = vmatpush1.bf16.msra.mxu0 0
        %5794 = vmatprep.subr.bf16.mxu0 0
        %5795 = vmatpush1.bf16.msra.mxu0 0
        %5796 = vmatprep.subr.bf16.mxu0 0
        %5797 = vmatpush1.bf16.msra.mxu0 0
        %5798 = vmatprep.subr.bf16.mxu0 0
        %5799 = vmatpush1.bf16.msra.mxu0 0
        %5800 = vmatprep.subr.bf16.mxu0 0
        %5801 = vmatpush1.bf16.msra.mxu0 0
        %5802 = vmatprep.subr.bf16.mxu0 0
        %5803 = vmatpush1.bf16.msra.mxu0 0
        %5804 = vmatprep.subr.bf16.mxu0 0
        %5805 = vmatpush1.bf16.msra.mxu0 0
        %5806 = vmatprep.subr.bf16.mxu0 0
        %5807 = vmatpush1.bf16.msra.mxu0 0
        %5808 = vmatprep.subr.bf16.mxu0 0
        %5809 = vmatpush1.bf16.msra.mxu0 0
        %5810 = vmatprep.subr.bf16.mxu0 0
        %5811 = vmatpush1.bf16.msra.mxu0 0
        %5812 = vmatprep.subr.bf16.mxu0 0
        %5813 = vmatpush1.bf16.msra.mxu0 0
        %5814 = vmatprep.subr.bf16.mxu0 0
        %5815 = vmatpush1.bf16.msra.mxu0 0
        %5816 = vmatprep.subr.bf16.mxu0 0
        %5817 = vmatpush1.bf16.msra.mxu0 0
        %5818 = vmatprep.subr.bf16.mxu0 0
        %5819 = vmatpush1.bf16.msra.mxu0 0
        %5820 = vmatprep.mubr.bf16.mxu0 0
        %5821 = vmatmul.mubr.bf16.gmra.mrb[0].mxu0 %v5786
        %v5822 = vpop.f32.mrb[0].mxu0
        %v5823 = vadd.f32 0.0, %v5822
        %v5824 = vpop.f32.mrb[0].mxu0
        %v5825 = vadd.f32 0.0, %v5824
        %v5826 = vpop.f32.mrb[0].mxu0
        %v5827 = vpop.f32.mrb[0].mxu0
        %5828 = vdwg.mxu0
        %v5829 = vpack.c.bf16 %v5823, %v5823
        %v5830 = vpack.c.bf16 %v5825, %v5825
        %s5831 = scalar_lea.vmem %s13, 384
        %v5832 = vld [vmem:[%s5831] sm:$0xf]
        %v5833 = vld [vmem:[%s5831 + $0x4] sm:$0xf]
        %v5834 = vld [vmem:[%s5831 + $0x8] sm:$0xf]
        %v5835 = vld [vmem:[%s5831 + $0xc] sm:$0xf]
        %v5836 = vld [vmem:[%s5831 + $0x10] sm:$0xf]
        %v5837 = vld [vmem:[%s5831 + $0x14] sm:$0xf]
        %v5838 = vld [vmem:[%s5831 + $0x18] sm:$0xf]
        %v5839 = vld [vmem:[%s5831 + $0x1c] sm:$0xf]
        %v5840 = vld [vmem:[%s5831 + $0x20] sm:$0xf]
        %v5841 = vld [vmem:[%s5831 + $0x24] sm:$0xf]
        %v5842 = vld [vmem:[%s5831 + $0x28] sm:$0xf]
        %v5843 = vld [vmem:[%s5831 + $0x2c] sm:$0xf]
        %v5844 = vld [vmem:[%s5831 + $0x30] sm:$0xf]
        %v5845 = vld [vmem:[%s5831 + $0x34] sm:$0xf]
        %v5846 = vld [vmem:[%s5831 + $0x38] sm:$0xf]
        %v5847 = vld [vmem:[%s5831 + $0x3c] sm:$0xf]
        %v5848 = vld [vmem:[%s5831 + $0x40] sm:$0xf]
        %v5849 = vld [vmem:[%s5831 + $0x44] sm:$0xf]
        %v5850 = vld [vmem:[%s5831 + $0x48] sm:$0xf]
        %v5851 = vld [vmem:[%s5831 + $0x4c] sm:$0xf]
        %v5852 = vld [vmem:[%s5831 + $0x50] sm:$0xf]
        %v5853 = vld [vmem:[%s5831 + $0x54] sm:$0xf]
        %v5854 = vld [vmem:[%s5831 + $0x58] sm:$0xf]
        %v5855 = vld [vmem:[%s5831 + $0x5c] sm:$0xf]
        %v5856 = vld [vmem:[%s5831 + $0x60] sm:$0xf]
        %v5857 = vld [vmem:[%s5831 + $0x64] sm:$0xf]
        %v5858 = vld [vmem:[%s5831 + $0x68] sm:$0xf]
        %v5859 = vld [vmem:[%s5831 + $0x6c] sm:$0xf]
        %v5860 = vld [vmem:[%s5831 + $0x70] sm:$0xf]
        %v5861 = vld [vmem:[%s5831 + $0x74] sm:$0xf]
        %v5862 = vld [vmem:[%s5831 + $0x78] sm:$0xf]
        %v5863 = vld [vmem:[%s5831 + $0x7c] sm:$0xf]
        %v5896 = vunpack.c.l.b16 %v5832
        %v5897 = vunpack.c.l.b16 %v5833
        %v5898 = vunpack.c.l.b16 %v5834
        %v5899 = vunpack.c.l.b16 %v5835
        %v5900 = vunpack.c.l.b16 %v5836
        %v5901 = vunpack.c.l.b16 %v5837
        %v5902 = vunpack.c.l.b16 %v5838
        %v5903 = vunpack.c.l.b16 %v5839
        %v5904 = vunpack.c.l.b16 %v5840
        %v5905 = vunpack.c.l.b16 %v5841
        %v5906 = vunpack.c.l.b16 %v5842
        %v5907 = vunpack.c.l.b16 %v5843
        %v5908 = vunpack.c.l.b16 %v5844
        %v5909 = vunpack.c.l.b16 %v5845
        %v5910 = vunpack.c.l.b16 %v5846
        %v5911 = vunpack.c.l.b16 %v5847
        %v5912 = vunpack.c.l.b16 %v5848
        %v5913 = vunpack.c.l.b16 %v5849
        %v5914 = vunpack.c.l.b16 %v5850
        %v5915 = vunpack.c.l.b16 %v5851
        %v5916 = vunpack.c.l.b16 %v5852
        %v5917 = vunpack.c.l.b16 %v5853
        %v5918 = vunpack.c.l.b16 %v5854
        %v5919 = vunpack.c.l.b16 %v5855
        %v5920 = vunpack.c.l.b16 %v5856
        %v5921 = vunpack.c.l.b16 %v5857
        %v5922 = vunpack.c.l.b16 %v5858
        %v5923 = vunpack.c.l.b16 %v5859
        %v5924 = vunpack.c.l.b16 %v5860
        %v5925 = vunpack.c.l.b16 %v5861
        %v5926 = vunpack.c.l.b16 %v5862
        %v5927 = vunpack.c.l.b16 %v5863
        %v5928 = vpack.c.b16 %v5897, %v5896
        %v5929 = vpack.c.b16 %v5899, %v5898
        %v5930 = vpack.c.b16 %v5901, %v5900
        %v5931 = vpack.c.b16 %v5903, %v5902
        %v5932 = vpack.c.b16 %v5905, %v5904
        %v5933 = vpack.c.b16 %v5907, %v5906
        %v5934 = vpack.c.b16 %v5909, %v5908
        %v5935 = vpack.c.b16 %v5911, %v5910
        %v5936 = vpack.c.b16 %v5913, %v5912
        %v5937 = vpack.c.b16 %v5915, %v5914
        %v5938 = vpack.c.b16 %v5917, %v5916
        %v5939 = vpack.c.b16 %v5919, %v5918
        %v5940 = vpack.c.b16 %v5921, %v5920
        %v5941 = vpack.c.b16 %v5923, %v5922
        %v5942 = vpack.c.b16 %v5925, %v5924
        %v5943 = vpack.c.b16 %v5927, %v5926
        %5960 = vmatprep.subr.bf16.mxu0 0
        %5961 = vmatpush1.bf16.msra.mxu0 %v5928
        %5962 = vmatprep.subr.bf16.mxu0 0
        %5963 = vmatpush1.bf16.msra.mxu0 %v5929
        %5964 = vmatprep.subr.bf16.mxu0 0
        %5965 = vmatpush1.bf16.msra.mxu0 %v5930
        %5966 = vmatprep.subr.bf16.mxu0 0
        %5967 = vmatpush1.bf16.msra.mxu0 %v5931
        %5968 = vmatprep.subr.bf16.mxu0 0
        %5969 = vmatpush1.bf16.msra.mxu0 %v5932
        %5970 = vmatprep.subr.bf16.mxu0 0
        %5971 = vmatpush1.bf16.msra.mxu0 %v5933
        %5972 = vmatprep.subr.bf16.mxu0 0
        %5973 = vmatpush1.bf16.msra.mxu0 %v5934
        %5974 = vmatprep.subr.bf16.mxu0 0
        %5975 = vmatpush1.bf16.msra.mxu0 %v5935
        %5976 = vmatprep.subr.bf16.mxu0 0
        %5977 = vmatpush1.bf16.msra.mxu0 %v5936
        %5978 = vmatprep.subr.bf16.mxu0 0
        %5979 = vmatpush1.bf16.msra.mxu0 %v5937
        %5980 = vmatprep.subr.bf16.mxu0 0
        %5981 = vmatpush1.bf16.msra.mxu0 %v5938
        %5982 = vmatprep.subr.bf16.mxu0 0
        %5983 = vmatpush1.bf16.msra.mxu0 %v5939
        %5984 = vmatprep.subr.bf16.mxu0 0
        %5985 = vmatpush1.bf16.msra.mxu0 %v5940
        %5986 = vmatprep.subr.bf16.mxu0 0
        %5987 = vmatpush1.bf16.msra.mxu0 %v5941
        %5988 = vmatprep.subr.bf16.mxu0 0
        %5989 = vmatpush1.bf16.msra.mxu0 %v5942
        %5990 = vmatprep.subr.bf16.mxu0 0
        %5991 = vmatpush1.bf16.msra.mxu0 %v5943
        %5992 = vmatprep.mubr.bf16.mxu0 %v5830
        %5993 = vmatmul.mubr.bf16.gmra.mrb[0].mxu0 %v5829
        %v5994 = vpop.f32.mrb[0].mxu0
        %v5995 = vadd.f32 0.0, %v5994
        %v5996 = vpop.f32.mrb[0].mxu0
        %v5997 = vpop.f32.mrb[0].mxu0
        %v5998 = vpop.f32.mrb[0].mxu0
        %5999 = vdwg.mxu0
        %v6000 = vadd.f32 %v5782, %v5995
        %s6001 = scalar_lea.vmem [#allocation14], 8
        %v6002 = vld [vmem:[%s6001] sm:$0x3]
        %v6004 = vsel %vm5133, %v6002, 0
        %6006 = vmatprep.subr.bf16.mxu0 %v5129
        %6007 = vmatpush1.bf16.msra.mxu0 %v5128
        %6008 = vmatprep.subr.bf16.mxu0 %v5131
        %6009 = vmatpush1.bf16.msra.mxu0 %v5130
        %6010 = vmatprep.subr.bf16.mxu0 0
        %6011 = vmatpush1.bf16.msra.mxu0 0
        %6012 = vmatprep.subr.bf16.mxu0 0
        %6013 = vmatpush1.bf16.msra.mxu0 0
        %6014 = vmatprep.subr.bf16.mxu0 0
        %6015 = vmatpush1.bf16.msra.mxu0 0
        %6016 = vmatprep.subr.bf16.mxu0 0
        %6017 = vmatpush1.bf16.msra.mxu0 0
        %6018 = vmatprep.subr.bf16.mxu0 0
        %6019 = vmatpush1.bf16.msra.mxu0 0
        %6020 = vmatprep.subr.bf16.mxu0 0
        %6021 = vmatpush1.bf16.msra.mxu0 0
        %6022 = vmatprep.subr.bf16.mxu0 0
        %6023 = vmatpush1.bf16.msra.mxu0 0
        %6024 = vmatprep.subr.bf16.mxu0 0
        %6025 = vmatpush1.bf16.msra.mxu0 0
        %6026 = vmatprep.subr.bf16.mxu0 0
        %6027 = vmatpush1.bf16.msra.mxu0 0
        %6028 = vmatprep.subr.bf16.mxu0 0
        %6029 = vmatpush1.bf16.msra.mxu0 0
        %6030 = vmatprep.subr.bf16.mxu0 0
        %6031 = vmatpush1.bf16.msra.mxu0 0
        %6032 = vmatprep.subr.bf16.mxu0 0
        %6033 = vmatpush1.bf16.msra.mxu0 0
        %6034 = vmatprep.subr.bf16.mxu0 0
        %6035 = vmatpush1.bf16.msra.mxu0 0
        %6036 = vmatprep.subr.bf16.mxu0 0
        %6037 = vmatpush1.bf16.msra.mxu0 0
        %6038 = vmatprep.mubr.bf16.mxu0 0
        %6039 = vmatmul.mubr.bf16.gmra.mrb[0].mxu0 %v6004
        %v6040 = vpop.f32.mrb[0].mxu0
        %v6041 = vadd.f32 0.0, %v6040
        %v6042 = vpop.f32.mrb[0].mxu0
        %v6043 = vadd.f32 0.0, %v6042
        %v6044 = vpop.f32.mrb[0].mxu0
        %v6045 = vpop.f32.mrb[0].mxu0
        %6046 = vdwg.mxu0
        %v6047 = vpack.c.bf16 %v6041, %v6041
        %v6048 = vpack.c.bf16 %v6043, %v6043
        %s6049 = scalar_lea.vmem %s13, 512
        %v6050 = vld [vmem:[%s6049] sm:$0xf]
        %v6051 = vld [vmem:[%s6049 + $0x4] sm:$0xf]
        %v6052 = vld [vmem:[%s6049 + $0x8] sm:$0xf]
        %v6053 = vld [vmem:[%s6049 + $0xc] sm:$0xf]
        %v6054 = vld [vmem:[%s6049 + $0x10] sm:$0xf]
        %v6055 = vld [vmem:[%s6049 + $0x14] sm:$0xf]
        %v6056 = vld [vmem:[%s6049 + $0x18] sm:$0xf]
        %v6057 = vld [vmem:[%s6049 + $0x1c] sm:$0xf]
        %v6058 = vld [vmem:[%s6049 + $0x20] sm:$0xf]
        %v6059 = vld [vmem:[%s6049 + $0x24] sm:$0xf]
        %v6060 = vld [vmem:[%s6049 + $0x28] sm:$0xf]
        %v6061 = vld [vmem:[%s6049 + $0x2c] sm:$0xf]
        %v6062 = vld [vmem:[%s6049 + $0x30] sm:$0xf]
        %v6063 = vld [vmem:[%s6049 + $0x34] sm:$0xf]
        %v6064 = vld [vmem:[%s6049 + $0x38] sm:$0xf]
        %v6065 = vld [vmem:[%s6049 + $0x3c] sm:$0xf]
        %v6066 = vld [vmem:[%s6049 + $0x40] sm:$0xf]
        %v6067 = vld [vmem:[%s6049 + $0x44] sm:$0xf]
        %v6068 = vld [vmem:[%s6049 + $0x48] sm:$0xf]
        %v6069 = vld [vmem:[%s6049 + $0x4c] sm:$0xf]
        %v6070 = vld [vmem:[%s6049 + $0x50] sm:$0xf]
        %v6071 = vld [vmem:[%s6049 + $0x54] sm:$0xf]
        %v6072 = vld [vmem:[%s6049 + $0x58] sm:$0xf]
        %v6073 = vld [vmem:[%s6049 + $0x5c] sm:$0xf]
        %v6074 = vld [vmem:[%s6049 + $0x60] sm:$0xf]
        %v6075 = vld [vmem:[%s6049 + $0x64] sm:$0xf]
        %v6076 = vld [vmem:[%s6049 + $0x68] sm:$0xf]
        %v6077 = vld [vmem:[%s6049 + $0x6c] sm:$0xf]
        %v6078 = vld [vmem:[%s6049 + $0x70] sm:$0xf]
        %v6079 = vld [vmem:[%s6049 + $0x74] sm:$0xf]
        %v6080 = vld [vmem:[%s6049 + $0x78] sm:$0xf]
        %v6081 = vld [vmem:[%s6049 + $0x7c] sm:$0xf]
        %v6114 = vunpack.c.l.b16 %v6050
        %v6115 = vunpack.c.l.b16 %v6051
        %v6116 = vunpack.c.l.b16 %v6052
        %v6117 = vunpack.c.l.b16 %v6053
        %v6118 = vunpack.c.l.b16 %v6054
        %v6119 = vunpack.c.l.b16 %v6055
        %v6120 = vunpack.c.l.b16 %v6056
        %v6121 = vunpack.c.l.b16 %v6057
        %v6122 = vunpack.c.l.b16 %v6058
        %v6123 = vunpack.c.l.b16 %v6059
        %v6124 = vunpack.c.l.b16 %v6060
        %v6125 = vunpack.c.l.b16 %v6061
        %v6126 = vunpack.c.l.b16 %v6062
        %v6127 = vunpack.c.l.b16 %v6063
        %v6128 = vunpack.c.l.b16 %v6064
        %v6129 = vunpack.c.l.b16 %v6065
        %v6130 = vunpack.c.l.b16 %v6066
        %v6131 = vunpack.c.l.b16 %v6067
        %v6132 = vunpack.c.l.b16 %v6068
        %v6133 = vunpack.c.l.b16 %v6069
        %v6134 = vunpack.c.l.b16 %v6070
        %v6135 = vunpack.c.l.b16 %v6071
        %v6136 = vunpack.c.l.b16 %v6072
        %v6137 = vunpack.c.l.b16 %v6073
        %v6138 = vunpack.c.l.b16 %v6074
        %v6139 = vunpack.c.l.b16 %v6075
        %v6140 = vunpack.c.l.b16 %v6076
        %v6141 = vunpack.c.l.b16 %v6077
        %v6142 = vunpack.c.l.b16 %v6078
        %v6143 = vunpack.c.l.b16 %v6079
        %v6144 = vunpack.c.l.b16 %v6080
        %v6145 = vunpack.c.l.b16 %v6081
        %v6146 = vpack.c.b16 %v6115, %v6114
        %v6147 = vpack.c.b16 %v6117, %v6116
        %v6148 = vpack.c.b16 %v6119, %v6118
        %v6149 = vpack.c.b16 %v6121, %v6120
        %v6150 = vpack.c.b16 %v6123, %v6122
        %v6151 = vpack.c.b16 %v6125, %v6124
        %v6152 = vpack.c.b16 %v6127, %v6126
        %v6153 = vpack.c.b16 %v6129, %v6128
        %v6154 = vpack.c.b16 %v6131, %v6130
        %v6155 = vpack.c.b16 %v6133, %v6132
        %v6156 = vpack.c.b16 %v6135, %v6134
        %v6157 = vpack.c.b16 %v6137, %v6136
        %v6158 = vpack.c.b16 %v6139, %v6138
        %v6159 = vpack.c.b16 %v6141, %v6140
        %v6160 = vpack.c.b16 %v6143, %v6142
        %v6161 = vpack.c.b16 %v6145, %v6144
        %6178 = vmatprep.subr.bf16.mxu0 0
        %6179 = vmatpush1.bf16.msra.mxu0 %v6146
        %6180 = vmatprep.subr.bf16.mxu0 0
        %6181 = vmatpush1.bf16.msra.mxu0 %v6147
        %6182 = vmatprep.subr.bf16.mxu0 0
        %6183 = vmatpush1.bf16.msra.mxu0 %v6148
        %6184 = vmatprep.subr.bf16.mxu0 0
        %6185 = vmatpush1.bf16.msra.mxu0 %v6149
        %6186 = vmatprep.subr.bf16.mxu0 0
        %6187 = vmatpush1.bf16.msra.mxu0 %v6150
        %6188 = vmatprep.subr.bf16.mxu0 0
        %6189 = vmatpush1.bf16.msra.mxu0 %v6151
        %6190 = vmatprep.subr.bf16.mxu0 0
        %6191 = vmatpush1.bf16.msra.mxu0 %v6152
        %6192 = vmatprep.subr.bf16.mxu0 0
        %6193 = vmatpush1.bf16.msra.mxu0 %v6153
        %6194 = vmatprep.subr.bf16.mxu0 0
        %6195 = vmatpush1.bf16.msra.mxu0 %v6154
        %6196 = vmatprep.subr.bf16.mxu0 0
        %6197 = vmatpush1.bf16.msra.mxu0 %v6155
        %6198 = vmatprep.subr.bf16.mxu0 0
        %6199 = vmatpush1.bf16.msra.mxu0 %v6156
        %6200 = vmatprep.subr.bf16.mxu0 0
        %6201 = vmatpush1.bf16.msra.mxu0 %v6157
        %6202 = vmatprep.subr.bf16.mxu0 0
        %6203 = vmatpush1.bf16.msra.mxu0 %v6158
        %6204 = vmatprep.subr.bf16.mxu0 0
        %6205 = vmatpush1.bf16.msra.mxu0 %v6159
        %6206 = vmatprep.subr.bf16.mxu0 0
        %6207 = vmatpush1.bf16.msra.mxu0 %v6160
        %6208 = vmatprep.subr.bf16.mxu0 0
        %6209 = vmatpush1.bf16.msra.mxu0 %v6161
        %6210 = vmatprep.mubr.bf16.mxu0 %v6048
        %6211 = vmatmul.mubr.bf16.gmra.mrb[0].mxu0 %v6047
        %v6212 = vpop.f32.mrb[0].mxu0
        %v6213 = vadd.f32 0.0, %v6212
        %v6214 = vpop.f32.mrb[0].mxu0
        %v6215 = vpop.f32.mrb[0].mxu0
        %v6216 = vpop.f32.mrb[0].mxu0
        %6217 = vdwg.mxu0
        %v6218 = vadd.f32 %v6000, %v6213
        %s6219 = scalar_lea.vmem [#allocation14], 10
        %v6220 = vld [vmem:[%s6219] sm:$0x3]
        %v6222 = vsel %vm5133, %v6220, 0
        %6224 = vmatprep.subr.bf16.mxu0 %v5129
        %6225 = vmatpush1.bf16.msra.mxu0 %v5128
        %6226 = vmatprep.subr.bf16.mxu0 %v5131
        %6227 = vmatpush1.bf16.msra.mxu0 %v5130
        %6228 = vmatprep.subr.bf16.mxu0 0
        %6229 = vmatpush1.bf16.msra.mxu0 0
        %6230 = vmatprep.subr.bf16.mxu0 0
        %6231 = vmatpush1.bf16.msra.mxu0 0
        %6232 = vmatprep.subr.bf16.mxu0 0
        %6233 = vmatpush1.bf16.msra.mxu0 0
        %6234 = vmatprep.subr.bf16.mxu0 0
        %6235 = vmatpush1.bf16.msra.mxu0 0
        %6236 = vmatprep.subr.bf16.mxu0 0
        %6237 = vmatpush1.bf16.msra.mxu0 0
        %6238 = vmatprep.subr.bf16.mxu0 0
        %6239 = vmatpush1.bf16.msra.mxu0 0
        %6240 = vmatprep.subr.bf16.mxu0 0
        %6241 = vmatpush1.bf16.msra.mxu0 0
        %6242 = vmatprep.subr.bf16.mxu0 0
        %6243 = vmatpush1.bf16.msra.mxu0 0
        %6244 = vmatprep.subr.bf16.mxu0 0
        %6245 = vmatpush1.bf16.msra.mxu0 0
        %6246 = vmatprep.subr.bf16.mxu0 0
        %6247 = vmatpush1.bf16.msra.mxu0 0
        %6248 = vmatprep.subr.bf16.mxu0 0
        %6249 = vmatpush1.bf16.msra.mxu0 0
        %6250 = vmatprep.subr.bf16.mxu0 0
        %6251 = vmatpush1.bf16.msra.mxu0 0
        %6252 = vmatprep.subr.bf16.mxu0 0
        %6253 = vmatpush1.bf16.msra.mxu0 0
        %6254 = vmatprep.subr.bf16.mxu0 0
        %6255 = vmatpush1.bf16.msra.mxu0 0
        %6256 = vmatprep.mubr.bf16.mxu0 0
        %6257 = vmatmul.mubr.bf16.gmra.mrb[0].mxu0 %v6222
        %v6258 = vpop.f32.mrb[0].mxu0
        %v6259 = vadd.f32 0.0, %v6258
        %v6260 = vpop.f32.mrb[0].mxu0
        %v6261 = vadd.f32 0.0, %v6260
        %v6262 = vpop.f32.mrb[0].mxu0
        %v6263 = vpop.f32.mrb[0].mxu0
        %6264 = vdwg.mxu0
        %v6265 = vpack.c.bf16 %v6259, %v6259
        %v6266 = vpack.c.bf16 %v6261, %v6261
        %s6267 = scalar_lea.vmem %s13, 640
        %v6268 = vld [vmem:[%s6267] sm:$0xf]
        %v6269 = vld [vmem:[%s6267 + $0x4] sm:$0xf]
        %v6270 = vld [vmem:[%s6267 + $0x8] sm:$0xf]
        %v6271 = vld [vmem:[%s6267 + $0xc] sm:$0xf]
        %v6272 = vld [vmem:[%s6267 + $0x10] sm:$0xf]
        %v6273 = vld [vmem:[%s6267 + $0x14] sm:$0xf]
        %v6274 = vld [vmem:[%s6267 + $0x18] sm:$0xf]
        %v6275 = vld [vmem:[%s6267 + $0x1c] sm:$0xf]
        %v6276 = vld [vmem:[%s6267 + $0x20] sm:$0xf]
        %v6277 = vld [vmem:[%s6267 + $0x24] sm:$0xf]
        %v6278 = vld [vmem:[%s6267 + $0x28] sm:$0xf]
        %v6279 = vld [vmem:[%s6267 + $0x2c] sm:$0xf]
        %v6280 = vld [vmem:[%s6267 + $0x30] sm:$0xf]
        %v6281 = vld [vmem:[%s6267 + $0x34] sm:$0xf]
        %v6282 = vld [vmem:[%s6267 + $0x38] sm:$0xf]
        %v6283 = vld [vmem:[%s6267 + $0x3c] sm:$0xf]
        %v6284 = vld [vmem:[%s6267 + $0x40] sm:$0xf]
        %v6285 = vld [vmem:[%s6267 + $0x44] sm:$0xf]
        %v6286 = vld [vmem:[%s6267 + $0x48] sm:$0xf]
        %v6287 = vld [vmem:[%s6267 + $0x4c] sm:$0xf]
        %v6288 = vld [vmem:[%s6267 + $0x50] sm:$0xf]
        %v6289 = vld [vmem:[%s6267 + $0x54] sm:$0xf]
        %v6290 = vld [vmem:[%s6267 + $0x58] sm:$0xf]
        %v6291 = vld [vmem:[%s6267 + $0x5c] sm:$0xf]
        %v6292 = vld [vmem:[%s6267 + $0x60] sm:$0xf]
        %v6293 = vld [vmem:[%s6267 + $0x64] sm:$0xf]
        %v6294 = vld [vmem:[%s6267 + $0x68] sm:$0xf]
        %v6295 = vld [vmem:[%s6267 + $0x6c] sm:$0xf]
        %v6296 = vld [vmem:[%s6267 + $0x70] sm:$0xf]
        %v6297 = vld [vmem:[%s6267 + $0x74] sm:$0xf]
        %v6298 = vld [vmem:[%s6267 + $0x78] sm:$0xf]
        %v6299 = vld [vmem:[%s6267 + $0x7c] sm:$0xf]
        %v6332 = vunpack.c.l.b16 %v6268
        %v6333 = vunpack.c.l.b16 %v6269
        %v6334 = vunpack.c.l.b16 %v6270
        %v6335 = vunpack.c.l.b16 %v6271
        %v6336 = vunpack.c.l.b16 %v6272
        %v6337 = vunpack.c.l.b16 %v6273
        %v6338 = vunpack.c.l.b16 %v6274
        %v6339 = vunpack.c.l.b16 %v6275
        %v6340 = vunpack.c.l.b16 %v6276
        %v6341 = vunpack.c.l.b16 %v6277
        %v6342 = vunpack.c.l.b16 %v6278
        %v6343 = vunpack.c.l.b16 %v6279
        %v6344 = vunpack.c.l.b16 %v6280
        %v6345 = vunpack.c.l.b16 %v6281
        %v6346 = vunpack.c.l.b16 %v6282
        %v6347 = vunpack.c.l.b16 %v6283
        %v6348 = vunpack.c.l.b16 %v6284
        %v6349 = vunpack.c.l.b16 %v6285
        %v6350 = vunpack.c.l.b16 %v6286
        %v6351 = vunpack.c.l.b16 %v6287
        %v6352 = vunpack.c.l.b16 %v6288
        %v6353 = vunpack.c.l.b16 %v6289
        %v6354 = vunpack.c.l.b16 %v6290
        %v6355 = vunpack.c.l.b16 %v6291
        %v6356 = vunpack.c.l.b16 %v6292
        %v6357 = vunpack.c.l.b16 %v6293
        %v6358 = vunpack.c.l.b16 %v6294
        %v6359 = vunpack.c.l.b16 %v6295
        %v6360 = vunpack.c.l.b16 %v6296
        %v6361 = vunpack.c.l.b16 %v6297
        %v6362 = vunpack.c.l.b16 %v6298
        %v6363 = vunpack.c.l.b16 %v6299
        %v6364 = vpack.c.b16 %v6333, %v6332
        %v6365 = vpack.c.b16 %v6335, %v6334
        %v6366 = vpack.c.b16 %v6337, %v6336
        %v6367 = vpack.c.b16 %v6339, %v6338
        %v6368 = vpack.c.b16 %v6341, %v6340
        %v6369 = vpack.c.b16 %v6343, %v6342
        %v6370 = vpack.c.b16 %v6345, %v6344
        %v6371 = vpack.c.b16 %v6347, %v6346
        %v6372 = vpack.c.b16 %v6349, %v6348
        %v6373 = vpack.c.b16 %v6351, %v6350
        %v6374 = vpack.c.b16 %v6353, %v6352
        %v6375 = vpack.c.b16 %v6355, %v6354
        %v6376 = vpack.c.b16 %v6357, %v6356
        %v6377 = vpack.c.b16 %v6359, %v6358
        %v6378 = vpack.c.b16 %v6361, %v6360
        %v6379 = vpack.c.b16 %v6363, %v6362
        %6396 = vmatprep.subr.bf16.mxu0 0
        %6397 = vmatpush1.bf16.msra.mxu0 %v6364
        %6398 = vmatprep.subr.bf16.mxu0 0
        %6399 = vmatpush1.bf16.msra.mxu0 %v6365
        %6400 = vmatprep.subr.bf16.mxu0 0
        %6401 = vmatpush1.bf16.msra.mxu0 %v6366
        %6402 = vmatprep.subr.bf16.mxu0 0
        %6403 = vmatpush1.bf16.msra.mxu0 %v6367
        %6404 = vmatprep.subr.bf16.mxu0 0
        %6405 = vmatpush1.bf16.msra.mxu0 %v6368
        %6406 = vmatprep.subr.bf16.mxu0 0
        %6407 = vmatpush1.bf16.msra.mxu0 %v6369
        %6408 = vmatprep.subr.bf16.mxu0 0
        %6409 = vmatpush1.bf16.msra.mxu0 %v6370
        %6410 = vmatprep.subr.bf16.mxu0 0
        %6411 = vmatpush1.bf16.msra.mxu0 %v6371
        %6412 = vmatprep.subr.bf16.mxu0 0
        %6413 = vmatpush1.bf16.msra.mxu0 %v6372
        %6414 = vmatprep.subr.bf16.mxu0 0
        %6415 = vmatpush1.bf16.msra.mxu0 %v6373
        %6416 = vmatprep.subr.bf16.mxu0 0
        %6417 = vmatpush1.bf16.msra.mxu0 %v6374
        %6418 = vmatprep.subr.bf16.mxu0 0
        %6419 = vmatpush1.bf16.msra.mxu0 %v6375
        %6420 = vmatprep.subr.bf16.mxu0 0
        %6421 = vmatpush1.bf16.msra.mxu0 %v6376
        %6422 = vmatprep.subr.bf16.mxu0 0
        %6423 = vmatpush1.bf16.msra.mxu0 %v6377
        %6424 = vmatprep.subr.bf16.mxu0 0
        %6425 = vmatpush1.bf16.msra.mxu0 %v6378
        %6426 = vmatprep.subr.bf16.mxu0 0
        %6427 = vmatpush1.bf16.msra.mxu0 %v6379
        %6428 = vmatprep.mubr.bf16.mxu0 %v6266
        %6429 = vmatmul.mubr.bf16.gmra.mrb[0].mxu0 %v6265
        %v6430 = vpop.f32.mrb[0].mxu0
        %v6431 = vadd.f32 0.0, %v6430
        %v6432 = vpop.f32.mrb[0].mxu0
        %v6433 = vpop.f32.mrb[0].mxu0
        %v6434 = vpop.f32.mrb[0].mxu0
        %6435 = vdwg.mxu0
        %v6436 = vadd.f32 %v6218, %v6431
        %s6437 = scalar_lea.vmem [#allocation14], 12
        %v6438 = vld [vmem:[%s6437] sm:$0x3]
        %v6440 = vsel %vm5133, %v6438, 0
        %6442 = vmatprep.subr.bf16.mxu0 %v5129
        %6443 = vmatpush1.bf16.msra.mxu0 %v5128
        %6444 = vmatprep.subr.bf16.mxu0 %v5131
        %6445 = vmatpush1.bf16.msra.mxu0 %v5130
        %6446 = vmatprep.subr.bf16.mxu0 0
        %6447 = vmatpush1.bf16.msra.mxu0 0
        %6448 = vmatprep.subr.bf16.mxu0 0
        %6449 = vmatpush1.bf16.msra.mxu0 0
        %6450 = vmatprep.subr.bf16.mxu0 0
        %6451 = vmatpush1.bf16.msra.mxu0 0
        %6452 = vmatprep.subr.bf16.mxu0 0
        %6453 = vmatpush1.bf16.msra.mxu0 0
        %6454 = vmatprep.subr.bf16.mxu0 0
        %6455 = vmatpush1.bf16.msra.mxu0 0
        %6456 = vmatprep.subr.bf16.mxu0 0
        %6457 = vmatpush1.bf16.msra.mxu0 0
        %6458 = vmatprep.subr.bf16.mxu0 0
        %6459 = vmatpush1.bf16.msra.mxu0 0
        %6460 = vmatprep.subr.bf16.mxu0 0
        %6461 = vmatpush1.bf16.msra.mxu0 0
        %6462 = vmatprep.subr.bf16.mxu0 0
        %6463 = vmatpush1.bf16.msra.mxu0 0
        %6464 = vmatprep.subr.bf16.mxu0 0
        %6465 = vmatpush1.bf16.msra.mxu0 0
        %6466 = vmatprep.subr.bf16.mxu0 0
        %6467 = vmatpush1.bf16.msra.mxu0 0
        %6468 = vmatprep.subr.bf16.mxu0 0
        %6469 = vmatpush1.bf16.msra.mxu0 0
        %6470 = vmatprep.subr.bf16.mxu0 0
        %6471 = vmatpush1.bf16.msra.mxu0 0
        %6472 = vmatprep.subr.bf16.mxu0 0
        %6473 = vmatpush1.bf16.msra.mxu0 0
        %6474 = vmatprep.mubr.bf16.mxu0 0
        %6475 = vmatmul.mubr.bf16.gmra.mrb[0].mxu0 %v6440
        %v6476 = vpop.f32.mrb[0].mxu0
        %v6477 = vadd.f32 0.0, %v6476
        %v6478 = vpop.f32.mrb[0].mxu0
        %v6479 = vadd.f32 0.0, %v6478
        %v6480 = vpop.f32.mrb[0].mxu0
        %v6481 = vpop.f32.mrb[0].mxu0
        %6482 = vdwg.mxu0
        %v6483 = vpack.c.bf16 %v6477, %v6477
        %v6484 = vpack.c.bf16 %v6479, %v6479
        %s6485 = scalar_lea.vmem %s13, 768
        %v6486 = vld [vmem:[%s6485] sm:$0xf]
        %v6487 = vld [vmem:[%s6485 + $0x4] sm:$0xf]
        %v6488 = vld [vmem:[%s6485 + $0x8] sm:$0xf]
        %v6489 = vld [vmem:[%s6485 + $0xc] sm:$0xf]
        %v6490 = vld [vmem:[%s6485 + $0x10] sm:$0xf]
        %v6491 = vld [vmem:[%s6485 + $0x14] sm:$0xf]
        %v6492 = vld [vmem:[%s6485 + $0x18] sm:$0xf]
        %v6493 = vld [vmem:[%s6485 + $0x1c] sm:$0xf]
        %v6494 = vld [vmem:[%s6485 + $0x20] sm:$0xf]
        %v6495 = vld [vmem:[%s6485 + $0x24] sm:$0xf]
        %v6496 = vld [vmem:[%s6485 + $0x28] sm:$0xf]
        %v6497 = vld [vmem:[%s6485 + $0x2c] sm:$0xf]
        %v6498 = vld [vmem:[%s6485 + $0x30] sm:$0xf]
        %v6499 = vld [vmem:[%s6485 + $0x34] sm:$0xf]
        %v6500 = vld [vmem:[%s6485 + $0x38] sm:$0xf]
        %v6501 = vld [vmem:[%s6485 + $0x3c] sm:$0xf]
        %v6502 = vld [vmem:[%s6485 + $0x40] sm:$0xf]
        %v6503 = vld [vmem:[%s6485 + $0x44] sm:$0xf]
        %v6504 = vld [vmem:[%s6485 + $0x48] sm:$0xf]
        %v6505 = vld [vmem:[%s6485 + $0x4c] sm:$0xf]
        %v6506 = vld [vmem:[%s6485 + $0x50] sm:$0xf]
        %v6507 = vld [vmem:[%s6485 + $0x54] sm:$0xf]
        %v6508 = vld [vmem:[%s6485 + $0x58] sm:$0xf]
        %v6509 = vld [vmem:[%s6485 + $0x5c] sm:$0xf]
        %v6510 = vld [vmem:[%s6485 + $0x60] sm:$0xf]
        %v6511 = vld [vmem:[%s6485 + $0x64] sm:$0xf]
        %v6512 = vld [vmem:[%s6485 + $0x68] sm:$0xf]
        %v6513 = vld [vmem:[%s6485 + $0x6c] sm:$0xf]
        %v6514 = vld [vmem:[%s6485 + $0x70] sm:$0xf]
        %v6515 = vld [vmem:[%s6485 + $0x74] sm:$0xf]
        %v6516 = vld [vmem:[%s6485 + $0x78] sm:$0xf]
        %v6517 = vld [vmem:[%s6485 + $0x7c] sm:$0xf]
        %v6550 = vunpack.c.l.b16 %v6486
        %v6551 = vunpack.c.l.b16 %v6487
        %v6552 = vunpack.c.l.b16 %v6488
        %v6553 = vunpack.c.l.b16 %v6489
        %v6554 = vunpack.c.l.b16 %v6490
        %v6555 = vunpack.c.l.b16 %v6491
        %v6556 = vunpack.c.l.b16 %v6492
        %v6557 = vunpack.c.l.b16 %v6493
        %v6558 = vunpack.c.l.b16 %v6494
        %v6559 = vunpack.c.l.b16 %v6495
        %v6560 = vunpack.c.l.b16 %v6496
        %v6561 = vunpack.c.l.b16 %v6497
        %v6562 = vunpack.c.l.b16 %v6498
        %v6563 = vunpack.c.l.b16 %v6499
        %v6564 = vunpack.c.l.b16 %v6500
        %v6565 = vunpack.c.l.b16 %v6501
        %v6566 = vunpack.c.l.b16 %v6502
        %v6567 = vunpack.c.l.b16 %v6503
        %v6568 = vunpack.c.l.b16 %v6504
        %v6569 = vunpack.c.l.b16 %v6505
        %v6570 = vunpack.c.l.b16 %v6506
        %v6571 = vunpack.c.l.b16 %v6507
        %v6572 = vunpack.c.l.b16 %v6508
        %v6573 = vunpack.c.l.b16 %v6509
        %v6574 = vunpack.c.l.b16 %v6510
        %v6575 = vunpack.c.l.b16 %v6511
        %v6576 = vunpack.c.l.b16 %v6512
        %v6577 = vunpack.c.l.b16 %v6513
        %v6578 = vunpack.c.l.b16 %v6514
        %v6579 = vunpack.c.l.b16 %v6515
        %v6580 = vunpack.c.l.b16 %v6516
        %v6581 = vunpack.c.l.b16 %v6517
        %v6582 = vpack.c.b16 %v6551, %v6550
        %v6583 = vpack.c.b16 %v6553, %v6552
        %v6584 = vpack.c.b16 %v6555, %v6554
        %v6585 = vpack.c.b16 %v6557, %v6556
        %v6586 = vpack.c.b16 %v6559, %v6558
        %v6587 = vpack.c.b16 %v6561, %v6560
        %v6588 = vpack.c.b16 %v6563, %v6562
        %v6589 = vpack.c.b16 %v6565, %v6564
        %v6590 = vpack.c.b16 %v6567, %v6566
        %v6591 = vpack.c.b16 %v6569, %v6568
        %v6592 = vpack.c.b16 %v6571, %v6570
        %v6593 = vpack.c.b16 %v6573, %v6572
        %v6594 = vpack.c.b16 %v6575, %v6574
        %v6595 = vpack.c.b16 %v6577, %v6576
        %v6596 = vpack.c.b16 %v6579, %v6578
        %v6597 = vpack.c.b16 %v6581, %v6580
        %6614 = vmatprep.subr.bf16.mxu0 0
        %6615 = vmatpush1.bf16.msra.mxu0 %v6582
        %6616 = vmatprep.subr.bf16.mxu0 0
        %6617 = vmatpush1.bf16.msra.mxu0 %v6583
        %6618 = vmatprep.subr.bf16.mxu0 0
        %6619 = vmatpush1.bf16.msra.mxu0 %v6584
        %6620 = vmatprep.subr.bf16.mxu0 0
        %6621 = vmatpush1.bf16.msra.mxu0 %v6585
        %6622 = vmatprep.subr.bf16.mxu0 0
        %6623 = vmatpush1.bf16.msra.mxu0 %v6586
        %6624 = vmatprep.subr.bf16.mxu0 0
        %6625 = vmatpush1.bf16.msra.mxu0 %v6587
        %6626 = vmatprep.subr.bf16.mxu0 0
        %6627 = vmatpush1.bf16.msra.mxu0 %v6588
        %6628 = vmatprep.subr.bf16.mxu0 0
        %6629 = vmatpush1.bf16.msra.mxu0 %v6589
        %6630 = vmatprep.subr.bf16.mxu0 0
        %6631 = vmatpush1.bf16.msra.mxu0 %v6590
        %6632 = vmatprep.subr.bf16.mxu0 0
        %6633 = vmatpush1.bf16.msra.mxu0 %v6591
        %6634 = vmatprep.subr.bf16.mxu0 0
        %6635 = vmatpush1.bf16.msra.mxu0 %v6592
        %6636 = vmatprep.subr.bf16.mxu0 0
        %6637 = vmatpush1.bf16.msra.mxu0 %v6593
        %6638 = vmatprep.subr.bf16.mxu0 0
        %6639 = vmatpush1.bf16.msra.mxu0 %v6594
        %6640 = vmatprep.subr.bf16.mxu0 0
        %6641 = vmatpush1.bf16.msra.mxu0 %v6595
        %6642 = vmatprep.subr.bf16.mxu0 0
        %6643 = vmatpush1.bf16.msra.mxu0 %v6596
        %6644 = vmatprep.subr.bf16.mxu0 0
        %6645 = vmatpush1.bf16.msra.mxu0 %v6597
        %6646 = vmatprep.mubr.bf16.mxu0 %v6484
        %6647 = vmatmul.mubr.bf16.gmra.mrb[0].mxu0 %v6483
        %v6648 = vpop.f32.mrb[0].mxu0
        %v6649 = vadd.f32 0.0, %v6648
        %v6650 = vpop.f32.mrb[0].mxu0
        %v6651 = vpop.f32.mrb[0].mxu0
        %v6652 = vpop.f32.mrb[0].mxu0
        %6653 = vdwg.mxu0
        %v6654 = vadd.f32 %v6436, %v6649
        %s6655 = scalar_lea.vmem [#allocation14], 14
        %v6656 = vld [vmem:[%s6655] sm:$0x3]
        %v6658 = vsel %vm5133, %v6656, 0
        %6660 = vmatprep.subr.bf16.mxu0 %v5129
        %6661 = vmatpush1.bf16.msra.mxu0 %v5128
        %6662 = vmatprep.subr.bf16.mxu0 %v5131
        %6663 = vmatpush1.bf16.msra.mxu0 %v5130
        %6664 = vmatprep.subr.bf16.mxu0 0
        %6665 = vmatpush1.bf16.msra.mxu0 0
        %6666 = vmatprep.subr.bf16.mxu0 0
        %6667 = vmatpush1.bf16.msra.mxu0 0
        %6668 = vmatprep.subr.bf16.mxu0 0
        %6669 = vmatpush1.bf16.msra.mxu0 0
        %6670 = vmatprep.subr.bf16.mxu0 0
        %6671 = vmatpush1.bf16.msra.mxu0 0
        %6672 = vmatprep.subr.bf16.mxu0 0
        %6673 = vmatpush1.bf16.msra.mxu0 0
        %6674 = vmatprep.subr.bf16.mxu0 0
        %6675 = vmatpush1.bf16.msra.mxu0 0
        %6676 = vmatprep.subr.bf16.mxu0 0
        %6677 = vmatpush1.bf16.msra.mxu0 0
        %6678 = vmatprep.subr.bf16.mxu0 0
        %6679 = vmatpush1.bf16.msra.mxu0 0
        %6680 = vmatprep.subr.bf16.mxu0 0
        %6681 = vmatpush1.bf16.msra.mxu0 0
        %6682 = vmatprep.subr.bf16.mxu0 0
        %6683 = vmatpush1.bf16.msra.mxu0 0
        %6684 = vmatprep.subr.bf16.mxu0 0
        %6685 = vmatpush1.bf16.msra.mxu0 0
        %6686 = vmatprep.subr.bf16.mxu0 0
        %6687 = vmatpush1.bf16.msra.mxu0 0
        %6688 = vmatprep.subr.bf16.mxu0 0
        %6689 = vmatpush1.bf16.msra.mxu0 0
        %6690 = vmatprep.subr.bf16.mxu0 0
        %6691 = vmatpush1.bf16.msra.mxu0 0
        %6692 = vmatprep.mubr.bf16.mxu0 0
        %6693 = vmatmul.mubr.bf16.gmra.mrb[0].mxu0 %v6658
        %v6694 = vpop.f32.mrb[0].mxu0
        %v6695 = vadd.f32 0.0, %v6694
        %v6696 = vpop.f32.mrb[0].mxu0
        %v6697 = vadd.f32 0.0, %v6696
        %v6698 = vpop.f32.mrb[0].mxu0
        %v6699 = vpop.f32.mrb[0].mxu0
        %6700 = vdwg.mxu0
        %v6701 = vpack.c.bf16 %v6695, %v6695
        %v6702 = vpack.c.bf16 %v6697, %v6697
        %s6703 = scalar_lea.vmem %s13, 896
        %v6704 = vld [vmem:[%s6703] sm:$0xf]
        %v6705 = vld [vmem:[%s6703 + $0x4] sm:$0xf]
        %v6706 = vld [vmem:[%s6703 + $0x8] sm:$0xf]
        %v6707 = vld [vmem:[%s6703 + $0xc] sm:$0xf]
        %v6708 = vld [vmem:[%s6703 + $0x10] sm:$0xf]
        %v6709 = vld [vmem:[%s6703 + $0x14] sm:$0xf]
        %v6710 = vld [vmem:[%s6703 + $0x18] sm:$0xf]
        %v6711 = vld [vmem:[%s6703 + $0x1c] sm:$0xf]
        %v6712 = vld [vmem:[%s6703 + $0x20] sm:$0xf]
        %v6713 = vld [vmem:[%s6703 + $0x24] sm:$0xf]
        %v6714 = vld [vmem:[%s6703 + $0x28] sm:$0xf]
        %v6715 = vld [vmem:[%s6703 + $0x2c] sm:$0xf]
        %v6716 = vld [vmem:[%s6703 + $0x30] sm:$0xf]
        %v6717 = vld [vmem:[%s6703 + $0x34] sm:$0xf]
        %v6718 = vld [vmem:[%s6703 + $0x38] sm:$0xf]
        %v6719 = vld [vmem:[%s6703 + $0x3c] sm:$0xf]
        %v6720 = vld [vmem:[%s6703 + $0x40] sm:$0xf]
        %v6721 = vld [vmem:[%s6703 + $0x44] sm:$0xf]
        %v6722 = vld [vmem:[%s6703 + $0x48] sm:$0xf]
        %v6723 = vld [vmem:[%s6703 + $0x4c] sm:$0xf]
        %v6724 = vld [vmem:[%s6703 + $0x50] sm:$0xf]
        %v6725 = vld [vmem:[%s6703 + $0x54] sm:$0xf]
        %v6726 = vld [vmem:[%s6703 + $0x58] sm:$0xf]
        %v6727 = vld [vmem:[%s6703 + $0x5c] sm:$0xf]
        %v6728 = vld [vmem:[%s6703 + $0x60] sm:$0xf]
        %v6729 = vld [vmem:[%s6703 + $0x64] sm:$0xf]
        %v6730 = vld [vmem:[%s6703 + $0x68] sm:$0xf]
        %v6731 = vld [vmem:[%s6703 + $0x6c] sm:$0xf]
        %v6732 = vld [vmem:[%s6703 + $0x70] sm:$0xf]
        %v6733 = vld [vmem:[%s6703 + $0x74] sm:$0xf]
        %v6734 = vld [vmem:[%s6703 + $0x78] sm:$0xf]
        %v6735 = vld [vmem:[%s6703 + $0x7c] sm:$0xf]
        %v6768 = vunpack.c.l.b16 %v6704
        %v6769 = vunpack.c.l.b16 %v6705
        %v6770 = vunpack.c.l.b16 %v6706
        %v6771 = vunpack.c.l.b16 %v6707
        %v6772 = vunpack.c.l.b16 %v6708
        %v6773 = vunpack.c.l.b16 %v6709
        %v6774 = vunpack.c.l.b16 %v6710
        %v6775 = vunpack.c.l.b16 %v6711
        %v6776 = vunpack.c.l.b16 %v6712
        %v6777 = vunpack.c.l.b16 %v6713
        %v6778 = vunpack.c.l.b16 %v6714
        %v6779 = vunpack.c.l.b16 %v6715
        %v6780 = vunpack.c.l.b16 %v6716
        %v6781 = vunpack.c.l.b16 %v6717
        %v6782 = vunpack.c.l.b16 %v6718
        %v6783 = vunpack.c.l.b16 %v6719
        %v6784 = vunpack.c.l.b16 %v6720
        %v6785 = vunpack.c.l.b16 %v6721
        %v6786 = vunpack.c.l.b16 %v6722
        %v6787 = vunpack.c.l.b16 %v6723
        %v6788 = vunpack.c.l.b16 %v6724
        %v6789 = vunpack.c.l.b16 %v6725
        %v6790 = vunpack.c.l.b16 %v6726
        %v6791 = vunpack.c.l.b16 %v6727
        %v6792 = vunpack.c.l.b16 %v6728
        %v6793 = vunpack.c.l.b16 %v6729
        %v6794 = vunpack.c.l.b16 %v6730
        %v6795 = vunpack.c.l.b16 %v6731
        %v6796 = vunpack.c.l.b16 %v6732
        %v6797 = vunpack.c.l.b16 %v6733
        %v6798 = vunpack.c.l.b16 %v6734
        %v6799 = vunpack.c.l.b16 %v6735
        %v6800 = vpack.c.b16 %v6769, %v6768
        %v6801 = vpack.c.b16 %v6771, %v6770
        %v6802 = vpack.c.b16 %v6773, %v6772
        %v6803 = vpack.c.b16 %v6775, %v6774
        %v6804 = vpack.c.b16 %v6777, %v6776
        %v6805 = vpack.c.b16 %v6779, %v6778
        %v6806 = vpack.c.b16 %v6781, %v6780
        %v6807 = vpack.c.b16 %v6783, %v6782
        %v6808 = vpack.c.b16 %v6785, %v6784
        %v6809 = vpack.c.b16 %v6787, %v6786
        %v6810 = vpack.c.b16 %v6789, %v6788
        %v6811 = vpack.c.b16 %v6791, %v6790
        %v6812 = vpack.c.b16 %v6793, %v6792
        %v6813 = vpack.c.b16 %v6795, %v6794
        %v6814 = vpack.c.b16 %v6797, %v6796
        %v6815 = vpack.c.b16 %v6799, %v6798
        %6832 = vmatprep.subr.bf16.mxu0 0
        %6833 = vmatpush1.bf16.msra.mxu0 %v6800
        %6834 = vmatprep.subr.bf16.mxu0 0
        %6835 = vmatpush1.bf16.msra.mxu0 %v6801
        %6836 = vmatprep.subr.bf16.mxu0 0
        %6837 = vmatpush1.bf16.msra.mxu0 %v6802
        %6838 = vmatprep.subr.bf16.mxu0 0
        %6839 = vmatpush1.bf16.msra.mxu0 %v6803
        %6840 = vmatprep.subr.bf16.mxu0 0
        %6841 = vmatpush1.bf16.msra.mxu0 %v6804
        %6842 = vmatprep.subr.bf16.mxu0 0
        %6843 = vmatpush1.bf16.msra.mxu0 %v6805
        %6844 = vmatprep.subr.bf16.mxu0 0
        %6845 = vmatpush1.bf16.msra.mxu0 %v6806
        %6846 = vmatprep.subr.bf16.mxu0 0
        %6847 = vmatpush1.bf16.msra.mxu0 %v6807
        %6848 = vmatprep.subr.bf16.mxu0 0
        %6849 = vmatpush1.bf16.msra.mxu0 %v6808
        %6850 = vmatprep.subr.bf16.mxu0 0
        %6851 = vmatpush1.bf16.msra.mxu0 %v6809
        %6852 = vmatprep.subr.bf16.mxu0 0
        %6853 = vmatpush1.bf16.msra.mxu0 %v6810
        %6854 = vmatprep.subr.bf16.mxu0 0
        %6855 = vmatpush1.bf16.msra.mxu0 %v6811
        %6856 = vmatprep.subr.bf16.mxu0 0
        %6857 = vmatpush1.bf16.msra.mxu0 %v6812
        %6858 = vmatprep.subr.bf16.mxu0 0
        %6859 = vmatpush1.bf16.msra.mxu0 %v6813
        %6860 = vmatprep.subr.bf16.mxu0 0
        %6861 = vmatpush1.bf16.msra.mxu0 %v6814
        %6862 = vmatprep.subr.bf16.mxu0 0
        %6863 = vmatpush1.bf16.msra.mxu0 %v6815
        %6864 = vmatprep.mubr.bf16.mxu0 %v6702
        %6865 = vmatmul.mubr.bf16.gmra.mrb[0].mxu0 %v6701
        %v6866 = vpop.f32.mrb[0].mxu0
        %v6867 = vadd.f32 0.0, %v6866
        %v6868 = vpop.f32.mrb[0].mxu0
        %v6869 = vpop.f32.mrb[0].mxu0
        %v6870 = vpop.f32.mrb[0].mxu0
        %6871 = vdwg.mxu0
        %v6872 = vadd.f32 %v6654, %v6867
        %v6873 = vld [vmem:[%s15] sm:$0x1]
        %v6875 = vlaneseq
        %v6876 = vshrl.u32 %v6875, 7
        %v6877 = vsub.s32 0, %v6876
        %v6878 = vrot.slane %v6873, %v6877
        %v6880 = vadd.f32 %v6872, %v6878
        %6881 = vst [vmem:[%s628] sm:$0xf] %v6880
        %s6882 = sand.u32 %s384, 1
        %s6883 = scalar_lea.sflag [#allocation4], %s6882
        %s6884 = sand.u32 %s384, 1
        %s6885 = smul.addr %s6884, 4
        %s6886 = scalar_lea.vmem [#allocation16], %s6885
        // Predicated region
        $region117: #{ae_classifier_forward.1} parent=83 // pred_check
          %p6887 = pneg %p394
        $region118: #{ae_classifier_forward.1} parent=83 // pred_check_branch
          %6889 = sbr.rel (%p6887) target = $region120
        $region119: #{ae_classifier_forward.1} parent=83 // pred_region
          %s6891 = ssub.s32 64, 64
          %6892 = vsyncadd %s6883, %s6891
          %s6893 = smul.addr %s35, 64
          %s6894 = scalar_lea.hbm %s16, %s6893
          %s6896 = sshll.u32 %s6886, 4
          %s6897 = int_to_ptr.vmem [resolvable:$true] %s6896
          %6899 = dma.vmem_to_hbm [thread:$0]  %s6897, 64, %s6894, %s6883
        $region120: #{ae_classifier_forward.1} parent=83 // pred_fallthru
          _
      $region84: #{ae_classifier_forward.1} parent=5 // pred_fallthru
        _
      %p6900 = scmp.le.s32.totalorder 2, %s30
      // Predicated region
      $region121: #{ae_classifier_forward.1} parent=5 // pred_check
        %p6901 = pneg %p6900
      $region122: #{ae_classifier_forward.1} parent=5 // pred_check_branch
        %6903 = sbr.rel (%p6901) target = $region124
      $region123: #{ae_classifier_forward.1} parent=5 // pred_region
        %s6904 = ssub.s32 %s30, 2
        // Predicated region
        $region125: #{ae_classifier_forward.1} parent=123 // pred_check
          %p6905 = pneg %p400
        $region126: #{ae_classifier_forward.1} parent=123 // pred_check_branch
          %6907 = sbr.rel (%p6905) target = $region128
        $region127: #{ae_classifier_forward.1} parent=123 // pred_region
          %s6908 = sand.u32 %s385, 1
          %s6909 = scalar_lea.sflag [#allocation4], %s6908
          %s6910 = sand.u32 %s385, 1
          %s6911 = smul.addr %s6910, 4
          %s6912 = scalar_lea.vmem [#allocation16], %s6911
          %6913 = dma.done %s6909, 64
        $region128: #{ae_classifier_forward.1} parent=123 // pred_fallthru
          _
      $region124: #{ae_classifier_forward.1} parent=5 // pred_fallthru
        _
    $region6: #{ae_classifier_forward.1} parent=1 // loop_footer
      %s34 = sadd.s32 1, %s30
    $region7: #{ae_classifier_forward.1} parent=1 // loop_footer_branch
      %29 = sbr.rel target = $region3
    $region8: #{ae_classifier_forward.1} parent=1 // loop_exit
      _
    %6914 = vsyncpa [#allocation3], 1
    %s6915 = scalar_lea.sflag [#allocation3], 1
    %6916 = vsyncpa %s6915, 1
    %6917 = vsyncpa [#allocation6], 1
    %6918 = vsyncpa [#allocation9], 1
    %6919 = vsyncpa [#allocation12], 1
    %6920 = vsyncpa [#allocation15], 1
    %6921 = vsyncpa [#allocation4], 1
    %s6922 = scalar_lea.sflag [#allocation4], 1
    %6923 = vsyncpa %s6922, 1

</llo_original>
